<compile_context>
chip_gen: v7x
topology: tpu7x:2x2x1
jax: 0.10.0
libtpu: 0.0.40
codegen_flags: <defaults>
</compile_context>

<pallas_src>
import functools

import numpy as np

import jax
import jax.numpy as jnp
from jax.experimental import pallas as pl
from jax.experimental.pallas import tpu as pltpu


# ----------------------------------------------------------------------------
# Fused autoregressive GRU decode kernel (all T-1 steps in one kernel body).
#   inputs : onehot0 [BT,V] f32, emb_gates [V,3H] bf16, rep_gates [BT,3H] f32,
#            (w_ih_l bf16, b_ih_l f32) for l=1..L-1,
#            (w_hh_l bf16, b_hh_l f32) for l=0..L-1,
#            w_out [H,V] bf16, b_out [1,V] f32
#   output : logits [T-1, BT, V] f32 (lane-dense, V % 128 == 0)
#   state  : hidden (L x [BT,H] f32) + one-hot feedback ([BT,V] f32) carried
#            as fori_loop carry values (vregs), NOT VMEM scratch.
# ----------------------------------------------------------------------------
def _gru_decoder_kernel(*refs, L, H, V, BT, n_steps):
    onehot0_ref, emb_gates_ref, rep_gates_ref = refs[0], refs[1], refs[2]
    pos = 3
    w_ih, b_ih = [None], [None]
    for _ in range(1, L):
        w_ih.append(refs[pos]); b_ih.append(refs[pos + 1]); pos += 2
    w_hh, b_hh = [], []
    for _ in range(L):
        w_hh.append(refs[pos]); b_hh.append(refs[pos + 1]); pos += 2
    w_out_ref, b_out_ref = refs[pos], refs[pos + 1]; pos += 2
    logits_ref = refs[pos]

    iota_v = jax.lax.broadcasted_iota(jnp.int32, (BT, V), 1)

    def step(i, carry):
        hs, oh = carry                                   # hs: L x [BT,H] f32

        # Hidden-side gate projections for ALL layers, hoisted off the serial
        # layer chain (depend only on the previous step's hidden state).
        gh = [jnp.dot(hs[l].astype(jnp.bfloat16), w_hh[l][...],
                      preferred_element_type=jnp.float32) + b_hh[l][...]
              for l in range(L)]

        # Layer-0 input gates: one-hot lookup through the pre-projected
        # embedding table (MXU gather) + step-constant representation term.
        gx = (jnp.dot(oh.astype(jnp.bfloat16), emb_gates_ref[...],
                      preferred_element_type=jnp.float32)
              + rep_gates_ref[...])                                   # [BT,3H]

        new_hs = []
        x = None
        for l in range(L):
            if l > 0:
                gx = (jnp.dot(x.astype(jnp.bfloat16), w_ih[l][...],
                              preferred_element_type=jnp.float32)
                      + b_ih[l][...])
            # PyTorch GRU gate order: r, z, n (lane-aligned slices, H%128==0)
            r = jax.nn.sigmoid(gx[:, 0 * H:1 * H] + gh[l][:, 0 * H:1 * H])
            z = jax.nn.sigmoid(gx[:, 1 * H:2 * H] + gh[l][:, 1 * H:2 * H])
            n = jnp.tanh(gx[:, 2 * H:3 * H] + r * gh[l][:, 2 * H:3 * H])
            h_new = (1.0 - z) * n + z * hs[l]
            new_hs.append(h_new)
            x = h_new

        logits = (jnp.dot(x.astype(jnp.bfloat16), w_out_ref[...],
                          preferred_element_type=jnp.float32)
                  + b_out_ref[...])                                   # [BT,V]
        logits_ref[i] = logits

        # greedy feedback: first maximal index (matches jnp.argmax tie-break)
        mx = jnp.max(logits, axis=-1, keepdims=True)
        pred = jnp.min(jnp.where(logits == mx, iota_v, V),
                       axis=-1, keepdims=True)                        # [BT,1]
        oh_new = jnp.where(iota_v == pred, 1.0, 0.0)                  # [BT,V]
        return (tuple(new_hs), oh_new)

    carry0 = (tuple(jnp.zeros((BT, H), jnp.float32) for _ in range(L)),
              onehot0_ref[...])
    unroll = n_steps if n_steps <= 8 else 2      # serial chain: big unroll only
    jax.lax.fori_loop(0, n_steps, step, carry0, unroll=unroll)


def _round_up(x, m):
    return (x + m - 1) // m * m


# ----------------------------------------------------------------------------
# Full forward pass (PRETRAIN, eval mode).
# ----------------------------------------------------------------------------
def gru_decoder_forward(params, seq, hidden, repr_hidden, num_layers):
    B, T = seq.shape
    V, E = params["embedding"].shape
    H = hidden
    pad = params["padding_idx"]
    n_steps = T - 1
    hi = jax.lax.Precision.HIGHEST

    assert H % 128 == 0 and V % 128 == 0, \
        "lane-aligned gate slices / lane-dense logits assume H,V % 128 == 0"

    # Pad batch to a multiple of 8 sublanes; tile batch for the grid.
    B_pad = _round_up(max(B, 8), 8)
    if B_pad <= 256:
        BT = B_pad
    else:
        BT = 256
        B_pad = _round_up(B, BT)
    n_btiles = B_pad // BT
    seq_pad = jnp.pad(seq, ((0, B_pad - B), (0, 0)), constant_values=pad)

    # representation = Linear(Embedding(seq).mean(1))   (input_dropout = id)
    # Tiny op -> plain jnp in the wrapper (no dedicated pallas_call).
    emb_seq = params["embedding"][seq_pad]                    # [B_pad, T, E]
    representation = (jnp.dot(emb_seq.mean(axis=1), params["w_rep"],
                              precision=hi) + params["b_rep"])        # [B_pad,R]

    # Hoisted layer-0 input projections (one big GEMM + step-constant term).
    g0 = params["gru"][0]
    emb_gates = jnp.dot(params["embedding"], g0["w_ih"][:E, :],
                        precision=hi).astype(jnp.bfloat16)            # [V,3H]
    rep_gates = (jnp.dot(representation, g0["w_ih"][E:, :], precision=hi)
                 + g0["b_ih"])                                        # [B_pad,3H]
    onehot0 = (seq_pad[:, 0:1] ==
               jnp.arange(V, dtype=seq_pad.dtype)[None, :]).astype(jnp.float32)

    inputs = [onehot0, emb_gates, rep_gates]
    in_specs = [
        pl.BlockSpec((BT, V), lambda b: (b, 0)),        # onehot0
        pl.BlockSpec((V, 3 * H), lambda b: (0, 0)),     # emb_gates (bf16)
        pl.BlockSpec((BT, 3 * H), lambda b: (b, 0)),    # rep_gates
    ]
    for l in range(1, num_layers):
        inputs += [params["gru"][l]["w_ih"].astype(jnp.bfloat16),
                   params["gru"][l]["b_ih"]]
        in_specs += [pl.BlockSpec((H, 3 * H), lambda b: (0, 0)),
                     pl.BlockSpec((1, 3 * H), lambda b: (0, 0))]
    for l in range(num_layers):
        inputs += [params["gru"][l]["w_hh"].astype(jnp.bfloat16),
                   params["gru"][l]["b_hh"]]
        in_specs += [pl.BlockSpec((H, 3 * H), lambda b: (0, 0)),
                     pl.BlockSpec((1, 3 * H), lambda b: (0, 0))]
    inputs += [params["w_out"].astype(jnp.bfloat16), params["b_out"]]
    in_specs += [pl.BlockSpec((H, V), lambda b: (0, 0)),
                 pl.BlockSpec((1, V), lambda b: (0, 0))]

    kernel = functools.partial(_gru_decoder_kernel, L=num_layers, H=H, V=V,
                               BT=BT, n_steps=n_steps)
    logits_tbv = pl.pallas_call(
        kernel,
        out_shape=jax.ShapeDtypeStruct((n_steps, B_pad, V), jnp.float32),
        grid=(n_btiles,),
        in_specs=in_specs,
        out_specs=pl.BlockSpec((n_steps, BT, V), lambda b: (0, b, 0)),
        compiler_params=pltpu.CompilerParams(
            dimension_semantics=("parallel",),        # batch tiles -> 2 TCs on v7x
            vmem_limit_bytes=32 * 1024 * 1024),
    )(*inputs)

    logits_tbv = logits_tbv[:, :B, :]                          # drop pad rows
    preds_tb = jnp.argmax(logits_tbv, axis=-1)                 # [T-1, B] i32
    predictions = jnp.transpose(preds_tb)                      # [B, T-1]

    # losses (glue): computed directly on the (T-1, B, V) kernel layout
    # (layout-agnostic reductions; no extra HBM pass over the large tensor).
    labels_tb = jnp.transpose(seq[:, 1:])                      # [T-1, B]
    flat_logits = logits_tbv.reshape(n_steps * B, V)
    flat_labels = labels_tb.reshape(-1)
    lse = jax.nn.logsumexp(flat_logits, axis=-1)
    picked = jnp.take_along_axis(flat_logits, flat_labels[:, None], axis=-1)[:, 0]
    ce = lse - picked
    mask = (flat_labels != pad).astype(jnp.float32)
    loss = jnp.sum(ce * mask)
    log_ppl = jnp.sum(ce * mask) / jnp.maximum(jnp.sum(mask), 1.0)

    logits = jnp.transpose(logits_tbv, (1, 0, 2))              # [B, T-1, V]
    return loss, predictions, log_ppl, logits


# ----------------------------------------------------------------------------
# Deterministic PyTorch-shaped parameter init (stored transposed for x @ W).
# ----------------------------------------------------------------------------
def init_params(key, vocab, embed, hidden, repr_hidden, num_layers,
                padding_idx=0):
    ks = iter(jax.random.split(key, 5 + 4 * num_layers))
    u = lambda k, shape, b: jax.random.uniform(k, shape, jnp.float32, -b, b)

    emb = jax.random.normal(next(ks), (vocab, embed), jnp.float32) * 0.1
    emb = emb.at[padding_idx].set(0.0)            # nn.Embedding(padding_idx=...)

    b_rep = 1.0 / (embed ** 0.5)
    params = {
        "embedding": emb,
        "padding_idx": padding_idx,
        "w_rep": u(next(ks), (embed, repr_hidden), b_rep),   # Linear(E,R) W^T
        "b_rep": u(next(ks), (1, repr_hidden), b_rep),
        "gru": [],
    }
    b_h = 1.0 / (hidden ** 0.5)
    for layer in range(num_layers):
        din = (embed + repr_hidden) if layer == 0 else hidden
        params["gru"].append({
            "w_ih": u(next(ks), (din, 3 * hidden), b_h),     # weight_ih_l{k}^T
            "w_hh": u(next(ks), (hidden, 3 * hidden), b_h),  # weight_hh_l{k}^T
            "b_ih": u(next(ks), (1, 3 * hidden), b_h),
            "b_hh": u(next(ks), (1, 3 * hidden), b_h),
        })
    params["w_out"] = u(next(ks), (hidden, vocab), b_h)      # Linear(H,V) W^T
    params["b_out"] = u(next(ks), (1, vocab), b_h)
    return params


# ----------------------------------------------------------------------------
# Pure-JAX reference with the SAME precision choices as the kernel (bf16 MXU
# operands, f32 accumulation, f32 gate math), teacher-forced with the kernel's
# own predictions so precision jitter cannot compound through the argmax
# feedback.
# ----------------------------------------------------------------------------
def reference_logits(params, seq, kernel_preds, hidden, num_layers):
    B, T = seq.shape
    H = hidden
    V, E = params["embedding"].shape
    hi = jax.lax.Precision.HIGHEST
    emb = params["embedding"]

    def bdot(a, w):
        return jnp.dot(a.astype(jnp.bfloat16), w.astype(jnp.bfloat16),
                       preferred_element_type=jnp.float32)

    rep = jnp.dot(emb[seq].mean(axis=1), params["w_rep"], precision=hi) \
        + params["b_rep"]
    g0 = params["gru"][0]
    emb_gates = jnp.dot(emb, g0["w_ih"][:E, :], precision=hi).astype(jnp.bfloat16)
    rep_gates = jnp.dot(rep, g0["w_ih"][E:, :], precision=hi) + g0["b_ih"]

    h = [jnp.zeros((B, H), jnp.float32) for _ in range(num_layers)]
    tok = seq[:, 0]
    outs = []
    for i in range(T - 1):
        onehot = (tok[:, None] == jnp.arange(V)[None, :]).astype(jnp.float32)
        gx = bdot(onehot, emb_gates) + rep_gates
        x = None
        for l in range(num_layers):
            p = params["gru"][l]
            if l > 0:
                gx = bdot(x, p["w_ih"]) + p["b_ih"]
            gh = bdot(h[l], p["w_hh"]) + p["b_hh"]
            r = jax.nn.sigmoid(gx[:, :H] + gh[:, :H])
            z = jax.nn.sigmoid(gx[:, H:2 * H] + gh[:, H:2 * H])
            n = jnp.tanh(gx[:, 2 * H:] + r * gh[:, 2 * H:])
            h[l] = (1.0 - z) * n + z * h[l]
            x = h[l]
        outs.append(bdot(x, params["w_out"]) + params["b_out"])
        tok = kernel_preds[:, i]
    return jnp.stack(outs, axis=1)                            # [B, T-1, V]


if __name__ == "__main__":
    VOCAB, EMBED, HIDDEN, REPR_HIDDEN, NUM_LAYERS = 128, 32, 128, 64, 2
    B, T = 2, 8
    PAD = 0

    key = jax.random.PRNGKey(0)
    kp, ks = jax.random.split(key)
    params = init_params(kp, VOCAB, EMBED, HIDDEN, REPR_HIDDEN, NUM_LAYERS, PAD)

    seq = jax.random.randint(ks, (B, T), 1, VOCAB, dtype=jnp.int32)
    seq = seq.at[1, 6:].set(PAD)          # padded tail -> exercises ignore_index

    loss, predictions, log_ppl, logits = gru_decoder_forward(
        params, seq, HIDDEN, REPR_HIDDEN, NUM_LAYERS)
    jax.block_until_ready((loss, predictions, log_ppl, logits))

    # shapes / finiteness
    assert predictions.shape == (B, T - 1)
    assert logits.shape == (B, T - 1, VOCAB)
    assert bool(jnp.isfinite(loss)) and bool(jnp.isfinite(log_ppl))
    assert bool(jnp.all(jnp.isfinite(logits)))

    # recurrence math vs. precision-matched plain-JAX reference
    ref = reference_logits(params, seq, predictions, HIDDEN, NUM_LAYERS)
    np.testing.assert_allclose(np.asarray(logits), np.asarray(ref),
                               rtol=2e-3, atol=2e-3)

    print("KERNEL_OK")
</pallas_src>

<mosaic_0001>
module attributes {stable_mosaic.version = 11 : i64} {
  func.func @_gru_decoder_kernel(%arg0: i32, %arg1: memref<8x128xf32, #tpu.memory_space<vmem>>, %arg2: memref<128x384xbf16, #tpu.memory_space<vmem>>, %arg3: memref<8x384xf32, #tpu.memory_space<vmem>>, %arg4: memref<128x384xbf16, #tpu.memory_space<vmem>>, %arg5: memref<1x384xf32, #tpu.memory_space<vmem>>, %arg6: memref<128x384xbf16, #tpu.memory_space<vmem>>, %arg7: memref<1x384xf32, #tpu.memory_space<vmem>>, %arg8: memref<128x384xbf16, #tpu.memory_space<vmem>>, %arg9: memref<1x384xf32, #tpu.memory_space<vmem>>, %arg10: memref<128x128xbf16, #tpu.memory_space<vmem>>, %arg11: memref<1x128xf32, #tpu.memory_space<vmem>>, %arg12: memref<7x8x128xf32, #tpu.memory_space<vmem>>) attributes {dimension_semantics = [#tpu.dimension_semantics<parallel>], iteration_bounds = array<i64: 1>, scalar_prefetch = 0 : i64, scratch_operands = 0 : i64, tpu.core_type = #tpu.core_type<tc>, window_params = [{transform_indices = @transform_0, window_bounds = array<i64: 8, 128>}, {pipeline_mode = #tpu.pipeline_mode<synchronous>, transform_indices = @transform_1, window_bounds = array<i64: 128, 384>}, {transform_indices = @transform_2, window_bounds = array<i64: 8, 384>}, {pipeline_mode = #tpu.pipeline_mode<synchronous>, transform_indices = @transform_3, window_bounds = array<i64: 128, 384>}, {pipeline_mode = #tpu.pipeline_mode<synchronous>, transform_indices = @transform_4, window_bounds = array<i64: 1, 384>}, {pipeline_mode = #tpu.pipeline_mode<synchronous>, transform_indices = @transform_5, window_bounds = array<i64: 128, 384>}, {pipeline_mode = #tpu.pipeline_mode<synchronous>, transform_indices = @transform_6, window_bounds = array<i64: 1, 384>}, {pipeline_mode = #tpu.pipeline_mode<synchronous>, transform_indices = @transform_7, window_bounds = array<i64: 128, 384>}, {pipeline_mode = #tpu.pipeline_mode<synchronous>, transform_indices = @transform_8, window_bounds = array<i64: 1, 384>}, {pipeline_mode = #tpu.pipeline_mode<synchronous>, transform_indices = @transform_9, window_bounds = array<i64: 128, 128>}, {pipeline_mode = #tpu.pipeline_mode<synchronous>, transform_indices = @transform_10, window_bounds = array<i64: 1, 128>}, {transform_indices = @transform_11, window_bounds = array<i64: 7, 8, 128>}]} {
    %0 = tpu.iota {dimensions = array<i32: 1>} : vector<8x128xi32>
    %cst = arith.constant 0.000000e+00 : f32
    %1 = vector.broadcast %cst : f32 to vector<8x128xf32>
    %cst_0 = arith.constant 0.000000e+00 : f32
    %2 = vector.broadcast %cst_0 : f32 to vector<8x128xf32>
    %c0 = arith.constant 0 : index
    %c0_1 = arith.constant 0 : index
    %3 = vector.load %arg1[%c0, %c0_1] : memref<8x128xf32, #tpu.memory_space<vmem>>, vector<8x128xf32>
    %c0_i32 = arith.constant 0 : i32
    %4 = arith.truncf %1 : vector<8x128xf32> to vector<8x128xbf16>
    %c0_2 = arith.constant 0 : index
    %c0_3 = arith.constant 0 : index
    %5 = vector.load %arg6[%c0_2, %c0_3] : memref<128x384xbf16, #tpu.memory_space<vmem>>, vector<128x384xbf16>
    %cst_4 = arith.constant dense<0.000000e+00> : vector<8x384xf32>
    %6 = tpu.matmul %4, %5, %cst_4 {dimension_numbers = #tpu.dot_dimension_numbers<[1], [0], [0], [1], [0, 0, 1, 1], [], []>} : vector<8x128xbf16>, vector<128x384xbf16>, vector<8x384xf32> -> vector<8x384xf32>
    %c0_5 = arith.constant 0 : index
    %c0_6 = arith.constant 0 : index
    %7 = vector.load %arg7[%c0_5, %c0_6] : memref<1x384xf32, #tpu.memory_space<vmem>>, vector<1x384xf32>
    %8 = vector.broadcast %7 : vector<1x384xf32> to vector<8x384xf32>
    %9 = arith.addf %6, %8 : vector<8x384xf32>
    %10 = arith.truncf %2 : vector<8x128xf32> to vector<8x128xbf16>
    %c0_7 = arith.constant 0 : index
    %c0_8 = arith.constant 0 : index
    %11 = vector.load %arg8[%c0_7, %c0_8] : memref<128x384xbf16, #tpu.memory_space<vmem>>, vector<128x384xbf16>
    %cst_9 = arith.constant dense<0.000000e+00> : vector<8x384xf32>
    %12 = tpu.matmul %10, %11, %cst_9 {dimension_numbers = #tpu.dot_dimension_numbers<[1], [0], [0], [1], [0, 0, 1, 1], [], []>} : vector<8x128xbf16>, vector<128x384xbf16>, vector<8x384xf32> -> vector<8x384xf32>
    %c0_10 = arith.constant 0 : index
    %c0_11 = arith.constant 0 : index
    %13 = vector.load %arg9[%c0_10, %c0_11] : memref<1x384xf32, #tpu.memory_space<vmem>>, vector<1x384xf32>
    %14 = vector.broadcast %13 : vector<1x384xf32> to vector<8x384xf32>
    %15 = arith.addf %12, %14 : vector<8x384xf32>
    %16 = arith.truncf %3 : vector<8x128xf32> to vector<8x128xbf16>
    %c0_12 = arith.constant 0 : index
    %c0_13 = arith.constant 0 : index
    %17 = vector.load %arg2[%c0_12, %c0_13] : memref<128x384xbf16, #tpu.memory_space<vmem>>, vector<128x384xbf16>
    %cst_14 = arith.constant dense<0.000000e+00> : vector<8x384xf32>
    %18 = tpu.matmul %16, %17, %cst_14 {dimension_numbers = #tpu.dot_dimension_numbers<[1], [0], [0], [1], [0, 0, 1, 1], [], []>} : vector<8x128xbf16>, vector<128x384xbf16>, vector<8x384xf32> -> vector<8x384xf32>
    %c0_15 = arith.constant 0 : index
    %c0_16 = arith.constant 0 : index
    %19 = vector.load %arg3[%c0_15, %c0_16] : memref<8x384xf32, #tpu.memory_space<vmem>>, vector<8x384xf32>
    %20 = arith.addf %18, %19 : vector<8x384xf32>
    %21 = vector.extract_strided_slice %20 {offsets = [0, 0], sizes = [8, 128], strides = [1, 1]} : vector<8x384xf32> to vector<8x128xf32>
    %22 = vector.extract_strided_slice %9 {offsets = [0, 0], sizes = [8, 128], strides = [1, 1]} : vector<8x384xf32> to vector<8x128xf32>
    %23 = arith.addf %21, %22 : vector<8x128xf32>
    %24 = arith.negf %23 : vector<8x128xf32>
    %25 = math.exp %24 : vector<8x128xf32>
    %cst_17 = arith.constant 1.000000e+00 : f32
    %26 = vector.broadcast %cst_17 : f32 to vector<8x128xf32>
    %27 = arith.addf %26, %25 : vector<8x128xf32>
    %28 = arith.divf %26, %27 : vector<8x128xf32>
    %29 = vector.extract_strided_slice %20 {offsets = [0, 128], sizes = [8, 128], strides = [1, 1]} : vector<8x384xf32> to vector<8x128xf32>
    %30 = vector.extract_strided_slice %9 {offsets = [0, 128], sizes = [8, 128], strides = [1, 1]} : vector<8x384xf32> to vector<8x128xf32>
    %31 = arith.addf %29, %30 : vector<8x128xf32>
    %32 = arith.negf %31 : vector<8x128xf32>
    %33 = math.exp %32 : vector<8x128xf32>
    %cst_18 = arith.constant 1.000000e+00 : f32
    %34 = vector.broadcast %cst_18 : f32 to vector<8x128xf32>
    %35 = arith.addf %34, %33 : vector<8x128xf32>
    %36 = arith.divf %34, %35 : vector<8x128xf32>
    %37 = vector.extract_strided_slice %20 {offsets = [0, 256], sizes = [8, 128], strides = [1, 1]} : vector<8x384xf32> to vector<8x128xf32>
    %38 = vector.extract_strided_slice %9 {offsets = [0, 256], sizes = [8, 128], strides = [1, 1]} : vector<8x384xf32> to vector<8x128xf32>
    %39 = arith.mulf %28, %38 : vector<8x128xf32>
    %40 = arith.addf %37, %39 : vector<8x128xf32>
    %41 = math.tanh %40 : vector<8x128xf32>
    %cst_19 = arith.constant 1.000000e+00 : f32
    %42 = vector.broadcast %cst_19 : f32 to vector<8x128xf32>
    %43 = arith.subf %42, %36 : vector<8x128xf32>
    %44 = arith.mulf %43, %41 : vector<8x128xf32>
    %45 = arith.mulf %36, %1 : vector<8x128xf32>
    %46 = arith.addf %44, %45 : vector<8x128xf32>
    %47 = arith.truncf %46 : vector<8x128xf32> to vector<8x128xbf16>
    %c0_20 = arith.constant 0 : index
    %c0_21 = arith.constant 0 : index
    %48 = vector.load %arg4[%c0_20, %c0_21] : memref<128x384xbf16, #tpu.memory_space<vmem>>, vector<128x384xbf16>
    %cst_22 = arith.constant dense<0.000000e+00> : vector<8x384xf32>
    %49 = tpu.matmul %47, %48, %cst_22 {dimension_numbers = #tpu.dot_dimension_numbers<[1], [0], [0], [1], [0, 0, 1, 1], [], []>} : vector<8x128xbf16>, vector<128x384xbf16>, vector<8x384xf32> -> vector<8x384xf32>
    %c0_23 = arith.constant 0 : index
    %c0_24 = arith.constant 0 : index
    %50 = vector.load %arg5[%c0_23, %c0_24] : memref<1x384xf32, #tpu.memory_space<vmem>>, vector<1x384xf32>
    %51 = vector.broadcast %50 : vector<1x384xf32> to vector<8x384xf32>
    %52 = arith.addf %49, %51 : vector<8x384xf32>
    %53 = vector.extract_strided_slice %52 {offsets = [0, 0], sizes = [8, 128], strides = [1, 1]} : vector<8x384xf32> to vector<8x128xf32>
    %54 = vector.extract_strided_slice %15 {offsets = [0, 0], sizes = [8, 128], strides = [1, 1]} : vector<8x384xf32> to vector<8x128xf32>
    %55 = arith.addf %53, %54 : vector<8x128xf32>
    %56 = arith.negf %55 : vector<8x128xf32>
    %57 = math.exp %56 : vector<8x128xf32>
    %cst_25 = arith.constant 1.000000e+00 : f32
    %58 = vector.broadcast %cst_25 : f32 to vector<8x128xf32>
    %59 = arith.addf %58, %57 : vector<8x128xf32>
    %60 = arith.divf %58, %59 : vector<8x128xf32>
    %61 = vector.extract_strided_slice %52 {offsets = [0, 128], sizes = [8, 128], strides = [1, 1]} : vector<8x384xf32> to vector<8x128xf32>
    %62 = vector.extract_strided_slice %15 {offsets = [0, 128], sizes = [8, 128], strides = [1, 1]} : vector<8x384xf32> to vector<8x128xf32>
    %63 = arith.addf %61, %62 : vector<8x128xf32>
    %64 = arith.negf %63 : vector<8x128xf32>
    %65 = math.exp %64 : vector<8x128xf32>
    %cst_26 = arith.constant 1.000000e+00 : f32
    %66 = vector.broadcast %cst_26 : f32 to vector<8x128xf32>
    %67 = arith.addf %66, %65 : vector<8x128xf32>
    %68 = arith.divf %66, %67 : vector<8x128xf32>
    %69 = vector.extract_strided_slice %52 {offsets = [0, 256], sizes = [8, 128], strides = [1, 1]} : vector<8x384xf32> to vector<8x128xf32>
    %70 = vector.extract_strided_slice %15 {offsets = [0, 256], sizes = [8, 128], strides = [1, 1]} : vector<8x384xf32> to vector<8x128xf32>
    %71 = arith.mulf %60, %70 : vector<8x128xf32>
    %72 = arith.addf %69, %71 : vector<8x128xf32>
    %73 = math.tanh %72 : vector<8x128xf32>
    %cst_27 = arith.constant 1.000000e+00 : f32
    %74 = vector.broadcast %cst_27 : f32 to vector<8x128xf32>
    %75 = arith.subf %74, %68 : vector<8x128xf32>
    %76 = arith.mulf %75, %73 : vector<8x128xf32>
    %77 = arith.mulf %68, %2 : vector<8x128xf32>
    %78 = arith.addf %76, %77 : vector<8x128xf32>
    %79 = arith.truncf %78 : vector<8x128xf32> to vector<8x128xbf16>
    %c0_28 = arith.constant 0 : index
    %c0_29 = arith.constant 0 : index
    %80 = vector.load %arg10[%c0_28, %c0_29] : memref<128x128xbf16, #tpu.memory_space<vmem>>, vector<128x128xbf16>
    %cst_30 = arith.constant dense<0.000000e+00> : vector<8x128xf32>
    %81 = tpu.matmul %79, %80, %cst_30 {dimension_numbers = #tpu.dot_dimension_numbers<[1], [0], [0], [1], [0, 0, 1, 1], [], []>} : vector<8x128xbf16>, vector<128x128xbf16>, vector<8x128xf32> -> vector<8x128xf32>
    %c0_31 = arith.constant 0 : index
    %c0_32 = arith.constant 0 : index
    %82 = vector.load %arg11[%c0_31, %c0_32] : memref<1x128xf32, #tpu.memory_space<vmem>>, vector<1x128xf32>
    %83 = vector.broadcast %82 : vector<1x128xf32> to vector<8x128xf32>
    %84 = arith.addf %81, %83 : vector<8x128xf32>
    %85 = arith.index_cast %c0_i32 : i32 to index
    %c0_33 = arith.constant 0 : index
    %c0_34 = arith.constant 0 : index
    %86 = vector.load %arg12[%85, %c0_33, %c0_34] : memref<7x8x128xf32, #tpu.memory_space<vmem>>, vector<1x8x128xf32>
    %87 = vector.shape_cast %86 : vector<1x8x128xf32> to vector<8x128xf32>
    %88 = vector.shape_cast %84 : vector<8x128xf32> to vector<1x8x128xf32>
    tpu.vector_store %arg12[%85, %c0_33, %c0_34], %88 {strides = array<i32>} : memref<7x8x128xf32, #tpu.memory_space<vmem>>, vector<1x8x128xf32>,
    %cst_35 = arith.constant dense<0xFF800000> : vector<8xf32>
    %89 = vector.multi_reduction <maximumf>, %84, %cst_35 [1] : vector<8x128xf32> to vector<8xf32>
    %90 = vector.shape_cast %89 : vector<8xf32> to vector<8x1xf32>
    %91 = vector.broadcast %90 : vector<8x1xf32> to vector<8x128xf32>
    %92 = arith.cmpf oeq, %84, %91 : vector<8x128xf32>
    %c128_i32 = arith.constant 128 : i32
    %93 = vector.broadcast %c128_i32 : i32 to vector<8x128xi32>
    %94 = arith.select %92, %0, %93 : vector<8x128xi1>, vector<8x128xi32>
    %cst_36 = arith.constant dense<2147483647> : vector<8xi32>
    %95 = vector.multi_reduction <minsi>, %94, %cst_36 [1] : vector<8x128xi32> to vector<8xi32>
    %96 = vector.shape_cast %95 : vector<8xi32> to vector<8x1xi32>
    %97 = vector.broadcast %96 : vector<8x1xi32> to vector<8x128xi32>
    %98 = arith.cmpi eq, %0, %97 : vector<8x128xi32>
    %cst_37 = arith.constant 1.000000e+00 : f32
    %cst_38 = arith.constant 0.000000e+00 : f32
    %99 = vector.broadcast %cst_37 : f32 to vector<8x128xf32>
    %100 = vector.broadcast %cst_38 : f32 to vector<8x128xf32>
    %101 = arith.select %98, %99, %100 : vector<8x128xi1>, vector<8x128xf32>
    %c1_i32 = arith.constant 1 : i32
    %102 = arith.truncf %46 : vector<8x128xf32> to vector<8x128xbf16>
    %c0_39 = arith.constant 0 : index
    %c0_40 = arith.constant 0 : index
    %103 = vector.load %arg6[%c0_39, %c0_40] : memref<128x384xbf16, #tpu.memory_space<vmem>>, vector<128x384xbf16>
    %cst_41 = arith.constant dense<0.000000e+00> : vector<8x384xf32>
    %104 = tpu.matmul %102, %103, %cst_41 {dimension_numbers = #tpu.dot_dimension_numbers<[1], [0], [0], [1], [0, 0, 1, 1], [], []>} : vector<8x128xbf16>, vector<128x384xbf16>, vector<8x384xf32> -> vector<8x384xf32>
    %c0_42 = arith.constant 0 : index
    %c0_43 = arith.constant 0 : index
    %105 = vector.load %arg7[%c0_42, %c0_43] : memref<1x384xf32, #tpu.memory_space<vmem>>, vector<1x384xf32>
    %106 = vector.broadcast %105 : vector<1x384xf32> to vector<8x384xf32>
    %107 = arith.addf %104, %106 : vector<8x384xf32>
    %108 = arith.truncf %78 : vector<8x128xf32> to vector<8x128xbf16>
    %c0_44 = arith.constant 0 : index
    %c0_45 = arith.constant 0 : index
    %109 = vector.load %arg8[%c0_44, %c0_45] : memref<128x384xbf16, #tpu.memory_space<vmem>>, vector<128x384xbf16>
    %cst_46 = arith.constant dense<0.000000e+00> : vector<8x384xf32>
    %110 = tpu.matmul %108, %109, %cst_46 {dimension_numbers = #tpu.dot_dimension_numbers<[1], [0], [0], [1], [0, 0, 1, 1], [], []>} : vector<8x128xbf16>, vector<128x384xbf16>, vector<8x384xf32> -> vector<8x384xf32>
    %c0_47 = arith.constant 0 : index
    %c0_48 = arith.constant 0 : index
    %111 = vector.load %arg9[%c0_47, %c0_48] : memref<1x384xf32, #tpu.memory_space<vmem>>, vector<1x384xf32>
    %112 = vector.broadcast %111 : vector<1x384xf32> to vector<8x384xf32>
    %113 = arith.addf %110, %112 : vector<8x384xf32>
    %114 = arith.truncf %101 : vector<8x128xf32> to vector<8x128xbf16>
    %c0_49 = arith.constant 0 : index
    %c0_50 = arith.constant 0 : index
    %115 = vector.load %arg2[%c0_49, %c0_50] : memref<128x384xbf16, #tpu.memory_space<vmem>>, vector<128x384xbf16>
    %cst_51 = arith.constant dense<0.000000e+00> : vector<8x384xf32>
    %116 = tpu.matmul %114, %115, %cst_51 {dimension_numbers = #tpu.dot_dimension_numbers<[1], [0], [0], [1], [0, 0, 1, 1], [], []>} : vector<8x128xbf16>, vector<128x384xbf16>, vector<8x384xf32> -> vector<8x384xf32>
    %c0_52 = arith.constant 0 : index
    %c0_53 = arith.constant 0 : index
    %117 = vector.load %arg3[%c0_52, %c0_53] : memref<8x384xf32, #tpu.memory_space<vmem>>, vector<8x384xf32>
    %118 = arith.addf %116, %117 : vector<8x384xf32>
    %119 = vector.extract_strided_slice %118 {offsets = [0, 0], sizes = [8, 128], strides = [1, 1]} : vector<8x384xf32> to vector<8x128xf32>
    %120 = vector.extract_strided_slice %107 {offsets = [0, 0], sizes = [8, 128], strides = [1, 1]} : vector<8x384xf32> to vector<8x128xf32>
    %121 = arith.addf %119, %120 : vector<8x128xf32>
    %122 = arith.negf %121 : vector<8x128xf32>
    %123 = math.exp %122 : vector<8x128xf32>
    %cst_54 = arith.constant 1.000000e+00 : f32
    %124 = vector.broadcast %cst_54 : f32 to vector<8x128xf32>
    %125 = arith.addf %124, %123 : vector<8x128xf32>
    %126 = arith.divf %124, %125 : vector<8x128xf32>
    %127 = vector.extract_strided_slice %118 {offsets = [0, 128], sizes = [8, 128], strides = [1, 1]} : vector<8x384xf32> to vector<8x128xf32>
    %128 = vector.extract_strided_slice %107 {offsets = [0, 128], sizes = [8, 128], strides = [1, 1]} : vector<8x384xf32> to vector<8x128xf32>
    %129 = arith.addf %127, %128 : vector<8x128xf32>
    %130 = arith.negf %129 : vector<8x128xf32>
    %131 = math.exp %130 : vector<8x128xf32>
    %cst_55 = arith.constant 1.000000e+00 : f32
    %132 = vector.broadcast %cst_55 : f32 to vector<8x128xf32>
    %133 = arith.addf %132, %131 : vector<8x128xf32>
    %134 = arith.divf %132, %133 : vector<8x128xf32>
    %135 = vector.extract_strided_slice %118 {offsets = [0, 256], sizes = [8, 128], strides = [1, 1]} : vector<8x384xf32> to vector<8x128xf32>
    %136 = vector.extract_strided_slice %107 {offsets = [0, 256], sizes = [8, 128], strides = [1, 1]} : vector<8x384xf32> to vector<8x128xf32>
    %137 = arith.mulf %126, %136 : vector<8x128xf32>
    %138 = arith.addf %135, %137 : vector<8x128xf32>
    %139 = math.tanh %138 : vector<8x128xf32>
    %cst_56 = arith.constant 1.000000e+00 : f32
    %140 = vector.broadcast %cst_56 : f32 to vector<8x128xf32>
    %141 = arith.subf %140, %134 : vector<8x128xf32>
    %142 = arith.mulf %141, %139 : vector<8x128xf32>
    %143 = arith.mulf %134, %46 : vector<8x128xf32>
    %144 = arith.addf %142, %143 : vector<8x128xf32>
    %145 = arith.truncf %144 : vector<8x128xf32> to vector<8x128xbf16>
    %c0_57 = arith.constant 0 : index
    %c0_58 = arith.constant 0 : index
    %146 = vector.load %arg4[%c0_57, %c0_58] : memref<128x384xbf16, #tpu.memory_space<vmem>>, vector<128x384xbf16>
    %cst_59 = arith.constant dense<0.000000e+00> : vector<8x384xf32>
    %147 = tpu.matmul %145, %146, %cst_59 {dimension_numbers = #tpu.dot_dimension_numbers<[1], [0], [0], [1], [0, 0, 1, 1], [], []>} : vector<8x128xbf16>, vector<128x384xbf16>, vector<8x384xf32> -> vector<8x384xf32>
    %c0_60 = arith.constant 0 : index
    %c0_61 = arith.constant 0 : index
    %148 = vector.load %arg5[%c0_60, %c0_61] : memref<1x384xf32, #tpu.memory_space<vmem>>, vector<1x384xf32>
    %149 = vector.broadcast %148 : vector<1x384xf32> to vector<8x384xf32>
    %150 = arith.addf %147, %149 : vector<8x384xf32>
    %151 = vector.extract_strided_slice %150 {offsets = [0, 0], sizes = [8, 128], strides = [1, 1]} : vector<8x384xf32> to vector<8x128xf32>
    %152 = vector.extract_strided_slice %113 {offsets = [0, 0], sizes = [8, 128], strides = [1, 1]} : vector<8x384xf32> to vector<8x128xf32>
    %153 = arith.addf %151, %152 : vector<8x128xf32>
    %154 = arith.negf %153 : vector<8x128xf32>
    %155 = math.exp %154 : vector<8x128xf32>
    %cst_62 = arith.constant 1.000000e+00 : f32
    %156 = vector.broadcast %cst_62 : f32 to vector<8x128xf32>
    %157 = arith.addf %156, %155 : vector<8x128xf32>
    %158 = arith.divf %156, %157 : vector<8x128xf32>
    %159 = vector.extract_strided_slice %150 {offsets = [0, 128], sizes = [8, 128], strides = [1, 1]} : vector<8x384xf32> to vector<8x128xf32>
    %160 = vector.extract_strided_slice %113 {offsets = [0, 128], sizes = [8, 128], strides = [1, 1]} : vector<8x384xf32> to vector<8x128xf32>
    %161 = arith.addf %159, %160 : vector<8x128xf32>
    %162 = arith.negf %161 : vector<8x128xf32>
    %163 = math.exp %162 : vector<8x128xf32>
    %cst_63 = arith.constant 1.000000e+00 : f32
    %164 = vector.broadcast %cst_63 : f32 to vector<8x128xf32>
    %165 = arith.addf %164, %163 : vector<8x128xf32>
    %166 = arith.divf %164, %165 : vector<8x128xf32>
    %167 = vector.extract_strided_slice %150 {offsets = [0, 256], sizes = [8, 128], strides = [1, 1]} : vector<8x384xf32> to vector<8x128xf32>
    %168 = vector.extract_strided_slice %113 {offsets = [0, 256], sizes = [8, 128], strides = [1, 1]} : vector<8x384xf32> to vector<8x128xf32>
    %169 = arith.mulf %158, %168 : vector<8x128xf32>
    %170 = arith.addf %167, %169 : vector<8x128xf32>
    %171 = math.tanh %170 : vector<8x128xf32>
    %cst_64 = arith.constant 1.000000e+00 : f32
    %172 = vector.broadcast %cst_64 : f32 to vector<8x128xf32>
    %173 = arith.subf %172, %166 : vector<8x128xf32>
    %174 = arith.mulf %173, %171 : vector<8x128xf32>
    %175 = arith.mulf %166, %78 : vector<8x128xf32>
    %176 = arith.addf %174, %175 : vector<8x128xf32>
    %177 = arith.truncf %176 : vector<8x128xf32> to vector<8x128xbf16>
    %c0_65 = arith.constant 0 : index
    %c0_66 = arith.constant 0 : index
    %178 = vector.load %arg10[%c0_65, %c0_66] : memref<128x128xbf16, #tpu.memory_space<vmem>>, vector<128x128xbf16>
    %cst_67 = arith.constant dense<0.000000e+00> : vector<8x128xf32>
    %179 = tpu.matmul %177, %178, %cst_67 {dimension_numbers = #tpu.dot_dimension_numbers<[1], [0], [0], [1], [0, 0, 1, 1], [], []>} : vector<8x128xbf16>, vector<128x128xbf16>, vector<8x128xf32> -> vector<8x128xf32>
    %c0_68 = arith.constant 0 : index
    %c0_69 = arith.constant 0 : index
    %180 = vector.load %arg11[%c0_68, %c0_69] : memref<1x128xf32, #tpu.memory_space<vmem>>, vector<1x128xf32>
    %181 = vector.broadcast %180 : vector<1x128xf32> to vector<8x128xf32>
    %182 = arith.addf %179, %181 : vector<8x128xf32>
    %183 = arith.index_cast %c1_i32 : i32 to index
    %c0_70 = arith.constant 0 : index
    %c0_71 = arith.constant 0 : index
    %184 = vector.load %arg12[%183, %c0_70, %c0_71] : memref<7x8x128xf32, #tpu.memory_space<vmem>>, vector<1x8x128xf32>
    %185 = vector.shape_cast %184 : vector<1x8x128xf32> to vector<8x128xf32>
    %186 = vector.shape_cast %182 : vector<8x128xf32> to vector<1x8x128xf32>
    tpu.vector_store %arg12[%183, %c0_70, %c0_71], %186 {strides = array<i32>} : memref<7x8x128xf32, #tpu.memory_space<vmem>>, vector<1x8x128xf32>,
    %cst_72 = arith.constant dense<0xFF800000> : vector<8xf32>
    %187 = vector.multi_reduction <maximumf>, %182, %cst_72 [1] : vector<8x128xf32> to vector<8xf32>
    %188 = vector.shape_cast %187 : vector<8xf32> to vector<8x1xf32>
    %189 = vector.broadcast %188 : vector<8x1xf32> to vector<8x128xf32>
    %190 = arith.cmpf oeq, %182, %189 : vector<8x128xf32>
    %c128_i32_73 = arith.constant 128 : i32
    %191 = vector.broadcast %c128_i32_73 : i32 to vector<8x128xi32>
    %192 = arith.select %190, %0, %191 : vector<8x128xi1>, vector<8x128xi32>
    %cst_74 = arith.constant dense<2147483647> : vector<8xi32>
    %193 = vector.multi_reduction <minsi>, %192, %cst_74 [1] : vector<8x128xi32> to vector<8xi32>
    %194 = vector.shape_cast %193 : vector<8xi32> to vector<8x1xi32>
    %195 = vector.broadcast %194 : vector<8x1xi32> to vector<8x128xi32>
    %196 = arith.cmpi eq, %0, %195 : vector<8x128xi32>
    %cst_75 = arith.constant 1.000000e+00 : f32
    %cst_76 = arith.constant 0.000000e+00 : f32
    %197 = vector.broadcast %cst_75 : f32 to vector<8x128xf32>
    %198 = vector.broadcast %cst_76 : f32 to vector<8x128xf32>
    %199 = arith.select %196, %197, %198 : vector<8x128xi1>, vector<8x128xf32>
    %c2_i32 = arith.constant 2 : i32
    %200 = arith.truncf %144 : vector<8x128xf32> to vector<8x128xbf16>
    %c0_77 = arith.constant 0 : index
    %c0_78 = arith.constant 0 : index
    %201 = vector.load %arg6[%c0_77, %c0_78] : memref<128x384xbf16, #tpu.memory_space<vmem>>, vector<128x384xbf16>
    %cst_79 = arith.constant dense<0.000000e+00> : vector<8x384xf32>
    %202 = tpu.matmul %200, %201, %cst_79 {dimension_numbers = #tpu.dot_dimension_numbers<[1], [0], [0], [1], [0, 0, 1, 1], [], []>} : vector<8x128xbf16>, vector<128x384xbf16>, vector<8x384xf32> -> vector<8x384xf32>
    %c0_80 = arith.constant 0 : index
    %c0_81 = arith.constant 0 : index
    %203 = vector.load %arg7[%c0_80, %c0_81] : memref<1x384xf32, #tpu.memory_space<vmem>>, vector<1x384xf32>
    %204 = vector.broadcast %203 : vector<1x384xf32> to vector<8x384xf32>
    %205 = arith.addf %202, %204 : vector<8x384xf32>
    %206 = arith.truncf %176 : vector<8x128xf32> to vector<8x128xbf16>
    %c0_82 = arith.constant 0 : index
    %c0_83 = arith.constant 0 : index
    %207 = vector.load %arg8[%c0_82, %c0_83] : memref<128x384xbf16, #tpu.memory_space<vmem>>, vector<128x384xbf16>
    %cst_84 = arith.constant dense<0.000000e+00> : vector<8x384xf32>
    %208 = tpu.matmul %206, %207, %cst_84 {dimension_numbers = #tpu.dot_dimension_numbers<[1], [0], [0], [1], [0, 0, 1, 1], [], []>} : vector<8x128xbf16>, vector<128x384xbf16>, vector<8x384xf32> -> vector<8x384xf32>
    %c0_85 = arith.constant 0 : index
    %c0_86 = arith.constant 0 : index
    %209 = vector.load %arg9[%c0_85, %c0_86] : memref<1x384xf32, #tpu.memory_space<vmem>>, vector<1x384xf32>
    %210 = vector.broadcast %209 : vector<1x384xf32> to vector<8x384xf32>
    %211 = arith.addf %208, %210 : vector<8x384xf32>
    %212 = arith.truncf %199 : vector<8x128xf32> to vector<8x128xbf16>
    %c0_87 = arith.constant 0 : index
    %c0_88 = arith.constant 0 : index
    %213 = vector.load %arg2[%c0_87, %c0_88] : memref<128x384xbf16, #tpu.memory_space<vmem>>, vector<128x384xbf16>
    %cst_89 = arith.constant dense<0.000000e+00> : vector<8x384xf32>
    %214 = tpu.matmul %212, %213, %cst_89 {dimension_numbers = #tpu.dot_dimension_numbers<[1], [0], [0], [1], [0, 0, 1, 1], [], []>} : vector<8x128xbf16>, vector<128x384xbf16>, vector<8x384xf32> -> vector<8x384xf32>
    %c0_90 = arith.constant 0 : index
    %c0_91 = arith.constant 0 : index
    %215 = vector.load %arg3[%c0_90, %c0_91] : memref<8x384xf32, #tpu.memory_space<vmem>>, vector<8x384xf32>
    %216 = arith.addf %214, %215 : vector<8x384xf32>
    %217 = vector.extract_strided_slice %216 {offsets = [0, 0], sizes = [8, 128], strides = [1, 1]} : vector<8x384xf32> to vector<8x128xf32>
    %218 = vector.extract_strided_slice %205 {offsets = [0, 0], sizes = [8, 128], strides = [1, 1]} : vector<8x384xf32> to vector<8x128xf32>
    %219 = arith.addf %217, %218 : vector<8x128xf32>
    %220 = arith.negf %219 : vector<8x128xf32>
    %221 = math.exp %220 : vector<8x128xf32>
    %cst_92 = arith.constant 1.000000e+00 : f32
    %222 = vector.broadcast %cst_92 : f32 to vector<8x128xf32>
    %223 = arith.addf %222, %221 : vector<8x128xf32>
    %224 = arith.divf %222, %223 : vector<8x128xf32>
    %225 = vector.extract_strided_slice %216 {offsets = [0, 128], sizes = [8, 128], strides = [1, 1]} : vector<8x384xf32> to vector<8x128xf32>
    %226 = vector.extract_strided_slice %205 {offsets = [0, 128], sizes = [8, 128], strides = [1, 1]} : vector<8x384xf32> to vector<8x128xf32>
    %227 = arith.addf %225, %226 : vector<8x128xf32>
    %228 = arith.negf %227 : vector<8x128xf32>
    %229 = math.exp %228 : vector<8x128xf32>
    %cst_93 = arith.constant 1.000000e+00 : f32
    %230 = vector.broadcast %cst_93 : f32 to vector<8x128xf32>
    %231 = arith.addf %230, %229 : vector<8x128xf32>
    %232 = arith.divf %230, %231 : vector<8x128xf32>
    %233 = vector.extract_strided_slice %216 {offsets = [0, 256], sizes = [8, 128], strides = [1, 1]} : vector<8x384xf32> to vector<8x128xf32>
    %234 = vector.extract_strided_slice %205 {offsets = [0, 256], sizes = [8, 128], strides = [1, 1]} : vector<8x384xf32> to vector<8x128xf32>
    %235 = arith.mulf %224, %234 : vector<8x128xf32>
    %236 = arith.addf %233, %235 : vector<8x128xf32>
    %237 = math.tanh %236 : vector<8x128xf32>
    %cst_94 = arith.constant 1.000000e+00 : f32
    %238 = vector.broadcast %cst_94 : f32 to vector<8x128xf32>
    %239 = arith.subf %238, %232 : vector<8x128xf32>
    %240 = arith.mulf %239, %237 : vector<8x128xf32>
    %241 = arith.mulf %232, %144 : vector<8x128xf32>
    %242 = arith.addf %240, %241 : vector<8x128xf32>
    %243 = arith.truncf %242 : vector<8x128xf32> to vector<8x128xbf16>
    %c0_95 = arith.constant 0 : index
    %c0_96 = arith.constant 0 : index
    %244 = vector.load %arg4[%c0_95, %c0_96] : memref<128x384xbf16, #tpu.memory_space<vmem>>, vector<128x384xbf16>
    %cst_97 = arith.constant dense<0.000000e+00> : vector<8x384xf32>
    %245 = tpu.matmul %243, %244, %cst_97 {dimension_numbers = #tpu.dot_dimension_numbers<[1], [0], [0], [1], [0, 0, 1, 1], [], []>} : vector<8x128xbf16>, vector<128x384xbf16>, vector<8x384xf32> -> vector<8x384xf32>
    %c0_98 = arith.constant 0 : index
    %c0_99 = arith.constant 0 : index
    %246 = vector.load %arg5[%c0_98, %c0_99] : memref<1x384xf32, #tpu.memory_space<vmem>>, vector<1x384xf32>
    %247 = vector.broadcast %246 : vector<1x384xf32> to vector<8x384xf32>
    %248 = arith.addf %245, %247 : vector<8x384xf32>
    %249 = vector.extract_strided_slice %248 {offsets = [0, 0], sizes = [8, 128], strides = [1, 1]} : vector<8x384xf32> to vector<8x128xf32>
    %250 = vector.extract_strided_slice %211 {offsets = [0, 0], sizes = [8, 128], strides = [1, 1]} : vector<8x384xf32> to vector<8x128xf32>
    %251 = arith.addf %249, %250 : vector<8x128xf32>
    %252 = arith.negf %251 : vector<8x128xf32>
    %253 = math.exp %252 : vector<8x128xf32>
    %cst_100 = arith.constant 1.000000e+00 : f32
    %254 = vector.broadcast %cst_100 : f32 to vector<8x128xf32>
    %255 = arith.addf %254, %253 : vector<8x128xf32>
    %256 = arith.divf %254, %255 : vector<8x128xf32>
    %257 = vector.extract_strided_slice %248 {offsets = [0, 128], sizes = [8, 128], strides = [1, 1]} : vector<8x384xf32> to vector<8x128xf32>
    %258 = vector.extract_strided_slice %211 {offsets = [0, 128], sizes = [8, 128], strides = [1, 1]} : vector<8x384xf32> to vector<8x128xf32>
    %259 = arith.addf %257, %258 : vector<8x128xf32>
    %260 = arith.negf %259 : vector<8x128xf32>
    %261 = math.exp %260 : vector<8x128xf32>
    %cst_101 = arith.constant 1.000000e+00 : f32
    %262 = vector.broadcast %cst_101 : f32 to vector<8x128xf32>
    %263 = arith.addf %262, %261 : vector<8x128xf32>
    %264 = arith.divf %262, %263 : vector<8x128xf32>
    %265 = vector.extract_strided_slice %248 {offsets = [0, 256], sizes = [8, 128], strides = [1, 1]} : vector<8x384xf32> to vector<8x128xf32>
    %266 = vector.extract_strided_slice %211 {offsets = [0, 256], sizes = [8, 128], strides = [1, 1]} : vector<8x384xf32> to vector<8x128xf32>
    %267 = arith.mulf %256, %266 : vector<8x128xf32>
    %268 = arith.addf %265, %267 : vector<8x128xf32>
    %269 = math.tanh %268 : vector<8x128xf32>
    %cst_102 = arith.constant 1.000000e+00 : f32
    %270 = vector.broadcast %cst_102 : f32 to vector<8x128xf32>
    %271 = arith.subf %270, %264 : vector<8x128xf32>
    %272 = arith.mulf %271, %269 : vector<8x128xf32>
    %273 = arith.mulf %264, %176 : vector<8x128xf32>
    %274 = arith.addf %272, %273 : vector<8x128xf32>
    %275 = arith.truncf %274 : vector<8x128xf32> to vector<8x128xbf16>
    %c0_103 = arith.constant 0 : index
    %c0_104 = arith.constant 0 : index
    %276 = vector.load %arg10[%c0_103, %c0_104] : memref<128x128xbf16, #tpu.memory_space<vmem>>, vector<128x128xbf16>
    %cst_105 = arith.constant dense<0.000000e+00> : vector<8x128xf32>
    %277 = tpu.matmul %275, %276, %cst_105 {dimension_numbers = #tpu.dot_dimension_numbers<[1], [0], [0], [1], [0, 0, 1, 1], [], []>} : vector<8x128xbf16>, vector<128x128xbf16>, vector<8x128xf32> -> vector<8x128xf32>
    %c0_106 = arith.constant 0 : index
    %c0_107 = arith.constant 0 : index
    %278 = vector.load %arg11[%c0_106, %c0_107] : memref<1x128xf32, #tpu.memory_space<vmem>>, vector<1x128xf32>
    %279 = vector.broadcast %278 : vector<1x128xf32> to vector<8x128xf32>
    %280 = arith.addf %277, %279 : vector<8x128xf32>
    %281 = arith.index_cast %c2_i32 : i32 to index
    %c0_108 = arith.constant 0 : index
    %c0_109 = arith.constant 0 : index
    %282 = vector.load %arg12[%281, %c0_108, %c0_109] : memref<7x8x128xf32, #tpu.memory_space<vmem>>, vector<1x8x128xf32>
    %283 = vector.shape_cast %282 : vector<1x8x128xf32> to vector<8x128xf32>
    %284 = vector.shape_cast %280 : vector<8x128xf32> to vector<1x8x128xf32>
    tpu.vector_store %arg12[%281, %c0_108, %c0_109], %284 {strides = array<i32>} : memref<7x8x128xf32, #tpu.memory_space<vmem>>, vector<1x8x128xf32>,
    %cst_110 = arith.constant dense<0xFF800000> : vector<8xf32>
    %285 = vector.multi_reduction <maximumf>, %280, %cst_110 [1] : vector<8x128xf32> to vector<8xf32>
    %286 = vector.shape_cast %285 : vector<8xf32> to vector<8x1xf32>
    %287 = vector.broadcast %286 : vector<8x1xf32> to vector<8x128xf32>
    %288 = arith.cmpf oeq, %280, %287 : vector<8x128xf32>
    %c128_i32_111 = arith.constant 128 : i32
    %289 = vector.broadcast %c128_i32_111 : i32 to vector<8x128xi32>
    %290 = arith.select %288, %0, %289 : vector<8x128xi1>, vector<8x128xi32>
    %cst_112 = arith.constant dense<2147483647> : vector<8xi32>
    %291 = vector.multi_reduction <minsi>, %290, %cst_112 [1] : vector<8x128xi32> to vector<8xi32>
    %292 = vector.shape_cast %291 : vector<8xi32> to vector<8x1xi32>
    %293 = vector.broadcast %292 : vector<8x1xi32> to vector<8x128xi32>
    %294 = arith.cmpi eq, %0, %293 : vector<8x128xi32>
    %cst_113 = arith.constant 1.000000e+00 : f32
    %cst_114 = arith.constant 0.000000e+00 : f32
    %295 = vector.broadcast %cst_113 : f32 to vector<8x128xf32>
    %296 = vector.broadcast %cst_114 : f32 to vector<8x128xf32>
    %297 = arith.select %294, %295, %296 : vector<8x128xi1>, vector<8x128xf32>
    %c3_i32 = arith.constant 3 : i32
    %298 = arith.truncf %242 : vector<8x128xf32> to vector<8x128xbf16>
    %c0_115 = arith.constant 0 : index
    %c0_116 = arith.constant 0 : index
    %299 = vector.load %arg6[%c0_115, %c0_116] : memref<128x384xbf16, #tpu.memory_space<vmem>>, vector<128x384xbf16>
    %cst_117 = arith.constant dense<0.000000e+00> : vector<8x384xf32>
    %300 = tpu.matmul %298, %299, %cst_117 {dimension_numbers = #tpu.dot_dimension_numbers<[1], [0], [0], [1], [0, 0, 1, 1], [], []>} : vector<8x128xbf16>, vector<128x384xbf16>, vector<8x384xf32> -> vector<8x384xf32>
    %c0_118 = arith.constant 0 : index
    %c0_119 = arith.constant 0 : index
    %301 = vector.load %arg7[%c0_118, %c0_119] : memref<1x384xf32, #tpu.memory_space<vmem>>, vector<1x384xf32>
    %302 = vector.broadcast %301 : vector<1x384xf32> to vector<8x384xf32>
    %303 = arith.addf %300, %302 : vector<8x384xf32>
    %304 = arith.truncf %274 : vector<8x128xf32> to vector<8x128xbf16>
    %c0_120 = arith.constant 0 : index
    %c0_121 = arith.constant 0 : index
    %305 = vector.load %arg8[%c0_120, %c0_121] : memref<128x384xbf16, #tpu.memory_space<vmem>>, vector<128x384xbf16>
    %cst_122 = arith.constant dense<0.000000e+00> : vector<8x384xf32>
    %306 = tpu.matmul %304, %305, %cst_122 {dimension_numbers = #tpu.dot_dimension_numbers<[1], [0], [0], [1], [0, 0, 1, 1], [], []>} : vector<8x128xbf16>, vector<128x384xbf16>, vector<8x384xf32> -> vector<8x384xf32>
    %c0_123 = arith.constant 0 : index
    %c0_124 = arith.constant 0 : index
    %307 = vector.load %arg9[%c0_123, %c0_124] : memref<1x384xf32, #tpu.memory_space<vmem>>, vector<1x384xf32>
    %308 = vector.broadcast %307 : vector<1x384xf32> to vector<8x384xf32>
    %309 = arith.addf %306, %308 : vector<8x384xf32>
    %310 = arith.truncf %297 : vector<8x128xf32> to vector<8x128xbf16>
    %c0_125 = arith.constant 0 : index
    %c0_126 = arith.constant 0 : index
    %311 = vector.load %arg2[%c0_125, %c0_126] : memref<128x384xbf16, #tpu.memory_space<vmem>>, vector<128x384xbf16>
    %cst_127 = arith.constant dense<0.000000e+00> : vector<8x384xf32>
    %312 = tpu.matmul %310, %311, %cst_127 {dimension_numbers = #tpu.dot_dimension_numbers<[1], [0], [0], [1], [0, 0, 1, 1], [], []>} : vector<8x128xbf16>, vector<128x384xbf16>, vector<8x384xf32> -> vector<8x384xf32>
    %c0_128 = arith.constant 0 : index
    %c0_129 = arith.constant 0 : index
    %313 = vector.load %arg3[%c0_128, %c0_129] : memref<8x384xf32, #tpu.memory_space<vmem>>, vector<8x384xf32>
    %314 = arith.addf %312, %313 : vector<8x384xf32>
    %315 = vector.extract_strided_slice %314 {offsets = [0, 0], sizes = [8, 128], strides = [1, 1]} : vector<8x384xf32> to vector<8x128xf32>
    %316 = vector.extract_strided_slice %303 {offsets = [0, 0], sizes = [8, 128], strides = [1, 1]} : vector<8x384xf32> to vector<8x128xf32>
    %317 = arith.addf %315, %316 : vector<8x128xf32>
    %318 = arith.negf %317 : vector<8x128xf32>
    %319 = math.exp %318 : vector<8x128xf32>
    %cst_130 = arith.constant 1.000000e+00 : f32
    %320 = vector.broadcast %cst_130 : f32 to vector<8x128xf32>
    %321 = arith.addf %320, %319 : vector<8x128xf32>
    %322 = arith.divf %320, %321 : vector<8x128xf32>
    %323 = vector.extract_strided_slice %314 {offsets = [0, 128], sizes = [8, 128], strides = [1, 1]} : vector<8x384xf32> to vector<8x128xf32>
    %324 = vector.extract_strided_slice %303 {offsets = [0, 128], sizes = [8, 128], strides = [1, 1]} : vector<8x384xf32> to vector<8x128xf32>
    %325 = arith.addf %323, %324 : vector<8x128xf32>
    %326 = arith.negf %325 : vector<8x128xf32>
    %327 = math.exp %326 : vector<8x128xf32>
    %cst_131 = arith.constant 1.000000e+00 : f32
    %328 = vector.broadcast %cst_131 : f32 to vector<8x128xf32>
    %329 = arith.addf %328, %327 : vector<8x128xf32>
    %330 = arith.divf %328, %329 : vector<8x128xf32>
    %331 = vector.extract_strided_slice %314 {offsets = [0, 256], sizes = [8, 128], strides = [1, 1]} : vector<8x384xf32> to vector<8x128xf32>
    %332 = vector.extract_strided_slice %303 {offsets = [0, 256], sizes = [8, 128], strides = [1, 1]} : vector<8x384xf32> to vector<8x128xf32>
    %333 = arith.mulf %322, %332 : vector<8x128xf32>
    %334 = arith.addf %331, %333 : vector<8x128xf32>
    %335 = math.tanh %334 : vector<8x128xf32>
    %cst_132 = arith.constant 1.000000e+00 : f32
    %336 = vector.broadcast %cst_132 : f32 to vector<8x128xf32>
    %337 = arith.subf %336, %330 : vector<8x128xf32>
    %338 = arith.mulf %337, %335 : vector<8x128xf32>
    %339 = arith.mulf %330, %242 : vector<8x128xf32>
    %340 = arith.addf %338, %339 : vector<8x128xf32>
    %341 = arith.truncf %340 : vector<8x128xf32> to vector<8x128xbf16>
    %c0_133 = arith.constant 0 : index
    %c0_134 = arith.constant 0 : index
    %342 = vector.load %arg4[%c0_133, %c0_134] : memref<128x384xbf16, #tpu.memory_space<vmem>>, vector<128x384xbf16>
    %cst_135 = arith.constant dense<0.000000e+00> : vector<8x384xf32>
    %343 = tpu.matmul %341, %342, %cst_135 {dimension_numbers = #tpu.dot_dimension_numbers<[1], [0], [0], [1], [0, 0, 1, 1], [], []>} : vector<8x128xbf16>, vector<128x384xbf16>, vector<8x384xf32> -> vector<8x384xf32>
    %c0_136 = arith.constant 0 : index
    %c0_137 = arith.constant 0 : index
    %344 = vector.load %arg5[%c0_136, %c0_137] : memref<1x384xf32, #tpu.memory_space<vmem>>, vector<1x384xf32>
    %345 = vector.broadcast %344 : vector<1x384xf32> to vector<8x384xf32>
    %346 = arith.addf %343, %345 : vector<8x384xf32>
    %347 = vector.extract_strided_slice %346 {offsets = [0, 0], sizes = [8, 128], strides = [1, 1]} : vector<8x384xf32> to vector<8x128xf32>
    %348 = vector.extract_strided_slice %309 {offsets = [0, 0], sizes = [8, 128], strides = [1, 1]} : vector<8x384xf32> to vector<8x128xf32>
    %349 = arith.addf %347, %348 : vector<8x128xf32>
    %350 = arith.negf %349 : vector<8x128xf32>
    %351 = math.exp %350 : vector<8x128xf32>
    %cst_138 = arith.constant 1.000000e+00 : f32
    %352 = vector.broadcast %cst_138 : f32 to vector<8x128xf32>
    %353 = arith.addf %352, %351 : vector<8x128xf32>
    %354 = arith.divf %352, %353 : vector<8x128xf32>
    %355 = vector.extract_strided_slice %346 {offsets = [0, 128], sizes = [8, 128], strides = [1, 1]} : vector<8x384xf32> to vector<8x128xf32>
    %356 = vector.extract_strided_slice %309 {offsets = [0, 128], sizes = [8, 128], strides = [1, 1]} : vector<8x384xf32> to vector<8x128xf32>
    %357 = arith.addf %355, %356 : vector<8x128xf32>
    %358 = arith.negf %357 : vector<8x128xf32>
    %359 = math.exp %358 : vector<8x128xf32>
    %cst_139 = arith.constant 1.000000e+00 : f32
    %360 = vector.broadcast %cst_139 : f32 to vector<8x128xf32>
    %361 = arith.addf %360, %359 : vector<8x128xf32>
    %362 = arith.divf %360, %361 : vector<8x128xf32>
    %363 = vector.extract_strided_slice %346 {offsets = [0, 256], sizes = [8, 128], strides = [1, 1]} : vector<8x384xf32> to vector<8x128xf32>
    %364 = vector.extract_strided_slice %309 {offsets = [0, 256], sizes = [8, 128], strides = [1, 1]} : vector<8x384xf32> to vector<8x128xf32>
    %365 = arith.mulf %354, %364 : vector<8x128xf32>
    %366 = arith.addf %363, %365 : vector<8x128xf32>
    %367 = math.tanh %366 : vector<8x128xf32>
    %cst_140 = arith.constant 1.000000e+00 : f32
    %368 = vector.broadcast %cst_140 : f32 to vector<8x128xf32>
    %369 = arith.subf %368, %362 : vector<8x128xf32>
    %370 = arith.mulf %369, %367 : vector<8x128xf32>
    %371 = arith.mulf %362, %274 : vector<8x128xf32>
    %372 = arith.addf %370, %371 : vector<8x128xf32>
    %373 = arith.truncf %372 : vector<8x128xf32> to vector<8x128xbf16>
    %c0_141 = arith.constant 0 : index
    %c0_142 = arith.constant 0 : index
    %374 = vector.load %arg10[%c0_141, %c0_142] : memref<128x128xbf16, #tpu.memory_space<vmem>>, vector<128x128xbf16>
    %cst_143 = arith.constant dense<0.000000e+00> : vector<8x128xf32>
    %375 = tpu.matmul %373, %374, %cst_143 {dimension_numbers = #tpu.dot_dimension_numbers<[1], [0], [0], [1], [0, 0, 1, 1], [], []>} : vector<8x128xbf16>, vector<128x128xbf16>, vector<8x128xf32> -> vector<8x128xf32>
    %c0_144 = arith.constant 0 : index
    %c0_145 = arith.constant 0 : index
    %376 = vector.load %arg11[%c0_144, %c0_145] : memref<1x128xf32, #tpu.memory_space<vmem>>, vector<1x128xf32>
    %377 = vector.broadcast %376 : vector<1x128xf32> to vector<8x128xf32>
    %378 = arith.addf %375, %377 : vector<8x128xf32>
    %379 = arith.index_cast %c3_i32 : i32 to index
    %c0_146 = arith.constant 0 : index
    %c0_147 = arith.constant 0 : index
    %380 = vector.load %arg12[%379, %c0_146, %c0_147] : memref<7x8x128xf32, #tpu.memory_space<vmem>>, vector<1x8x128xf32>
    %381 = vector.shape_cast %380 : vector<1x8x128xf32> to vector<8x128xf32>
    %382 = vector.shape_cast %378 : vector<8x128xf32> to vector<1x8x128xf32>
    tpu.vector_store %arg12[%379, %c0_146, %c0_147], %382 {strides = array<i32>} : memref<7x8x128xf32, #tpu.memory_space<vmem>>, vector<1x8x128xf32>,
    %cst_148 = arith.constant dense<0xFF800000> : vector<8xf32>
    %383 = vector.multi_reduction <maximumf>, %378, %cst_148 [1] : vector<8x128xf32> to vector<8xf32>
    %384 = vector.shape_cast %383 : vector<8xf32> to vector<8x1xf32>
    %385 = vector.broadcast %384 : vector<8x1xf32> to vector<8x128xf32>
    %386 = arith.cmpf oeq, %378, %385 : vector<8x128xf32>
    %c128_i32_149 = arith.constant 128 : i32
    %387 = vector.broadcast %c128_i32_149 : i32 to vector<8x128xi32>
    %388 = arith.select %386, %0, %387 : vector<8x128xi1>, vector<8x128xi32>
    %cst_150 = arith.constant dense<2147483647> : vector<8xi32>
    %389 = vector.multi_reduction <minsi>, %388, %cst_150 [1] : vector<8x128xi32> to vector<8xi32>
    %390 = vector.shape_cast %389 : vector<8xi32> to vector<8x1xi32>
    %391 = vector.broadcast %390 : vector<8x1xi32> to vector<8x128xi32>
    %392 = arith.cmpi eq, %0, %391 : vector<8x128xi32>
    %cst_151 = arith.constant 1.000000e+00 : f32
    %cst_152 = arith.constant 0.000000e+00 : f32
    %393 = vector.broadcast %cst_151 : f32 to vector<8x128xf32>
    %394 = vector.broadcast %cst_152 : f32 to vector<8x128xf32>
    %395 = arith.select %392, %393, %394 : vector<8x128xi1>, vector<8x128xf32>
    %c4_i32 = arith.constant 4 : i32
    %396 = arith.truncf %340 : vector<8x128xf32> to vector<8x128xbf16>
    %c0_153 = arith.constant 0 : index
    %c0_154 = arith.constant 0 : index
    %397 = vector.load %arg6[%c0_153, %c0_154] : memref<128x384xbf16, #tpu.memory_space<vmem>>, vector<128x384xbf16>
    %cst_155 = arith.constant dense<0.000000e+00> : vector<8x384xf32>
    %398 = tpu.matmul %396, %397, %cst_155 {dimension_numbers = #tpu.dot_dimension_numbers<[1], [0], [0], [1], [0, 0, 1, 1], [], []>} : vector<8x128xbf16>, vector<128x384xbf16>, vector<8x384xf32> -> vector<8x384xf32>
    %c0_156 = arith.constant 0 : index
    %c0_157 = arith.constant 0 : index
    %399 = vector.load %arg7[%c0_156, %c0_157] : memref<1x384xf32, #tpu.memory_space<vmem>>, vector<1x384xf32>
    %400 = vector.broadcast %399 : vector<1x384xf32> to vector<8x384xf32>
    %401 = arith.addf %398, %400 : vector<8x384xf32>
    %402 = arith.truncf %372 : vector<8x128xf32> to vector<8x128xbf16>
    %c0_158 = arith.constant 0 : index
    %c0_159 = arith.constant 0 : index
    %403 = vector.load %arg8[%c0_158, %c0_159] : memref<128x384xbf16, #tpu.memory_space<vmem>>, vector<128x384xbf16>
    %cst_160 = arith.constant dense<0.000000e+00> : vector<8x384xf32>
    %404 = tpu.matmul %402, %403, %cst_160 {dimension_numbers = #tpu.dot_dimension_numbers<[1], [0], [0], [1], [0, 0, 1, 1], [], []>} : vector<8x128xbf16>, vector<128x384xbf16>, vector<8x384xf32> -> vector<8x384xf32>
    %c0_161 = arith.constant 0 : index
    %c0_162 = arith.constant 0 : index
    %405 = vector.load %arg9[%c0_161, %c0_162] : memref<1x384xf32, #tpu.memory_space<vmem>>, vector<1x384xf32>
    %406 = vector.broadcast %405 : vector<1x384xf32> to vector<8x384xf32>
    %407 = arith.addf %404, %406 : vector<8x384xf32>
    %408 = arith.truncf %395 : vector<8x128xf32> to vector<8x128xbf16>
    %c0_163 = arith.constant 0 : index
    %c0_164 = arith.constant 0 : index
    %409 = vector.load %arg2[%c0_163, %c0_164] : memref<128x384xbf16, #tpu.memory_space<vmem>>, vector<128x384xbf16>
    %cst_165 = arith.constant dense<0.000000e+00> : vector<8x384xf32>
    %410 = tpu.matmul %408, %409, %cst_165 {dimension_numbers = #tpu.dot_dimension_numbers<[1], [0], [0], [1], [0, 0, 1, 1], [], []>} : vector<8x128xbf16>, vector<128x384xbf16>, vector<8x384xf32> -> vector<8x384xf32>
    %c0_166 = arith.constant 0 : index
    %c0_167 = arith.constant 0 : index
    %411 = vector.load %arg3[%c0_166, %c0_167] : memref<8x384xf32, #tpu.memory_space<vmem>>, vector<8x384xf32>
    %412 = arith.addf %410, %411 : vector<8x384xf32>
    %413 = vector.extract_strided_slice %412 {offsets = [0, 0], sizes = [8, 128], strides = [1, 1]} : vector<8x384xf32> to vector<8x128xf32>
    %414 = vector.extract_strided_slice %401 {offsets = [0, 0], sizes = [8, 128], strides = [1, 1]} : vector<8x384xf32> to vector<8x128xf32>
    %415 = arith.addf %413, %414 : vector<8x128xf32>
    %416 = arith.negf %415 : vector<8x128xf32>
    %417 = math.exp %416 : vector<8x128xf32>
    %cst_168 = arith.constant 1.000000e+00 : f32
    %418 = vector.broadcast %cst_168 : f32 to vector<8x128xf32>
    %419 = arith.addf %418, %417 : vector<8x128xf32>
    %420 = arith.divf %418, %419 : vector<8x128xf32>
    %421 = vector.extract_strided_slice %412 {offsets = [0, 128], sizes = [8, 128], strides = [1, 1]} : vector<8x384xf32> to vector<8x128xf32>
    %422 = vector.extract_strided_slice %401 {offsets = [0, 128], sizes = [8, 128], strides = [1, 1]} : vector<8x384xf32> to vector<8x128xf32>
    %423 = arith.addf %421, %422 : vector<8x128xf32>
    %424 = arith.negf %423 : vector<8x128xf32>
    %425 = math.exp %424 : vector<8x128xf32>
    %cst_169 = arith.constant 1.000000e+00 : f32
    %426 = vector.broadcast %cst_169 : f32 to vector<8x128xf32>
    %427 = arith.addf %426, %425 : vector<8x128xf32>
    %428 = arith.divf %426, %427 : vector<8x128xf32>
    %429 = vector.extract_strided_slice %412 {offsets = [0, 256], sizes = [8, 128], strides = [1, 1]} : vector<8x384xf32> to vector<8x128xf32>
    %430 = vector.extract_strided_slice %401 {offsets = [0, 256], sizes = [8, 128], strides = [1, 1]} : vector<8x384xf32> to vector<8x128xf32>
    %431 = arith.mulf %420, %430 : vector<8x128xf32>
    %432 = arith.addf %429, %431 : vector<8x128xf32>
    %433 = math.tanh %432 : vector<8x128xf32>
    %cst_170 = arith.constant 1.000000e+00 : f32
    %434 = vector.broadcast %cst_170 : f32 to vector<8x128xf32>
    %435 = arith.subf %434, %428 : vector<8x128xf32>
    %436 = arith.mulf %435, %433 : vector<8x128xf32>
    %437 = arith.mulf %428, %340 : vector<8x128xf32>
    %438 = arith.addf %436, %437 : vector<8x128xf32>
    %439 = arith.truncf %438 : vector<8x128xf32> to vector<8x128xbf16>
    %c0_171 = arith.constant 0 : index
    %c0_172 = arith.constant 0 : index
    %440 = vector.load %arg4[%c0_171, %c0_172] : memref<128x384xbf16, #tpu.memory_space<vmem>>, vector<128x384xbf16>
    %cst_173 = arith.constant dense<0.000000e+00> : vector<8x384xf32>
    %441 = tpu.matmul %439, %440, %cst_173 {dimension_numbers = #tpu.dot_dimension_numbers<[1], [0], [0], [1], [0, 0, 1, 1], [], []>} : vector<8x128xbf16>, vector<128x384xbf16>, vector<8x384xf32> -> vector<8x384xf32>
    %c0_174 = arith.constant 0 : index
    %c0_175 = arith.constant 0 : index
    %442 = vector.load %arg5[%c0_174, %c0_175] : memref<1x384xf32, #tpu.memory_space<vmem>>, vector<1x384xf32>
    %443 = vector.broadcast %442 : vector<1x384xf32> to vector<8x384xf32>
    %444 = arith.addf %441, %443 : vector<8x384xf32>
    %445 = vector.extract_strided_slice %444 {offsets = [0, 0], sizes = [8, 128], strides = [1, 1]} : vector<8x384xf32> to vector<8x128xf32>
    %446 = vector.extract_strided_slice %407 {offsets = [0, 0], sizes = [8, 128], strides = [1, 1]} : vector<8x384xf32> to vector<8x128xf32>
    %447 = arith.addf %445, %446 : vector<8x128xf32>
    %448 = arith.negf %447 : vector<8x128xf32>
    %449 = math.exp %448 : vector<8x128xf32>
    %cst_176 = arith.constant 1.000000e+00 : f32
    %450 = vector.broadcast %cst_176 : f32 to vector<8x128xf32>
    %451 = arith.addf %450, %449 : vector<8x128xf32>
    %452 = arith.divf %450, %451 : vector<8x128xf32>
    %453 = vector.extract_strided_slice %444 {offsets = [0, 128], sizes = [8, 128], strides = [1, 1]} : vector<8x384xf32> to vector<8x128xf32>
    %454 = vector.extract_strided_slice %407 {offsets = [0, 128], sizes = [8, 128], strides = [1, 1]} : vector<8x384xf32> to vector<8x128xf32>
    %455 = arith.addf %453, %454 : vector<8x128xf32>
    %456 = arith.negf %455 : vector<8x128xf32>
    %457 = math.exp %456 : vector<8x128xf32>
    %cst_177 = arith.constant 1.000000e+00 : f32
    %458 = vector.broadcast %cst_177 : f32 to vector<8x128xf32>
    %459 = arith.addf %458, %457 : vector<8x128xf32>
    %460 = arith.divf %458, %459 : vector<8x128xf32>
    %461 = vector.extract_strided_slice %444 {offsets = [0, 256], sizes = [8, 128], strides = [1, 1]} : vector<8x384xf32> to vector<8x128xf32>
    %462 = vector.extract_strided_slice %407 {offsets = [0, 256], sizes = [8, 128], strides = [1, 1]} : vector<8x384xf32> to vector<8x128xf32>
    %463 = arith.mulf %452, %462 : vector<8x128xf32>
    %464 = arith.addf %461, %463 : vector<8x128xf32>
    %465 = math.tanh %464 : vector<8x128xf32>
    %cst_178 = arith.constant 1.000000e+00 : f32
    %466 = vector.broadcast %cst_178 : f32 to vector<8x128xf32>
    %467 = arith.subf %466, %460 : vector<8x128xf32>
    %468 = arith.mulf %467, %465 : vector<8x128xf32>
    %469 = arith.mulf %460, %372 : vector<8x128xf32>
    %470 = arith.addf %468, %469 : vector<8x128xf32>
    %471 = arith.truncf %470 : vector<8x128xf32> to vector<8x128xbf16>
    %c0_179 = arith.constant 0 : index
    %c0_180 = arith.constant 0 : index
    %472 = vector.load %arg10[%c0_179, %c0_180] : memref<128x128xbf16, #tpu.memory_space<vmem>>, vector<128x128xbf16>
    %cst_181 = arith.constant dense<0.000000e+00> : vector<8x128xf32>
    %473 = tpu.matmul %471, %472, %cst_181 {dimension_numbers = #tpu.dot_dimension_numbers<[1], [0], [0], [1], [0, 0, 1, 1], [], []>} : vector<8x128xbf16>, vector<128x128xbf16>, vector<8x128xf32> -> vector<8x128xf32>
    %c0_182 = arith.constant 0 : index
    %c0_183 = arith.constant 0 : index
    %474 = vector.load %arg11[%c0_182, %c0_183] : memref<1x128xf32, #tpu.memory_space<vmem>>, vector<1x128xf32>
    %475 = vector.broadcast %474 : vector<1x128xf32> to vector<8x128xf32>
    %476 = arith.addf %473, %475 : vector<8x128xf32>
    %477 = arith.index_cast %c4_i32 : i32 to index
    %c0_184 = arith.constant 0 : index
    %c0_185 = arith.constant 0 : index
    %478 = vector.load %arg12[%477, %c0_184, %c0_185] : memref<7x8x128xf32, #tpu.memory_space<vmem>>, vector<1x8x128xf32>
    %479 = vector.shape_cast %478 : vector<1x8x128xf32> to vector<8x128xf32>
    %480 = vector.shape_cast %476 : vector<8x128xf32> to vector<1x8x128xf32>
    tpu.vector_store %arg12[%477, %c0_184, %c0_185], %480 {strides = array<i32>} : memref<7x8x128xf32, #tpu.memory_space<vmem>>, vector<1x8x128xf32>,
    %cst_186 = arith.constant dense<0xFF800000> : vector<8xf32>
    %481 = vector.multi_reduction <maximumf>, %476, %cst_186 [1] : vector<8x128xf32> to vector<8xf32>
    %482 = vector.shape_cast %481 : vector<8xf32> to vector<8x1xf32>
    %483 = vector.broadcast %482 : vector<8x1xf32> to vector<8x128xf32>
    %484 = arith.cmpf oeq, %476, %483 : vector<8x128xf32>
    %c128_i32_187 = arith.constant 128 : i32
    %485 = vector.broadcast %c128_i32_187 : i32 to vector<8x128xi32>
    %486 = arith.select %484, %0, %485 : vector<8x128xi1>, vector<8x128xi32>
    %cst_188 = arith.constant dense<2147483647> : vector<8xi32>
    %487 = vector.multi_reduction <minsi>, %486, %cst_188 [1] : vector<8x128xi32> to vector<8xi32>
    %488 = vector.shape_cast %487 : vector<8xi32> to vector<8x1xi32>
    %489 = vector.broadcast %488 : vector<8x1xi32> to vector<8x128xi32>
    %490 = arith.cmpi eq, %0, %489 : vector<8x128xi32>
    %cst_189 = arith.constant 1.000000e+00 : f32
    %cst_190 = arith.constant 0.000000e+00 : f32
    %491 = vector.broadcast %cst_189 : f32 to vector<8x128xf32>
    %492 = vector.broadcast %cst_190 : f32 to vector<8x128xf32>
    %493 = arith.select %490, %491, %492 : vector<8x128xi1>, vector<8x128xf32>
    %c5_i32 = arith.constant 5 : i32
    %494 = arith.truncf %438 : vector<8x128xf32> to vector<8x128xbf16>
    %c0_191 = arith.constant 0 : index
    %c0_192 = arith.constant 0 : index
    %495 = vector.load %arg6[%c0_191, %c0_192] : memref<128x384xbf16, #tpu.memory_space<vmem>>, vector<128x384xbf16>
    %cst_193 = arith.constant dense<0.000000e+00> : vector<8x384xf32>
    %496 = tpu.matmul %494, %495, %cst_193 {dimension_numbers = #tpu.dot_dimension_numbers<[1], [0], [0], [1], [0, 0, 1, 1], [], []>} : vector<8x128xbf16>, vector<128x384xbf16>, vector<8x384xf32> -> vector<8x384xf32>
    %c0_194 = arith.constant 0 : index
    %c0_195 = arith.constant 0 : index
    %497 = vector.load %arg7[%c0_194, %c0_195] : memref<1x384xf32, #tpu.memory_space<vmem>>, vector<1x384xf32>
    %498 = vector.broadcast %497 : vector<1x384xf32> to vector<8x384xf32>
    %499 = arith.addf %496, %498 : vector<8x384xf32>
    %500 = arith.truncf %470 : vector<8x128xf32> to vector<8x128xbf16>
    %c0_196 = arith.constant 0 : index
    %c0_197 = arith.constant 0 : index
    %501 = vector.load %arg8[%c0_196, %c0_197] : memref<128x384xbf16, #tpu.memory_space<vmem>>, vector<128x384xbf16>
    %cst_198 = arith.constant dense<0.000000e+00> : vector<8x384xf32>
    %502 = tpu.matmul %500, %501, %cst_198 {dimension_numbers = #tpu.dot_dimension_numbers<[1], [0], [0], [1], [0, 0, 1, 1], [], []>} : vector<8x128xbf16>, vector<128x384xbf16>, vector<8x384xf32> -> vector<8x384xf32>
    %c0_199 = arith.constant 0 : index
    %c0_200 = arith.constant 0 : index
    %503 = vector.load %arg9[%c0_199, %c0_200] : memref<1x384xf32, #tpu.memory_space<vmem>>, vector<1x384xf32>
    %504 = vector.broadcast %503 : vector<1x384xf32> to vector<8x384xf32>
    %505 = arith.addf %502, %504 : vector<8x384xf32>
    %506 = arith.truncf %493 : vector<8x128xf32> to vector<8x128xbf16>
    %c0_201 = arith.constant 0 : index
    %c0_202 = arith.constant 0 : index
    %507 = vector.load %arg2[%c0_201, %c0_202] : memref<128x384xbf16, #tpu.memory_space<vmem>>, vector<128x384xbf16>
    %cst_203 = arith.constant dense<0.000000e+00> : vector<8x384xf32>
    %508 = tpu.matmul %506, %507, %cst_203 {dimension_numbers = #tpu.dot_dimension_numbers<[1], [0], [0], [1], [0, 0, 1, 1], [], []>} : vector<8x128xbf16>, vector<128x384xbf16>, vector<8x384xf32> -> vector<8x384xf32>
    %c0_204 = arith.constant 0 : index
    %c0_205 = arith.constant 0 : index
    %509 = vector.load %arg3[%c0_204, %c0_205] : memref<8x384xf32, #tpu.memory_space<vmem>>, vector<8x384xf32>
    %510 = arith.addf %508, %509 : vector<8x384xf32>
    %511 = vector.extract_strided_slice %510 {offsets = [0, 0], sizes = [8, 128], strides = [1, 1]} : vector<8x384xf32> to vector<8x128xf32>
    %512 = vector.extract_strided_slice %499 {offsets = [0, 0], sizes = [8, 128], strides = [1, 1]} : vector<8x384xf32> to vector<8x128xf32>
    %513 = arith.addf %511, %512 : vector<8x128xf32>
    %514 = arith.negf %513 : vector<8x128xf32>
    %515 = math.exp %514 : vector<8x128xf32>
    %cst_206 = arith.constant 1.000000e+00 : f32
    %516 = vector.broadcast %cst_206 : f32 to vector<8x128xf32>
    %517 = arith.addf %516, %515 : vector<8x128xf32>
    %518 = arith.divf %516, %517 : vector<8x128xf32>
    %519 = vector.extract_strided_slice %510 {offsets = [0, 128], sizes = [8, 128], strides = [1, 1]} : vector<8x384xf32> to vector<8x128xf32>
    %520 = vector.extract_strided_slice %499 {offsets = [0, 128], sizes = [8, 128], strides = [1, 1]} : vector<8x384xf32> to vector<8x128xf32>
    %521 = arith.addf %519, %520 : vector<8x128xf32>
    %522 = arith.negf %521 : vector<8x128xf32>
    %523 = math.exp %522 : vector<8x128xf32>
    %cst_207 = arith.constant 1.000000e+00 : f32
    %524 = vector.broadcast %cst_207 : f32 to vector<8x128xf32>
    %525 = arith.addf %524, %523 : vector<8x128xf32>
    %526 = arith.divf %524, %525 : vector<8x128xf32>
    %527 = vector.extract_strided_slice %510 {offsets = [0, 256], sizes = [8, 128], strides = [1, 1]} : vector<8x384xf32> to vector<8x128xf32>
    %528 = vector.extract_strided_slice %499 {offsets = [0, 256], sizes = [8, 128], strides = [1, 1]} : vector<8x384xf32> to vector<8x128xf32>
    %529 = arith.mulf %518, %528 : vector<8x128xf32>
    %530 = arith.addf %527, %529 : vector<8x128xf32>
    %531 = math.tanh %530 : vector<8x128xf32>
    %cst_208 = arith.constant 1.000000e+00 : f32
    %532 = vector.broadcast %cst_208 : f32 to vector<8x128xf32>
    %533 = arith.subf %532, %526 : vector<8x128xf32>
    %534 = arith.mulf %533, %531 : vector<8x128xf32>
    %535 = arith.mulf %526, %438 : vector<8x128xf32>
    %536 = arith.addf %534, %535 : vector<8x128xf32>
    %537 = arith.truncf %536 : vector<8x128xf32> to vector<8x128xbf16>
    %c0_209 = arith.constant 0 : index
    %c0_210 = arith.constant 0 : index
    %538 = vector.load %arg4[%c0_209, %c0_210] : memref<128x384xbf16, #tpu.memory_space<vmem>>, vector<128x384xbf16>
    %cst_211 = arith.constant dense<0.000000e+00> : vector<8x384xf32>
    %539 = tpu.matmul %537, %538, %cst_211 {dimension_numbers = #tpu.dot_dimension_numbers<[1], [0], [0], [1], [0, 0, 1, 1], [], []>} : vector<8x128xbf16>, vector<128x384xbf16>, vector<8x384xf32> -> vector<8x384xf32>
    %c0_212 = arith.constant 0 : index
    %c0_213 = arith.constant 0 : index
    %540 = vector.load %arg5[%c0_212, %c0_213] : memref<1x384xf32, #tpu.memory_space<vmem>>, vector<1x384xf32>
    %541 = vector.broadcast %540 : vector<1x384xf32> to vector<8x384xf32>
    %542 = arith.addf %539, %541 : vector<8x384xf32>
    %543 = vector.extract_strided_slice %542 {offsets = [0, 0], sizes = [8, 128], strides = [1, 1]} : vector<8x384xf32> to vector<8x128xf32>
    %544 = vector.extract_strided_slice %505 {offsets = [0, 0], sizes = [8, 128], strides = [1, 1]} : vector<8x384xf32> to vector<8x128xf32>
    %545 = arith.addf %543, %544 : vector<8x128xf32>
    %546 = arith.negf %545 : vector<8x128xf32>
    %547 = math.exp %546 : vector<8x128xf32>
    %cst_214 = arith.constant 1.000000e+00 : f32
    %548 = vector.broadcast %cst_214 : f32 to vector<8x128xf32>
    %549 = arith.addf %548, %547 : vector<8x128xf32>
    %550 = arith.divf %548, %549 : vector<8x128xf32>
    %551 = vector.extract_strided_slice %542 {offsets = [0, 128], sizes = [8, 128], strides = [1, 1]} : vector<8x384xf32> to vector<8x128xf32>
    %552 = vector.extract_strided_slice %505 {offsets = [0, 128], sizes = [8, 128], strides = [1, 1]} : vector<8x384xf32> to vector<8x128xf32>
    %553 = arith.addf %551, %552 : vector<8x128xf32>
    %554 = arith.negf %553 : vector<8x128xf32>
    %555 = math.exp %554 : vector<8x128xf32>
    %cst_215 = arith.constant 1.000000e+00 : f32
    %556 = vector.broadcast %cst_215 : f32 to vector<8x128xf32>
    %557 = arith.addf %556, %555 : vector<8x128xf32>
    %558 = arith.divf %556, %557 : vector<8x128xf32>
    %559 = vector.extract_strided_slice %542 {offsets = [0, 256], sizes = [8, 128], strides = [1, 1]} : vector<8x384xf32> to vector<8x128xf32>
    %560 = vector.extract_strided_slice %505 {offsets = [0, 256], sizes = [8, 128], strides = [1, 1]} : vector<8x384xf32> to vector<8x128xf32>
    %561 = arith.mulf %550, %560 : vector<8x128xf32>
    %562 = arith.addf %559, %561 : vector<8x128xf32>
    %563 = math.tanh %562 : vector<8x128xf32>
    %cst_216 = arith.constant 1.000000e+00 : f32
    %564 = vector.broadcast %cst_216 : f32 to vector<8x128xf32>
    %565 = arith.subf %564, %558 : vector<8x128xf32>
    %566 = arith.mulf %565, %563 : vector<8x128xf32>
    %567 = arith.mulf %558, %470 : vector<8x128xf32>
    %568 = arith.addf %566, %567 : vector<8x128xf32>
    %569 = arith.truncf %568 : vector<8x128xf32> to vector<8x128xbf16>
    %c0_217 = arith.constant 0 : index
    %c0_218 = arith.constant 0 : index
    %570 = vector.load %arg10[%c0_217, %c0_218] : memref<128x128xbf16, #tpu.memory_space<vmem>>, vector<128x128xbf16>
    %cst_219 = arith.constant dense<0.000000e+00> : vector<8x128xf32>
    %571 = tpu.matmul %569, %570, %cst_219 {dimension_numbers = #tpu.dot_dimension_numbers<[1], [0], [0], [1], [0, 0, 1, 1], [], []>} : vector<8x128xbf16>, vector<128x128xbf16>, vector<8x128xf32> -> vector<8x128xf32>
    %c0_220 = arith.constant 0 : index
    %c0_221 = arith.constant 0 : index
    %572 = vector.load %arg11[%c0_220, %c0_221] : memref<1x128xf32, #tpu.memory_space<vmem>>, vector<1x128xf32>
    %573 = vector.broadcast %572 : vector<1x128xf32> to vector<8x128xf32>
    %574 = arith.addf %571, %573 : vector<8x128xf32>
    %575 = arith.index_cast %c5_i32 : i32 to index
    %c0_222 = arith.constant 0 : index
    %c0_223 = arith.constant 0 : index
    %576 = vector.load %arg12[%575, %c0_222, %c0_223] : memref<7x8x128xf32, #tpu.memory_space<vmem>>, vector<1x8x128xf32>
    %577 = vector.shape_cast %576 : vector<1x8x128xf32> to vector<8x128xf32>
    %578 = vector.shape_cast %574 : vector<8x128xf32> to vector<1x8x128xf32>
    tpu.vector_store %arg12[%575, %c0_222, %c0_223], %578 {strides = array<i32>} : memref<7x8x128xf32, #tpu.memory_space<vmem>>, vector<1x8x128xf32>,
    %cst_224 = arith.constant dense<0xFF800000> : vector<8xf32>
    %579 = vector.multi_reduction <maximumf>, %574, %cst_224 [1] : vector<8x128xf32> to vector<8xf32>
    %580 = vector.shape_cast %579 : vector<8xf32> to vector<8x1xf32>
    %581 = vector.broadcast %580 : vector<8x1xf32> to vector<8x128xf32>
    %582 = arith.cmpf oeq, %574, %581 : vector<8x128xf32>
    %c128_i32_225 = arith.constant 128 : i32
    %583 = vector.broadcast %c128_i32_225 : i32 to vector<8x128xi32>
    %584 = arith.select %582, %0, %583 : vector<8x128xi1>, vector<8x128xi32>
    %cst_226 = arith.constant dense<2147483647> : vector<8xi32>
    %585 = vector.multi_reduction <minsi>, %584, %cst_226 [1] : vector<8x128xi32> to vector<8xi32>
    %586 = vector.shape_cast %585 : vector<8xi32> to vector<8x1xi32>
    %587 = vector.broadcast %586 : vector<8x1xi32> to vector<8x128xi32>
    %588 = arith.cmpi eq, %0, %587 : vector<8x128xi32>
    %cst_227 = arith.constant 1.000000e+00 : f32
    %cst_228 = arith.constant 0.000000e+00 : f32
    %589 = vector.broadcast %cst_227 : f32 to vector<8x128xf32>
    %590 = vector.broadcast %cst_228 : f32 to vector<8x128xf32>
    %591 = arith.select %588, %589, %590 : vector<8x128xi1>, vector<8x128xf32>
    %c6_i32 = arith.constant 6 : i32
    %592 = arith.truncf %536 : vector<8x128xf32> to vector<8x128xbf16>
    %c0_229 = arith.constant 0 : index
    %c0_230 = arith.constant 0 : index
    %593 = vector.load %arg6[%c0_229, %c0_230] : memref<128x384xbf16, #tpu.memory_space<vmem>>, vector<128x384xbf16>
    %cst_231 = arith.constant dense<0.000000e+00> : vector<8x384xf32>
    %594 = tpu.matmul %592, %593, %cst_231 {dimension_numbers = #tpu.dot_dimension_numbers<[1], [0], [0], [1], [0, 0, 1, 1], [], []>} : vector<8x128xbf16>, vector<128x384xbf16>, vector<8x384xf32> -> vector<8x384xf32>
    %c0_232 = arith.constant 0 : index
    %c0_233 = arith.constant 0 : index
    %595 = vector.load %arg7[%c0_232, %c0_233] : memref<1x384xf32, #tpu.memory_space<vmem>>, vector<1x384xf32>
    %596 = vector.broadcast %595 : vector<1x384xf32> to vector<8x384xf32>
    %597 = arith.addf %594, %596 : vector<8x384xf32>
    %598 = arith.truncf %568 : vector<8x128xf32> to vector<8x128xbf16>
    %c0_234 = arith.constant 0 : index
    %c0_235 = arith.constant 0 : index
    %599 = vector.load %arg8[%c0_234, %c0_235] : memref<128x384xbf16, #tpu.memory_space<vmem>>, vector<128x384xbf16>
    %cst_236 = arith.constant dense<0.000000e+00> : vector<8x384xf32>
    %600 = tpu.matmul %598, %599, %cst_236 {dimension_numbers = #tpu.dot_dimension_numbers<[1], [0], [0], [1], [0, 0, 1, 1], [], []>} : vector<8x128xbf16>, vector<128x384xbf16>, vector<8x384xf32> -> vector<8x384xf32>
    %c0_237 = arith.constant 0 : index
    %c0_238 = arith.constant 0 : index
    %601 = vector.load %arg9[%c0_237, %c0_238] : memref<1x384xf32, #tpu.memory_space<vmem>>, vector<1x384xf32>
    %602 = vector.broadcast %601 : vector<1x384xf32> to vector<8x384xf32>
    %603 = arith.addf %600, %602 : vector<8x384xf32>
    %604 = arith.truncf %591 : vector<8x128xf32> to vector<8x128xbf16>
    %c0_239 = arith.constant 0 : index
    %c0_240 = arith.constant 0 : index
    %605 = vector.load %arg2[%c0_239, %c0_240] : memref<128x384xbf16, #tpu.memory_space<vmem>>, vector<128x384xbf16>
    %cst_241 = arith.constant dense<0.000000e+00> : vector<8x384xf32>
    %606 = tpu.matmul %604, %605, %cst_241 {dimension_numbers = #tpu.dot_dimension_numbers<[1], [0], [0], [1], [0, 0, 1, 1], [], []>} : vector<8x128xbf16>, vector<128x384xbf16>, vector<8x384xf32> -> vector<8x384xf32>
    %c0_242 = arith.constant 0 : index
    %c0_243 = arith.constant 0 : index
    %607 = vector.load %arg3[%c0_242, %c0_243] : memref<8x384xf32, #tpu.memory_space<vmem>>, vector<8x384xf32>
    %608 = arith.addf %606, %607 : vector<8x384xf32>
    %609 = vector.extract_strided_slice %608 {offsets = [0, 0], sizes = [8, 128], strides = [1, 1]} : vector<8x384xf32> to vector<8x128xf32>
    %610 = vector.extract_strided_slice %597 {offsets = [0, 0], sizes = [8, 128], strides = [1, 1]} : vector<8x384xf32> to vector<8x128xf32>
    %611 = arith.addf %609, %610 : vector<8x128xf32>
    %612 = arith.negf %611 : vector<8x128xf32>
    %613 = math.exp %612 : vector<8x128xf32>
    %cst_244 = arith.constant 1.000000e+00 : f32
    %614 = vector.broadcast %cst_244 : f32 to vector<8x128xf32>
    %615 = arith.addf %614, %613 : vector<8x128xf32>
    %616 = arith.divf %614, %615 : vector<8x128xf32>
    %617 = vector.extract_strided_slice %608 {offsets = [0, 128], sizes = [8, 128], strides = [1, 1]} : vector<8x384xf32> to vector<8x128xf32>
    %618 = vector.extract_strided_slice %597 {offsets = [0, 128], sizes = [8, 128], strides = [1, 1]} : vector<8x384xf32> to vector<8x128xf32>
    %619 = arith.addf %617, %618 : vector<8x128xf32>
    %620 = arith.negf %619 : vector<8x128xf32>
    %621 = math.exp %620 : vector<8x128xf32>
    %cst_245 = arith.constant 1.000000e+00 : f32
    %622 = vector.broadcast %cst_245 : f32 to vector<8x128xf32>
    %623 = arith.addf %622, %621 : vector<8x128xf32>
    %624 = arith.divf %622, %623 : vector<8x128xf32>
    %625 = vector.extract_strided_slice %608 {offsets = [0, 256], sizes = [8, 128], strides = [1, 1]} : vector<8x384xf32> to vector<8x128xf32>
    %626 = vector.extract_strided_slice %597 {offsets = [0, 256], sizes = [8, 128], strides = [1, 1]} : vector<8x384xf32> to vector<8x128xf32>
    %627 = arith.mulf %616, %626 : vector<8x128xf32>
    %628 = arith.addf %625, %627 : vector<8x128xf32>
    %629 = math.tanh %628 : vector<8x128xf32>
    %cst_246 = arith.constant 1.000000e+00 : f32
    %630 = vector.broadcast %cst_246 : f32 to vector<8x128xf32>
    %631 = arith.subf %630, %624 : vector<8x128xf32>
    %632 = arith.mulf %631, %629 : vector<8x128xf32>
    %633 = arith.mulf %624, %536 : vector<8x128xf32>
    %634 = arith.addf %632, %633 : vector<8x128xf32>
    %635 = arith.truncf %634 : vector<8x128xf32> to vector<8x128xbf16>
    %c0_247 = arith.constant 0 : index
    %c0_248 = arith.constant 0 : index
    %636 = vector.load %arg4[%c0_247, %c0_248] : memref<128x384xbf16, #tpu.memory_space<vmem>>, vector<128x384xbf16>
    %cst_249 = arith.constant dense<0.000000e+00> : vector<8x384xf32>
    %637 = tpu.matmul %635, %636, %cst_249 {dimension_numbers = #tpu.dot_dimension_numbers<[1], [0], [0], [1], [0, 0, 1, 1], [], []>} : vector<8x128xbf16>, vector<128x384xbf16>, vector<8x384xf32> -> vector<8x384xf32>
    %c0_250 = arith.constant 0 : index
    %c0_251 = arith.constant 0 : index
    %638 = vector.load %arg5[%c0_250, %c0_251] : memref<1x384xf32, #tpu.memory_space<vmem>>, vector<1x384xf32>
    %639 = vector.broadcast %638 : vector<1x384xf32> to vector<8x384xf32>
    %640 = arith.addf %637, %639 : vector<8x384xf32>
    %641 = vector.extract_strided_slice %640 {offsets = [0, 0], sizes = [8, 128], strides = [1, 1]} : vector<8x384xf32> to vector<8x128xf32>
    %642 = vector.extract_strided_slice %603 {offsets = [0, 0], sizes = [8, 128], strides = [1, 1]} : vector<8x384xf32> to vector<8x128xf32>
    %643 = arith.addf %641, %642 : vector<8x128xf32>
    %644 = arith.negf %643 : vector<8x128xf32>
    %645 = math.exp %644 : vector<8x128xf32>
    %cst_252 = arith.constant 1.000000e+00 : f32
    %646 = vector.broadcast %cst_252 : f32 to vector<8x128xf32>
    %647 = arith.addf %646, %645 : vector<8x128xf32>
    %648 = arith.divf %646, %647 : vector<8x128xf32>
    %649 = vector.extract_strided_slice %640 {offsets = [0, 128], sizes = [8, 128], strides = [1, 1]} : vector<8x384xf32> to vector<8x128xf32>
    %650 = vector.extract_strided_slice %603 {offsets = [0, 128], sizes = [8, 128], strides = [1, 1]} : vector<8x384xf32> to vector<8x128xf32>
    %651 = arith.addf %649, %650 : vector<8x128xf32>
    %652 = arith.negf %651 : vector<8x128xf32>
    %653 = math.exp %652 : vector<8x128xf32>
    %cst_253 = arith.constant 1.000000e+00 : f32
    %654 = vector.broadcast %cst_253 : f32 to vector<8x128xf32>
    %655 = arith.addf %654, %653 : vector<8x128xf32>
    %656 = arith.divf %654, %655 : vector<8x128xf32>
    %657 = vector.extract_strided_slice %640 {offsets = [0, 256], sizes = [8, 128], strides = [1, 1]} : vector<8x384xf32> to vector<8x128xf32>
    %658 = vector.extract_strided_slice %603 {offsets = [0, 256], sizes = [8, 128], strides = [1, 1]} : vector<8x384xf32> to vector<8x128xf32>
    %659 = arith.mulf %648, %658 : vector<8x128xf32>
    %660 = arith.addf %657, %659 : vector<8x128xf32>
    %661 = math.tanh %660 : vector<8x128xf32>
    %cst_254 = arith.constant 1.000000e+00 : f32
    %662 = vector.broadcast %cst_254 : f32 to vector<8x128xf32>
    %663 = arith.subf %662, %656 : vector<8x128xf32>
    %664 = arith.mulf %663, %661 : vector<8x128xf32>
    %665 = arith.mulf %656, %568 : vector<8x128xf32>
    %666 = arith.addf %664, %665 : vector<8x128xf32>
    %667 = arith.truncf %666 : vector<8x128xf32> to vector<8x128xbf16>
    %c0_255 = arith.constant 0 : index
    %c0_256 = arith.constant 0 : index
    %668 = vector.load %arg10[%c0_255, %c0_256] : memref<128x128xbf16, #tpu.memory_space<vmem>>, vector<128x128xbf16>
    %cst_257 = arith.constant dense<0.000000e+00> : vector<8x128xf32>
    %669 = tpu.matmul %667, %668, %cst_257 {dimension_numbers = #tpu.dot_dimension_numbers<[1], [0], [0], [1], [0, 0, 1, 1], [], []>} : vector<8x128xbf16>, vector<128x128xbf16>, vector<8x128xf32> -> vector<8x128xf32>
    %c0_258 = arith.constant 0 : index
    %c0_259 = arith.constant 0 : index
    %670 = vector.load %arg11[%c0_258, %c0_259] : memref<1x128xf32, #tpu.memory_space<vmem>>, vector<1x128xf32>
    %671 = vector.broadcast %670 : vector<1x128xf32> to vector<8x128xf32>
    %672 = arith.addf %669, %671 : vector<8x128xf32>
    %673 = arith.index_cast %c6_i32 : i32 to index
    %c0_260 = arith.constant 0 : index
    %c0_261 = arith.constant 0 : index
    %674 = vector.load %arg12[%673, %c0_260, %c0_261] : memref<7x8x128xf32, #tpu.memory_space<vmem>>, vector<1x8x128xf32>
    %675 = vector.shape_cast %674 : vector<1x8x128xf32> to vector<8x128xf32>
    %676 = vector.shape_cast %672 : vector<8x128xf32> to vector<1x8x128xf32>
    tpu.vector_store %arg12[%673, %c0_260, %c0_261], %676 {strides = array<i32>} : memref<7x8x128xf32, #tpu.memory_space<vmem>>, vector<1x8x128xf32>,
    %cst_262 = arith.constant dense<0xFF800000> : vector<8xf32>
    %677 = vector.multi_reduction <maximumf>, %672, %cst_262 [1] : vector<8x128xf32> to vector<8xf32>
    %678 = vector.shape_cast %677 : vector<8xf32> to vector<8x1xf32>
    %679 = vector.broadcast %678 : vector<8x1xf32> to vector<8x128xf32>
    %680 = arith.cmpf oeq, %672, %679 : vector<8x128xf32>
    %c128_i32_263 = arith.constant 128 : i32
    %681 = vector.broadcast %c128_i32_263 : i32 to vector<8x128xi32>
    %682 = arith.select %680, %0, %681 : vector<8x128xi1>, vector<8x128xi32>
    %cst_264 = arith.constant dense<2147483647> : vector<8xi32>
    %683 = vector.multi_reduction <minsi>, %682, %cst_264 [1] : vector<8x128xi32> to vector<8xi32>
    %684 = vector.shape_cast %683 : vector<8xi32> to vector<8x1xi32>
    %685 = vector.broadcast %684 : vector<8x1xi32> to vector<8x128xi32>
    %686 = arith.cmpi eq, %0, %685 : vector<8x128xi32>
    %cst_265 = arith.constant 1.000000e+00 : f32
    %cst_266 = arith.constant 0.000000e+00 : f32
    %687 = vector.broadcast %cst_265 : f32 to vector<8x128xf32>
    %688 = vector.broadcast %cst_266 : f32 to vector<8x128xf32>
    %689 = arith.select %686, %687, %688 : vector<8x128xi1>, vector<8x128xf32>
    %c7_i32 = arith.constant 7 : i32
    return
  }
  func.func @transform_0(%arg0: i32) -> (i32, i32) {
    %c0_i32 = arith.constant 0 : i32
    %c0_i32_0 = arith.constant 0 : i32
    return %arg0, %c0_i32 : i32, i32
  }
  func.func @transform_1(%arg0: i32) -> (i32, i32) {
    %c0_i32 = arith.constant 0 : i32
    %c0_i32_0 = arith.constant 0 : i32
    %c0_i32_1 = arith.constant 0 : i32
    return %c0_i32, %c0_i32_0 : i32, i32
  }
  func.func @transform_2(%arg0: i32) -> (i32, i32) {
    %c0_i32 = arith.constant 0 : i32
    %c0_i32_0 = arith.constant 0 : i32
    return %arg0, %c0_i32 : i32, i32
  }
  func.func @transform_3(%arg0: i32) -> (i32, i32) {
    %c0_i32 = arith.constant 0 : i32
    %c0_i32_0 = arith.constant 0 : i32
    %c0_i32_1 = arith.constant 0 : i32
    return %c0_i32, %c0_i32_0 : i32, i32
  }
  func.func @transform_4(%arg0: i32) -> (i32, i32) {
    %c0_i32 = arith.constant 0 : i32
    %c0_i32_0 = arith.constant 0 : i32
    %c0_i32_1 = arith.constant 0 : i32
    return %c0_i32, %c0_i32_0 : i32, i32
  }
  func.func @transform_5(%arg0: i32) -> (i32, i32) {
    %c0_i32 = arith.constant 0 : i32
    %c0_i32_0 = arith.constant 0 : i32
    %c0_i32_1 = arith.constant 0 : i32
    return %c0_i32, %c0_i32_0 : i32, i32
  }
  func.func @transform_6(%arg0: i32) -> (i32, i32) {
    %c0_i32 = arith.constant 0 : i32
    %c0_i32_0 = arith.constant 0 : i32
    %c0_i32_1 = arith.constant 0 : i32
    return %c0_i32, %c0_i32_0 : i32, i32
  }
  func.func @transform_7(%arg0: i32) -> (i32, i32) {
    %c0_i32 = arith.constant 0 : i32
    %c0_i32_0 = arith.constant 0 : i32
    %c0_i32_1 = arith.constant 0 : i32
    return %c0_i32, %c0_i32_0 : i32, i32
  }
  func.func @transform_8(%arg0: i32) -> (i32, i32) {
    %c0_i32 = arith.constant 0 : i32
    %c0_i32_0 = arith.constant 0 : i32
    %c0_i32_1 = arith.constant 0 : i32
    return %c0_i32, %c0_i32_0 : i32, i32
  }
  func.func @transform_9(%arg0: i32) -> (i32, i32) {
    %c0_i32 = arith.constant 0 : i32
    %c0_i32_0 = arith.constant 0 : i32
    %c0_i32_1 = arith.constant 0 : i32
    return %c0_i32, %c0_i32_0 : i32, i32
  }
  func.func @transform_10(%arg0: i32) -> (i32, i32) {
    %c0_i32 = arith.constant 0 : i32
    %c0_i32_0 = arith.constant 0 : i32
    %c0_i32_1 = arith.constant 0 : i32
    return %c0_i32, %c0_i32_0 : i32, i32
  }
  func.func @transform_11(%arg0: i32) -> (i32, i32, i32) {
    %c0_i32 = arith.constant 0 : i32
    %c0_i32_0 = arith.constant 0 : i32
    %c0_i32_1 = arith.constant 0 : i32
    return %c0_i32, %arg0, %c0_i32_0 : i32, i32, i32
  }
}

</mosaic_0001>

<llo_original>
// kernel: tpu_custom_call.1
$region0: #{tpu_custom_call.1}
  #allocation0 [shape = 'u32[]', space=smem, size = 0x4, offset = 0x4, fixed_abs, tag = 'smem constant byte address 0x4 - core index']
  #allocation1 [shape = 'u32[144,128]{1,0:T(1,128)}', space=vmem, size = 0x12000, scoped, tag = 'internal scratch']
  %s0 = inlined_call_operand.hbm [shape: f32[8,128], index: 0, kind: input, shape index: {}]
  %s1 = inlined_call_operand.hbm [shape: bf16[128,384], index: 1, kind: input, shape index: {}]
  %s2 = inlined_call_operand.hbm [shape: f32[8,384], index: 2, kind: input, shape index: {}]
  %s3 = inlined_call_operand.hbm [shape: bf16[128,384], index: 3, kind: input, shape index: {}]
  %s4 = inlined_call_operand.vmem [shape: f32[1,384], index: 4, kind: input, shape index: {}]
  %s5 = inlined_call_operand.hbm [shape: bf16[128,384], index: 5, kind: input, shape index: {}]
  %s6 = inlined_call_operand.vmem [shape: f32[1,384], index: 6, kind: input, shape index: {}]
  %s7 = inlined_call_operand.hbm [shape: bf16[128,384], index: 7, kind: input, shape index: {}]
  %s8 = inlined_call_operand.vmem [shape: f32[1,384], index: 8, kind: input, shape index: {}]
  %s9 = inlined_call_operand.hbm [shape: bf16[128,128], index: 9, kind: input, shape index: {}]
  %s10 = inlined_call_operand.vmem [shape: f32[1,128], index: 10, kind: input, shape index: {}]
  %s11 = inlined_call_operand.hbm [shape: f32[7,8,128], index: 11, kind: output, shape index: {}]
  %s12 = sld [smem:[#allocation0]]
  $region82: #{tpu_custom_call.1} parent=0
    _
  %s14 = ssub.s32 1, %s12
  %s15 = scalar_select 0, %s14, %s12
  $region1: #{tpu_custom_call.1} parent=0
    #allocation2 [shape = 'u8[4096]{0}', space=vmem, size = 0x1000, scoped, tag = 'input window, operand 0, single buffered']
    #allocation3 [shape = 's32[1]{0}', space=sflag, size = 0x4, scoped, tag = 'scoped memory for tpu_custom_call.1']
    #allocation4 [shape = 's32[1]{0}', space=sflag, size = 0x4, scoped, tag = 'scoped memory for tpu_custom_call.1']
    #allocation5 [shape = 'u8[98304]{0}', space=vmem, size = 0x18000, scoped, tag = 'input window, operand 1, single buffered']
    #allocation6 [shape = 's32[1]{0}', space=sflag, size = 0x4, scoped, tag = 'scoped memory for tpu_custom_call.1']
    #allocation7 [shape = 'u8[12288]{0}', space=vmem, size = 0x3000, scoped, tag = 'input window, operand 2, single buffered']
    #allocation8 [shape = 'u8[98304]{0}', space=vmem, size = 0x18000, scoped, tag = 'input window, operand 3, single buffered']
    #allocation9 [shape = 's32[1]{0}', space=sflag, size = 0x4, scoped, tag = 'scoped memory for tpu_custom_call.1']
    #allocation10 [shape = 'u8[98304]{0}', space=vmem, size = 0x18000, scoped, tag = 'input window, operand 5, single buffered']
    #allocation11 [shape = 'u8[98304]{0}', space=vmem, size = 0x18000, scoped, tag = 'input window, operand 7, single buffered']
    #allocation12 [shape = 's32[1]{0}', space=sflag, size = 0x4, scoped, tag = 'scoped memory for tpu_custom_call.1']
    #allocation13 [shape = 'u8[32768]{0}', space=vmem, size = 0x8000, scoped, tag = 'input window, operand 9, single buffered']
    #allocation14 [shape = 'u8[28672]{0}', space=vmem, size = 0x7000, scoped, tag = 'output window, operand 0, single buffered']
    %16 = vsyncpa [#allocation3], 0
    %17 = vsyncpa [#allocation6], 0
    %18 = vsyncpa [#allocation9], 0
    %19 = vsyncpa [#allocation12], 0
    %20 = vsyncpa [#allocation4], 0
    // Predicated region
    $region2: #{tpu_custom_call.1} parent=1 // pred_check
      _
    $region3: #{tpu_custom_call.1} parent=1 // pred_check_branch
      %22 = sbr.rel (0) target = $region5
    $region4: #{tpu_custom_call.1} parent=1 // pred_region
      %s24 = ssub.s32 128, 128
      %25 = vsyncadd [#allocation3], %s24
      %s27 = sshll.u32 [#allocation2], 4
      %s28 = int_to_ptr.vmem [resolvable:$true] %s27
      %30 = dma.hbm_to_vmem [thread:$0]  %s0, 128, %s28, [#allocation3]
    $region5: #{tpu_custom_call.1} parent=1 // pred_fallthru
      _
    // Predicated region
    $region6: #{tpu_custom_call.1} parent=1 // pred_check
      _
    $region7: #{tpu_custom_call.1} parent=1 // pred_check_branch
      %32 = sbr.rel (0) target = $region9
    $region8: #{tpu_custom_call.1} parent=1 // pred_region
      %s34 = ssub.s32 3072, 3072
      %35 = vsyncadd [#allocation6], %s34
      %s36 = sshll.u32 [#allocation5], 4
      %s37 = int_to_ptr.vmem [resolvable:$true] %s36
      %42 = dma.hbm_to_vmem [thread:$0]  %s1, 3072, %s37, [#allocation6], 192, 192, 12
    $region9: #{tpu_custom_call.1} parent=1 // pred_fallthru
      _
    // Predicated region
    $region10: #{tpu_custom_call.1} parent=1 // pred_check
      _
    $region11: #{tpu_custom_call.1} parent=1 // pred_check_branch
      %44 = sbr.rel (0) target = $region13
    $region12: #{tpu_custom_call.1} parent=1 // pred_region
      %s46 = ssub.s32 384, 384
      %47 = vsyncadd [#allocation6], %s46
      %s49 = sshll.u32 [#allocation7], 4
      %s50 = int_to_ptr.vmem [resolvable:$true] %s49
      %52 = dma.hbm_to_vmem [thread:$0]  %s2, 384, %s50, [#allocation6]
    $region13: #{tpu_custom_call.1} parent=1 // pred_fallthru
      _
    // Predicated region
    $region14: #{tpu_custom_call.1} parent=1 // pred_check
      _
    $region15: #{tpu_custom_call.1} parent=1 // pred_check_branch
      %54 = sbr.rel (0) target = $region17
    $region16: #{tpu_custom_call.1} parent=1 // pred_region
      %s56 = ssub.s32 3072, 3072
      %57 = vsyncadd [#allocation9], %s56
      %s58 = sshll.u32 [#allocation8], 4
      %s59 = int_to_ptr.vmem [resolvable:$true] %s58
      %64 = dma.hbm_to_vmem [thread:$0]  %s3, 3072, %s59, [#allocation9], 192, 192, 12
    $region17: #{tpu_custom_call.1} parent=1 // pred_fallthru
      _
    // Predicated region
    $region18: #{tpu_custom_call.1} parent=1 // pred_check
      _
    $region19: #{tpu_custom_call.1} parent=1 // pred_check_branch
      %66 = sbr.rel (0) target = $region21
    $region20: #{tpu_custom_call.1} parent=1 // pred_region
      _
    $region21: #{tpu_custom_call.1} parent=1 // pred_fallthru
      _
    // Predicated region
    $region22: #{tpu_custom_call.1} parent=1 // pred_check
      _
    $region23: #{tpu_custom_call.1} parent=1 // pred_check_branch
      %68 = sbr.rel (0) target = $region25
    $region24: #{tpu_custom_call.1} parent=1 // pred_region
      %s70 = ssub.s32 3072, 3072
      %71 = vsyncadd [#allocation9], %s70
      %s72 = sshll.u32 [#allocation10], 4
      %s73 = int_to_ptr.vmem [resolvable:$true] %s72
      %78 = dma.hbm_to_vmem [thread:$0]  %s5, 3072, %s73, [#allocation9], 192, 192, 12
    $region25: #{tpu_custom_call.1} parent=1 // pred_fallthru
      _
    // Predicated region
    $region26: #{tpu_custom_call.1} parent=1 // pred_check
      _
    $region27: #{tpu_custom_call.1} parent=1 // pred_check_branch
      %80 = sbr.rel (0) target = $region29
    $region28: #{tpu_custom_call.1} parent=1 // pred_region
      _
    $region29: #{tpu_custom_call.1} parent=1 // pred_fallthru
      _
    // Predicated region
    $region30: #{tpu_custom_call.1} parent=1 // pred_check
      _
    $region31: #{tpu_custom_call.1} parent=1 // pred_check_branch
      %82 = sbr.rel (0) target = $region33
    $region32: #{tpu_custom_call.1} parent=1 // pred_region
      %s84 = ssub.s32 3072, 3072
      %85 = vsyncadd [#allocation12], %s84
      %s86 = sshll.u32 [#allocation11], 4
      %s87 = int_to_ptr.vmem [resolvable:$true] %s86
      %92 = dma.hbm_to_vmem [thread:$0]  %s7, 3072, %s87, [#allocation12], 192, 192, 12
    $region33: #{tpu_custom_call.1} parent=1 // pred_fallthru
      _
    // Predicated region
    $region34: #{tpu_custom_call.1} parent=1 // pred_check
      _
    $region35: #{tpu_custom_call.1} parent=1 // pred_check_branch
      %94 = sbr.rel (0) target = $region37
    $region36: #{tpu_custom_call.1} parent=1 // pred_region
      _
    $region37: #{tpu_custom_call.1} parent=1 // pred_fallthru
      _
    // Predicated region
    $region38: #{tpu_custom_call.1} parent=1 // pred_check
      _
    $region39: #{tpu_custom_call.1} parent=1 // pred_check_branch
      %96 = sbr.rel (0) target = $region41
    $region40: #{tpu_custom_call.1} parent=1 // pred_region
      %s98 = ssub.s32 1024, 1024
      %99 = vsyncadd [#allocation12], %s98
      %s100 = sshll.u32 [#allocation13], 4
      %s101 = int_to_ptr.vmem [resolvable:$true] %s100
      %106 = dma.hbm_to_vmem [thread:$0]  %s9, 1024, %s101, [#allocation12], 64, 64, 4
    $region41: #{tpu_custom_call.1} parent=1 // pred_fallthru
      _
    // Predicated region
    $region42: #{tpu_custom_call.1} parent=1 // pred_check
      _
    $region43: #{tpu_custom_call.1} parent=1 // pred_check_branch
      %108 = sbr.rel (0) target = $region45
    $region44: #{tpu_custom_call.1} parent=1 // pred_region
      _
    $region45: #{tpu_custom_call.1} parent=1 // pred_fallthru
      _
    // Predicated region
    $region46: #{tpu_custom_call.1} parent=1 // pred_check
      _
    $region47: #{tpu_custom_call.1} parent=1 // pred_check_branch
      %110 = sbr.rel (0) target = $region49
    $region48: #{tpu_custom_call.1} parent=1 // pred_region
      %111 = dma.done [#allocation3], 128
    $region49: #{tpu_custom_call.1} parent=1 // pred_fallthru
      _
    // Predicated region
    $region50: #{tpu_custom_call.1} parent=1 // pred_check
      _
    $region51: #{tpu_custom_call.1} parent=1 // pred_check_branch
      %113 = sbr.rel (0) target = $region53
    $region52: #{tpu_custom_call.1} parent=1 // pred_region
      %114 = dma.done [#allocation6], 3072
    $region53: #{tpu_custom_call.1} parent=1 // pred_fallthru
      _
    // Predicated region
    $region54: #{tpu_custom_call.1} parent=1 // pred_check
      _
    $region55: #{tpu_custom_call.1} parent=1 // pred_check_branch
      %116 = sbr.rel (0) target = $region57
    $region56: #{tpu_custom_call.1} parent=1 // pred_region
      %117 = dma.done [#allocation6], 384
    $region57: #{tpu_custom_call.1} parent=1 // pred_fallthru
      _
    // Predicated region
    $region58: #{tpu_custom_call.1} parent=1 // pred_check
      _
    $region59: #{tpu_custom_call.1} parent=1 // pred_check_branch
      %119 = sbr.rel (0) target = $region61
    $region60: #{tpu_custom_call.1} parent=1 // pred_region
      %120 = dma.done [#allocation9], 3072
    $region61: #{tpu_custom_call.1} parent=1 // pred_fallthru
      _
    // Predicated region
    $region62: #{tpu_custom_call.1} parent=1 // pred_check
      _
    $region63: #{tpu_custom_call.1} parent=1 // pred_check_branch
      %122 = sbr.rel (0) target = $region65
    $region64: #{tpu_custom_call.1} parent=1 // pred_region
      %123 = dma.done [#allocation9], 3072
    $region65: #{tpu_custom_call.1} parent=1 // pred_fallthru
      _
    // Predicated region
    $region66: #{tpu_custom_call.1} parent=1 // pred_check
      _
    $region67: #{tpu_custom_call.1} parent=1 // pred_check_branch
      %125 = sbr.rel (0) target = $region69
    $region68: #{tpu_custom_call.1} parent=1 // pred_region
      %126 = dma.done [#allocation12], 3072
    $region69: #{tpu_custom_call.1} parent=1 // pred_fallthru
      _
    // Predicated region
    $region70: #{tpu_custom_call.1} parent=1 // pred_check
      _
    $region71: #{tpu_custom_call.1} parent=1 // pred_check_branch
      %128 = sbr.rel (0) target = $region73
    $region72: #{tpu_custom_call.1} parent=1 // pred_region
      %129 = dma.done [#allocation12], 1024
    $region73: #{tpu_custom_call.1} parent=1 // pred_fallthru
      _
    %v131 = vlaneseq
    %v132 = vand.u32 %v131, 127
    %v133 = vld [vmem:[#allocation2] sm:$0xff]
    %v134 = vld [vmem:[#allocation10] sm:$0xff]
    %v135 = vld [vmem:[#allocation10 + $0x8] sm:$0xf]
    %v136 = vld [vmem:[#allocation10 + $0xc] sm:$0xff]
    %v137 = vld [vmem:[#allocation10 + $0x14] sm:$0xf]
    %v138 = vld [vmem:[#allocation10 + $0x18] sm:$0xff]
    %v139 = vld [vmem:[#allocation10 + $0x20] sm:$0xf]
    %v140 = vld [vmem:[#allocation10 + $0x24] sm:$0xff]
    %v141 = vld [vmem:[#allocation10 + $0x2c] sm:$0xf]
    %v142 = vld [vmem:[#allocation10 + $0x30] sm:$0xff]
    %v143 = vld [vmem:[#allocation10 + $0x38] sm:$0xf]
    %v144 = vld [vmem:[#allocation10 + $0x3c] sm:$0xff]
    %v145 = vld [vmem:[#allocation10 + $0x44] sm:$0xf]
    %v146 = vld [vmem:[#allocation10 + $0x48] sm:$0xff]
    %v147 = vld [vmem:[#allocation10 + $0x50] sm:$0xf]
    %v148 = vld [vmem:[#allocation10 + $0x54] sm:$0xff]
    %v149 = vld [vmem:[#allocation10 + $0x5c] sm:$0xf]
    %v150 = vld [vmem:[#allocation10 + $0x60] sm:$0xff]
    %v151 = vld [vmem:[#allocation10 + $0x68] sm:$0xf]
    %v152 = vld [vmem:[#allocation10 + $0x6c] sm:$0xff]
    %v153 = vld [vmem:[#allocation10 + $0x74] sm:$0xf]
    %v154 = vld [vmem:[#allocation10 + $0x78] sm:$0xff]
    %v155 = vld [vmem:[#allocation10 + $0x80] sm:$0xf]
    %v156 = vld [vmem:[#allocation10 + $0x84] sm:$0xff]
    %v157 = vld [vmem:[#allocation10 + $0x8c] sm:$0xf]
    %v158 = vld [vmem:[#allocation10 + $0x90] sm:$0xff]
    %v159 = vld [vmem:[#allocation10 + $0x98] sm:$0xf]
    %v160 = vld [vmem:[#allocation10 + $0x9c] sm:$0xff]
    %v161 = vld [vmem:[#allocation10 + $0xa4] sm:$0xf]
    %v162 = vld [vmem:[#allocation10 + $0xa8] sm:$0xff]
    %v163 = vld [vmem:[#allocation10 + $0xb0] sm:$0xf]
    %v164 = vld [vmem:[#allocation10 + $0xb4] sm:$0xff]
    %v165 = vld [vmem:[#allocation10 + $0xbc] sm:$0xf]
    %v166 = vld [vmem:[%s6] sm:$0x7]
    %v168 = vlaneseq
    %v169 = vshrl.u32 %v168, 7
    %v170 = vsub.s32 0, %v169
    %v171 = vrot.slane %v166, %v170
    %v172 = vlaneseq
    %v173 = vshrl.u32 %v172, 7
    %v174 = vsub.s32 1, %v173
    %v175 = vrot.slane %v166, %v174
    %v176 = vlaneseq
    %v177 = vshrl.u32 %v176, 7
    %v178 = vsub.s32 2, %v177
    %v179 = vrot.slane %v166, %v178
    %v215 = vunpack.c.l.b16 %v134
    %v216 = vunpack.c.h.b16 %v134
    %v217 = vunpack.c.l.b16 %v135
    %v218 = vunpack.c.l.b16 %v136
    %v219 = vunpack.c.h.b16 %v136
    %v220 = vunpack.c.l.b16 %v137
    %v221 = vunpack.c.l.b16 %v138
    %v222 = vunpack.c.h.b16 %v138
    %v223 = vunpack.c.l.b16 %v139
    %v224 = vunpack.c.l.b16 %v140
    %v225 = vunpack.c.h.b16 %v140
    %v226 = vunpack.c.l.b16 %v141
    %v227 = vunpack.c.l.b16 %v142
    %v228 = vunpack.c.h.b16 %v142
    %v229 = vunpack.c.l.b16 %v143
    %v230 = vunpack.c.l.b16 %v144
    %v231 = vunpack.c.h.b16 %v144
    %v232 = vunpack.c.l.b16 %v145
    %v233 = vunpack.c.l.b16 %v146
    %v234 = vunpack.c.h.b16 %v146
    %v235 = vunpack.c.l.b16 %v147
    %v236 = vunpack.c.l.b16 %v148
    %v237 = vunpack.c.h.b16 %v148
    %v238 = vunpack.c.l.b16 %v149
    %v239 = vunpack.c.l.b16 %v150
    %v240 = vunpack.c.h.b16 %v150
    %v241 = vunpack.c.l.b16 %v151
    %v242 = vunpack.c.l.b16 %v152
    %v243 = vunpack.c.h.b16 %v152
    %v244 = vunpack.c.l.b16 %v153
    %v245 = vunpack.c.l.b16 %v154
    %v246 = vunpack.c.h.b16 %v154
    %v247 = vunpack.c.l.b16 %v155
    %v248 = vunpack.c.l.b16 %v156
    %v249 = vunpack.c.h.b16 %v156
    %v250 = vunpack.c.l.b16 %v157
    %v251 = vunpack.c.l.b16 %v158
    %v252 = vunpack.c.h.b16 %v158
    %v253 = vunpack.c.l.b16 %v159
    %v254 = vunpack.c.l.b16 %v160
    %v255 = vunpack.c.h.b16 %v160
    %v256 = vunpack.c.l.b16 %v161
    %v257 = vunpack.c.l.b16 %v162
    %v258 = vunpack.c.h.b16 %v162
    %v259 = vunpack.c.l.b16 %v163
    %v260 = vunpack.c.l.b16 %v164
    %v261 = vunpack.c.h.b16 %v164
    %v262 = vunpack.c.l.b16 %v165
    %v263 = vpack.c.b16 %v218, %v215
    %v264 = vpack.c.b16 %v219, %v216
    %v265 = vpack.c.b16 %v220, %v217
    %v266 = vpack.c.b16 %v224, %v221
    %v267 = vpack.c.b16 %v225, %v222
    %v268 = vpack.c.b16 %v226, %v223
    %v269 = vpack.c.b16 %v230, %v227
    %v270 = vpack.c.b16 %v231, %v228
    %v271 = vpack.c.b16 %v232, %v229
    %v272 = vpack.c.b16 %v236, %v233
    %v273 = vpack.c.b16 %v237, %v234
    %v274 = vpack.c.b16 %v238, %v235
    %v275 = vpack.c.b16 %v242, %v239
    %v276 = vpack.c.b16 %v243, %v240
    %v277 = vpack.c.b16 %v244, %v241
    %v278 = vpack.c.b16 %v248, %v245
    %v279 = vpack.c.b16 %v249, %v246
    %v280 = vpack.c.b16 %v250, %v247
    %v281 = vpack.c.b16 %v254, %v251
    %v282 = vpack.c.b16 %v255, %v252
    %v283 = vpack.c.b16 %v256, %v253
    %v284 = vpack.c.b16 %v260, %v257
    %v285 = vpack.c.b16 %v261, %v258
    %v286 = vpack.c.b16 %v262, %v259
    %311 = vmatprep.subr.bf16.mxu0 %v264
    %312 = vmatpush1.bf16.msra.mxu0 %v263
    %313 = vmatprep.subr.bf16.mxu0 %v267
    %314 = vmatpush1.bf16.msra.mxu0 %v266
    %315 = vmatprep.subr.bf16.mxu0 %v270
    %316 = vmatpush1.bf16.msra.mxu0 %v269
    %317 = vmatprep.subr.bf16.mxu0 %v273
    %318 = vmatpush1.bf16.msra.mxu0 %v272
    %319 = vmatprep.subr.bf16.mxu0 %v276
    %320 = vmatpush1.bf16.msra.mxu0 %v275
    %321 = vmatprep.subr.bf16.mxu0 %v279
    %322 = vmatpush1.bf16.msra.mxu0 %v278
    %323 = vmatprep.subr.bf16.mxu0 %v282
    %324 = vmatpush1.bf16.msra.mxu0 %v281
    %325 = vmatprep.subr.bf16.mxu0 %v285
    %326 = vmatpush1.bf16.msra.mxu0 %v284
    %327 = vmatprep.subr.bf16.mxu0 0
    %328 = vmatpush1.bf16.msra.mxu0 0
    %329 = vmatprep.subr.bf16.mxu0 0
    %330 = vmatpush1.bf16.msra.mxu0 0
    %331 = vmatprep.subr.bf16.mxu0 0
    %332 = vmatpush1.bf16.msra.mxu0 0
    %333 = vmatprep.subr.bf16.mxu0 0
    %334 = vmatpush1.bf16.msra.mxu0 0
    %335 = vmatprep.subr.bf16.mxu0 0
    %336 = vmatpush1.bf16.msra.mxu0 0
    %337 = vmatprep.subr.bf16.mxu0 0
    %338 = vmatpush1.bf16.msra.mxu0 0
    %339 = vmatprep.subr.bf16.mxu0 0
    %340 = vmatpush1.bf16.msra.mxu0 0
    %341 = vmatprep.subr.bf16.mxu0 0
    %342 = vmatpush1.bf16.msra.mxu0 0
    %343 = vmatprep.mubr.bf16.mxu0 0
    %344 = vmatmul.mubr.bf16.gmra.mrb[0].mxu0 0
    %v345 = vpop.f32.mrb[0].mxu0
    %v346 = vadd.f32 %v171, %v345
    %v347 = vpop.f32.mrb[0].mxu0
    %v348 = vadd.f32 %v175, %v347
    %v349 = vpop.f32.mrb[0].mxu0
    %v350 = vpop.f32.mrb[0].mxu0
    %351 = vdwg.mxu0
    %352 = vmatprep.subr.bf16.mxu0 0
    %353 = vmatpush1.bf16.msra.mxu0 %v265
    %354 = vmatprep.subr.bf16.mxu0 0
    %355 = vmatpush1.bf16.msra.mxu0 %v268
    %356 = vmatprep.subr.bf16.mxu0 0
    %357 = vmatpush1.bf16.msra.mxu0 %v271
    %358 = vmatprep.subr.bf16.mxu0 0
    %359 = vmatpush1.bf16.msra.mxu0 %v274
    %360 = vmatprep.subr.bf16.mxu0 0
    %361 = vmatpush1.bf16.msra.mxu0 %v277
    %362 = vmatprep.subr.bf16.mxu0 0
    %363 = vmatpush1.bf16.msra.mxu0 %v280
    %364 = vmatprep.subr.bf16.mxu0 0
    %365 = vmatpush1.bf16.msra.mxu0 %v283
    %366 = vmatprep.subr.bf16.mxu0 0
    %367 = vmatpush1.bf16.msra.mxu0 %v286
    %368 = vmatprep.subr.bf16.mxu0 0
    %369 = vmatpush1.bf16.msra.mxu0 0
    %370 = vmatprep.subr.bf16.mxu0 0
    %371 = vmatpush1.bf16.msra.mxu0 0
    %372 = vmatprep.subr.bf16.mxu0 0
    %373 = vmatpush1.bf16.msra.mxu0 0
    %374 = vmatprep.subr.bf16.mxu0 0
    %375 = vmatpush1.bf16.msra.mxu0 0
    %376 = vmatprep.subr.bf16.mxu0 0
    %377 = vmatpush1.bf16.msra.mxu0 0
    %378 = vmatprep.subr.bf16.mxu0 0
    %379 = vmatpush1.bf16.msra.mxu0 0
    %380 = vmatprep.subr.bf16.mxu0 0
    %381 = vmatpush1.bf16.msra.mxu0 0
    %382 = vmatprep.subr.bf16.mxu0 0
    %383 = vmatpush1.bf16.msra.mxu0 0
    %384 = vmatprep.mubr.bf16.mxu0 0
    %385 = vmatmul.mubr.bf16.gmra.mrb[0].mxu0 0
    %v386 = vpop.f32.mrb[0].mxu0
    %v387 = vadd.f32 %v179, %v386
    %v388 = vpop.f32.mrb[0].mxu0
    %v389 = vpop.f32.mrb[0].mxu0
    %v390 = vpop.f32.mrb[0].mxu0
    %391 = vdwg.mxu0
    %v392 = vld [vmem:[#allocation11] sm:$0xff]
    %v393 = vld [vmem:[#allocation11 + $0x8] sm:$0xf]
    %v394 = vld [vmem:[#allocation11 + $0xc] sm:$0xff]
    %v395 = vld [vmem:[#allocation11 + $0x14] sm:$0xf]
    %v396 = vld [vmem:[#allocation11 + $0x18] sm:$0xff]
    %v397 = vld [vmem:[#allocation11 + $0x20] sm:$0xf]
    %v398 = vld [vmem:[#allocation11 + $0x24] sm:$0xff]
    %v399 = vld [vmem:[#allocation11 + $0x2c] sm:$0xf]
    %v400 = vld [vmem:[#allocation11 + $0x30] sm:$0xff]
    %v401 = vld [vmem:[#allocation11 + $0x38] sm:$0xf]
    %v402 = vld [vmem:[#allocation11 + $0x3c] sm:$0xff]
    %v403 = vld [vmem:[#allocation11 + $0x44] sm:$0xf]
    %v404 = vld [vmem:[#allocation11 + $0x48] sm:$0xff]
    %v405 = vld [vmem:[#allocation11 + $0x50] sm:$0xf]
    %v406 = vld [vmem:[#allocation11 + $0x54] sm:$0xff]
    %v407 = vld [vmem:[#allocation11 + $0x5c] sm:$0xf]
    %v408 = vld [vmem:[#allocation11 + $0x60] sm:$0xff]
    %v409 = vld [vmem:[#allocation11 + $0x68] sm:$0xf]
    %v410 = vld [vmem:[#allocation11 + $0x6c] sm:$0xff]
    %v411 = vld [vmem:[#allocation11 + $0x74] sm:$0xf]
    %v412 = vld [vmem:[#allocation11 + $0x78] sm:$0xff]
    %v413 = vld [vmem:[#allocation11 + $0x80] sm:$0xf]
    %v414 = vld [vmem:[#allocation11 + $0x84] sm:$0xff]
    %v415 = vld [vmem:[#allocation11 + $0x8c] sm:$0xf]
    %v416 = vld [vmem:[#allocation11 + $0x90] sm:$0xff]
    %v417 = vld [vmem:[#allocation11 + $0x98] sm:$0xf]
    %v418 = vld [vmem:[#allocation11 + $0x9c] sm:$0xff]
    %v419 = vld [vmem:[#allocation11 + $0xa4] sm:$0xf]
    %v420 = vld [vmem:[#allocation11 + $0xa8] sm:$0xff]
    %v421 = vld [vmem:[#allocation11 + $0xb0] sm:$0xf]
    %v422 = vld [vmem:[#allocation11 + $0xb4] sm:$0xff]
    %v423 = vld [vmem:[#allocation11 + $0xbc] sm:$0xf]
    %v424 = vld [vmem:[%s8] sm:$0x7]
    %v426 = vlaneseq
    %v427 = vshrl.u32 %v426, 7
    %v428 = vsub.s32 0, %v427
    %v429 = vrot.slane %v424, %v428
    %v430 = vlaneseq
    %v431 = vshrl.u32 %v430, 7
    %v432 = vsub.s32 1, %v431
    %v433 = vrot.slane %v424, %v432
    %v434 = vlaneseq
    %v435 = vshrl.u32 %v434, 7
    %v436 = vsub.s32 2, %v435
    %v437 = vrot.slane %v424, %v436
    %v473 = vunpack.c.l.b16 %v392
    %v474 = vunpack.c.h.b16 %v392
    %v475 = vunpack.c.l.b16 %v393
    %v476 = vunpack.c.l.b16 %v394
    %v477 = vunpack.c.h.b16 %v394
    %v478 = vunpack.c.l.b16 %v395
    %v479 = vunpack.c.l.b16 %v396
    %v480 = vunpack.c.h.b16 %v396
    %v481 = vunpack.c.l.b16 %v397
    %v482 = vunpack.c.l.b16 %v398
    %v483 = vunpack.c.h.b16 %v398
    %v484 = vunpack.c.l.b16 %v399
    %v485 = vunpack.c.l.b16 %v400
    %v486 = vunpack.c.h.b16 %v400
    %v487 = vunpack.c.l.b16 %v401
    %v488 = vunpack.c.l.b16 %v402
    %v489 = vunpack.c.h.b16 %v402
    %v490 = vunpack.c.l.b16 %v403
    %v491 = vunpack.c.l.b16 %v404
    %v492 = vunpack.c.h.b16 %v404
    %v493 = vunpack.c.l.b16 %v405
    %v494 = vunpack.c.l.b16 %v406
    %v495 = vunpack.c.h.b16 %v406
    %v496 = vunpack.c.l.b16 %v407
    %v497 = vunpack.c.l.b16 %v408
    %v498 = vunpack.c.h.b16 %v408
    %v499 = vunpack.c.l.b16 %v409
    %v500 = vunpack.c.l.b16 %v410
    %v501 = vunpack.c.h.b16 %v410
    %v502 = vunpack.c.l.b16 %v411
    %v503 = vunpack.c.l.b16 %v412
    %v504 = vunpack.c.h.b16 %v412
    %v505 = vunpack.c.l.b16 %v413
    %v506 = vunpack.c.l.b16 %v414
    %v507 = vunpack.c.h.b16 %v414
    %v508 = vunpack.c.l.b16 %v415
    %v509 = vunpack.c.l.b16 %v416
    %v510 = vunpack.c.h.b16 %v416
    %v511 = vunpack.c.l.b16 %v417
    %v512 = vunpack.c.l.b16 %v418
    %v513 = vunpack.c.h.b16 %v418
    %v514 = vunpack.c.l.b16 %v419
    %v515 = vunpack.c.l.b16 %v420
    %v516 = vunpack.c.h.b16 %v420
    %v517 = vunpack.c.l.b16 %v421
    %v518 = vunpack.c.l.b16 %v422
    %v519 = vunpack.c.h.b16 %v422
    %v520 = vunpack.c.l.b16 %v423
    %v521 = vpack.c.b16 %v476, %v473
    %v522 = vpack.c.b16 %v477, %v474
    %v523 = vpack.c.b16 %v478, %v475
    %v524 = vpack.c.b16 %v482, %v479
    %v525 = vpack.c.b16 %v483, %v480
    %v526 = vpack.c.b16 %v484, %v481
    %v527 = vpack.c.b16 %v488, %v485
    %v528 = vpack.c.b16 %v489, %v486
    %v529 = vpack.c.b16 %v490, %v487
    %v530 = vpack.c.b16 %v494, %v491
    %v531 = vpack.c.b16 %v495, %v492
    %v532 = vpack.c.b16 %v496, %v493
    %v533 = vpack.c.b16 %v500, %v497
    %v534 = vpack.c.b16 %v501, %v498
    %v535 = vpack.c.b16 %v502, %v499
    %v536 = vpack.c.b16 %v506, %v503
    %v537 = vpack.c.b16 %v507, %v504
    %v538 = vpack.c.b16 %v508, %v505
    %v539 = vpack.c.b16 %v512, %v509
    %v540 = vpack.c.b16 %v513, %v510
    %v541 = vpack.c.b16 %v514, %v511
    %v542 = vpack.c.b16 %v518, %v515
    %v543 = vpack.c.b16 %v519, %v516
    %v544 = vpack.c.b16 %v520, %v517
    %569 = vmatprep.subr.bf16.mxu0 %v522
    %570 = vmatpush1.bf16.msra.mxu0 %v521
    %571 = vmatprep.subr.bf16.mxu0 %v525
    %572 = vmatpush1.bf16.msra.mxu0 %v524
    %573 = vmatprep.subr.bf16.mxu0 %v528
    %574 = vmatpush1.bf16.msra.mxu0 %v527
    %575 = vmatprep.subr.bf16.mxu0 %v531
    %576 = vmatpush1.bf16.msra.mxu0 %v530
    %577 = vmatprep.subr.bf16.mxu0 %v534
    %578 = vmatpush1.bf16.msra.mxu0 %v533
    %579 = vmatprep.subr.bf16.mxu0 %v537
    %580 = vmatpush1.bf16.msra.mxu0 %v536
    %581 = vmatprep.subr.bf16.mxu0 %v540
    %582 = vmatpush1.bf16.msra.mxu0 %v539
    %583 = vmatprep.subr.bf16.mxu0 %v543
    %584 = vmatpush1.bf16.msra.mxu0 %v542
    %585 = vmatprep.subr.bf16.mxu0 0
    %586 = vmatpush1.bf16.msra.mxu0 0
    %587 = vmatprep.subr.bf16.mxu0 0
    %588 = vmatpush1.bf16.msra.mxu0 0
    %589 = vmatprep.subr.bf16.mxu0 0
    %590 = vmatpush1.bf16.msra.mxu0 0
    %591 = vmatprep.subr.bf16.mxu0 0
    %592 = vmatpush1.bf16.msra.mxu0 0
    %593 = vmatprep.subr.bf16.mxu0 0
    %594 = vmatpush1.bf16.msra.mxu0 0
    %595 = vmatprep.subr.bf16.mxu0 0
    %596 = vmatpush1.bf16.msra.mxu0 0
    %597 = vmatprep.subr.bf16.mxu0 0
    %598 = vmatpush1.bf16.msra.mxu0 0
    %599 = vmatprep.subr.bf16.mxu0 0
    %600 = vmatpush1.bf16.msra.mxu0 0
    %601 = vmatprep.mubr.bf16.mxu0 0
    %602 = vmatmul.mubr.bf16.gmra.mrb[0].mxu0 0
    %v603 = vpop.f32.mrb[0].mxu0
    %v604 = vadd.f32 %v429, %v603
    %v605 = vpop.f32.mrb[0].mxu0
    %v606 = vadd.f32 %v433, %v605
    %v607 = vpop.f32.mrb[0].mxu0
    %v608 = vpop.f32.mrb[0].mxu0
    %609 = vdwg.mxu0
    %610 = vmatprep.subr.bf16.mxu0 0
    %611 = vmatpush1.bf16.msra.mxu0 %v523
    %612 = vmatprep.subr.bf16.mxu0 0
    %613 = vmatpush1.bf16.msra.mxu0 %v526
    %614 = vmatprep.subr.bf16.mxu0 0
    %615 = vmatpush1.bf16.msra.mxu0 %v529
    %616 = vmatprep.subr.bf16.mxu0 0
    %617 = vmatpush1.bf16.msra.mxu0 %v532
    %618 = vmatprep.subr.bf16.mxu0 0
    %619 = vmatpush1.bf16.msra.mxu0 %v535
    %620 = vmatprep.subr.bf16.mxu0 0
    %621 = vmatpush1.bf16.msra.mxu0 %v538
    %622 = vmatprep.subr.bf16.mxu0 0
    %623 = vmatpush1.bf16.msra.mxu0 %v541
    %624 = vmatprep.subr.bf16.mxu0 0
    %625 = vmatpush1.bf16.msra.mxu0 %v544
    %626 = vmatprep.subr.bf16.mxu0 0
    %627 = vmatpush1.bf16.msra.mxu0 0
    %628 = vmatprep.subr.bf16.mxu0 0
    %629 = vmatpush1.bf16.msra.mxu0 0
    %630 = vmatprep.subr.bf16.mxu0 0
    %631 = vmatpush1.bf16.msra.mxu0 0
    %632 = vmatprep.subr.bf16.mxu0 0
    %633 = vmatpush1.bf16.msra.mxu0 0
    %634 = vmatprep.subr.bf16.mxu0 0
    %635 = vmatpush1.bf16.msra.mxu0 0
    %636 = vmatprep.subr.bf16.mxu0 0
    %637 = vmatpush1.bf16.msra.mxu0 0
    %638 = vmatprep.subr.bf16.mxu0 0
    %639 = vmatpush1.bf16.msra.mxu0 0
    %640 = vmatprep.subr.bf16.mxu0 0
    %641 = vmatpush1.bf16.msra.mxu0 0
    %642 = vmatprep.mubr.bf16.mxu0 0
    %643 = vmatmul.mubr.bf16.gmra.mrb[0].mxu0 0
    %v644 = vpop.f32.mrb[0].mxu0
    %v645 = vadd.f32 %v437, %v644
    %v646 = vpop.f32.mrb[0].mxu0
    %v647 = vpop.f32.mrb[0].mxu0
    %v648 = vpop.f32.mrb[0].mxu0
    %649 = vdwg.mxu0
    %v650 = vpack.c.bf16 %v133, %v133
    %v651 = vld [vmem:[#allocation5] sm:$0xff]
    %v652 = vld [vmem:[#allocation5 + $0x8] sm:$0xf]
    %v653 = vld [vmem:[#allocation5 + $0xc] sm:$0xff]
    %v654 = vld [vmem:[#allocation5 + $0x14] sm:$0xf]
    %v655 = vld [vmem:[#allocation5 + $0x18] sm:$0xff]
    %v656 = vld [vmem:[#allocation5 + $0x20] sm:$0xf]
    %v657 = vld [vmem:[#allocation5 + $0x24] sm:$0xff]
    %v658 = vld [vmem:[#allocation5 + $0x2c] sm:$0xf]
    %v659 = vld [vmem:[#allocation5 + $0x30] sm:$0xff]
    %v660 = vld [vmem:[#allocation5 + $0x38] sm:$0xf]
    %v661 = vld [vmem:[#allocation5 + $0x3c] sm:$0xff]
    %v662 = vld [vmem:[#allocation5 + $0x44] sm:$0xf]
    %v663 = vld [vmem:[#allocation5 + $0x48] sm:$0xff]
    %v664 = vld [vmem:[#allocation5 + $0x50] sm:$0xf]
    %v665 = vld [vmem:[#allocation5 + $0x54] sm:$0xff]
    %v666 = vld [vmem:[#allocation5 + $0x5c] sm:$0xf]
    %v667 = vld [vmem:[#allocation5 + $0x60] sm:$0xff]
    %v668 = vld [vmem:[#allocation5 + $0x68] sm:$0xf]
    %v669 = vld [vmem:[#allocation5 + $0x6c] sm:$0xff]
    %v670 = vld [vmem:[#allocation5 + $0x74] sm:$0xf]
    %v671 = vld [vmem:[#allocation5 + $0x78] sm:$0xff]
    %v672 = vld [vmem:[#allocation5 + $0x80] sm:$0xf]
    %v673 = vld [vmem:[#allocation5 + $0x84] sm:$0xff]
    %v674 = vld [vmem:[#allocation5 + $0x8c] sm:$0xf]
    %v675 = vld [vmem:[#allocation5 + $0x90] sm:$0xff]
    %v676 = vld [vmem:[#allocation5 + $0x98] sm:$0xf]
    %v677 = vld [vmem:[#allocation5 + $0x9c] sm:$0xff]
    %v678 = vld [vmem:[#allocation5 + $0xa4] sm:$0xf]
    %v679 = vld [vmem:[#allocation5 + $0xa8] sm:$0xff]
    %v680 = vld [vmem:[#allocation5 + $0xb0] sm:$0xf]
    %v681 = vld [vmem:[#allocation5 + $0xb4] sm:$0xff]
    %v682 = vld [vmem:[#allocation5 + $0xbc] sm:$0xf]
    %v683 = vld [vmem:[#allocation7] sm:$0xff]
    %v684 = vld [vmem:[#allocation7 + $0x8] sm:$0xff]
    %v685 = vld [vmem:[#allocation7 + $0x10] sm:$0xff]
    %v718 = vunpack.c.l.b16 %v651
    %v719 = vunpack.c.h.b16 %v651
    %v720 = vunpack.c.l.b16 %v652
    %v721 = vunpack.c.l.b16 %v653
    %v722 = vunpack.c.h.b16 %v653
    %v723 = vunpack.c.l.b16 %v654
    %v724 = vunpack.c.l.b16 %v655
    %v725 = vunpack.c.h.b16 %v655
    %v726 = vunpack.c.l.b16 %v656
    %v727 = vunpack.c.l.b16 %v657
    %v728 = vunpack.c.h.b16 %v657
    %v729 = vunpack.c.l.b16 %v658
    %v730 = vunpack.c.l.b16 %v659
    %v731 = vunpack.c.h.b16 %v659
    %v732 = vunpack.c.l.b16 %v660
    %v733 = vunpack.c.l.b16 %v661
    %v734 = vunpack.c.h.b16 %v661
    %v735 = vunpack.c.l.b16 %v662
    %v736 = vunpack.c.l.b16 %v663
    %v737 = vunpack.c.h.b16 %v663
    %v738 = vunpack.c.l.b16 %v664
    %v739 = vunpack.c.l.b16 %v665
    %v740 = vunpack.c.h.b16 %v665
    %v741 = vunpack.c.l.b16 %v666
    %v742 = vunpack.c.l.b16 %v667
    %v743 = vunpack.c.h.b16 %v667
    %v744 = vunpack.c.l.b16 %v668
    %v745 = vunpack.c.l.b16 %v669
    %v746 = vunpack.c.h.b16 %v669
    %v747 = vunpack.c.l.b16 %v670
    %v748 = vunpack.c.l.b16 %v671
    %v749 = vunpack.c.h.b16 %v671
    %v750 = vunpack.c.l.b16 %v672
    %v751 = vunpack.c.l.b16 %v673
    %v752 = vunpack.c.h.b16 %v673
    %v753 = vunpack.c.l.b16 %v674
    %v754 = vunpack.c.l.b16 %v675
    %v755 = vunpack.c.h.b16 %v675
    %v756 = vunpack.c.l.b16 %v676
    %v757 = vunpack.c.l.b16 %v677
    %v758 = vunpack.c.h.b16 %v677
    %v759 = vunpack.c.l.b16 %v678
    %v760 = vunpack.c.l.b16 %v679
    %v761 = vunpack.c.h.b16 %v679
    %v762 = vunpack.c.l.b16 %v680
    %v763 = vunpack.c.l.b16 %v681
    %v764 = vunpack.c.h.b16 %v681
    %v765 = vunpack.c.l.b16 %v682
    %v766 = vpack.c.b16 %v721, %v718
    %v767 = vpack.c.b16 %v722, %v719
    %v768 = vpack.c.b16 %v723, %v720
    %v769 = vpack.c.b16 %v727, %v724
    %v770 = vpack.c.b16 %v728, %v725
    %v771 = vpack.c.b16 %v729, %v726
    %v772 = vpack.c.b16 %v733, %v730
    %v773 = vpack.c.b16 %v734, %v731
    %v774 = vpack.c.b16 %v735, %v732
    %v775 = vpack.c.b16 %v739, %v736
    %v776 = vpack.c.b16 %v740, %v737
    %v777 = vpack.c.b16 %v741, %v738
    %v778 = vpack.c.b16 %v745, %v742
    %v779 = vpack.c.b16 %v746, %v743
    %v780 = vpack.c.b16 %v747, %v744
    %v781 = vpack.c.b16 %v751, %v748
    %v782 = vpack.c.b16 %v752, %v749
    %v783 = vpack.c.b16 %v753, %v750
    %v784 = vpack.c.b16 %v757, %v754
    %v785 = vpack.c.b16 %v758, %v755
    %v786 = vpack.c.b16 %v759, %v756
    %v787 = vpack.c.b16 %v763, %v760
    %v788 = vpack.c.b16 %v764, %v761
    %v789 = vpack.c.b16 %v765, %v762
    %814 = vmatprep.subr.bf16.mxu0 %v767
    %815 = vmatpush1.bf16.msra.mxu0 %v766
    %816 = vmatprep.subr.bf16.mxu0 %v770
    %817 = vmatpush1.bf16.msra.mxu0 %v769
    %818 = vmatprep.subr.bf16.mxu0 %v773
    %819 = vmatpush1.bf16.msra.mxu0 %v772
    %820 = vmatprep.subr.bf16.mxu0 %v776
    %821 = vmatpush1.bf16.msra.mxu0 %v775
    %822 = vmatprep.subr.bf16.mxu0 %v779
    %823 = vmatpush1.bf16.msra.mxu0 %v778
    %824 = vmatprep.subr.bf16.mxu0 %v782
    %825 = vmatpush1.bf16.msra.mxu0 %v781
    %826 = vmatprep.subr.bf16.mxu0 %v785
    %827 = vmatpush1.bf16.msra.mxu0 %v784
    %828 = vmatprep.subr.bf16.mxu0 %v788
    %829 = vmatpush1.bf16.msra.mxu0 %v787
    %830 = vmatprep.subr.bf16.mxu0 0
    %831 = vmatpush1.bf16.msra.mxu0 0
    %832 = vmatprep.subr.bf16.mxu0 0
    %833 = vmatpush1.bf16.msra.mxu0 0
    %834 = vmatprep.subr.bf16.mxu0 0
    %835 = vmatpush1.bf16.msra.mxu0 0
    %836 = vmatprep.subr.bf16.mxu0 0
    %837 = vmatpush1.bf16.msra.mxu0 0
    %838 = vmatprep.subr.bf16.mxu0 0
    %839 = vmatpush1.bf16.msra.mxu0 0
    %840 = vmatprep.subr.bf16.mxu0 0
    %841 = vmatpush1.bf16.msra.mxu0 0
    %842 = vmatprep.subr.bf16.mxu0 0
    %843 = vmatpush1.bf16.msra.mxu0 0
    %844 = vmatprep.subr.bf16.mxu0 0
    %845 = vmatpush1.bf16.msra.mxu0 0
    %846 = vmatprep.mubr.bf16.mxu0 0
    %847 = vmatmul.mubr.bf16.gmra.mrb[0].mxu0 %v650
    %v848 = vpop.f32.mrb[0].mxu0
    %v849 = vadd.f32 %v683, %v848
    %v850 = vpop.f32.mrb[0].mxu0
    %v851 = vadd.f32 %v684, %v850
    %v852 = vpop.f32.mrb[0].mxu0
    %v853 = vpop.f32.mrb[0].mxu0
    %854 = vdwg.mxu0
    %855 = vmatprep.subr.bf16.mxu0 0
    %856 = vmatpush1.bf16.msra.mxu0 %v768
    %857 = vmatprep.subr.bf16.mxu0 0
    %858 = vmatpush1.bf16.msra.mxu0 %v771
    %859 = vmatprep.subr.bf16.mxu0 0
    %860 = vmatpush1.bf16.msra.mxu0 %v774
    %861 = vmatprep.subr.bf16.mxu0 0
    %862 = vmatpush1.bf16.msra.mxu0 %v777
    %863 = vmatprep.subr.bf16.mxu0 0
    %864 = vmatpush1.bf16.msra.mxu0 %v780
    %865 = vmatprep.subr.bf16.mxu0 0
    %866 = vmatpush1.bf16.msra.mxu0 %v783
    %867 = vmatprep.subr.bf16.mxu0 0
    %868 = vmatpush1.bf16.msra.mxu0 %v786
    %869 = vmatprep.subr.bf16.mxu0 0
    %870 = vmatpush1.bf16.msra.mxu0 %v789
    %871 = vmatprep.subr.bf16.mxu0 0
    %872 = vmatpush1.bf16.msra.mxu0 0
    %873 = vmatprep.subr.bf16.mxu0 0
    %874 = vmatpush1.bf16.msra.mxu0 0
    %875 = vmatprep.subr.bf16.mxu0 0
    %876 = vmatpush1.bf16.msra.mxu0 0
    %877 = vmatprep.subr.bf16.mxu0 0
    %878 = vmatpush1.bf16.msra.mxu0 0
    %879 = vmatprep.subr.bf16.mxu0 0
    %880 = vmatpush1.bf16.msra.mxu0 0
    %881 = vmatprep.subr.bf16.mxu0 0
    %882 = vmatpush1.bf16.msra.mxu0 0
    %883 = vmatprep.subr.bf16.mxu0 0
    %884 = vmatpush1.bf16.msra.mxu0 0
    %885 = vmatprep.subr.bf16.mxu0 0
    %886 = vmatpush1.bf16.msra.mxu0 0
    %887 = vmatprep.mubr.bf16.mxu0 0
    %888 = vmatmul.mubr.bf16.gmra.mrb[0].mxu0 %v650
    %v889 = vpop.f32.mrb[0].mxu0
    %v890 = vadd.f32 %v685, %v889
    %v891 = vpop.f32.mrb[0].mxu0
    %v892 = vpop.f32.mrb[0].mxu0
    %v893 = vpop.f32.mrb[0].mxu0
    %894 = vdwg.mxu0
    %v895 = vadd.f32 %v849, %v346
    %v896 = vxor.u32 %v895, 2147483648
    %v897 = vmul.f32 %v896, 1.442695
    %v898 = vpow.pop %v897
    %v899 = vadd.f32 %v898, 1.0
    %v900 = vrcp.pop %v899
    %v901 = vmul.f32 1.0, %v900
    %v902 = vadd.f32 %v851, %v348
    %v903 = vxor.u32 %v902, 2147483648
    %v904 = vmul.f32 %v903, 1.442695
    %v905 = vpow.pop %v904
    %v906 = vadd.f32 %v905, 1.0
    %v907 = vrcp.pop %v906
    %v908 = vmul.f32 1.0, %v907
    %v909 = vmul.f32 %v901, %v387
    %v910 = vadd.f32 %v890, %v909
    %v911 = vtanh.pop %v910
    %v912 = vsub.f32 1.0, %v908
    %v913 = vmul.f32 %v912, %v911
    %v914 = vmul.f32 %v908, 0.0
    %v915 = vadd.f32 %v913, %v914
    %v916 = vpack.c.bf16 %v915, %v915
    %v917 = vld [vmem:[#allocation8] sm:$0xff]
    %v918 = vld [vmem:[#allocation8 + $0x8] sm:$0xf]
    %v919 = vld [vmem:[#allocation8 + $0xc] sm:$0xff]
    %v920 = vld [vmem:[#allocation8 + $0x14] sm:$0xf]
    %v921 = vld [vmem:[#allocation8 + $0x18] sm:$0xff]
    %v922 = vld [vmem:[#allocation8 + $0x20] sm:$0xf]
    %v923 = vld [vmem:[#allocation8 + $0x24] sm:$0xff]
    %v924 = vld [vmem:[#allocation8 + $0x2c] sm:$0xf]
    %v925 = vld [vmem:[#allocation8 + $0x30] sm:$0xff]
    %v926 = vld [vmem:[#allocation8 + $0x38] sm:$0xf]
    %v927 = vld [vmem:[#allocation8 + $0x3c] sm:$0xff]
    %v928 = vld [vmem:[#allocation8 + $0x44] sm:$0xf]
    %v929 = vld [vmem:[#allocation8 + $0x48] sm:$0xff]
    %v930 = vld [vmem:[#allocation8 + $0x50] sm:$0xf]
    %v931 = vld [vmem:[#allocation8 + $0x54] sm:$0xff]
    %v932 = vld [vmem:[#allocation8 + $0x5c] sm:$0xf]
    %v933 = vld [vmem:[#allocation8 + $0x60] sm:$0xff]
    %v934 = vld [vmem:[#allocation8 + $0x68] sm:$0xf]
    %v935 = vld [vmem:[#allocation8 + $0x6c] sm:$0xff]
    %v936 = vld [vmem:[#allocation8 + $0x74] sm:$0xf]
    %v937 = vld [vmem:[#allocation8 + $0x78] sm:$0xff]
    %v938 = vld [vmem:[#allocation8 + $0x80] sm:$0xf]
    %v939 = vld [vmem:[#allocation8 + $0x84] sm:$0xff]
    %v940 = vld [vmem:[#allocation8 + $0x8c] sm:$0xf]
    %v941 = vld [vmem:[#allocation8 + $0x90] sm:$0xff]
    %v942 = vld [vmem:[#allocation8 + $0x98] sm:$0xf]
    %v943 = vld [vmem:[#allocation8 + $0x9c] sm:$0xff]
    %v944 = vld [vmem:[#allocation8 + $0xa4] sm:$0xf]
    %v945 = vld [vmem:[#allocation8 + $0xa8] sm:$0xff]
    %v946 = vld [vmem:[#allocation8 + $0xb0] sm:$0xf]
    %v947 = vld [vmem:[#allocation8 + $0xb4] sm:$0xff]
    %v948 = vld [vmem:[#allocation8 + $0xbc] sm:$0xf]
    %v949 = vld [vmem:[%s4] sm:$0x7]
    %v951 = vlaneseq
    %v952 = vshrl.u32 %v951, 7
    %v953 = vsub.s32 0, %v952
    %v954 = vrot.slane %v949, %v953
    %v955 = vlaneseq
    %v956 = vshrl.u32 %v955, 7
    %v957 = vsub.s32 1, %v956
    %v958 = vrot.slane %v949, %v957
    %v959 = vlaneseq
    %v960 = vshrl.u32 %v959, 7
    %v961 = vsub.s32 2, %v960
    %v962 = vrot.slane %v949, %v961
    %v998 = vunpack.c.l.b16 %v917
    %v999 = vunpack.c.h.b16 %v917
    %v1000 = vunpack.c.l.b16 %v918
    %v1001 = vunpack.c.l.b16 %v919
    %v1002 = vunpack.c.h.b16 %v919
    %v1003 = vunpack.c.l.b16 %v920
    %v1004 = vunpack.c.l.b16 %v921
    %v1005 = vunpack.c.h.b16 %v921
    %v1006 = vunpack.c.l.b16 %v922
    %v1007 = vunpack.c.l.b16 %v923
    %v1008 = vunpack.c.h.b16 %v923
    %v1009 = vunpack.c.l.b16 %v924
    %v1010 = vunpack.c.l.b16 %v925
    %v1011 = vunpack.c.h.b16 %v925
    %v1012 = vunpack.c.l.b16 %v926
    %v1013 = vunpack.c.l.b16 %v927
    %v1014 = vunpack.c.h.b16 %v927
    %v1015 = vunpack.c.l.b16 %v928
    %v1016 = vunpack.c.l.b16 %v929
    %v1017 = vunpack.c.h.b16 %v929
    %v1018 = vunpack.c.l.b16 %v930
    %v1019 = vunpack.c.l.b16 %v931
    %v1020 = vunpack.c.h.b16 %v931
    %v1021 = vunpack.c.l.b16 %v932
    %v1022 = vunpack.c.l.b16 %v933
    %v1023 = vunpack.c.h.b16 %v933
    %v1024 = vunpack.c.l.b16 %v934
    %v1025 = vunpack.c.l.b16 %v935
    %v1026 = vunpack.c.h.b16 %v935
    %v1027 = vunpack.c.l.b16 %v936
    %v1028 = vunpack.c.l.b16 %v937
    %v1029 = vunpack.c.h.b16 %v937
    %v1030 = vunpack.c.l.b16 %v938
    %v1031 = vunpack.c.l.b16 %v939
    %v1032 = vunpack.c.h.b16 %v939
    %v1033 = vunpack.c.l.b16 %v940
    %v1034 = vunpack.c.l.b16 %v941
    %v1035 = vunpack.c.h.b16 %v941
    %v1036 = vunpack.c.l.b16 %v942
    %v1037 = vunpack.c.l.b16 %v943
    %v1038 = vunpack.c.h.b16 %v943
    %v1039 = vunpack.c.l.b16 %v944
    %v1040 = vunpack.c.l.b16 %v945
    %v1041 = vunpack.c.h.b16 %v945
    %v1042 = vunpack.c.l.b16 %v946
    %v1043 = vunpack.c.l.b16 %v947
    %v1044 = vunpack.c.h.b16 %v947
    %v1045 = vunpack.c.l.b16 %v948
    %v1046 = vpack.c.b16 %v1001, %v998
    %v1047 = vpack.c.b16 %v1002, %v999
    %v1048 = vpack.c.b16 %v1003, %v1000
    %v1049 = vpack.c.b16 %v1007, %v1004
    %v1050 = vpack.c.b16 %v1008, %v1005
    %v1051 = vpack.c.b16 %v1009, %v1006
    %v1052 = vpack.c.b16 %v1013, %v1010
    %v1053 = vpack.c.b16 %v1014, %v1011
    %v1054 = vpack.c.b16 %v1015, %v1012
    %v1055 = vpack.c.b16 %v1019, %v1016
    %v1056 = vpack.c.b16 %v1020, %v1017
    %v1057 = vpack.c.b16 %v1021, %v1018
    %v1058 = vpack.c.b16 %v1025, %v1022
    %v1059 = vpack.c.b16 %v1026, %v1023
    %v1060 = vpack.c.b16 %v1027, %v1024
    %v1061 = vpack.c.b16 %v1031, %v1028
    %v1062 = vpack.c.b16 %v1032, %v1029
    %v1063 = vpack.c.b16 %v1033, %v1030
    %v1064 = vpack.c.b16 %v1037, %v1034
    %v1065 = vpack.c.b16 %v1038, %v1035
    %v1066 = vpack.c.b16 %v1039, %v1036
    %v1067 = vpack.c.b16 %v1043, %v1040
    %v1068 = vpack.c.b16 %v1044, %v1041
    %v1069 = vpack.c.b16 %v1045, %v1042
    %1094 = vmatprep.subr.bf16.mxu0 %v1047
    %1095 = vmatpush1.bf16.msra.mxu0 %v1046
    %1096 = vmatprep.subr.bf16.mxu0 %v1050
    %1097 = vmatpush1.bf16.msra.mxu0 %v1049
    %1098 = vmatprep.subr.bf16.mxu0 %v1053
    %1099 = vmatpush1.bf16.msra.mxu0 %v1052
    %1100 = vmatprep.subr.bf16.mxu0 %v1056
    %1101 = vmatpush1.bf16.msra.mxu0 %v1055
    %1102 = vmatprep.subr.bf16.mxu0 %v1059
    %1103 = vmatpush1.bf16.msra.mxu0 %v1058
    %1104 = vmatprep.subr.bf16.mxu0 %v1062
    %1105 = vmatpush1.bf16.msra.mxu0 %v1061
    %1106 = vmatprep.subr.bf16.mxu0 %v1065
    %1107 = vmatpush1.bf16.msra.mxu0 %v1064
    %1108 = vmatprep.subr.bf16.mxu0 %v1068
    %1109 = vmatpush1.bf16.msra.mxu0 %v1067
    %1110 = vmatprep.subr.bf16.mxu0 0
    %1111 = vmatpush1.bf16.msra.mxu0 0
    %1112 = vmatprep.subr.bf16.mxu0 0
    %1113 = vmatpush1.bf16.msra.mxu0 0
    %1114 = vmatprep.subr.bf16.mxu0 0
    %1115 = vmatpush1.bf16.msra.mxu0 0
    %1116 = vmatprep.subr.bf16.mxu0 0
    %1117 = vmatpush1.bf16.msra.mxu0 0
    %1118 = vmatprep.subr.bf16.mxu0 0
    %1119 = vmatpush1.bf16.msra.mxu0 0
    %1120 = vmatprep.subr.bf16.mxu0 0
    %1121 = vmatpush1.bf16.msra.mxu0 0
    %1122 = vmatprep.subr.bf16.mxu0 0
    %1123 = vmatpush1.bf16.msra.mxu0 0
    %1124 = vmatprep.subr.bf16.mxu0 0
    %1125 = vmatpush1.bf16.msra.mxu0 0
    %1126 = vmatprep.mubr.bf16.mxu0 0
    %1127 = vmatmul.mubr.bf16.gmra.mrb[0].mxu0 %v916
    %v1128 = vpop.f32.mrb[0].mxu0
    %v1129 = vadd.f32 %v954, %v1128
    %v1130 = vpop.f32.mrb[0].mxu0
    %v1131 = vadd.f32 %v958, %v1130
    %v1132 = vpop.f32.mrb[0].mxu0
    %v1133 = vpop.f32.mrb[0].mxu0
    %1134 = vdwg.mxu0
    %1135 = vmatprep.subr.bf16.mxu0 0
    %1136 = vmatpush1.bf16.msra.mxu0 %v1048
    %1137 = vmatprep.subr.bf16.mxu0 0
    %1138 = vmatpush1.bf16.msra.mxu0 %v1051
    %1139 = vmatprep.subr.bf16.mxu0 0
    %1140 = vmatpush1.bf16.msra.mxu0 %v1054
    %1141 = vmatprep.subr.bf16.mxu0 0
    %1142 = vmatpush1.bf16.msra.mxu0 %v1057
    %1143 = vmatprep.subr.bf16.mxu0 0
    %1144 = vmatpush1.bf16.msra.mxu0 %v1060
    %1145 = vmatprep.subr.bf16.mxu0 0
    %1146 = vmatpush1.bf16.msra.mxu0 %v1063
    %1147 = vmatprep.subr.bf16.mxu0 0
    %1148 = vmatpush1.bf16.msra.mxu0 %v1066
    %1149 = vmatprep.subr.bf16.mxu0 0
    %1150 = vmatpush1.bf16.msra.mxu0 %v1069
    %1151 = vmatprep.subr.bf16.mxu0 0
    %1152 = vmatpush1.bf16.msra.mxu0 0
    %1153 = vmatprep.subr.bf16.mxu0 0
    %1154 = vmatpush1.bf16.msra.mxu0 0
    %1155 = vmatprep.subr.bf16.mxu0 0
    %1156 = vmatpush1.bf16.msra.mxu0 0
    %1157 = vmatprep.subr.bf16.mxu0 0
    %1158 = vmatpush1.bf16.msra.mxu0 0
    %1159 = vmatprep.subr.bf16.mxu0 0
    %1160 = vmatpush1.bf16.msra.mxu0 0
    %1161 = vmatprep.subr.bf16.mxu0 0
    %1162 = vmatpush1.bf16.msra.mxu0 0
    %1163 = vmatprep.subr.bf16.mxu0 0
    %1164 = vmatpush1.bf16.msra.mxu0 0
    %1165 = vmatprep.subr.bf16.mxu0 0
    %1166 = vmatpush1.bf16.msra.mxu0 0
    %1167 = vmatprep.mubr.bf16.mxu0 0
    %1168 = vmatmul.mubr.bf16.gmra.mrb[0].mxu0 %v916
    %v1169 = vpop.f32.mrb[0].mxu0
    %v1170 = vadd.f32 %v962, %v1169
    %v1171 = vpop.f32.mrb[0].mxu0
    %v1172 = vpop.f32.mrb[0].mxu0
    %v1173 = vpop.f32.mrb[0].mxu0
    %1174 = vdwg.mxu0
    %v1175 = vadd.f32 %v1129, %v604
    %v1176 = vxor.u32 %v1175, 2147483648
    %v1177 = vmul.f32 %v1176, 1.442695
    %v1178 = vpow.pop %v1177
    %v1179 = vadd.f32 %v1178, 1.0
    %v1180 = vrcp.pop %v1179
    %v1181 = vmul.f32 1.0, %v1180
    %v1182 = vadd.f32 %v1131, %v606
    %v1183 = vxor.u32 %v1182, 2147483648
    %v1184 = vmul.f32 %v1183, 1.442695
    %v1185 = vpow.pop %v1184
    %v1186 = vadd.f32 %v1185, 1.0
    %v1187 = vrcp.pop %v1186
    %v1188 = vmul.f32 1.0, %v1187
    %v1189 = vmul.f32 %v1181, %v645
    %v1190 = vadd.f32 %v1170, %v1189
    %v1191 = vtanh.pop %v1190
    %v1192 = vsub.f32 1.0, %v1188
    %v1193 = vmul.f32 %v1192, %v1191
    %v1194 = vmul.f32 %v1188, 0.0
    %v1195 = vadd.f32 %v1193, %v1194
    %v1196 = vpack.c.bf16 %v1195, %v1195
    %v1197 = vld [vmem:[#allocation13] sm:$0xf]
    %v1198 = vld [vmem:[#allocation13 + $0x4] sm:$0xf]
    %v1199 = vld [vmem:[#allocation13 + $0x8] sm:$0xf]
    %v1200 = vld [vmem:[#allocation13 + $0xc] sm:$0xf]
    %v1201 = vld [vmem:[#allocation13 + $0x10] sm:$0xf]
    %v1202 = vld [vmem:[#allocation13 + $0x14] sm:$0xf]
    %v1203 = vld [vmem:[#allocation13 + $0x18] sm:$0xf]
    %v1204 = vld [vmem:[#allocation13 + $0x1c] sm:$0xf]
    %v1205 = vld [vmem:[#allocation13 + $0x20] sm:$0xf]
    %v1206 = vld [vmem:[#allocation13 + $0x24] sm:$0xf]
    %v1207 = vld [vmem:[#allocation13 + $0x28] sm:$0xf]
    %v1208 = vld [vmem:[#allocation13 + $0x2c] sm:$0xf]
    %v1209 = vld [vmem:[#allocation13 + $0x30] sm:$0xf]
    %v1210 = vld [vmem:[#allocation13 + $0x34] sm:$0xf]
    %v1211 = vld [vmem:[#allocation13 + $0x38] sm:$0xf]
    %v1212 = vld [vmem:[#allocation13 + $0x3c] sm:$0xf]
    %v1213 = vld [vmem:[%s10] sm:$0x1]
    %v1215 = vlaneseq
    %v1216 = vshrl.u32 %v1215, 7
    %v1217 = vsub.s32 0, %v1216
    %v1218 = vrot.slane %v1213, %v1217
    %v1236 = vunpack.c.l.b16 %v1197
    %v1237 = vunpack.c.l.b16 %v1198
    %v1238 = vunpack.c.l.b16 %v1199
    %v1239 = vunpack.c.l.b16 %v1200
    %v1240 = vunpack.c.l.b16 %v1201
    %v1241 = vunpack.c.l.b16 %v1202
    %v1242 = vunpack.c.l.b16 %v1203
    %v1243 = vunpack.c.l.b16 %v1204
    %v1244 = vunpack.c.l.b16 %v1205
    %v1245 = vunpack.c.l.b16 %v1206
    %v1246 = vunpack.c.l.b16 %v1207
    %v1247 = vunpack.c.l.b16 %v1208
    %v1248 = vunpack.c.l.b16 %v1209
    %v1249 = vunpack.c.l.b16 %v1210
    %v1250 = vunpack.c.l.b16 %v1211
    %v1251 = vunpack.c.l.b16 %v1212
    %v1252 = vpack.c.b16 %v1237, %v1236
    %v1253 = vpack.c.b16 %v1239, %v1238
    %v1254 = vpack.c.b16 %v1241, %v1240
    %v1255 = vpack.c.b16 %v1243, %v1242
    %v1256 = vpack.c.b16 %v1245, %v1244
    %v1257 = vpack.c.b16 %v1247, %v1246
    %v1258 = vpack.c.b16 %v1249, %v1248
    %v1259 = vpack.c.b16 %v1251, %v1250
    %1268 = vmatprep.subr.bf16.mxu0 0
    %1269 = vmatpush1.bf16.msra.mxu0 %v1252
    %1270 = vmatprep.subr.bf16.mxu0 0
    %1271 = vmatpush1.bf16.msra.mxu0 %v1253
    %1272 = vmatprep.subr.bf16.mxu0 0
    %1273 = vmatpush1.bf16.msra.mxu0 %v1254
    %1274 = vmatprep.subr.bf16.mxu0 0
    %1275 = vmatpush1.bf16.msra.mxu0 %v1255
    %1276 = vmatprep.subr.bf16.mxu0 0
    %1277 = vmatpush1.bf16.msra.mxu0 %v1256
    %1278 = vmatprep.subr.bf16.mxu0 0
    %1279 = vmatpush1.bf16.msra.mxu0 %v1257
    %1280 = vmatprep.subr.bf16.mxu0 0
    %1281 = vmatpush1.bf16.msra.mxu0 %v1258
    %1282 = vmatprep.subr.bf16.mxu0 0
    %1283 = vmatpush1.bf16.msra.mxu0 %v1259
    %1284 = vmatprep.subr.bf16.mxu0 0
    %1285 = vmatpush1.bf16.msra.mxu0 0
    %1286 = vmatprep.subr.bf16.mxu0 0
    %1287 = vmatpush1.bf16.msra.mxu0 0
    %1288 = vmatprep.subr.bf16.mxu0 0
    %1289 = vmatpush1.bf16.msra.mxu0 0
    %1290 = vmatprep.subr.bf16.mxu0 0
    %1291 = vmatpush1.bf16.msra.mxu0 0
    %1292 = vmatprep.subr.bf16.mxu0 0
    %1293 = vmatpush1.bf16.msra.mxu0 0
    %1294 = vmatprep.subr.bf16.mxu0 0
    %1295 = vmatpush1.bf16.msra.mxu0 0
    %1296 = vmatprep.subr.bf16.mxu0 0
    %1297 = vmatpush1.bf16.msra.mxu0 0
    %1298 = vmatprep.subr.bf16.mxu0 0
    %1299 = vmatpush1.bf16.msra.mxu0 0
    %1300 = vmatprep.mubr.bf16.mxu0 0
    %1301 = vmatmul.mubr.bf16.gmra.mrb[0].mxu0 %v1196
    %v1302 = vpop.f32.mrb[0].mxu0
    %v1303 = vadd.f32 %v1218, %v1302
    %v1304 = vpop.f32.mrb[0].mxu0
    %v1305 = vpop.f32.mrb[0].mxu0
    %v1306 = vpop.f32.mrb[0].mxu0
    %1307 = vdwg.mxu0
    %1308 = vst [vmem:[#allocation14] sm:$0xff] %v1303
    %1309 = vmax.xlane.f32.xlu0 %v1303
    %v1310 = vpop.xlane.xlu0 %1309
    %vm1311 = vcmp.eq.f32.partialorder %v1303, %v1310
    %v1312 = vsel %vm1311, %v132, 128
    %v1313 = vand.u32 %v1312, 65535
    %v1314 = vshra.s32 %v1312, 16
    %v1315 = vcvt.s32.f32 %v1313
    %v1316 = vcvt.s32.f32 %v1314
    %1317 = vmin.xlane.f32.xlu0 %v1316
    %v1318 = vpop.xlane.xlu0 %1317
    %vm1319 = vcmp.eq.f32.partialorder %v1316, %v1318
    %v1320 = vsel %vm1319, %v1315, inf
    %1321 = vmin.xlane.f32.xlu0 %v1320
    %v1322 = vpop.xlane.xlu0 %1321
    %v1323 = vcvt.f32.s32 %v1322
    %v1324 = vcvt.f32.s32 %v1318
    %v1325 = vshll.u32 %v1324, 16
    %v1326 = vadd.s32 %v1325, %v1323
    %vm1327 = vcmp.eq.s32.totalorder %v132, %v1326
    %v1328 = vsel %vm1327, 1.0, 0.0
    %v1329 = vld [vmem:[#allocation10] sm:$0xff]
    %v1330 = vld [vmem:[#allocation10 + $0x8] sm:$0xf]
    %v1331 = vld [vmem:[#allocation10 + $0xc] sm:$0xff]
    %v1332 = vld [vmem:[#allocation10 + $0x14] sm:$0xf]
    %v1333 = vld [vmem:[#allocation10 + $0x18] sm:$0xff]
    %v1334 = vld [vmem:[#allocation10 + $0x20] sm:$0xf]
    %v1335 = vld [vmem:[#allocation10 + $0x24] sm:$0xff]
    %v1336 = vld [vmem:[#allocation10 + $0x2c] sm:$0xf]
    %v1337 = vld [vmem:[#allocation10 + $0x30] sm:$0xff]
    %v1338 = vld [vmem:[#allocation10 + $0x38] sm:$0xf]
    %v1339 = vld [vmem:[#allocation10 + $0x3c] sm:$0xff]
    %v1340 = vld [vmem:[#allocation10 + $0x44] sm:$0xf]
    %v1341 = vld [vmem:[#allocation10 + $0x48] sm:$0xff]
    %v1342 = vld [vmem:[#allocation10 + $0x50] sm:$0xf]
    %v1343 = vld [vmem:[#allocation10 + $0x54] sm:$0xff]
    %v1344 = vld [vmem:[#allocation10 + $0x5c] sm:$0xf]
    %v1345 = vld [vmem:[#allocation10 + $0x60] sm:$0xff]
    %v1346 = vld [vmem:[#allocation10 + $0x68] sm:$0xf]
    %v1347 = vld [vmem:[#allocation10 + $0x6c] sm:$0xff]
    %v1348 = vld [vmem:[#allocation10 + $0x74] sm:$0xf]
    %v1349 = vld [vmem:[#allocation10 + $0x78] sm:$0xff]
    %v1350 = vld [vmem:[#allocation10 + $0x80] sm:$0xf]
    %v1351 = vld [vmem:[#allocation10 + $0x84] sm:$0xff]
    %v1352 = vld [vmem:[#allocation10 + $0x8c] sm:$0xf]
    %v1353 = vld [vmem:[#allocation10 + $0x90] sm:$0xff]
    %v1354 = vld [vmem:[#allocation10 + $0x98] sm:$0xf]
    %v1355 = vld [vmem:[#allocation10 + $0x9c] sm:$0xff]
    %v1356 = vld [vmem:[#allocation10 + $0xa4] sm:$0xf]
    %v1357 = vld [vmem:[#allocation10 + $0xa8] sm:$0xff]
    %v1358 = vld [vmem:[#allocation10 + $0xb0] sm:$0xf]
    %v1359 = vld [vmem:[#allocation10 + $0xb4] sm:$0xff]
    %v1360 = vld [vmem:[#allocation10 + $0xbc] sm:$0xf]
    %v1361 = vld [vmem:[%s6] sm:$0x7]
    %v1363 = vlaneseq
    %v1364 = vshrl.u32 %v1363, 7
    %v1365 = vsub.s32 0, %v1364
    %v1366 = vrot.slane %v1361, %v1365
    %v1367 = vlaneseq
    %v1368 = vshrl.u32 %v1367, 7
    %v1369 = vsub.s32 1, %v1368
    %v1370 = vrot.slane %v1361, %v1369
    %v1371 = vlaneseq
    %v1372 = vshrl.u32 %v1371, 7
    %v1373 = vsub.s32 2, %v1372
    %v1374 = vrot.slane %v1361, %v1373
    %v1410 = vunpack.c.l.b16 %v1329
    %v1411 = vunpack.c.h.b16 %v1329
    %v1412 = vunpack.c.l.b16 %v1330
    %v1413 = vunpack.c.l.b16 %v1331
    %v1414 = vunpack.c.h.b16 %v1331
    %v1415 = vunpack.c.l.b16 %v1332
    %v1416 = vunpack.c.l.b16 %v1333
    %v1417 = vunpack.c.h.b16 %v1333
    %v1418 = vunpack.c.l.b16 %v1334
    %v1419 = vunpack.c.l.b16 %v1335
    %v1420 = vunpack.c.h.b16 %v1335
    %v1421 = vunpack.c.l.b16 %v1336
    %v1422 = vunpack.c.l.b16 %v1337
    %v1423 = vunpack.c.h.b16 %v1337
    %v1424 = vunpack.c.l.b16 %v1338
    %v1425 = vunpack.c.l.b16 %v1339
    %v1426 = vunpack.c.h.b16 %v1339
    %v1427 = vunpack.c.l.b16 %v1340
    %v1428 = vunpack.c.l.b16 %v1341
    %v1429 = vunpack.c.h.b16 %v1341
    %v1430 = vunpack.c.l.b16 %v1342
    %v1431 = vunpack.c.l.b16 %v1343
    %v1432 = vunpack.c.h.b16 %v1343
    %v1433 = vunpack.c.l.b16 %v1344
    %v1434 = vunpack.c.l.b16 %v1345
    %v1435 = vunpack.c.h.b16 %v1345
    %v1436 = vunpack.c.l.b16 %v1346
    %v1437 = vunpack.c.l.b16 %v1347
    %v1438 = vunpack.c.h.b16 %v1347
    %v1439 = vunpack.c.l.b16 %v1348
    %v1440 = vunpack.c.l.b16 %v1349
    %v1441 = vunpack.c.h.b16 %v1349
    %v1442 = vunpack.c.l.b16 %v1350
    %v1443 = vunpack.c.l.b16 %v1351
    %v1444 = vunpack.c.h.b16 %v1351
    %v1445 = vunpack.c.l.b16 %v1352
    %v1446 = vunpack.c.l.b16 %v1353
    %v1447 = vunpack.c.h.b16 %v1353
    %v1448 = vunpack.c.l.b16 %v1354
    %v1449 = vunpack.c.l.b16 %v1355
    %v1450 = vunpack.c.h.b16 %v1355
    %v1451 = vunpack.c.l.b16 %v1356
    %v1452 = vunpack.c.l.b16 %v1357
    %v1453 = vunpack.c.h.b16 %v1357
    %v1454 = vunpack.c.l.b16 %v1358
    %v1455 = vunpack.c.l.b16 %v1359
    %v1456 = vunpack.c.h.b16 %v1359
    %v1457 = vunpack.c.l.b16 %v1360
    %v1458 = vpack.c.b16 %v1413, %v1410
    %v1459 = vpack.c.b16 %v1414, %v1411
    %v1460 = vpack.c.b16 %v1415, %v1412
    %v1461 = vpack.c.b16 %v1419, %v1416
    %v1462 = vpack.c.b16 %v1420, %v1417
    %v1463 = vpack.c.b16 %v1421, %v1418
    %v1464 = vpack.c.b16 %v1425, %v1422
    %v1465 = vpack.c.b16 %v1426, %v1423
    %v1466 = vpack.c.b16 %v1427, %v1424
    %v1467 = vpack.c.b16 %v1431, %v1428
    %v1468 = vpack.c.b16 %v1432, %v1429
    %v1469 = vpack.c.b16 %v1433, %v1430
    %v1470 = vpack.c.b16 %v1437, %v1434
    %v1471 = vpack.c.b16 %v1438, %v1435
    %v1472 = vpack.c.b16 %v1439, %v1436
    %v1473 = vpack.c.b16 %v1443, %v1440
    %v1474 = vpack.c.b16 %v1444, %v1441
    %v1475 = vpack.c.b16 %v1445, %v1442
    %v1476 = vpack.c.b16 %v1449, %v1446
    %v1477 = vpack.c.b16 %v1450, %v1447
    %v1478 = vpack.c.b16 %v1451, %v1448
    %v1479 = vpack.c.b16 %v1455, %v1452
    %v1480 = vpack.c.b16 %v1456, %v1453
    %v1481 = vpack.c.b16 %v1457, %v1454
    %1506 = vmatprep.subr.bf16.mxu0 %v1459
    %1507 = vmatpush1.bf16.msra.mxu0 %v1458
    %1508 = vmatprep.subr.bf16.mxu0 %v1462
    %1509 = vmatpush1.bf16.msra.mxu0 %v1461
    %1510 = vmatprep.subr.bf16.mxu0 %v1465
    %1511 = vmatpush1.bf16.msra.mxu0 %v1464
    %1512 = vmatprep.subr.bf16.mxu0 %v1468
    %1513 = vmatpush1.bf16.msra.mxu0 %v1467
    %1514 = vmatprep.subr.bf16.mxu0 %v1471
    %1515 = vmatpush1.bf16.msra.mxu0 %v1470
    %1516 = vmatprep.subr.bf16.mxu0 %v1474
    %1517 = vmatpush1.bf16.msra.mxu0 %v1473
    %1518 = vmatprep.subr.bf16.mxu0 %v1477
    %1519 = vmatpush1.bf16.msra.mxu0 %v1476
    %1520 = vmatprep.subr.bf16.mxu0 %v1480
    %1521 = vmatpush1.bf16.msra.mxu0 %v1479
    %1522 = vmatprep.subr.bf16.mxu0 0
    %1523 = vmatpush1.bf16.msra.mxu0 0
    %1524 = vmatprep.subr.bf16.mxu0 0
    %1525 = vmatpush1.bf16.msra.mxu0 0
    %1526 = vmatprep.subr.bf16.mxu0 0
    %1527 = vmatpush1.bf16.msra.mxu0 0
    %1528 = vmatprep.subr.bf16.mxu0 0
    %1529 = vmatpush1.bf16.msra.mxu0 0
    %1530 = vmatprep.subr.bf16.mxu0 0
    %1531 = vmatpush1.bf16.msra.mxu0 0
    %1532 = vmatprep.subr.bf16.mxu0 0
    %1533 = vmatpush1.bf16.msra.mxu0 0
    %1534 = vmatprep.subr.bf16.mxu0 0
    %1535 = vmatpush1.bf16.msra.mxu0 0
    %1536 = vmatprep.subr.bf16.mxu0 0
    %1537 = vmatpush1.bf16.msra.mxu0 0
    %1538 = vmatprep.mubr.bf16.mxu0 0
    %1539 = vmatmul.mubr.bf16.gmra.mrb[0].mxu0 %v916
    %v1540 = vpop.f32.mrb[0].mxu0
    %v1541 = vadd.f32 %v1366, %v1540
    %v1542 = vpop.f32.mrb[0].mxu0
    %v1543 = vadd.f32 %v1370, %v1542
    %v1544 = vpop.f32.mrb[0].mxu0
    %v1545 = vpop.f32.mrb[0].mxu0
    %1546 = vdwg.mxu0
    %1547 = vmatprep.subr.bf16.mxu0 0
    %1548 = vmatpush1.bf16.msra.mxu0 %v1460
    %1549 = vmatprep.subr.bf16.mxu0 0
    %1550 = vmatpush1.bf16.msra.mxu0 %v1463
    %1551 = vmatprep.subr.bf16.mxu0 0
    %1552 = vmatpush1.bf16.msra.mxu0 %v1466
    %1553 = vmatprep.subr.bf16.mxu0 0
    %1554 = vmatpush1.bf16.msra.mxu0 %v1469
    %1555 = vmatprep.subr.bf16.mxu0 0
    %1556 = vmatpush1.bf16.msra.mxu0 %v1472
    %1557 = vmatprep.subr.bf16.mxu0 0
    %1558 = vmatpush1.bf16.msra.mxu0 %v1475
    %1559 = vmatprep.subr.bf16.mxu0 0
    %1560 = vmatpush1.bf16.msra.mxu0 %v1478
    %1561 = vmatprep.subr.bf16.mxu0 0
    %1562 = vmatpush1.bf16.msra.mxu0 %v1481
    %1563 = vmatprep.subr.bf16.mxu0 0
    %1564 = vmatpush1.bf16.msra.mxu0 0
    %1565 = vmatprep.subr.bf16.mxu0 0
    %1566 = vmatpush1.bf16.msra.mxu0 0
    %1567 = vmatprep.subr.bf16.mxu0 0
    %1568 = vmatpush1.bf16.msra.mxu0 0
    %1569 = vmatprep.subr.bf16.mxu0 0
    %1570 = vmatpush1.bf16.msra.mxu0 0
    %1571 = vmatprep.subr.bf16.mxu0 0
    %1572 = vmatpush1.bf16.msra.mxu0 0
    %1573 = vmatprep.subr.bf16.mxu0 0
    %1574 = vmatpush1.bf16.msra.mxu0 0
    %1575 = vmatprep.subr.bf16.mxu0 0
    %1576 = vmatpush1.bf16.msra.mxu0 0
    %1577 = vmatprep.subr.bf16.mxu0 0
    %1578 = vmatpush1.bf16.msra.mxu0 0
    %1579 = vmatprep.mubr.bf16.mxu0 0
    %1580 = vmatmul.mubr.bf16.gmra.mrb[0].mxu0 %v916
    %v1581 = vpop.f32.mrb[0].mxu0
    %v1582 = vadd.f32 %v1374, %v1581
    %v1583 = vpop.f32.mrb[0].mxu0
    %v1584 = vpop.f32.mrb[0].mxu0
    %v1585 = vpop.f32.mrb[0].mxu0
    %1586 = vdwg.mxu0
    %v1587 = vld [vmem:[#allocation11] sm:$0xff]
    %v1588 = vld [vmem:[#allocation11 + $0x8] sm:$0xf]
    %v1589 = vld [vmem:[#allocation11 + $0xc] sm:$0xff]
    %v1590 = vld [vmem:[#allocation11 + $0x14] sm:$0xf]
    %v1591 = vld [vmem:[#allocation11 + $0x18] sm:$0xff]
    %v1592 = vld [vmem:[#allocation11 + $0x20] sm:$0xf]
    %v1593 = vld [vmem:[#allocation11 + $0x24] sm:$0xff]
    %v1594 = vld [vmem:[#allocation11 + $0x2c] sm:$0xf]
    %v1595 = vld [vmem:[#allocation11 + $0x30] sm:$0xff]
    %v1596 = vld [vmem:[#allocation11 + $0x38] sm:$0xf]
    %v1597 = vld [vmem:[#allocation11 + $0x3c] sm:$0xff]
    %v1598 = vld [vmem:[#allocation11 + $0x44] sm:$0xf]
    %v1599 = vld [vmem:[#allocation11 + $0x48] sm:$0xff]
    %v1600 = vld [vmem:[#allocation11 + $0x50] sm:$0xf]
    %v1601 = vld [vmem:[#allocation11 + $0x54] sm:$0xff]
    %v1602 = vld [vmem:[#allocation11 + $0x5c] sm:$0xf]
    %v1603 = vld [vmem:[#allocation11 + $0x60] sm:$0xff]
    %v1604 = vld [vmem:[#allocation11 + $0x68] sm:$0xf]
    %v1605 = vld [vmem:[#allocation11 + $0x6c] sm:$0xff]
    %v1606 = vld [vmem:[#allocation11 + $0x74] sm:$0xf]
    %v1607 = vld [vmem:[#allocation11 + $0x78] sm:$0xff]
    %v1608 = vld [vmem:[#allocation11 + $0x80] sm:$0xf]
    %v1609 = vld [vmem:[#allocation11 + $0x84] sm:$0xff]
    %v1610 = vld [vmem:[#allocation11 + $0x8c] sm:$0xf]
    %v1611 = vld [vmem:[#allocation11 + $0x90] sm:$0xff]
    %v1612 = vld [vmem:[#allocation11 + $0x98] sm:$0xf]
    %v1613 = vld [vmem:[#allocation11 + $0x9c] sm:$0xff]
    %v1614 = vld [vmem:[#allocation11 + $0xa4] sm:$0xf]
    %v1615 = vld [vmem:[#allocation11 + $0xa8] sm:$0xff]
    %v1616 = vld [vmem:[#allocation11 + $0xb0] sm:$0xf]
    %v1617 = vld [vmem:[#allocation11 + $0xb4] sm:$0xff]
    %v1618 = vld [vmem:[#allocation11 + $0xbc] sm:$0xf]
    %v1619 = vld [vmem:[%s8] sm:$0x7]
    %v1621 = vlaneseq
    %v1622 = vshrl.u32 %v1621, 7
    %v1623 = vsub.s32 0, %v1622
    %v1624 = vrot.slane %v1619, %v1623
    %v1625 = vlaneseq
    %v1626 = vshrl.u32 %v1625, 7
    %v1627 = vsub.s32 1, %v1626
    %v1628 = vrot.slane %v1619, %v1627
    %v1629 = vlaneseq
    %v1630 = vshrl.u32 %v1629, 7
    %v1631 = vsub.s32 2, %v1630
    %v1632 = vrot.slane %v1619, %v1631
    %v1668 = vunpack.c.l.b16 %v1587
    %v1669 = vunpack.c.h.b16 %v1587
    %v1670 = vunpack.c.l.b16 %v1588
    %v1671 = vunpack.c.l.b16 %v1589
    %v1672 = vunpack.c.h.b16 %v1589
    %v1673 = vunpack.c.l.b16 %v1590
    %v1674 = vunpack.c.l.b16 %v1591
    %v1675 = vunpack.c.h.b16 %v1591
    %v1676 = vunpack.c.l.b16 %v1592
    %v1677 = vunpack.c.l.b16 %v1593
    %v1678 = vunpack.c.h.b16 %v1593
    %v1679 = vunpack.c.l.b16 %v1594
    %v1680 = vunpack.c.l.b16 %v1595
    %v1681 = vunpack.c.h.b16 %v1595
    %v1682 = vunpack.c.l.b16 %v1596
    %v1683 = vunpack.c.l.b16 %v1597
    %v1684 = vunpack.c.h.b16 %v1597
    %v1685 = vunpack.c.l.b16 %v1598
    %v1686 = vunpack.c.l.b16 %v1599
    %v1687 = vunpack.c.h.b16 %v1599
    %v1688 = vunpack.c.l.b16 %v1600
    %v1689 = vunpack.c.l.b16 %v1601
    %v1690 = vunpack.c.h.b16 %v1601
    %v1691 = vunpack.c.l.b16 %v1602
    %v1692 = vunpack.c.l.b16 %v1603
    %v1693 = vunpack.c.h.b16 %v1603
    %v1694 = vunpack.c.l.b16 %v1604
    %v1695 = vunpack.c.l.b16 %v1605
    %v1696 = vunpack.c.h.b16 %v1605
    %v1697 = vunpack.c.l.b16 %v1606
    %v1698 = vunpack.c.l.b16 %v1607
    %v1699 = vunpack.c.h.b16 %v1607
    %v1700 = vunpack.c.l.b16 %v1608
    %v1701 = vunpack.c.l.b16 %v1609
    %v1702 = vunpack.c.h.b16 %v1609
    %v1703 = vunpack.c.l.b16 %v1610
    %v1704 = vunpack.c.l.b16 %v1611
    %v1705 = vunpack.c.h.b16 %v1611
    %v1706 = vunpack.c.l.b16 %v1612
    %v1707 = vunpack.c.l.b16 %v1613
    %v1708 = vunpack.c.h.b16 %v1613
    %v1709 = vunpack.c.l.b16 %v1614
    %v1710 = vunpack.c.l.b16 %v1615
    %v1711 = vunpack.c.h.b16 %v1615
    %v1712 = vunpack.c.l.b16 %v1616
    %v1713 = vunpack.c.l.b16 %v1617
    %v1714 = vunpack.c.h.b16 %v1617
    %v1715 = vunpack.c.l.b16 %v1618
    %v1716 = vpack.c.b16 %v1671, %v1668
    %v1717 = vpack.c.b16 %v1672, %v1669
    %v1718 = vpack.c.b16 %v1673, %v1670
    %v1719 = vpack.c.b16 %v1677, %v1674
    %v1720 = vpack.c.b16 %v1678, %v1675
    %v1721 = vpack.c.b16 %v1679, %v1676
    %v1722 = vpack.c.b16 %v1683, %v1680
    %v1723 = vpack.c.b16 %v1684, %v1681
    %v1724 = vpack.c.b16 %v1685, %v1682
    %v1725 = vpack.c.b16 %v1689, %v1686
    %v1726 = vpack.c.b16 %v1690, %v1687
    %v1727 = vpack.c.b16 %v1691, %v1688
    %v1728 = vpack.c.b16 %v1695, %v1692
    %v1729 = vpack.c.b16 %v1696, %v1693
    %v1730 = vpack.c.b16 %v1697, %v1694
    %v1731 = vpack.c.b16 %v1701, %v1698
    %v1732 = vpack.c.b16 %v1702, %v1699
    %v1733 = vpack.c.b16 %v1703, %v1700
    %v1734 = vpack.c.b16 %v1707, %v1704
    %v1735 = vpack.c.b16 %v1708, %v1705
    %v1736 = vpack.c.b16 %v1709, %v1706
    %v1737 = vpack.c.b16 %v1713, %v1710
    %v1738 = vpack.c.b16 %v1714, %v1711
    %v1739 = vpack.c.b16 %v1715, %v1712
    %1764 = vmatprep.subr.bf16.mxu0 %v1717
    %1765 = vmatpush1.bf16.msra.mxu0 %v1716
    %1766 = vmatprep.subr.bf16.mxu0 %v1720
    %1767 = vmatpush1.bf16.msra.mxu0 %v1719
    %1768 = vmatprep.subr.bf16.mxu0 %v1723
    %1769 = vmatpush1.bf16.msra.mxu0 %v1722
    %1770 = vmatprep.subr.bf16.mxu0 %v1726
    %1771 = vmatpush1.bf16.msra.mxu0 %v1725
    %1772 = vmatprep.subr.bf16.mxu0 %v1729
    %1773 = vmatpush1.bf16.msra.mxu0 %v1728
    %1774 = vmatprep.subr.bf16.mxu0 %v1732
    %1775 = vmatpush1.bf16.msra.mxu0 %v1731
    %1776 = vmatprep.subr.bf16.mxu0 %v1735
    %1777 = vmatpush1.bf16.msra.mxu0 %v1734
    %1778 = vmatprep.subr.bf16.mxu0 %v1738
    %1779 = vmatpush1.bf16.msra.mxu0 %v1737
    %1780 = vmatprep.subr.bf16.mxu0 0
    %1781 = vmatpush1.bf16.msra.mxu0 0
    %1782 = vmatprep.subr.bf16.mxu0 0
    %1783 = vmatpush1.bf16.msra.mxu0 0
    %1784 = vmatprep.subr.bf16.mxu0 0
    %1785 = vmatpush1.bf16.msra.mxu0 0
    %1786 = vmatprep.subr.bf16.mxu0 0
    %1787 = vmatpush1.bf16.msra.mxu0 0
    %1788 = vmatprep.subr.bf16.mxu0 0
    %1789 = vmatpush1.bf16.msra.mxu0 0
    %1790 = vmatprep.subr.bf16.mxu0 0
    %1791 = vmatpush1.bf16.msra.mxu0 0
    %1792 = vmatprep.subr.bf16.mxu0 0
    %1793 = vmatpush1.bf16.msra.mxu0 0
    %1794 = vmatprep.subr.bf16.mxu0 0
    %1795 = vmatpush1.bf16.msra.mxu0 0
    %1796 = vmatprep.mubr.bf16.mxu0 0
    %1797 = vmatmul.mubr.bf16.gmra.mrb[0].mxu0 %v1196
    %v1798 = vpop.f32.mrb[0].mxu0
    %v1799 = vadd.f32 %v1624, %v1798
    %v1800 = vpop.f32.mrb[0].mxu0
    %v1801 = vadd.f32 %v1628, %v1800
    %v1802 = vpop.f32.mrb[0].mxu0
    %v1803 = vpop.f32.mrb[0].mxu0
    %1804 = vdwg.mxu0
    %1805 = vmatprep.subr.bf16.mxu0 0
    %1806 = vmatpush1.bf16.msra.mxu0 %v1718
    %1807 = vmatprep.subr.bf16.mxu0 0
    %1808 = vmatpush1.bf16.msra.mxu0 %v1721
    %1809 = vmatprep.subr.bf16.mxu0 0
    %1810 = vmatpush1.bf16.msra.mxu0 %v1724
    %1811 = vmatprep.subr.bf16.mxu0 0
    %1812 = vmatpush1.bf16.msra.mxu0 %v1727
    %1813 = vmatprep.subr.bf16.mxu0 0
    %1814 = vmatpush1.bf16.msra.mxu0 %v1730
    %1815 = vmatprep.subr.bf16.mxu0 0
    %1816 = vmatpush1.bf16.msra.mxu0 %v1733
    %1817 = vmatprep.subr.bf16.mxu0 0
    %1818 = vmatpush1.bf16.msra.mxu0 %v1736
    %1819 = vmatprep.subr.bf16.mxu0 0
    %1820 = vmatpush1.bf16.msra.mxu0 %v1739
    %1821 = vmatprep.subr.bf16.mxu0 0
    %1822 = vmatpush1.bf16.msra.mxu0 0
    %1823 = vmatprep.subr.bf16.mxu0 0
    %1824 = vmatpush1.bf16.msra.mxu0 0
    %1825 = vmatprep.subr.bf16.mxu0 0
    %1826 = vmatpush1.bf16.msra.mxu0 0
    %1827 = vmatprep.subr.bf16.mxu0 0
    %1828 = vmatpush1.bf16.msra.mxu0 0
    %1829 = vmatprep.subr.bf16.mxu0 0
    %1830 = vmatpush1.bf16.msra.mxu0 0
    %1831 = vmatprep.subr.bf16.mxu0 0
    %1832 = vmatpush1.bf16.msra.mxu0 0
    %1833 = vmatprep.subr.bf16.mxu0 0
    %1834 = vmatpush1.bf16.msra.mxu0 0
    %1835 = vmatprep.subr.bf16.mxu0 0
    %1836 = vmatpush1.bf16.msra.mxu0 0
    %1837 = vmatprep.mubr.bf16.mxu0 0
    %1838 = vmatmul.mubr.bf16.gmra.mrb[0].mxu0 %v1196
    %v1839 = vpop.f32.mrb[0].mxu0
    %v1840 = vadd.f32 %v1632, %v1839
    %v1841 = vpop.f32.mrb[0].mxu0
    %v1842 = vpop.f32.mrb[0].mxu0
    %v1843 = vpop.f32.mrb[0].mxu0
    %1844 = vdwg.mxu0
    %v1845 = vpack.c.bf16 %v1328, %v1328
    %v1846 = vld [vmem:[#allocation5] sm:$0xff]
    %v1847 = vld [vmem:[#allocation5 + $0x8] sm:$0xf]
    %v1848 = vld [vmem:[#allocation5 + $0xc] sm:$0xff]
    %v1849 = vld [vmem:[#allocation5 + $0x14] sm:$0xf]
    %v1850 = vld [vmem:[#allocation5 + $0x18] sm:$0xff]
    %v1851 = vld [vmem:[#allocation5 + $0x20] sm:$0xf]
    %v1852 = vld [vmem:[#allocation5 + $0x24] sm:$0xff]
    %v1853 = vld [vmem:[#allocation5 + $0x2c] sm:$0xf]
    %v1854 = vld [vmem:[#allocation5 + $0x30] sm:$0xff]
    %v1855 = vld [vmem:[#allocation5 + $0x38] sm:$0xf]
    %v1856 = vld [vmem:[#allocation5 + $0x3c] sm:$0xff]
    %v1857 = vld [vmem:[#allocation5 + $0x44] sm:$0xf]
    %v1858 = vld [vmem:[#allocation5 + $0x48] sm:$0xff]
    %v1859 = vld [vmem:[#allocation5 + $0x50] sm:$0xf]
    %v1860 = vld [vmem:[#allocation5 + $0x54] sm:$0xff]
    %v1861 = vld [vmem:[#allocation5 + $0x5c] sm:$0xf]
    %v1862 = vld [vmem:[#allocation5 + $0x60] sm:$0xff]
    %v1863 = vld [vmem:[#allocation5 + $0x68] sm:$0xf]
    %v1864 = vld [vmem:[#allocation5 + $0x6c] sm:$0xff]
    %v1865 = vld [vmem:[#allocation5 + $0x74] sm:$0xf]
    %v1866 = vld [vmem:[#allocation5 + $0x78] sm:$0xff]
    %v1867 = vld [vmem:[#allocation5 + $0x80] sm:$0xf]
    %v1868 = vld [vmem:[#allocation5 + $0x84] sm:$0xff]
    %v1869 = vld [vmem:[#allocation5 + $0x8c] sm:$0xf]
    %v1870 = vld [vmem:[#allocation5 + $0x90] sm:$0xff]
    %v1871 = vld [vmem:[#allocation5 + $0x98] sm:$0xf]
    %v1872 = vld [vmem:[#allocation5 + $0x9c] sm:$0xff]
    %v1873 = vld [vmem:[#allocation5 + $0xa4] sm:$0xf]
    %v1874 = vld [vmem:[#allocation5 + $0xa8] sm:$0xff]
    %v1875 = vld [vmem:[#allocation5 + $0xb0] sm:$0xf]
    %v1876 = vld [vmem:[#allocation5 + $0xb4] sm:$0xff]
    %v1877 = vld [vmem:[#allocation5 + $0xbc] sm:$0xf]
    %v1878 = vld [vmem:[#allocation7] sm:$0xff]
    %v1879 = vld [vmem:[#allocation7 + $0x8] sm:$0xff]
    %v1880 = vld [vmem:[#allocation7 + $0x10] sm:$0xff]
    %v1913 = vunpack.c.l.b16 %v1846
    %v1914 = vunpack.c.h.b16 %v1846
    %v1915 = vunpack.c.l.b16 %v1847
    %v1916 = vunpack.c.l.b16 %v1848
    %v1917 = vunpack.c.h.b16 %v1848
    %v1918 = vunpack.c.l.b16 %v1849
    %v1919 = vunpack.c.l.b16 %v1850
    %v1920 = vunpack.c.h.b16 %v1850
    %v1921 = vunpack.c.l.b16 %v1851
    %v1922 = vunpack.c.l.b16 %v1852
    %v1923 = vunpack.c.h.b16 %v1852
    %v1924 = vunpack.c.l.b16 %v1853
    %v1925 = vunpack.c.l.b16 %v1854
    %v1926 = vunpack.c.h.b16 %v1854
    %v1927 = vunpack.c.l.b16 %v1855
    %v1928 = vunpack.c.l.b16 %v1856
    %v1929 = vunpack.c.h.b16 %v1856
    %v1930 = vunpack.c.l.b16 %v1857
    %v1931 = vunpack.c.l.b16 %v1858
    %v1932 = vunpack.c.h.b16 %v1858
    %v1933 = vunpack.c.l.b16 %v1859
    %v1934 = vunpack.c.l.b16 %v1860
    %v1935 = vunpack.c.h.b16 %v1860
    %v1936 = vunpack.c.l.b16 %v1861
    %v1937 = vunpack.c.l.b16 %v1862
    %v1938 = vunpack.c.h.b16 %v1862
    %v1939 = vunpack.c.l.b16 %v1863
    %v1940 = vunpack.c.l.b16 %v1864
    %v1941 = vunpack.c.h.b16 %v1864
    %v1942 = vunpack.c.l.b16 %v1865
    %v1943 = vunpack.c.l.b16 %v1866
    %v1944 = vunpack.c.h.b16 %v1866
    %v1945 = vunpack.c.l.b16 %v1867
    %v1946 = vunpack.c.l.b16 %v1868
    %v1947 = vunpack.c.h.b16 %v1868
    %v1948 = vunpack.c.l.b16 %v1869
    %v1949 = vunpack.c.l.b16 %v1870
    %v1950 = vunpack.c.h.b16 %v1870
    %v1951 = vunpack.c.l.b16 %v1871
    %v1952 = vunpack.c.l.b16 %v1872
    %v1953 = vunpack.c.h.b16 %v1872
    %v1954 = vunpack.c.l.b16 %v1873
    %v1955 = vunpack.c.l.b16 %v1874
    %v1956 = vunpack.c.h.b16 %v1874
    %v1957 = vunpack.c.l.b16 %v1875
    %v1958 = vunpack.c.l.b16 %v1876
    %v1959 = vunpack.c.h.b16 %v1876
    %v1960 = vunpack.c.l.b16 %v1877
    %v1961 = vpack.c.b16 %v1916, %v1913
    %v1962 = vpack.c.b16 %v1917, %v1914
    %v1963 = vpack.c.b16 %v1918, %v1915
    %v1964 = vpack.c.b16 %v1922, %v1919
    %v1965 = vpack.c.b16 %v1923, %v1920
    %v1966 = vpack.c.b16 %v1924, %v1921
    %v1967 = vpack.c.b16 %v1928, %v1925
    %v1968 = vpack.c.b16 %v1929, %v1926
    %v1969 = vpack.c.b16 %v1930, %v1927
    %v1970 = vpack.c.b16 %v1934, %v1931
    %v1971 = vpack.c.b16 %v1935, %v1932
    %v1972 = vpack.c.b16 %v1936, %v1933
    %v1973 = vpack.c.b16 %v1940, %v1937
    %v1974 = vpack.c.b16 %v1941, %v1938
    %v1975 = vpack.c.b16 %v1942, %v1939
    %v1976 = vpack.c.b16 %v1946, %v1943
    %v1977 = vpack.c.b16 %v1947, %v1944
    %v1978 = vpack.c.b16 %v1948, %v1945
    %v1979 = vpack.c.b16 %v1952, %v1949
    %v1980 = vpack.c.b16 %v1953, %v1950
    %v1981 = vpack.c.b16 %v1954, %v1951
    %v1982 = vpack.c.b16 %v1958, %v1955
    %v1983 = vpack.c.b16 %v1959, %v1956
    %v1984 = vpack.c.b16 %v1960, %v1957
    %2009 = vmatprep.subr.bf16.mxu0 %v1962
    %2010 = vmatpush1.bf16.msra.mxu0 %v1961
    %2011 = vmatprep.subr.bf16.mxu0 %v1965
    %2012 = vmatpush1.bf16.msra.mxu0 %v1964
    %2013 = vmatprep.subr.bf16.mxu0 %v1968
    %2014 = vmatpush1.bf16.msra.mxu0 %v1967
    %2015 = vmatprep.subr.bf16.mxu0 %v1971
    %2016 = vmatpush1.bf16.msra.mxu0 %v1970
    %2017 = vmatprep.subr.bf16.mxu0 %v1974
    %2018 = vmatpush1.bf16.msra.mxu0 %v1973
    %2019 = vmatprep.subr.bf16.mxu0 %v1977
    %2020 = vmatpush1.bf16.msra.mxu0 %v1976
    %2021 = vmatprep.subr.bf16.mxu0 %v1980
    %2022 = vmatpush1.bf16.msra.mxu0 %v1979
    %2023 = vmatprep.subr.bf16.mxu0 %v1983
    %2024 = vmatpush1.bf16.msra.mxu0 %v1982
    %2025 = vmatprep.subr.bf16.mxu0 0
    %2026 = vmatpush1.bf16.msra.mxu0 0
    %2027 = vmatprep.subr.bf16.mxu0 0
    %2028 = vmatpush1.bf16.msra.mxu0 0
    %2029 = vmatprep.subr.bf16.mxu0 0
    %2030 = vmatpush1.bf16.msra.mxu0 0
    %2031 = vmatprep.subr.bf16.mxu0 0
    %2032 = vmatpush1.bf16.msra.mxu0 0
    %2033 = vmatprep.subr.bf16.mxu0 0
    %2034 = vmatpush1.bf16.msra.mxu0 0
    %2035 = vmatprep.subr.bf16.mxu0 0
    %2036 = vmatpush1.bf16.msra.mxu0 0
    %2037 = vmatprep.subr.bf16.mxu0 0
    %2038 = vmatpush1.bf16.msra.mxu0 0
    %2039 = vmatprep.subr.bf16.mxu0 0
    %2040 = vmatpush1.bf16.msra.mxu0 0
    %2041 = vmatprep.mubr.bf16.mxu0 0
    %2042 = vmatmul.mubr.bf16.gmra.mrb[0].mxu0 %v1845
    %v2043 = vpop.f32.mrb[0].mxu0
    %v2044 = vadd.f32 %v1878, %v2043
    %v2045 = vpop.f32.mrb[0].mxu0
    %v2046 = vadd.f32 %v1879, %v2045
    %v2047 = vpop.f32.mrb[0].mxu0
    %v2048 = vpop.f32.mrb[0].mxu0
    %2049 = vdwg.mxu0
    %2050 = vmatprep.subr.bf16.mxu0 0
    %2051 = vmatpush1.bf16.msra.mxu0 %v1963
    %2052 = vmatprep.subr.bf16.mxu0 0
    %2053 = vmatpush1.bf16.msra.mxu0 %v1966
    %2054 = vmatprep.subr.bf16.mxu0 0
    %2055 = vmatpush1.bf16.msra.mxu0 %v1969
    %2056 = vmatprep.subr.bf16.mxu0 0
    %2057 = vmatpush1.bf16.msra.mxu0 %v1972
    %2058 = vmatprep.subr.bf16.mxu0 0
    %2059 = vmatpush1.bf16.msra.mxu0 %v1975
    %2060 = vmatprep.subr.bf16.mxu0 0
    %2061 = vmatpush1.bf16.msra.mxu0 %v1978
    %2062 = vmatprep.subr.bf16.mxu0 0
    %2063 = vmatpush1.bf16.msra.mxu0 %v1981
    %2064 = vmatprep.subr.bf16.mxu0 0
    %2065 = vmatpush1.bf16.msra.mxu0 %v1984
    %2066 = vmatprep.subr.bf16.mxu0 0
    %2067 = vmatpush1.bf16.msra.mxu0 0
    %2068 = vmatprep.subr.bf16.mxu0 0
    %2069 = vmatpush1.bf16.msra.mxu0 0
    %2070 = vmatprep.subr.bf16.mxu0 0
    %2071 = vmatpush1.bf16.msra.mxu0 0
    %2072 = vmatprep.subr.bf16.mxu0 0
    %2073 = vmatpush1.bf16.msra.mxu0 0
    %2074 = vmatprep.subr.bf16.mxu0 0
    %2075 = vmatpush1.bf16.msra.mxu0 0
    %2076 = vmatprep.subr.bf16.mxu0 0
    %2077 = vmatpush1.bf16.msra.mxu0 0
    %2078 = vmatprep.subr.bf16.mxu0 0
    %2079 = vmatpush1.bf16.msra.mxu0 0
    %2080 = vmatprep.subr.bf16.mxu0 0
    %2081 = vmatpush1.bf16.msra.mxu0 0
    %2082 = vmatprep.mubr.bf16.mxu0 0
    %2083 = vmatmul.mubr.bf16.gmra.mrb[0].mxu0 %v1845
    %v2084 = vpop.f32.mrb[0].mxu0
    %v2085 = vadd.f32 %v1880, %v2084
    %v2086 = vpop.f32.mrb[0].mxu0
    %v2087 = vpop.f32.mrb[0].mxu0
    %v2088 = vpop.f32.mrb[0].mxu0
    %2089 = vdwg.mxu0
    %v2090 = vadd.f32 %v2044, %v1541
    %v2091 = vxor.u32 %v2090, 2147483648
    %v2092 = vmul.f32 %v2091, 1.442695
    %v2093 = vpow.pop %v2092
    %v2094 = vadd.f32 %v2093, 1.0
    %v2095 = vrcp.pop %v2094
    %v2096 = vmul.f32 1.0, %v2095
    %v2097 = vadd.f32 %v2046, %v1543
    %v2098 = vxor.u32 %v2097, 2147483648
    %v2099 = vmul.f32 %v2098, 1.442695
    %v2100 = vpow.pop %v2099
    %v2101 = vadd.f32 %v2100, 1.0
    %v2102 = vrcp.pop %v2101
    %v2103 = vmul.f32 1.0, %v2102
    %v2104 = vmul.f32 %v2096, %v1582
    %v2105 = vadd.f32 %v2085, %v2104
    %v2106 = vtanh.pop %v2105
    %v2107 = vsub.f32 1.0, %v2103
    %v2108 = vmul.f32 %v2107, %v2106
    %v2109 = vmul.f32 %v2103, %v915
    %v2110 = vadd.f32 %v2108, %v2109
    %v2111 = vpack.c.bf16 %v2110, %v2110
    %v2112 = vld [vmem:[#allocation8] sm:$0xff]
    %v2113 = vld [vmem:[#allocation8 + $0x8] sm:$0xf]
    %v2114 = vld [vmem:[#allocation8 + $0xc] sm:$0xff]
    %v2115 = vld [vmem:[#allocation8 + $0x14] sm:$0xf]
    %v2116 = vld [vmem:[#allocation8 + $0x18] sm:$0xff]
    %v2117 = vld [vmem:[#allocation8 + $0x20] sm:$0xf]
    %v2118 = vld [vmem:[#allocation8 + $0x24] sm:$0xff]
    %v2119 = vld [vmem:[#allocation8 + $0x2c] sm:$0xf]
    %v2120 = vld [vmem:[#allocation8 + $0x30] sm:$0xff]
    %v2121 = vld [vmem:[#allocation8 + $0x38] sm:$0xf]
    %v2122 = vld [vmem:[#allocation8 + $0x3c] sm:$0xff]
    %v2123 = vld [vmem:[#allocation8 + $0x44] sm:$0xf]
    %v2124 = vld [vmem:[#allocation8 + $0x48] sm:$0xff]
    %v2125 = vld [vmem:[#allocation8 + $0x50] sm:$0xf]
    %v2126 = vld [vmem:[#allocation8 + $0x54] sm:$0xff]
    %v2127 = vld [vmem:[#allocation8 + $0x5c] sm:$0xf]
    %v2128 = vld [vmem:[#allocation8 + $0x60] sm:$0xff]
    %v2129 = vld [vmem:[#allocation8 + $0x68] sm:$0xf]
    %v2130 = vld [vmem:[#allocation8 + $0x6c] sm:$0xff]
    %v2131 = vld [vmem:[#allocation8 + $0x74] sm:$0xf]
    %v2132 = vld [vmem:[#allocation8 + $0x78] sm:$0xff]
    %v2133 = vld [vmem:[#allocation8 + $0x80] sm:$0xf]
    %v2134 = vld [vmem:[#allocation8 + $0x84] sm:$0xff]
    %v2135 = vld [vmem:[#allocation8 + $0x8c] sm:$0xf]
    %v2136 = vld [vmem:[#allocation8 + $0x90] sm:$0xff]
    %v2137 = vld [vmem:[#allocation8 + $0x98] sm:$0xf]
    %v2138 = vld [vmem:[#allocation8 + $0x9c] sm:$0xff]
    %v2139 = vld [vmem:[#allocation8 + $0xa4] sm:$0xf]
    %v2140 = vld [vmem:[#allocation8 + $0xa8] sm:$0xff]
    %v2141 = vld [vmem:[#allocation8 + $0xb0] sm:$0xf]
    %v2142 = vld [vmem:[#allocation8 + $0xb4] sm:$0xff]
    %v2143 = vld [vmem:[#allocation8 + $0xbc] sm:$0xf]
    %v2144 = vld [vmem:[%s4] sm:$0x7]
    %v2146 = vlaneseq
    %v2147 = vshrl.u32 %v2146, 7
    %v2148 = vsub.s32 0, %v2147
    %v2149 = vrot.slane %v2144, %v2148
    %v2150 = vlaneseq
    %v2151 = vshrl.u32 %v2150, 7
    %v2152 = vsub.s32 1, %v2151
    %v2153 = vrot.slane %v2144, %v2152
    %v2154 = vlaneseq
    %v2155 = vshrl.u32 %v2154, 7
    %v2156 = vsub.s32 2, %v2155
    %v2157 = vrot.slane %v2144, %v2156
    %v2193 = vunpack.c.l.b16 %v2112
    %v2194 = vunpack.c.h.b16 %v2112
    %v2195 = vunpack.c.l.b16 %v2113
    %v2196 = vunpack.c.l.b16 %v2114
    %v2197 = vunpack.c.h.b16 %v2114
    %v2198 = vunpack.c.l.b16 %v2115
    %v2199 = vunpack.c.l.b16 %v2116
    %v2200 = vunpack.c.h.b16 %v2116
    %v2201 = vunpack.c.l.b16 %v2117
    %v2202 = vunpack.c.l.b16 %v2118
    %v2203 = vunpack.c.h.b16 %v2118
    %v2204 = vunpack.c.l.b16 %v2119
    %v2205 = vunpack.c.l.b16 %v2120
    %v2206 = vunpack.c.h.b16 %v2120
    %v2207 = vunpack.c.l.b16 %v2121
    %v2208 = vunpack.c.l.b16 %v2122
    %v2209 = vunpack.c.h.b16 %v2122
    %v2210 = vunpack.c.l.b16 %v2123
    %v2211 = vunpack.c.l.b16 %v2124
    %v2212 = vunpack.c.h.b16 %v2124
    %v2213 = vunpack.c.l.b16 %v2125
    %v2214 = vunpack.c.l.b16 %v2126
    %v2215 = vunpack.c.h.b16 %v2126
    %v2216 = vunpack.c.l.b16 %v2127
    %v2217 = vunpack.c.l.b16 %v2128
    %v2218 = vunpack.c.h.b16 %v2128
    %v2219 = vunpack.c.l.b16 %v2129
    %v2220 = vunpack.c.l.b16 %v2130
    %v2221 = vunpack.c.h.b16 %v2130
    %v2222 = vunpack.c.l.b16 %v2131
    %v2223 = vunpack.c.l.b16 %v2132
    %v2224 = vunpack.c.h.b16 %v2132
    %v2225 = vunpack.c.l.b16 %v2133
    %v2226 = vunpack.c.l.b16 %v2134
    %v2227 = vunpack.c.h.b16 %v2134
    %v2228 = vunpack.c.l.b16 %v2135
    %v2229 = vunpack.c.l.b16 %v2136
    %v2230 = vunpack.c.h.b16 %v2136
    %v2231 = vunpack.c.l.b16 %v2137
    %v2232 = vunpack.c.l.b16 %v2138
    %v2233 = vunpack.c.h.b16 %v2138
    %v2234 = vunpack.c.l.b16 %v2139
    %v2235 = vunpack.c.l.b16 %v2140
    %v2236 = vunpack.c.h.b16 %v2140
    %v2237 = vunpack.c.l.b16 %v2141
    %v2238 = vunpack.c.l.b16 %v2142
    %v2239 = vunpack.c.h.b16 %v2142
    %v2240 = vunpack.c.l.b16 %v2143
    %v2241 = vpack.c.b16 %v2196, %v2193
    %v2242 = vpack.c.b16 %v2197, %v2194
    %v2243 = vpack.c.b16 %v2198, %v2195
    %v2244 = vpack.c.b16 %v2202, %v2199
    %v2245 = vpack.c.b16 %v2203, %v2200
    %v2246 = vpack.c.b16 %v2204, %v2201
    %v2247 = vpack.c.b16 %v2208, %v2205
    %v2248 = vpack.c.b16 %v2209, %v2206
    %v2249 = vpack.c.b16 %v2210, %v2207
    %v2250 = vpack.c.b16 %v2214, %v2211
    %v2251 = vpack.c.b16 %v2215, %v2212
    %v2252 = vpack.c.b16 %v2216, %v2213
    %v2253 = vpack.c.b16 %v2220, %v2217
    %v2254 = vpack.c.b16 %v2221, %v2218
    %v2255 = vpack.c.b16 %v2222, %v2219
    %v2256 = vpack.c.b16 %v2226, %v2223
    %v2257 = vpack.c.b16 %v2227, %v2224
    %v2258 = vpack.c.b16 %v2228, %v2225
    %v2259 = vpack.c.b16 %v2232, %v2229
    %v2260 = vpack.c.b16 %v2233, %v2230
    %v2261 = vpack.c.b16 %v2234, %v2231
    %v2262 = vpack.c.b16 %v2238, %v2235
    %v2263 = vpack.c.b16 %v2239, %v2236
    %v2264 = vpack.c.b16 %v2240, %v2237
    %2289 = vmatprep.subr.bf16.mxu0 %v2242
    %2290 = vmatpush1.bf16.msra.mxu0 %v2241
    %2291 = vmatprep.subr.bf16.mxu0 %v2245
    %2292 = vmatpush1.bf16.msra.mxu0 %v2244
    %2293 = vmatprep.subr.bf16.mxu0 %v2248
    %2294 = vmatpush1.bf16.msra.mxu0 %v2247
    %2295 = vmatprep.subr.bf16.mxu0 %v2251
    %2296 = vmatpush1.bf16.msra.mxu0 %v2250
    %2297 = vmatprep.subr.bf16.mxu0 %v2254
    %2298 = vmatpush1.bf16.msra.mxu0 %v2253
    %2299 = vmatprep.subr.bf16.mxu0 %v2257
    %2300 = vmatpush1.bf16.msra.mxu0 %v2256
    %2301 = vmatprep.subr.bf16.mxu0 %v2260
    %2302 = vmatpush1.bf16.msra.mxu0 %v2259
    %2303 = vmatprep.subr.bf16.mxu0 %v2263
    %2304 = vmatpush1.bf16.msra.mxu0 %v2262
    %2305 = vmatprep.subr.bf16.mxu0 0
    %2306 = vmatpush1.bf16.msra.mxu0 0
    %2307 = vmatprep.subr.bf16.mxu0 0
    %2308 = vmatpush1.bf16.msra.mxu0 0
    %2309 = vmatprep.subr.bf16.mxu0 0
    %2310 = vmatpush1.bf16.msra.mxu0 0
    %2311 = vmatprep.subr.bf16.mxu0 0
    %2312 = vmatpush1.bf16.msra.mxu0 0
    %2313 = vmatprep.subr.bf16.mxu0 0
    %2314 = vmatpush1.bf16.msra.mxu0 0
    %2315 = vmatprep.subr.bf16.mxu0 0
    %2316 = vmatpush1.bf16.msra.mxu0 0
    %2317 = vmatprep.subr.bf16.mxu0 0
    %2318 = vmatpush1.bf16.msra.mxu0 0
    %2319 = vmatprep.subr.bf16.mxu0 0
    %2320 = vmatpush1.bf16.msra.mxu0 0
    %2321 = vmatprep.mubr.bf16.mxu0 0
    %2322 = vmatmul.mubr.bf16.gmra.mrb[0].mxu0 %v2111
    %v2323 = vpop.f32.mrb[0].mxu0
    %v2324 = vadd.f32 %v2149, %v2323
    %v2325 = vpop.f32.mrb[0].mxu0
    %v2326 = vadd.f32 %v2153, %v2325
    %v2327 = vpop.f32.mrb[0].mxu0
    %v2328 = vpop.f32.mrb[0].mxu0
    %2329 = vdwg.mxu0
    %2330 = vmatprep.subr.bf16.mxu0 0
    %2331 = vmatpush1.bf16.msra.mxu0 %v2243
    %2332 = vmatprep.subr.bf16.mxu0 0
    %2333 = vmatpush1.bf16.msra.mxu0 %v2246
    %2334 = vmatprep.subr.bf16.mxu0 0
    %2335 = vmatpush1.bf16.msra.mxu0 %v2249
    %2336 = vmatprep.subr.bf16.mxu0 0
    %2337 = vmatpush1.bf16.msra.mxu0 %v2252
    %2338 = vmatprep.subr.bf16.mxu0 0
    %2339 = vmatpush1.bf16.msra.mxu0 %v2255
    %2340 = vmatprep.subr.bf16.mxu0 0
    %2341 = vmatpush1.bf16.msra.mxu0 %v2258
    %2342 = vmatprep.subr.bf16.mxu0 0
    %2343 = vmatpush1.bf16.msra.mxu0 %v2261
    %2344 = vmatprep.subr.bf16.mxu0 0
    %2345 = vmatpush1.bf16.msra.mxu0 %v2264
    %2346 = vmatprep.subr.bf16.mxu0 0
    %2347 = vmatpush1.bf16.msra.mxu0 0
    %2348 = vmatprep.subr.bf16.mxu0 0
    %2349 = vmatpush1.bf16.msra.mxu0 0
    %2350 = vmatprep.subr.bf16.mxu0 0
    %2351 = vmatpush1.bf16.msra.mxu0 0
    %2352 = vmatprep.subr.bf16.mxu0 0
    %2353 = vmatpush1.bf16.msra.mxu0 0
    %2354 = vmatprep.subr.bf16.mxu0 0
    %2355 = vmatpush1.bf16.msra.mxu0 0
    %2356 = vmatprep.subr.bf16.mxu0 0
    %2357 = vmatpush1.bf16.msra.mxu0 0
    %2358 = vmatprep.subr.bf16.mxu0 0
    %2359 = vmatpush1.bf16.msra.mxu0 0
    %2360 = vmatprep.subr.bf16.mxu0 0
    %2361 = vmatpush1.bf16.msra.mxu0 0
    %2362 = vmatprep.mubr.bf16.mxu0 0
    %2363 = vmatmul.mubr.bf16.gmra.mrb[0].mxu0 %v2111
    %v2364 = vpop.f32.mrb[0].mxu0
    %v2365 = vadd.f32 %v2157, %v2364
    %v2366 = vpop.f32.mrb[0].mxu0
    %v2367 = vpop.f32.mrb[0].mxu0
    %v2368 = vpop.f32.mrb[0].mxu0
    %2369 = vdwg.mxu0
    %v2370 = vadd.f32 %v2324, %v1799
    %v2371 = vxor.u32 %v2370, 2147483648
    %v2372 = vmul.f32 %v2371, 1.442695
    %v2373 = vpow.pop %v2372
    %v2374 = vadd.f32 %v2373, 1.0
    %v2375 = vrcp.pop %v2374
    %v2376 = vmul.f32 1.0, %v2375
    %v2377 = vadd.f32 %v2326, %v1801
    %v2378 = vxor.u32 %v2377, 2147483648
    %v2379 = vmul.f32 %v2378, 1.442695
    %v2380 = vpow.pop %v2379
    %v2381 = vadd.f32 %v2380, 1.0
    %v2382 = vrcp.pop %v2381
    %v2383 = vmul.f32 1.0, %v2382
    %v2384 = vmul.f32 %v2376, %v1840
    %v2385 = vadd.f32 %v2365, %v2384
    %v2386 = vtanh.pop %v2385
    %v2387 = vsub.f32 1.0, %v2383
    %v2388 = vmul.f32 %v2387, %v2386
    %v2389 = vmul.f32 %v2383, %v1195
    %v2390 = vadd.f32 %v2388, %v2389
    %v2391 = vpack.c.bf16 %v2390, %v2390
    %v2392 = vld [vmem:[#allocation13] sm:$0xf]
    %v2393 = vld [vmem:[#allocation13 + $0x4] sm:$0xf]
    %v2394 = vld [vmem:[#allocation13 + $0x8] sm:$0xf]
    %v2395 = vld [vmem:[#allocation13 + $0xc] sm:$0xf]
    %v2396 = vld [vmem:[#allocation13 + $0x10] sm:$0xf]
    %v2397 = vld [vmem:[#allocation13 + $0x14] sm:$0xf]
    %v2398 = vld [vmem:[#allocation13 + $0x18] sm:$0xf]
    %v2399 = vld [vmem:[#allocation13 + $0x1c] sm:$0xf]
    %v2400 = vld [vmem:[#allocation13 + $0x20] sm:$0xf]
    %v2401 = vld [vmem:[#allocation13 + $0x24] sm:$0xf]
    %v2402 = vld [vmem:[#allocation13 + $0x28] sm:$0xf]
    %v2403 = vld [vmem:[#allocation13 + $0x2c] sm:$0xf]
    %v2404 = vld [vmem:[#allocation13 + $0x30] sm:$0xf]
    %v2405 = vld [vmem:[#allocation13 + $0x34] sm:$0xf]
    %v2406 = vld [vmem:[#allocation13 + $0x38] sm:$0xf]
    %v2407 = vld [vmem:[#allocation13 + $0x3c] sm:$0xf]
    %v2408 = vld [vmem:[%s10] sm:$0x1]
    %v2410 = vlaneseq
    %v2411 = vshrl.u32 %v2410, 7
    %v2412 = vsub.s32 0, %v2411
    %v2413 = vrot.slane %v2408, %v2412
    %v2431 = vunpack.c.l.b16 %v2392
    %v2432 = vunpack.c.l.b16 %v2393
    %v2433 = vunpack.c.l.b16 %v2394
    %v2434 = vunpack.c.l.b16 %v2395
    %v2435 = vunpack.c.l.b16 %v2396
    %v2436 = vunpack.c.l.b16 %v2397
    %v2437 = vunpack.c.l.b16 %v2398
    %v2438 = vunpack.c.l.b16 %v2399
    %v2439 = vunpack.c.l.b16 %v2400
    %v2440 = vunpack.c.l.b16 %v2401
    %v2441 = vunpack.c.l.b16 %v2402
    %v2442 = vunpack.c.l.b16 %v2403
    %v2443 = vunpack.c.l.b16 %v2404
    %v2444 = vunpack.c.l.b16 %v2405
    %v2445 = vunpack.c.l.b16 %v2406
    %v2446 = vunpack.c.l.b16 %v2407
    %v2447 = vpack.c.b16 %v2432, %v2431
    %v2448 = vpack.c.b16 %v2434, %v2433
    %v2449 = vpack.c.b16 %v2436, %v2435
    %v2450 = vpack.c.b16 %v2438, %v2437
    %v2451 = vpack.c.b16 %v2440, %v2439
    %v2452 = vpack.c.b16 %v2442, %v2441
    %v2453 = vpack.c.b16 %v2444, %v2443
    %v2454 = vpack.c.b16 %v2446, %v2445
    %2463 = vmatprep.subr.bf16.mxu0 0
    %2464 = vmatpush1.bf16.msra.mxu0 %v2447
    %2465 = vmatprep.subr.bf16.mxu0 0
    %2466 = vmatpush1.bf16.msra.mxu0 %v2448
    %2467 = vmatprep.subr.bf16.mxu0 0
    %2468 = vmatpush1.bf16.msra.mxu0 %v2449
    %2469 = vmatprep.subr.bf16.mxu0 0
    %2470 = vmatpush1.bf16.msra.mxu0 %v2450
    %2471 = vmatprep.subr.bf16.mxu0 0
    %2472 = vmatpush1.bf16.msra.mxu0 %v2451
    %2473 = vmatprep.subr.bf16.mxu0 0
    %2474 = vmatpush1.bf16.msra.mxu0 %v2452
    %2475 = vmatprep.subr.bf16.mxu0 0
    %2476 = vmatpush1.bf16.msra.mxu0 %v2453
    %2477 = vmatprep.subr.bf16.mxu0 0
    %2478 = vmatpush1.bf16.msra.mxu0 %v2454
    %2479 = vmatprep.subr.bf16.mxu0 0
    %2480 = vmatpush1.bf16.msra.mxu0 0
    %2481 = vmatprep.subr.bf16.mxu0 0
    %2482 = vmatpush1.bf16.msra.mxu0 0
    %2483 = vmatprep.subr.bf16.mxu0 0
    %2484 = vmatpush1.bf16.msra.mxu0 0
    %2485 = vmatprep.subr.bf16.mxu0 0
    %2486 = vmatpush1.bf16.msra.mxu0 0
    %2487 = vmatprep.subr.bf16.mxu0 0
    %2488 = vmatpush1.bf16.msra.mxu0 0
    %2489 = vmatprep.subr.bf16.mxu0 0
    %2490 = vmatpush1.bf16.msra.mxu0 0
    %2491 = vmatprep.subr.bf16.mxu0 0
    %2492 = vmatpush1.bf16.msra.mxu0 0
    %2493 = vmatprep.subr.bf16.mxu0 0
    %2494 = vmatpush1.bf16.msra.mxu0 0
    %2495 = vmatprep.mubr.bf16.mxu0 0
    %2496 = vmatmul.mubr.bf16.gmra.mrb[0].mxu0 %v2391
    %v2497 = vpop.f32.mrb[0].mxu0
    %v2498 = vadd.f32 %v2413, %v2497
    %v2499 = vpop.f32.mrb[0].mxu0
    %v2500 = vpop.f32.mrb[0].mxu0
    %v2501 = vpop.f32.mrb[0].mxu0
    %2502 = vdwg.mxu0
    %s2503 = scalar_lea.vmem [#allocation14], 8
    %2504 = vst [vmem:[%s2503] sm:$0xff] %v2498
    %2505 = vmax.xlane.f32.xlu0 %v2498
    %v2506 = vpop.xlane.xlu0 %2505
    %vm2507 = vcmp.eq.f32.partialorder %v2498, %v2506
    %v2508 = vsel %vm2507, %v132, 128
    %v2509 = vand.u32 %v2508, 65535
    %v2510 = vshra.s32 %v2508, 16
    %v2511 = vcvt.s32.f32 %v2509
    %v2512 = vcvt.s32.f32 %v2510
    %2513 = vmin.xlane.f32.xlu0 %v2512
    %v2514 = vpop.xlane.xlu0 %2513
    %vm2515 = vcmp.eq.f32.partialorder %v2512, %v2514
    %v2516 = vsel %vm2515, %v2511, inf
    %2517 = vmin.xlane.f32.xlu0 %v2516
    %v2518 = vpop.xlane.xlu0 %2517
    %v2519 = vcvt.f32.s32 %v2518
    %v2520 = vcvt.f32.s32 %v2514
    %v2521 = vshll.u32 %v2520, 16
    %v2522 = vadd.s32 %v2521, %v2519
    %vm2523 = vcmp.eq.s32.totalorder %v132, %v2522
    %v2524 = vsel %vm2523, 1.0, 0.0
    %v2525 = vld [vmem:[#allocation10] sm:$0xff]
    %v2526 = vld [vmem:[#allocation10 + $0x8] sm:$0xf]
    %v2527 = vld [vmem:[#allocation10 + $0xc] sm:$0xff]
    %v2528 = vld [vmem:[#allocation10 + $0x14] sm:$0xf]
    %v2529 = vld [vmem:[#allocation10 + $0x18] sm:$0xff]
    %v2530 = vld [vmem:[#allocation10 + $0x20] sm:$0xf]
    %v2531 = vld [vmem:[#allocation10 + $0x24] sm:$0xff]
    %v2532 = vld [vmem:[#allocation10 + $0x2c] sm:$0xf]
    %v2533 = vld [vmem:[#allocation10 + $0x30] sm:$0xff]
    %v2534 = vld [vmem:[#allocation10 + $0x38] sm:$0xf]
    %v2535 = vld [vmem:[#allocation10 + $0x3c] sm:$0xff]
    %v2536 = vld [vmem:[#allocation10 + $0x44] sm:$0xf]
    %v2537 = vld [vmem:[#allocation10 + $0x48] sm:$0xff]
    %v2538 = vld [vmem:[#allocation10 + $0x50] sm:$0xf]
    %v2539 = vld [vmem:[#allocation10 + $0x54] sm:$0xff]
    %v2540 = vld [vmem:[#allocation10 + $0x5c] sm:$0xf]
    %v2541 = vld [vmem:[#allocation10 + $0x60] sm:$0xff]
    %v2542 = vld [vmem:[#allocation10 + $0x68] sm:$0xf]
    %v2543 = vld [vmem:[#allocation10 + $0x6c] sm:$0xff]
    %v2544 = vld [vmem:[#allocation10 + $0x74] sm:$0xf]
    %v2545 = vld [vmem:[#allocation10 + $0x78] sm:$0xff]
    %v2546 = vld [vmem:[#allocation10 + $0x80] sm:$0xf]
    %v2547 = vld [vmem:[#allocation10 + $0x84] sm:$0xff]
    %v2548 = vld [vmem:[#allocation10 + $0x8c] sm:$0xf]
    %v2549 = vld [vmem:[#allocation10 + $0x90] sm:$0xff]
    %v2550 = vld [vmem:[#allocation10 + $0x98] sm:$0xf]
    %v2551 = vld [vmem:[#allocation10 + $0x9c] sm:$0xff]
    %v2552 = vld [vmem:[#allocation10 + $0xa4] sm:$0xf]
    %v2553 = vld [vmem:[#allocation10 + $0xa8] sm:$0xff]
    %v2554 = vld [vmem:[#allocation10 + $0xb0] sm:$0xf]
    %v2555 = vld [vmem:[#allocation10 + $0xb4] sm:$0xff]
    %v2556 = vld [vmem:[#allocation10 + $0xbc] sm:$0xf]
    %v2557 = vld [vmem:[%s6] sm:$0x7]
    %v2559 = vlaneseq
    %v2560 = vshrl.u32 %v2559, 7
    %v2561 = vsub.s32 0, %v2560
    %v2562 = vrot.slane %v2557, %v2561
    %v2563 = vlaneseq
    %v2564 = vshrl.u32 %v2563, 7
    %v2565 = vsub.s32 1, %v2564
    %v2566 = vrot.slane %v2557, %v2565
    %v2567 = vlaneseq
    %v2568 = vshrl.u32 %v2567, 7
    %v2569 = vsub.s32 2, %v2568
    %v2570 = vrot.slane %v2557, %v2569
    %v2606 = vunpack.c.l.b16 %v2525
    %v2607 = vunpack.c.h.b16 %v2525
    %v2608 = vunpack.c.l.b16 %v2526
    %v2609 = vunpack.c.l.b16 %v2527
    %v2610 = vunpack.c.h.b16 %v2527
    %v2611 = vunpack.c.l.b16 %v2528
    %v2612 = vunpack.c.l.b16 %v2529
    %v2613 = vunpack.c.h.b16 %v2529
    %v2614 = vunpack.c.l.b16 %v2530
    %v2615 = vunpack.c.l.b16 %v2531
    %v2616 = vunpack.c.h.b16 %v2531
    %v2617 = vunpack.c.l.b16 %v2532
    %v2618 = vunpack.c.l.b16 %v2533
    %v2619 = vunpack.c.h.b16 %v2533
    %v2620 = vunpack.c.l.b16 %v2534
    %v2621 = vunpack.c.l.b16 %v2535
    %v2622 = vunpack.c.h.b16 %v2535
    %v2623 = vunpack.c.l.b16 %v2536
    %v2624 = vunpack.c.l.b16 %v2537
    %v2625 = vunpack.c.h.b16 %v2537
    %v2626 = vunpack.c.l.b16 %v2538
    %v2627 = vunpack.c.l.b16 %v2539
    %v2628 = vunpack.c.h.b16 %v2539
    %v2629 = vunpack.c.l.b16 %v2540
    %v2630 = vunpack.c.l.b16 %v2541
    %v2631 = vunpack.c.h.b16 %v2541
    %v2632 = vunpack.c.l.b16 %v2542
    %v2633 = vunpack.c.l.b16 %v2543
    %v2634 = vunpack.c.h.b16 %v2543
    %v2635 = vunpack.c.l.b16 %v2544
    %v2636 = vunpack.c.l.b16 %v2545
    %v2637 = vunpack.c.h.b16 %v2545
    %v2638 = vunpack.c.l.b16 %v2546
    %v2639 = vunpack.c.l.b16 %v2547
    %v2640 = vunpack.c.h.b16 %v2547
    %v2641 = vunpack.c.l.b16 %v2548
    %v2642 = vunpack.c.l.b16 %v2549
    %v2643 = vunpack.c.h.b16 %v2549
    %v2644 = vunpack.c.l.b16 %v2550
    %v2645 = vunpack.c.l.b16 %v2551
    %v2646 = vunpack.c.h.b16 %v2551
    %v2647 = vunpack.c.l.b16 %v2552
    %v2648 = vunpack.c.l.b16 %v2553
    %v2649 = vunpack.c.h.b16 %v2553
    %v2650 = vunpack.c.l.b16 %v2554
    %v2651 = vunpack.c.l.b16 %v2555
    %v2652 = vunpack.c.h.b16 %v2555
    %v2653 = vunpack.c.l.b16 %v2556
    %v2654 = vpack.c.b16 %v2609, %v2606
    %v2655 = vpack.c.b16 %v2610, %v2607
    %v2656 = vpack.c.b16 %v2611, %v2608
    %v2657 = vpack.c.b16 %v2615, %v2612
    %v2658 = vpack.c.b16 %v2616, %v2613
    %v2659 = vpack.c.b16 %v2617, %v2614
    %v2660 = vpack.c.b16 %v2621, %v2618
    %v2661 = vpack.c.b16 %v2622, %v2619
    %v2662 = vpack.c.b16 %v2623, %v2620
    %v2663 = vpack.c.b16 %v2627, %v2624
    %v2664 = vpack.c.b16 %v2628, %v2625
    %v2665 = vpack.c.b16 %v2629, %v2626
    %v2666 = vpack.c.b16 %v2633, %v2630
    %v2667 = vpack.c.b16 %v2634, %v2631
    %v2668 = vpack.c.b16 %v2635, %v2632
    %v2669 = vpack.c.b16 %v2639, %v2636
    %v2670 = vpack.c.b16 %v2640, %v2637
    %v2671 = vpack.c.b16 %v2641, %v2638
    %v2672 = vpack.c.b16 %v2645, %v2642
    %v2673 = vpack.c.b16 %v2646, %v2643
    %v2674 = vpack.c.b16 %v2647, %v2644
    %v2675 = vpack.c.b16 %v2651, %v2648
    %v2676 = vpack.c.b16 %v2652, %v2649
    %v2677 = vpack.c.b16 %v2653, %v2650
    %2702 = vmatprep.subr.bf16.mxu0 %v2655
    %2703 = vmatpush1.bf16.msra.mxu0 %v2654
    %2704 = vmatprep.subr.bf16.mxu0 %v2658
    %2705 = vmatpush1.bf16.msra.mxu0 %v2657
    %2706 = vmatprep.subr.bf16.mxu0 %v2661
    %2707 = vmatpush1.bf16.msra.mxu0 %v2660
    %2708 = vmatprep.subr.bf16.mxu0 %v2664
    %2709 = vmatpush1.bf16.msra.mxu0 %v2663
    %2710 = vmatprep.subr.bf16.mxu0 %v2667
    %2711 = vmatpush1.bf16.msra.mxu0 %v2666
    %2712 = vmatprep.subr.bf16.mxu0 %v2670
    %2713 = vmatpush1.bf16.msra.mxu0 %v2669
    %2714 = vmatprep.subr.bf16.mxu0 %v2673
    %2715 = vmatpush1.bf16.msra.mxu0 %v2672
    %2716 = vmatprep.subr.bf16.mxu0 %v2676
    %2717 = vmatpush1.bf16.msra.mxu0 %v2675
    %2718 = vmatprep.subr.bf16.mxu0 0
    %2719 = vmatpush1.bf16.msra.mxu0 0
    %2720 = vmatprep.subr.bf16.mxu0 0
    %2721 = vmatpush1.bf16.msra.mxu0 0
    %2722 = vmatprep.subr.bf16.mxu0 0
    %2723 = vmatpush1.bf16.msra.mxu0 0
    %2724 = vmatprep.subr.bf16.mxu0 0
    %2725 = vmatpush1.bf16.msra.mxu0 0
    %2726 = vmatprep.subr.bf16.mxu0 0
    %2727 = vmatpush1.bf16.msra.mxu0 0
    %2728 = vmatprep.subr.bf16.mxu0 0
    %2729 = vmatpush1.bf16.msra.mxu0 0
    %2730 = vmatprep.subr.bf16.mxu0 0
    %2731 = vmatpush1.bf16.msra.mxu0 0
    %2732 = vmatprep.subr.bf16.mxu0 0
    %2733 = vmatpush1.bf16.msra.mxu0 0
    %2734 = vmatprep.mubr.bf16.mxu0 0
    %2735 = vmatmul.mubr.bf16.gmra.mrb[0].mxu0 %v2111
    %v2736 = vpop.f32.mrb[0].mxu0
    %v2737 = vadd.f32 %v2562, %v2736
    %v2738 = vpop.f32.mrb[0].mxu0
    %v2739 = vadd.f32 %v2566, %v2738
    %v2740 = vpop.f32.mrb[0].mxu0
    %v2741 = vpop.f32.mrb[0].mxu0
    %2742 = vdwg.mxu0
    %2743 = vmatprep.subr.bf16.mxu0 0
    %2744 = vmatpush1.bf16.msra.mxu0 %v2656
    %2745 = vmatprep.subr.bf16.mxu0 0
    %2746 = vmatpush1.bf16.msra.mxu0 %v2659
    %2747 = vmatprep.subr.bf16.mxu0 0
    %2748 = vmatpush1.bf16.msra.mxu0 %v2662
    %2749 = vmatprep.subr.bf16.mxu0 0
    %2750 = vmatpush1.bf16.msra.mxu0 %v2665
    %2751 = vmatprep.subr.bf16.mxu0 0
    %2752 = vmatpush1.bf16.msra.mxu0 %v2668
    %2753 = vmatprep.subr.bf16.mxu0 0
    %2754 = vmatpush1.bf16.msra.mxu0 %v2671
    %2755 = vmatprep.subr.bf16.mxu0 0
    %2756 = vmatpush1.bf16.msra.mxu0 %v2674
    %2757 = vmatprep.subr.bf16.mxu0 0
    %2758 = vmatpush1.bf16.msra.mxu0 %v2677
    %2759 = vmatprep.subr.bf16.mxu0 0
    %2760 = vmatpush1.bf16.msra.mxu0 0
    %2761 = vmatprep.subr.bf16.mxu0 0
    %2762 = vmatpush1.bf16.msra.mxu0 0
    %2763 = vmatprep.subr.bf16.mxu0 0
    %2764 = vmatpush1.bf16.msra.mxu0 0
    %2765 = vmatprep.subr.bf16.mxu0 0
    %2766 = vmatpush1.bf16.msra.mxu0 0
    %2767 = vmatprep.subr.bf16.mxu0 0
    %2768 = vmatpush1.bf16.msra.mxu0 0
    %2769 = vmatprep.subr.bf16.mxu0 0
    %2770 = vmatpush1.bf16.msra.mxu0 0
    %2771 = vmatprep.subr.bf16.mxu0 0
    %2772 = vmatpush1.bf16.msra.mxu0 0
    %2773 = vmatprep.subr.bf16.mxu0 0
    %2774 = vmatpush1.bf16.msra.mxu0 0
    %2775 = vmatprep.mubr.bf16.mxu0 0
    %2776 = vmatmul.mubr.bf16.gmra.mrb[0].mxu0 %v2111
    %v2777 = vpop.f32.mrb[0].mxu0
    %v2778 = vadd.f32 %v2570, %v2777
    %v2779 = vpop.f32.mrb[0].mxu0
    %v2780 = vpop.f32.mrb[0].mxu0
    %v2781 = vpop.f32.mrb[0].mxu0
    %2782 = vdwg.mxu0
    %v2783 = vld [vmem:[#allocation11] sm:$0xff]
    %v2784 = vld [vmem:[#allocation11 + $0x8] sm:$0xf]
    %v2785 = vld [vmem:[#allocation11 + $0xc] sm:$0xff]
    %v2786 = vld [vmem:[#allocation11 + $0x14] sm:$0xf]
    %v2787 = vld [vmem:[#allocation11 + $0x18] sm:$0xff]
    %v2788 = vld [vmem:[#allocation11 + $0x20] sm:$0xf]
    %v2789 = vld [vmem:[#allocation11 + $0x24] sm:$0xff]
    %v2790 = vld [vmem:[#allocation11 + $0x2c] sm:$0xf]
    %v2791 = vld [vmem:[#allocation11 + $0x30] sm:$0xff]
    %v2792 = vld [vmem:[#allocation11 + $0x38] sm:$0xf]
    %v2793 = vld [vmem:[#allocation11 + $0x3c] sm:$0xff]
    %v2794 = vld [vmem:[#allocation11 + $0x44] sm:$0xf]
    %v2795 = vld [vmem:[#allocation11 + $0x48] sm:$0xff]
    %v2796 = vld [vmem:[#allocation11 + $0x50] sm:$0xf]
    %v2797 = vld [vmem:[#allocation11 + $0x54] sm:$0xff]
    %v2798 = vld [vmem:[#allocation11 + $0x5c] sm:$0xf]
    %v2799 = vld [vmem:[#allocation11 + $0x60] sm:$0xff]
    %v2800 = vld [vmem:[#allocation11 + $0x68] sm:$0xf]
    %v2801 = vld [vmem:[#allocation11 + $0x6c] sm:$0xff]
    %v2802 = vld [vmem:[#allocation11 + $0x74] sm:$0xf]
    %v2803 = vld [vmem:[#allocation11 + $0x78] sm:$0xff]
    %v2804 = vld [vmem:[#allocation11 + $0x80] sm:$0xf]
    %v2805 = vld [vmem:[#allocation11 + $0x84] sm:$0xff]
    %v2806 = vld [vmem:[#allocation11 + $0x8c] sm:$0xf]
    %v2807 = vld [vmem:[#allocation11 + $0x90] sm:$0xff]
    %v2808 = vld [vmem:[#allocation11 + $0x98] sm:$0xf]
    %v2809 = vld [vmem:[#allocation11 + $0x9c] sm:$0xff]
    %v2810 = vld [vmem:[#allocation11 + $0xa4] sm:$0xf]
    %v2811 = vld [vmem:[#allocation11 + $0xa8] sm:$0xff]
    %v2812 = vld [vmem:[#allocation11 + $0xb0] sm:$0xf]
    %v2813 = vld [vmem:[#allocation11 + $0xb4] sm:$0xff]
    %v2814 = vld [vmem:[#allocation11 + $0xbc] sm:$0xf]
    %v2815 = vld [vmem:[%s8] sm:$0x7]
    %v2817 = vlaneseq
    %v2818 = vshrl.u32 %v2817, 7
    %v2819 = vsub.s32 0, %v2818
    %v2820 = vrot.slane %v2815, %v2819
    %v2821 = vlaneseq
    %v2822 = vshrl.u32 %v2821, 7
    %v2823 = vsub.s32 1, %v2822
    %v2824 = vrot.slane %v2815, %v2823
    %v2825 = vlaneseq
    %v2826 = vshrl.u32 %v2825, 7
    %v2827 = vsub.s32 2, %v2826
    %v2828 = vrot.slane %v2815, %v2827
    %v2864 = vunpack.c.l.b16 %v2783
    %v2865 = vunpack.c.h.b16 %v2783
    %v2866 = vunpack.c.l.b16 %v2784
    %v2867 = vunpack.c.l.b16 %v2785
    %v2868 = vunpack.c.h.b16 %v2785
    %v2869 = vunpack.c.l.b16 %v2786
    %v2870 = vunpack.c.l.b16 %v2787
    %v2871 = vunpack.c.h.b16 %v2787
    %v2872 = vunpack.c.l.b16 %v2788
    %v2873 = vunpack.c.l.b16 %v2789
    %v2874 = vunpack.c.h.b16 %v2789
    %v2875 = vunpack.c.l.b16 %v2790
    %v2876 = vunpack.c.l.b16 %v2791
    %v2877 = vunpack.c.h.b16 %v2791
    %v2878 = vunpack.c.l.b16 %v2792
    %v2879 = vunpack.c.l.b16 %v2793
    %v2880 = vunpack.c.h.b16 %v2793
    %v2881 = vunpack.c.l.b16 %v2794
    %v2882 = vunpack.c.l.b16 %v2795
    %v2883 = vunpack.c.h.b16 %v2795
    %v2884 = vunpack.c.l.b16 %v2796
    %v2885 = vunpack.c.l.b16 %v2797
    %v2886 = vunpack.c.h.b16 %v2797
    %v2887 = vunpack.c.l.b16 %v2798
    %v2888 = vunpack.c.l.b16 %v2799
    %v2889 = vunpack.c.h.b16 %v2799
    %v2890 = vunpack.c.l.b16 %v2800
    %v2891 = vunpack.c.l.b16 %v2801
    %v2892 = vunpack.c.h.b16 %v2801
    %v2893 = vunpack.c.l.b16 %v2802
    %v2894 = vunpack.c.l.b16 %v2803
    %v2895 = vunpack.c.h.b16 %v2803
    %v2896 = vunpack.c.l.b16 %v2804
    %v2897 = vunpack.c.l.b16 %v2805
    %v2898 = vunpack.c.h.b16 %v2805
    %v2899 = vunpack.c.l.b16 %v2806
    %v2900 = vunpack.c.l.b16 %v2807
    %v2901 = vunpack.c.h.b16 %v2807
    %v2902 = vunpack.c.l.b16 %v2808
    %v2903 = vunpack.c.l.b16 %v2809
    %v2904 = vunpack.c.h.b16 %v2809
    %v2905 = vunpack.c.l.b16 %v2810
    %v2906 = vunpack.c.l.b16 %v2811
    %v2907 = vunpack.c.h.b16 %v2811
    %v2908 = vunpack.c.l.b16 %v2812
    %v2909 = vunpack.c.l.b16 %v2813
    %v2910 = vunpack.c.h.b16 %v2813
    %v2911 = vunpack.c.l.b16 %v2814
    %v2912 = vpack.c.b16 %v2867, %v2864
    %v2913 = vpack.c.b16 %v2868, %v2865
    %v2914 = vpack.c.b16 %v2869, %v2866
    %v2915 = vpack.c.b16 %v2873, %v2870
    %v2916 = vpack.c.b16 %v2874, %v2871
    %v2917 = vpack.c.b16 %v2875, %v2872
    %v2918 = vpack.c.b16 %v2879, %v2876
    %v2919 = vpack.c.b16 %v2880, %v2877
    %v2920 = vpack.c.b16 %v2881, %v2878
    %v2921 = vpack.c.b16 %v2885, %v2882
    %v2922 = vpack.c.b16 %v2886, %v2883
    %v2923 = vpack.c.b16 %v2887, %v2884
    %v2924 = vpack.c.b16 %v2891, %v2888
    %v2925 = vpack.c.b16 %v2892, %v2889
    %v2926 = vpack.c.b16 %v2893, %v2890
    %v2927 = vpack.c.b16 %v2897, %v2894
    %v2928 = vpack.c.b16 %v2898, %v2895
    %v2929 = vpack.c.b16 %v2899, %v2896
    %v2930 = vpack.c.b16 %v2903, %v2900
    %v2931 = vpack.c.b16 %v2904, %v2901
    %v2932 = vpack.c.b16 %v2905, %v2902
    %v2933 = vpack.c.b16 %v2909, %v2906
    %v2934 = vpack.c.b16 %v2910, %v2907
    %v2935 = vpack.c.b16 %v2911, %v2908
    %2960 = vmatprep.subr.bf16.mxu0 %v2913
    %2961 = vmatpush1.bf16.msra.mxu0 %v2912
    %2962 = vmatprep.subr.bf16.mxu0 %v2916
    %2963 = vmatpush1.bf16.msra.mxu0 %v2915
    %2964 = vmatprep.subr.bf16.mxu0 %v2919
    %2965 = vmatpush1.bf16.msra.mxu0 %v2918
    %2966 = vmatprep.subr.bf16.mxu0 %v2922
    %2967 = vmatpush1.bf16.msra.mxu0 %v2921
    %2968 = vmatprep.subr.bf16.mxu0 %v2925
    %2969 = vmatpush1.bf16.msra.mxu0 %v2924
    %2970 = vmatprep.subr.bf16.mxu0 %v2928
    %2971 = vmatpush1.bf16.msra.mxu0 %v2927
    %2972 = vmatprep.subr.bf16.mxu0 %v2931
    %2973 = vmatpush1.bf16.msra.mxu0 %v2930
    %2974 = vmatprep.subr.bf16.mxu0 %v2934
    %2975 = vmatpush1.bf16.msra.mxu0 %v2933
    %2976 = vmatprep.subr.bf16.mxu0 0
    %2977 = vmatpush1.bf16.msra.mxu0 0
    %2978 = vmatprep.subr.bf16.mxu0 0
    %2979 = vmatpush1.bf16.msra.mxu0 0
    %2980 = vmatprep.subr.bf16.mxu0 0
    %2981 = vmatpush1.bf16.msra.mxu0 0
    %2982 = vmatprep.subr.bf16.mxu0 0
    %2983 = vmatpush1.bf16.msra.mxu0 0
    %2984 = vmatprep.subr.bf16.mxu0 0
    %2985 = vmatpush1.bf16.msra.mxu0 0
    %2986 = vmatprep.subr.bf16.mxu0 0
    %2987 = vmatpush1.bf16.msra.mxu0 0
    %2988 = vmatprep.subr.bf16.mxu0 0
    %2989 = vmatpush1.bf16.msra.mxu0 0
    %2990 = vmatprep.subr.bf16.mxu0 0
    %2991 = vmatpush1.bf16.msra.mxu0 0
    %2992 = vmatprep.mubr.bf16.mxu0 0
    %2993 = vmatmul.mubr.bf16.gmra.mrb[0].mxu0 %v2391
    %v2994 = vpop.f32.mrb[0].mxu0
    %v2995 = vadd.f32 %v2820, %v2994
    %v2996 = vpop.f32.mrb[0].mxu0
    %v2997 = vadd.f32 %v2824, %v2996
    %v2998 = vpop.f32.mrb[0].mxu0
    %v2999 = vpop.f32.mrb[0].mxu0
    %3000 = vdwg.mxu0
    %3001 = vmatprep.subr.bf16.mxu0 0
    %3002 = vmatpush1.bf16.msra.mxu0 %v2914
    %3003 = vmatprep.subr.bf16.mxu0 0
    %3004 = vmatpush1.bf16.msra.mxu0 %v2917
    %3005 = vmatprep.subr.bf16.mxu0 0
    %3006 = vmatpush1.bf16.msra.mxu0 %v2920
    %3007 = vmatprep.subr.bf16.mxu0 0
    %3008 = vmatpush1.bf16.msra.mxu0 %v2923
    %3009 = vmatprep.subr.bf16.mxu0 0
    %3010 = vmatpush1.bf16.msra.mxu0 %v2926
    %3011 = vmatprep.subr.bf16.mxu0 0
    %3012 = vmatpush1.bf16.msra.mxu0 %v2929
    %3013 = vmatprep.subr.bf16.mxu0 0
    %3014 = vmatpush1.bf16.msra.mxu0 %v2932
    %3015 = vmatprep.subr.bf16.mxu0 0
    %3016 = vmatpush1.bf16.msra.mxu0 %v2935
    %3017 = vmatprep.subr.bf16.mxu0 0
    %3018 = vmatpush1.bf16.msra.mxu0 0
    %3019 = vmatprep.subr.bf16.mxu0 0
    %3020 = vmatpush1.bf16.msra.mxu0 0
    %3021 = vmatprep.subr.bf16.mxu0 0
    %3022 = vmatpush1.bf16.msra.mxu0 0
    %3023 = vmatprep.subr.bf16.mxu0 0
    %3024 = vmatpush1.bf16.msra.mxu0 0
    %3025 = vmatprep.subr.bf16.mxu0 0
    %3026 = vmatpush1.bf16.msra.mxu0 0
    %3027 = vmatprep.subr.bf16.mxu0 0
    %3028 = vmatpush1.bf16.msra.mxu0 0
    %3029 = vmatprep.subr.bf16.mxu0 0
    %3030 = vmatpush1.bf16.msra.mxu0 0
    %3031 = vmatprep.subr.bf16.mxu0 0
    %3032 = vmatpush1.bf16.msra.mxu0 0
    %3033 = vmatprep.mubr.bf16.mxu0 0
    %3034 = vmatmul.mubr.bf16.gmra.mrb[0].mxu0 %v2391
    %v3035 = vpop.f32.mrb[0].mxu0
    %v3036 = vadd.f32 %v2828, %v3035
    %v3037 = vpop.f32.mrb[0].mxu0
    %v3038 = vpop.f32.mrb[0].mxu0
    %v3039 = vpop.f32.mrb[0].mxu0
    %3040 = vdwg.mxu0
    %v3041 = vpack.c.bf16 %v2524, %v2524
    %v3042 = vld [vmem:[#allocation5] sm:$0xff]
    %v3043 = vld [vmem:[#allocation5 + $0x8] sm:$0xf]
    %v3044 = vld [vmem:[#allocation5 + $0xc] sm:$0xff]
    %v3045 = vld [vmem:[#allocation5 + $0x14] sm:$0xf]
    %v3046 = vld [vmem:[#allocation5 + $0x18] sm:$0xff]
    %v3047 = vld [vmem:[#allocation5 + $0x20] sm:$0xf]
    %v3048 = vld [vmem:[#allocation5 + $0x24] sm:$0xff]
    %v3049 = vld [vmem:[#allocation5 + $0x2c] sm:$0xf]
    %v3050 = vld [vmem:[#allocation5 + $0x30] sm:$0xff]
    %v3051 = vld [vmem:[#allocation5 + $0x38] sm:$0xf]
    %v3052 = vld [vmem:[#allocation5 + $0x3c] sm:$0xff]
    %v3053 = vld [vmem:[#allocation5 + $0x44] sm:$0xf]
    %v3054 = vld [vmem:[#allocation5 + $0x48] sm:$0xff]
    %v3055 = vld [vmem:[#allocation5 + $0x50] sm:$0xf]
    %v3056 = vld [vmem:[#allocation5 + $0x54] sm:$0xff]
    %v3057 = vld [vmem:[#allocation5 + $0x5c] sm:$0xf]
    %v3058 = vld [vmem:[#allocation5 + $0x60] sm:$0xff]
    %v3059 = vld [vmem:[#allocation5 + $0x68] sm:$0xf]
    %v3060 = vld [vmem:[#allocation5 + $0x6c] sm:$0xff]
    %v3061 = vld [vmem:[#allocation5 + $0x74] sm:$0xf]
    %v3062 = vld [vmem:[#allocation5 + $0x78] sm:$0xff]
    %v3063 = vld [vmem:[#allocation5 + $0x80] sm:$0xf]
    %v3064 = vld [vmem:[#allocation5 + $0x84] sm:$0xff]
    %v3065 = vld [vmem:[#allocation5 + $0x8c] sm:$0xf]
    %v3066 = vld [vmem:[#allocation5 + $0x90] sm:$0xff]
    %v3067 = vld [vmem:[#allocation5 + $0x98] sm:$0xf]
    %v3068 = vld [vmem:[#allocation5 + $0x9c] sm:$0xff]
    %v3069 = vld [vmem:[#allocation5 + $0xa4] sm:$0xf]
    %v3070 = vld [vmem:[#allocation5 + $0xa8] sm:$0xff]
    %v3071 = vld [vmem:[#allocation5 + $0xb0] sm:$0xf]
    %v3072 = vld [vmem:[#allocation5 + $0xb4] sm:$0xff]
    %v3073 = vld [vmem:[#allocation5 + $0xbc] sm:$0xf]
    %v3074 = vld [vmem:[#allocation7] sm:$0xff]
    %v3075 = vld [vmem:[#allocation7 + $0x8] sm:$0xff]
    %v3076 = vld [vmem:[#allocation7 + $0x10] sm:$0xff]
    %v3109 = vunpack.c.l.b16 %v3042
    %v3110 = vunpack.c.h.b16 %v3042
    %v3111 = vunpack.c.l.b16 %v3043
    %v3112 = vunpack.c.l.b16 %v3044
    %v3113 = vunpack.c.h.b16 %v3044
    %v3114 = vunpack.c.l.b16 %v3045
    %v3115 = vunpack.c.l.b16 %v3046
    %v3116 = vunpack.c.h.b16 %v3046
    %v3117 = vunpack.c.l.b16 %v3047
    %v3118 = vunpack.c.l.b16 %v3048
    %v3119 = vunpack.c.h.b16 %v3048
    %v3120 = vunpack.c.l.b16 %v3049
    %v3121 = vunpack.c.l.b16 %v3050
    %v3122 = vunpack.c.h.b16 %v3050
    %v3123 = vunpack.c.l.b16 %v3051
    %v3124 = vunpack.c.l.b16 %v3052
    %v3125 = vunpack.c.h.b16 %v3052
    %v3126 = vunpack.c.l.b16 %v3053
    %v3127 = vunpack.c.l.b16 %v3054
    %v3128 = vunpack.c.h.b16 %v3054
    %v3129 = vunpack.c.l.b16 %v3055
    %v3130 = vunpack.c.l.b16 %v3056
    %v3131 = vunpack.c.h.b16 %v3056
    %v3132 = vunpack.c.l.b16 %v3057
    %v3133 = vunpack.c.l.b16 %v3058
    %v3134 = vunpack.c.h.b16 %v3058
    %v3135 = vunpack.c.l.b16 %v3059
    %v3136 = vunpack.c.l.b16 %v3060
    %v3137 = vunpack.c.h.b16 %v3060
    %v3138 = vunpack.c.l.b16 %v3061
    %v3139 = vunpack.c.l.b16 %v3062
    %v3140 = vunpack.c.h.b16 %v3062
    %v3141 = vunpack.c.l.b16 %v3063
    %v3142 = vunpack.c.l.b16 %v3064
    %v3143 = vunpack.c.h.b16 %v3064
    %v3144 = vunpack.c.l.b16 %v3065
    %v3145 = vunpack.c.l.b16 %v3066
    %v3146 = vunpack.c.h.b16 %v3066
    %v3147 = vunpack.c.l.b16 %v3067
    %v3148 = vunpack.c.l.b16 %v3068
    %v3149 = vunpack.c.h.b16 %v3068
    %v3150 = vunpack.c.l.b16 %v3069
    %v3151 = vunpack.c.l.b16 %v3070
    %v3152 = vunpack.c.h.b16 %v3070
    %v3153 = vunpack.c.l.b16 %v3071
    %v3154 = vunpack.c.l.b16 %v3072
    %v3155 = vunpack.c.h.b16 %v3072
    %v3156 = vunpack.c.l.b16 %v3073
    %v3157 = vpack.c.b16 %v3112, %v3109
    %v3158 = vpack.c.b16 %v3113, %v3110
    %v3159 = vpack.c.b16 %v3114, %v3111
    %v3160 = vpack.c.b16 %v3118, %v3115
    %v3161 = vpack.c.b16 %v3119, %v3116
    %v3162 = vpack.c.b16 %v3120, %v3117
    %v3163 = vpack.c.b16 %v3124, %v3121
    %v3164 = vpack.c.b16 %v3125, %v3122
    %v3165 = vpack.c.b16 %v3126, %v3123
    %v3166 = vpack.c.b16 %v3130, %v3127
    %v3167 = vpack.c.b16 %v3131, %v3128
    %v3168 = vpack.c.b16 %v3132, %v3129
    %v3169 = vpack.c.b16 %v3136, %v3133
    %v3170 = vpack.c.b16 %v3137, %v3134
    %v3171 = vpack.c.b16 %v3138, %v3135
    %v3172 = vpack.c.b16 %v3142, %v3139
    %v3173 = vpack.c.b16 %v3143, %v3140
    %v3174 = vpack.c.b16 %v3144, %v3141
    %v3175 = vpack.c.b16 %v3148, %v3145
    %v3176 = vpack.c.b16 %v3149, %v3146
    %v3177 = vpack.c.b16 %v3150, %v3147
    %v3178 = vpack.c.b16 %v3154, %v3151
    %v3179 = vpack.c.b16 %v3155, %v3152
    %v3180 = vpack.c.b16 %v3156, %v3153
    %3205 = vmatprep.subr.bf16.mxu0 %v3158
    %3206 = vmatpush1.bf16.msra.mxu0 %v3157
    %3207 = vmatprep.subr.bf16.mxu0 %v3161
    %3208 = vmatpush1.bf16.msra.mxu0 %v3160
    %3209 = vmatprep.subr.bf16.mxu0 %v3164
    %3210 = vmatpush1.bf16.msra.mxu0 %v3163
    %3211 = vmatprep.subr.bf16.mxu0 %v3167
    %3212 = vmatpush1.bf16.msra.mxu0 %v3166
    %3213 = vmatprep.subr.bf16.mxu0 %v3170
    %3214 = vmatpush1.bf16.msra.mxu0 %v3169
    %3215 = vmatprep.subr.bf16.mxu0 %v3173
    %3216 = vmatpush1.bf16.msra.mxu0 %v3172
    %3217 = vmatprep.subr.bf16.mxu0 %v3176
    %3218 = vmatpush1.bf16.msra.mxu0 %v3175
    %3219 = vmatprep.subr.bf16.mxu0 %v3179
    %3220 = vmatpush1.bf16.msra.mxu0 %v3178
    %3221 = vmatprep.subr.bf16.mxu0 0
    %3222 = vmatpush1.bf16.msra.mxu0 0
    %3223 = vmatprep.subr.bf16.mxu0 0
    %3224 = vmatpush1.bf16.msra.mxu0 0
    %3225 = vmatprep.subr.bf16.mxu0 0
    %3226 = vmatpush1.bf16.msra.mxu0 0
    %3227 = vmatprep.subr.bf16.mxu0 0
    %3228 = vmatpush1.bf16.msra.mxu0 0
    %3229 = vmatprep.subr.bf16.mxu0 0
    %3230 = vmatpush1.bf16.msra.mxu0 0
    %3231 = vmatprep.subr.bf16.mxu0 0
    %3232 = vmatpush1.bf16.msra.mxu0 0
    %3233 = vmatprep.subr.bf16.mxu0 0
    %3234 = vmatpush1.bf16.msra.mxu0 0
    %3235 = vmatprep.subr.bf16.mxu0 0
    %3236 = vmatpush1.bf16.msra.mxu0 0
    %3237 = vmatprep.mubr.bf16.mxu0 0
    %3238 = vmatmul.mubr.bf16.gmra.mrb[0].mxu0 %v3041
    %v3239 = vpop.f32.mrb[0].mxu0
    %v3240 = vadd.f32 %v3074, %v3239
    %v3241 = vpop.f32.mrb[0].mxu0
    %v3242 = vadd.f32 %v3075, %v3241
    %v3243 = vpop.f32.mrb[0].mxu0
    %v3244 = vpop.f32.mrb[0].mxu0
    %3245 = vdwg.mxu0
    %3246 = vmatprep.subr.bf16.mxu0 0
    %3247 = vmatpush1.bf16.msra.mxu0 %v3159
    %3248 = vmatprep.subr.bf16.mxu0 0
    %3249 = vmatpush1.bf16.msra.mxu0 %v3162
    %3250 = vmatprep.subr.bf16.mxu0 0
    %3251 = vmatpush1.bf16.msra.mxu0 %v3165
    %3252 = vmatprep.subr.bf16.mxu0 0
    %3253 = vmatpush1.bf16.msra.mxu0 %v3168
    %3254 = vmatprep.subr.bf16.mxu0 0
    %3255 = vmatpush1.bf16.msra.mxu0 %v3171
    %3256 = vmatprep.subr.bf16.mxu0 0
    %3257 = vmatpush1.bf16.msra.mxu0 %v3174
    %3258 = vmatprep.subr.bf16.mxu0 0
    %3259 = vmatpush1.bf16.msra.mxu0 %v3177
    %3260 = vmatprep.subr.bf16.mxu0 0
    %3261 = vmatpush1.bf16.msra.mxu0 %v3180
    %3262 = vmatprep.subr.bf16.mxu0 0
    %3263 = vmatpush1.bf16.msra.mxu0 0
    %3264 = vmatprep.subr.bf16.mxu0 0
    %3265 = vmatpush1.bf16.msra.mxu0 0
    %3266 = vmatprep.subr.bf16.mxu0 0
    %3267 = vmatpush1.bf16.msra.mxu0 0
    %3268 = vmatprep.subr.bf16.mxu0 0
    %3269 = vmatpush1.bf16.msra.mxu0 0
    %3270 = vmatprep.subr.bf16.mxu0 0
    %3271 = vmatpush1.bf16.msra.mxu0 0
    %3272 = vmatprep.subr.bf16.mxu0 0
    %3273 = vmatpush1.bf16.msra.mxu0 0
    %3274 = vmatprep.subr.bf16.mxu0 0
    %3275 = vmatpush1.bf16.msra.mxu0 0
    %3276 = vmatprep.subr.bf16.mxu0 0
    %3277 = vmatpush1.bf16.msra.mxu0 0
    %3278 = vmatprep.mubr.bf16.mxu0 0
    %3279 = vmatmul.mubr.bf16.gmra.mrb[0].mxu0 %v3041
    %v3280 = vpop.f32.mrb[0].mxu0
    %v3281 = vadd.f32 %v3076, %v3280
    %v3282 = vpop.f32.mrb[0].mxu0
    %v3283 = vpop.f32.mrb[0].mxu0
    %v3284 = vpop.f32.mrb[0].mxu0
    %3285 = vdwg.mxu0
    %v3286 = vadd.f32 %v3240, %v2737
    %v3287 = vxor.u32 %v3286, 2147483648
    %v3288 = vmul.f32 %v3287, 1.442695
    %v3289 = vpow.pop %v3288
    %v3290 = vadd.f32 %v3289, 1.0
    %v3291 = vrcp.pop %v3290
    %v3292 = vmul.f32 1.0, %v3291
    %v3293 = vadd.f32 %v3242, %v2739
    %v3294 = vxor.u32 %v3293, 2147483648
    %v3295 = vmul.f32 %v3294, 1.442695
    %v3296 = vpow.pop %v3295
    %v3297 = vadd.f32 %v3296, 1.0
    %v3298 = vrcp.pop %v3297
    %v3299 = vmul.f32 1.0, %v3298
    %v3300 = vmul.f32 %v3292, %v2778
    %v3301 = vadd.f32 %v3281, %v3300
    %v3302 = vtanh.pop %v3301
    %v3303 = vsub.f32 1.0, %v3299
    %v3304 = vmul.f32 %v3303, %v3302
    %v3305 = vmul.f32 %v3299, %v2110
    %v3306 = vadd.f32 %v3304, %v3305
    %v3307 = vpack.c.bf16 %v3306, %v3306
    %v3308 = vld [vmem:[#allocation8] sm:$0xff]
    %v3309 = vld [vmem:[#allocation8 + $0x8] sm:$0xf]
    %v3310 = vld [vmem:[#allocation8 + $0xc] sm:$0xff]
    %v3311 = vld [vmem:[#allocation8 + $0x14] sm:$0xf]
    %v3312 = vld [vmem:[#allocation8 + $0x18] sm:$0xff]
    %v3313 = vld [vmem:[#allocation8 + $0x20] sm:$0xf]
    %v3314 = vld [vmem:[#allocation8 + $0x24] sm:$0xff]
    %v3315 = vld [vmem:[#allocation8 + $0x2c] sm:$0xf]
    %v3316 = vld [vmem:[#allocation8 + $0x30] sm:$0xff]
    %v3317 = vld [vmem:[#allocation8 + $0x38] sm:$0xf]
    %v3318 = vld [vmem:[#allocation8 + $0x3c] sm:$0xff]
    %v3319 = vld [vmem:[#allocation8 + $0x44] sm:$0xf]
    %v3320 = vld [vmem:[#allocation8 + $0x48] sm:$0xff]
    %v3321 = vld [vmem:[#allocation8 + $0x50] sm:$0xf]
    %v3322 = vld [vmem:[#allocation8 + $0x54] sm:$0xff]
    %v3323 = vld [vmem:[#allocation8 + $0x5c] sm:$0xf]
    %v3324 = vld [vmem:[#allocation8 + $0x60] sm:$0xff]
    %v3325 = vld [vmem:[#allocation8 + $0x68] sm:$0xf]
    %v3326 = vld [vmem:[#allocation8 + $0x6c] sm:$0xff]
    %v3327 = vld [vmem:[#allocation8 + $0x74] sm:$0xf]
    %v3328 = vld [vmem:[#allocation8 + $0x78] sm:$0xff]
    %v3329 = vld [vmem:[#allocation8 + $0x80] sm:$0xf]
    %v3330 = vld [vmem:[#allocation8 + $0x84] sm:$0xff]
    %v3331 = vld [vmem:[#allocation8 + $0x8c] sm:$0xf]
    %v3332 = vld [vmem:[#allocation8 + $0x90] sm:$0xff]
    %v3333 = vld [vmem:[#allocation8 + $0x98] sm:$0xf]
    %v3334 = vld [vmem:[#allocation8 + $0x9c] sm:$0xff]
    %v3335 = vld [vmem:[#allocation8 + $0xa4] sm:$0xf]
    %v3336 = vld [vmem:[#allocation8 + $0xa8] sm:$0xff]
    %v3337 = vld [vmem:[#allocation8 + $0xb0] sm:$0xf]
    %v3338 = vld [vmem:[#allocation8 + $0xb4] sm:$0xff]
    %v3339 = vld [vmem:[#allocation8 + $0xbc] sm:$0xf]
    %v3340 = vld [vmem:[%s4] sm:$0x7]
    %v3342 = vlaneseq
    %v3343 = vshrl.u32 %v3342, 7
    %v3344 = vsub.s32 0, %v3343
    %v3345 = vrot.slane %v3340, %v3344
    %v3346 = vlaneseq
    %v3347 = vshrl.u32 %v3346, 7
    %v3348 = vsub.s32 1, %v3347
    %v3349 = vrot.slane %v3340, %v3348
    %v3350 = vlaneseq
    %v3351 = vshrl.u32 %v3350, 7
    %v3352 = vsub.s32 2, %v3351
    %v3353 = vrot.slane %v3340, %v3352
    %v3389 = vunpack.c.l.b16 %v3308
    %v3390 = vunpack.c.h.b16 %v3308
    %v3391 = vunpack.c.l.b16 %v3309
    %v3392 = vunpack.c.l.b16 %v3310
    %v3393 = vunpack.c.h.b16 %v3310
    %v3394 = vunpack.c.l.b16 %v3311
    %v3395 = vunpack.c.l.b16 %v3312
    %v3396 = vunpack.c.h.b16 %v3312
    %v3397 = vunpack.c.l.b16 %v3313
    %v3398 = vunpack.c.l.b16 %v3314
    %v3399 = vunpack.c.h.b16 %v3314
    %v3400 = vunpack.c.l.b16 %v3315
    %v3401 = vunpack.c.l.b16 %v3316
    %v3402 = vunpack.c.h.b16 %v3316
    %v3403 = vunpack.c.l.b16 %v3317
    %v3404 = vunpack.c.l.b16 %v3318
    %v3405 = vunpack.c.h.b16 %v3318
    %v3406 = vunpack.c.l.b16 %v3319
    %v3407 = vunpack.c.l.b16 %v3320
    %v3408 = vunpack.c.h.b16 %v3320
    %v3409 = vunpack.c.l.b16 %v3321
    %v3410 = vunpack.c.l.b16 %v3322
    %v3411 = vunpack.c.h.b16 %v3322
    %v3412 = vunpack.c.l.b16 %v3323
    %v3413 = vunpack.c.l.b16 %v3324
    %v3414 = vunpack.c.h.b16 %v3324
    %v3415 = vunpack.c.l.b16 %v3325
    %v3416 = vunpack.c.l.b16 %v3326
    %v3417 = vunpack.c.h.b16 %v3326
    %v3418 = vunpack.c.l.b16 %v3327
    %v3419 = vunpack.c.l.b16 %v3328
    %v3420 = vunpack.c.h.b16 %v3328
    %v3421 = vunpack.c.l.b16 %v3329
    %v3422 = vunpack.c.l.b16 %v3330
    %v3423 = vunpack.c.h.b16 %v3330
    %v3424 = vunpack.c.l.b16 %v3331
    %v3425 = vunpack.c.l.b16 %v3332
    %v3426 = vunpack.c.h.b16 %v3332
    %v3427 = vunpack.c.l.b16 %v3333
    %v3428 = vunpack.c.l.b16 %v3334
    %v3429 = vunpack.c.h.b16 %v3334
    %v3430 = vunpack.c.l.b16 %v3335
    %v3431 = vunpack.c.l.b16 %v3336
    %v3432 = vunpack.c.h.b16 %v3336
    %v3433 = vunpack.c.l.b16 %v3337
    %v3434 = vunpack.c.l.b16 %v3338
    %v3435 = vunpack.c.h.b16 %v3338
    %v3436 = vunpack.c.l.b16 %v3339
    %v3437 = vpack.c.b16 %v3392, %v3389
    %v3438 = vpack.c.b16 %v3393, %v3390
    %v3439 = vpack.c.b16 %v3394, %v3391
    %v3440 = vpack.c.b16 %v3398, %v3395
    %v3441 = vpack.c.b16 %v3399, %v3396
    %v3442 = vpack.c.b16 %v3400, %v3397
    %v3443 = vpack.c.b16 %v3404, %v3401
    %v3444 = vpack.c.b16 %v3405, %v3402
    %v3445 = vpack.c.b16 %v3406, %v3403
    %v3446 = vpack.c.b16 %v3410, %v3407
    %v3447 = vpack.c.b16 %v3411, %v3408
    %v3448 = vpack.c.b16 %v3412, %v3409
    %v3449 = vpack.c.b16 %v3416, %v3413
    %v3450 = vpack.c.b16 %v3417, %v3414
    %v3451 = vpack.c.b16 %v3418, %v3415
    %v3452 = vpack.c.b16 %v3422, %v3419
    %v3453 = vpack.c.b16 %v3423, %v3420
    %v3454 = vpack.c.b16 %v3424, %v3421
    %v3455 = vpack.c.b16 %v3428, %v3425
    %v3456 = vpack.c.b16 %v3429, %v3426
    %v3457 = vpack.c.b16 %v3430, %v3427
    %v3458 = vpack.c.b16 %v3434, %v3431
    %v3459 = vpack.c.b16 %v3435, %v3432
    %v3460 = vpack.c.b16 %v3436, %v3433
    %3485 = vmatprep.subr.bf16.mxu0 %v3438
    %3486 = vmatpush1.bf16.msra.mxu0 %v3437
    %3487 = vmatprep.subr.bf16.mxu0 %v3441
    %3488 = vmatpush1.bf16.msra.mxu0 %v3440
    %3489 = vmatprep.subr.bf16.mxu0 %v3444
    %3490 = vmatpush1.bf16.msra.mxu0 %v3443
    %3491 = vmatprep.subr.bf16.mxu0 %v3447
    %3492 = vmatpush1.bf16.msra.mxu0 %v3446
    %3493 = vmatprep.subr.bf16.mxu0 %v3450
    %3494 = vmatpush1.bf16.msra.mxu0 %v3449
    %3495 = vmatprep.subr.bf16.mxu0 %v3453
    %3496 = vmatpush1.bf16.msra.mxu0 %v3452
    %3497 = vmatprep.subr.bf16.mxu0 %v3456
    %3498 = vmatpush1.bf16.msra.mxu0 %v3455
    %3499 = vmatprep.subr.bf16.mxu0 %v3459
    %3500 = vmatpush1.bf16.msra.mxu0 %v3458
    %3501 = vmatprep.subr.bf16.mxu0 0
    %3502 = vmatpush1.bf16.msra.mxu0 0
    %3503 = vmatprep.subr.bf16.mxu0 0
    %3504 = vmatpush1.bf16.msra.mxu0 0
    %3505 = vmatprep.subr.bf16.mxu0 0
    %3506 = vmatpush1.bf16.msra.mxu0 0
    %3507 = vmatprep.subr.bf16.mxu0 0
    %3508 = vmatpush1.bf16.msra.mxu0 0
    %3509 = vmatprep.subr.bf16.mxu0 0
    %3510 = vmatpush1.bf16.msra.mxu0 0
    %3511 = vmatprep.subr.bf16.mxu0 0
    %3512 = vmatpush1.bf16.msra.mxu0 0
    %3513 = vmatprep.subr.bf16.mxu0 0
    %3514 = vmatpush1.bf16.msra.mxu0 0
    %3515 = vmatprep.subr.bf16.mxu0 0
    %3516 = vmatpush1.bf16.msra.mxu0 0
    %3517 = vmatprep.mubr.bf16.mxu0 0
    %3518 = vmatmul.mubr.bf16.gmra.mrb[0].mxu0 %v3307
    %v3519 = vpop.f32.mrb[0].mxu0
    %v3520 = vadd.f32 %v3345, %v3519
    %v3521 = vpop.f32.mrb[0].mxu0
    %v3522 = vadd.f32 %v3349, %v3521
    %v3523 = vpop.f32.mrb[0].mxu0
    %v3524 = vpop.f32.mrb[0].mxu0
    %3525 = vdwg.mxu0
    %3526 = vmatprep.subr.bf16.mxu0 0
    %3527 = vmatpush1.bf16.msra.mxu0 %v3439
    %3528 = vmatprep.subr.bf16.mxu0 0
    %3529 = vmatpush1.bf16.msra.mxu0 %v3442
    %3530 = vmatprep.subr.bf16.mxu0 0
    %3531 = vmatpush1.bf16.msra.mxu0 %v3445
    %3532 = vmatprep.subr.bf16.mxu0 0
    %3533 = vmatpush1.bf16.msra.mxu0 %v3448
    %3534 = vmatprep.subr.bf16.mxu0 0
    %3535 = vmatpush1.bf16.msra.mxu0 %v3451
    %3536 = vmatprep.subr.bf16.mxu0 0
    %3537 = vmatpush1.bf16.msra.mxu0 %v3454
    %3538 = vmatprep.subr.bf16.mxu0 0
    %3539 = vmatpush1.bf16.msra.mxu0 %v3457
    %3540 = vmatprep.subr.bf16.mxu0 0
    %3541 = vmatpush1.bf16.msra.mxu0 %v3460
    %3542 = vmatprep.subr.bf16.mxu0 0
    %3543 = vmatpush1.bf16.msra.mxu0 0
    %3544 = vmatprep.subr.bf16.mxu0 0
    %3545 = vmatpush1.bf16.msra.mxu0 0
    %3546 = vmatprep.subr.bf16.mxu0 0
    %3547 = vmatpush1.bf16.msra.mxu0 0
    %3548 = vmatprep.subr.bf16.mxu0 0
    %3549 = vmatpush1.bf16.msra.mxu0 0
    %3550 = vmatprep.subr.bf16.mxu0 0
    %3551 = vmatpush1.bf16.msra.mxu0 0
    %3552 = vmatprep.subr.bf16.mxu0 0
    %3553 = vmatpush1.bf16.msra.mxu0 0
    %3554 = vmatprep.subr.bf16.mxu0 0
    %3555 = vmatpush1.bf16.msra.mxu0 0
    %3556 = vmatprep.subr.bf16.mxu0 0
    %3557 = vmatpush1.bf16.msra.mxu0 0
    %3558 = vmatprep.mubr.bf16.mxu0 0
    %3559 = vmatmul.mubr.bf16.gmra.mrb[0].mxu0 %v3307
    %v3560 = vpop.f32.mrb[0].mxu0
    %v3561 = vadd.f32 %v3353, %v3560
    %v3562 = vpop.f32.mrb[0].mxu0
    %v3563 = vpop.f32.mrb[0].mxu0
    %v3564 = vpop.f32.mrb[0].mxu0
    %3565 = vdwg.mxu0
    %v3566 = vadd.f32 %v3520, %v2995
    %v3567 = vxor.u32 %v3566, 2147483648
    %v3568 = vmul.f32 %v3567, 1.442695
    %v3569 = vpow.pop %v3568
    %v3570 = vadd.f32 %v3569, 1.0
    %v3571 = vrcp.pop %v3570
    %v3572 = vmul.f32 1.0, %v3571
    %v3573 = vadd.f32 %v3522, %v2997
    %v3574 = vxor.u32 %v3573, 2147483648
    %v3575 = vmul.f32 %v3574, 1.442695
    %v3576 = vpow.pop %v3575
    %v3577 = vadd.f32 %v3576, 1.0
    %v3578 = vrcp.pop %v3577
    %v3579 = vmul.f32 1.0, %v3578
    %v3580 = vmul.f32 %v3572, %v3036
    %v3581 = vadd.f32 %v3561, %v3580
    %v3582 = vtanh.pop %v3581
    %v3583 = vsub.f32 1.0, %v3579
    %v3584 = vmul.f32 %v3583, %v3582
    %v3585 = vmul.f32 %v3579, %v2390
    %v3586 = vadd.f32 %v3584, %v3585
    %v3587 = vpack.c.bf16 %v3586, %v3586
    %v3588 = vld [vmem:[#allocation13] sm:$0xf]
    %v3589 = vld [vmem:[#allocation13 + $0x4] sm:$0xf]
    %v3590 = vld [vmem:[#allocation13 + $0x8] sm:$0xf]
    %v3591 = vld [vmem:[#allocation13 + $0xc] sm:$0xf]
    %v3592 = vld [vmem:[#allocation13 + $0x10] sm:$0xf]
    %v3593 = vld [vmem:[#allocation13 + $0x14] sm:$0xf]
    %v3594 = vld [vmem:[#allocation13 + $0x18] sm:$0xf]
    %v3595 = vld [vmem:[#allocation13 + $0x1c] sm:$0xf]
    %v3596 = vld [vmem:[#allocation13 + $0x20] sm:$0xf]
    %v3597 = vld [vmem:[#allocation13 + $0x24] sm:$0xf]
    %v3598 = vld [vmem:[#allocation13 + $0x28] sm:$0xf]
    %v3599 = vld [vmem:[#allocation13 + $0x2c] sm:$0xf]
    %v3600 = vld [vmem:[#allocation13 + $0x30] sm:$0xf]
    %v3601 = vld [vmem:[#allocation13 + $0x34] sm:$0xf]
    %v3602 = vld [vmem:[#allocation13 + $0x38] sm:$0xf]
    %v3603 = vld [vmem:[#allocation13 + $0x3c] sm:$0xf]
    %v3604 = vld [vmem:[%s10] sm:$0x1]
    %v3606 = vlaneseq
    %v3607 = vshrl.u32 %v3606, 7
    %v3608 = vsub.s32 0, %v3607
    %v3609 = vrot.slane %v3604, %v3608
    %v3627 = vunpack.c.l.b16 %v3588
    %v3628 = vunpack.c.l.b16 %v3589
    %v3629 = vunpack.c.l.b16 %v3590
    %v3630 = vunpack.c.l.b16 %v3591
    %v3631 = vunpack.c.l.b16 %v3592
    %v3632 = vunpack.c.l.b16 %v3593
    %v3633 = vunpack.c.l.b16 %v3594
    %v3634 = vunpack.c.l.b16 %v3595
    %v3635 = vunpack.c.l.b16 %v3596
    %v3636 = vunpack.c.l.b16 %v3597
    %v3637 = vunpack.c.l.b16 %v3598
    %v3638 = vunpack.c.l.b16 %v3599
    %v3639 = vunpack.c.l.b16 %v3600
    %v3640 = vunpack.c.l.b16 %v3601
    %v3641 = vunpack.c.l.b16 %v3602
    %v3642 = vunpack.c.l.b16 %v3603
    %v3643 = vpack.c.b16 %v3628, %v3627
    %v3644 = vpack.c.b16 %v3630, %v3629
    %v3645 = vpack.c.b16 %v3632, %v3631
    %v3646 = vpack.c.b16 %v3634, %v3633
    %v3647 = vpack.c.b16 %v3636, %v3635
    %v3648 = vpack.c.b16 %v3638, %v3637
    %v3649 = vpack.c.b16 %v3640, %v3639
    %v3650 = vpack.c.b16 %v3642, %v3641
    %3659 = vmatprep.subr.bf16.mxu0 0
    %3660 = vmatpush1.bf16.msra.mxu0 %v3643
    %3661 = vmatprep.subr.bf16.mxu0 0
    %3662 = vmatpush1.bf16.msra.mxu0 %v3644
    %3663 = vmatprep.subr.bf16.mxu0 0
    %3664 = vmatpush1.bf16.msra.mxu0 %v3645
    %3665 = vmatprep.subr.bf16.mxu0 0
    %3666 = vmatpush1.bf16.msra.mxu0 %v3646
    %3667 = vmatprep.subr.bf16.mxu0 0
    %3668 = vmatpush1.bf16.msra.mxu0 %v3647
    %3669 = vmatprep.subr.bf16.mxu0 0
    %3670 = vmatpush1.bf16.msra.mxu0 %v3648
    %3671 = vmatprep.subr.bf16.mxu0 0
    %3672 = vmatpush1.bf16.msra.mxu0 %v3649
    %3673 = vmatprep.subr.bf16.mxu0 0
    %3674 = vmatpush1.bf16.msra.mxu0 %v3650
    %3675 = vmatprep.subr.bf16.mxu0 0
    %3676 = vmatpush1.bf16.msra.mxu0 0
    %3677 = vmatprep.subr.bf16.mxu0 0
    %3678 = vmatpush1.bf16.msra.mxu0 0
    %3679 = vmatprep.subr.bf16.mxu0 0
    %3680 = vmatpush1.bf16.msra.mxu0 0
    %3681 = vmatprep.subr.bf16.mxu0 0
    %3682 = vmatpush1.bf16.msra.mxu0 0
    %3683 = vmatprep.subr.bf16.mxu0 0
    %3684 = vmatpush1.bf16.msra.mxu0 0
    %3685 = vmatprep.subr.bf16.mxu0 0
    %3686 = vmatpush1.bf16.msra.mxu0 0
    %3687 = vmatprep.subr.bf16.mxu0 0
    %3688 = vmatpush1.bf16.msra.mxu0 0
    %3689 = vmatprep.subr.bf16.mxu0 0
    %3690 = vmatpush1.bf16.msra.mxu0 0
    %3691 = vmatprep.mubr.bf16.mxu0 0
    %3692 = vmatmul.mubr.bf16.gmra.mrb[0].mxu0 %v3587
    %v3693 = vpop.f32.mrb[0].mxu0
    %v3694 = vadd.f32 %v3609, %v3693
    %v3695 = vpop.f32.mrb[0].mxu0
    %v3696 = vpop.f32.mrb[0].mxu0
    %v3697 = vpop.f32.mrb[0].mxu0
    %3698 = vdwg.mxu0
    %s3699 = scalar_lea.vmem [#allocation14], 16
    %3700 = vst [vmem:[%s3699] sm:$0xff] %v3694
    %3701 = vmax.xlane.f32.xlu0 %v3694
    %v3702 = vpop.xlane.xlu0 %3701
    %vm3703 = vcmp.eq.f32.partialorder %v3694, %v3702
    %v3704 = vsel %vm3703, %v132, 128
    %v3705 = vand.u32 %v3704, 65535
    %v3706 = vshra.s32 %v3704, 16
    %v3707 = vcvt.s32.f32 %v3705
    %v3708 = vcvt.s32.f32 %v3706
    %3709 = vmin.xlane.f32.xlu0 %v3708
    %v3710 = vpop.xlane.xlu0 %3709
    %vm3711 = vcmp.eq.f32.partialorder %v3708, %v3710
    %v3712 = vsel %vm3711, %v3707, inf
    %3713 = vmin.xlane.f32.xlu0 %v3712
    %v3714 = vpop.xlane.xlu0 %3713
    %v3715 = vcvt.f32.s32 %v3714
    %v3716 = vcvt.f32.s32 %v3710
    %v3717 = vshll.u32 %v3716, 16
    %v3718 = vadd.s32 %v3717, %v3715
    %vm3719 = vcmp.eq.s32.totalorder %v132, %v3718
    %v3720 = vsel %vm3719, 1.0, 0.0
    %v3721 = vld [vmem:[#allocation10] sm:$0xff]
    %v3722 = vld [vmem:[#allocation10 + $0x8] sm:$0xf]
    %v3723 = vld [vmem:[#allocation10 + $0xc] sm:$0xff]
    %v3724 = vld [vmem:[#allocation10 + $0x14] sm:$0xf]
    %v3725 = vld [vmem:[#allocation10 + $0x18] sm:$0xff]
    %v3726 = vld [vmem:[#allocation10 + $0x20] sm:$0xf]
    %v3727 = vld [vmem:[#allocation10 + $0x24] sm:$0xff]
    %v3728 = vld [vmem:[#allocation10 + $0x2c] sm:$0xf]
    %v3729 = vld [vmem:[#allocation10 + $0x30] sm:$0xff]
    %v3730 = vld [vmem:[#allocation10 + $0x38] sm:$0xf]
    %v3731 = vld [vmem:[#allocation10 + $0x3c] sm:$0xff]
    %v3732 = vld [vmem:[#allocation10 + $0x44] sm:$0xf]
    %v3733 = vld [vmem:[#allocation10 + $0x48] sm:$0xff]
    %v3734 = vld [vmem:[#allocation10 + $0x50] sm:$0xf]
    %v3735 = vld [vmem:[#allocation10 + $0x54] sm:$0xff]
    %v3736 = vld [vmem:[#allocation10 + $0x5c] sm:$0xf]
    %v3737 = vld [vmem:[#allocation10 + $0x60] sm:$0xff]
    %v3738 = vld [vmem:[#allocation10 + $0x68] sm:$0xf]
    %v3739 = vld [vmem:[#allocation10 + $0x6c] sm:$0xff]
    %v3740 = vld [vmem:[#allocation10 + $0x74] sm:$0xf]
    %v3741 = vld [vmem:[#allocation10 + $0x78] sm:$0xff]
    %v3742 = vld [vmem:[#allocation10 + $0x80] sm:$0xf]
    %v3743 = vld [vmem:[#allocation10 + $0x84] sm:$0xff]
    %v3744 = vld [vmem:[#allocation10 + $0x8c] sm:$0xf]
    %v3745 = vld [vmem:[#allocation10 + $0x90] sm:$0xff]
    %v3746 = vld [vmem:[#allocation10 + $0x98] sm:$0xf]
    %v3747 = vld [vmem:[#allocation10 + $0x9c] sm:$0xff]
    %v3748 = vld [vmem:[#allocation10 + $0xa4] sm:$0xf]
    %v3749 = vld [vmem:[#allocation10 + $0xa8] sm:$0xff]
    %v3750 = vld [vmem:[#allocation10 + $0xb0] sm:$0xf]
    %v3751 = vld [vmem:[#allocation10 + $0xb4] sm:$0xff]
    %v3752 = vld [vmem:[#allocation10 + $0xbc] sm:$0xf]
    %v3753 = vld [vmem:[%s6] sm:$0x7]
    %v3755 = vlaneseq
    %v3756 = vshrl.u32 %v3755, 7
    %v3757 = vsub.s32 0, %v3756
    %v3758 = vrot.slane %v3753, %v3757
    %v3759 = vlaneseq
    %v3760 = vshrl.u32 %v3759, 7
    %v3761 = vsub.s32 1, %v3760
    %v3762 = vrot.slane %v3753, %v3761
    %v3763 = vlaneseq
    %v3764 = vshrl.u32 %v3763, 7
    %v3765 = vsub.s32 2, %v3764
    %v3766 = vrot.slane %v3753, %v3765
    %v3802 = vunpack.c.l.b16 %v3721
    %v3803 = vunpack.c.h.b16 %v3721
    %v3804 = vunpack.c.l.b16 %v3722
    %v3805 = vunpack.c.l.b16 %v3723
    %v3806 = vunpack.c.h.b16 %v3723
    %v3807 = vunpack.c.l.b16 %v3724
    %v3808 = vunpack.c.l.b16 %v3725
    %v3809 = vunpack.c.h.b16 %v3725
    %v3810 = vunpack.c.l.b16 %v3726
    %v3811 = vunpack.c.l.b16 %v3727
    %v3812 = vunpack.c.h.b16 %v3727
    %v3813 = vunpack.c.l.b16 %v3728
    %v3814 = vunpack.c.l.b16 %v3729
    %v3815 = vunpack.c.h.b16 %v3729
    %v3816 = vunpack.c.l.b16 %v3730
    %v3817 = vunpack.c.l.b16 %v3731
    %v3818 = vunpack.c.h.b16 %v3731
    %v3819 = vunpack.c.l.b16 %v3732
    %v3820 = vunpack.c.l.b16 %v3733
    %v3821 = vunpack.c.h.b16 %v3733
    %v3822 = vunpack.c.l.b16 %v3734
    %v3823 = vunpack.c.l.b16 %v3735
    %v3824 = vunpack.c.h.b16 %v3735
    %v3825 = vunpack.c.l.b16 %v3736
    %v3826 = vunpack.c.l.b16 %v3737
    %v3827 = vunpack.c.h.b16 %v3737
    %v3828 = vunpack.c.l.b16 %v3738
    %v3829 = vunpack.c.l.b16 %v3739
    %v3830 = vunpack.c.h.b16 %v3739
    %v3831 = vunpack.c.l.b16 %v3740
    %v3832 = vunpack.c.l.b16 %v3741
    %v3833 = vunpack.c.h.b16 %v3741
    %v3834 = vunpack.c.l.b16 %v3742
    %v3835 = vunpack.c.l.b16 %v3743
    %v3836 = vunpack.c.h.b16 %v3743
    %v3837 = vunpack.c.l.b16 %v3744
    %v3838 = vunpack.c.l.b16 %v3745
    %v3839 = vunpack.c.h.b16 %v3745
    %v3840 = vunpack.c.l.b16 %v3746
    %v3841 = vunpack.c.l.b16 %v3747
    %v3842 = vunpack.c.h.b16 %v3747
    %v3843 = vunpack.c.l.b16 %v3748
    %v3844 = vunpack.c.l.b16 %v3749
    %v3845 = vunpack.c.h.b16 %v3749
    %v3846 = vunpack.c.l.b16 %v3750
    %v3847 = vunpack.c.l.b16 %v3751
    %v3848 = vunpack.c.h.b16 %v3751
    %v3849 = vunpack.c.l.b16 %v3752
    %v3850 = vpack.c.b16 %v3805, %v3802
    %v3851 = vpack.c.b16 %v3806, %v3803
    %v3852 = vpack.c.b16 %v3807, %v3804
    %v3853 = vpack.c.b16 %v3811, %v3808
    %v3854 = vpack.c.b16 %v3812, %v3809
    %v3855 = vpack.c.b16 %v3813, %v3810
    %v3856 = vpack.c.b16 %v3817, %v3814
    %v3857 = vpack.c.b16 %v3818, %v3815
    %v3858 = vpack.c.b16 %v3819, %v3816
    %v3859 = vpack.c.b16 %v3823, %v3820
    %v3860 = vpack.c.b16 %v3824, %v3821
    %v3861 = vpack.c.b16 %v3825, %v3822
    %v3862 = vpack.c.b16 %v3829, %v3826
    %v3863 = vpack.c.b16 %v3830, %v3827
    %v3864 = vpack.c.b16 %v3831, %v3828
    %v3865 = vpack.c.b16 %v3835, %v3832
    %v3866 = vpack.c.b16 %v3836, %v3833
    %v3867 = vpack.c.b16 %v3837, %v3834
    %v3868 = vpack.c.b16 %v3841, %v3838
    %v3869 = vpack.c.b16 %v3842, %v3839
    %v3870 = vpack.c.b16 %v3843, %v3840
    %v3871 = vpack.c.b16 %v3847, %v3844
    %v3872 = vpack.c.b16 %v3848, %v3845
    %v3873 = vpack.c.b16 %v3849, %v3846
    %3898 = vmatprep.subr.bf16.mxu0 %v3851
    %3899 = vmatpush1.bf16.msra.mxu0 %v3850
    %3900 = vmatprep.subr.bf16.mxu0 %v3854
    %3901 = vmatpush1.bf16.msra.mxu0 %v3853
    %3902 = vmatprep.subr.bf16.mxu0 %v3857
    %3903 = vmatpush1.bf16.msra.mxu0 %v3856
    %3904 = vmatprep.subr.bf16.mxu0 %v3860
    %3905 = vmatpush1.bf16.msra.mxu0 %v3859
    %3906 = vmatprep.subr.bf16.mxu0 %v3863
    %3907 = vmatpush1.bf16.msra.mxu0 %v3862
    %3908 = vmatprep.subr.bf16.mxu0 %v3866
    %3909 = vmatpush1.bf16.msra.mxu0 %v3865
    %3910 = vmatprep.subr.bf16.mxu0 %v3869
    %3911 = vmatpush1.bf16.msra.mxu0 %v3868
    %3912 = vmatprep.subr.bf16.mxu0 %v3872
    %3913 = vmatpush1.bf16.msra.mxu0 %v3871
    %3914 = vmatprep.subr.bf16.mxu0 0
    %3915 = vmatpush1.bf16.msra.mxu0 0
    %3916 = vmatprep.subr.bf16.mxu0 0
    %3917 = vmatpush1.bf16.msra.mxu0 0
    %3918 = vmatprep.subr.bf16.mxu0 0
    %3919 = vmatpush1.bf16.msra.mxu0 0
    %3920 = vmatprep.subr.bf16.mxu0 0
    %3921 = vmatpush1.bf16.msra.mxu0 0
    %3922 = vmatprep.subr.bf16.mxu0 0
    %3923 = vmatpush1.bf16.msra.mxu0 0
    %3924 = vmatprep.subr.bf16.mxu0 0
    %3925 = vmatpush1.bf16.msra.mxu0 0
    %3926 = vmatprep.subr.bf16.mxu0 0
    %3927 = vmatpush1.bf16.msra.mxu0 0
    %3928 = vmatprep.subr.bf16.mxu0 0
    %3929 = vmatpush1.bf16.msra.mxu0 0
    %3930 = vmatprep.mubr.bf16.mxu0 0
    %3931 = vmatmul.mubr.bf16.gmra.mrb[0].mxu0 %v3307
    %v3932 = vpop.f32.mrb[0].mxu0
    %v3933 = vadd.f32 %v3758, %v3932
    %v3934 = vpop.f32.mrb[0].mxu0
    %v3935 = vadd.f32 %v3762, %v3934
    %v3936 = vpop.f32.mrb[0].mxu0
    %v3937 = vpop.f32.mrb[0].mxu0
    %3938 = vdwg.mxu0
    %3939 = vmatprep.subr.bf16.mxu0 0
    %3940 = vmatpush1.bf16.msra.mxu0 %v3852
    %3941 = vmatprep.subr.bf16.mxu0 0
    %3942 = vmatpush1.bf16.msra.mxu0 %v3855
    %3943 = vmatprep.subr.bf16.mxu0 0
    %3944 = vmatpush1.bf16.msra.mxu0 %v3858
    %3945 = vmatprep.subr.bf16.mxu0 0
    %3946 = vmatpush1.bf16.msra.mxu0 %v3861
    %3947 = vmatprep.subr.bf16.mxu0 0
    %3948 = vmatpush1.bf16.msra.mxu0 %v3864
    %3949 = vmatprep.subr.bf16.mxu0 0
    %3950 = vmatpush1.bf16.msra.mxu0 %v3867
    %3951 = vmatprep.subr.bf16.mxu0 0
    %3952 = vmatpush1.bf16.msra.mxu0 %v3870
    %3953 = vmatprep.subr.bf16.mxu0 0
    %3954 = vmatpush1.bf16.msra.mxu0 %v3873
    %3955 = vmatprep.subr.bf16.mxu0 0
    %3956 = vmatpush1.bf16.msra.mxu0 0
    %3957 = vmatprep.subr.bf16.mxu0 0
    %3958 = vmatpush1.bf16.msra.mxu0 0
    %3959 = vmatprep.subr.bf16.mxu0 0
    %3960 = vmatpush1.bf16.msra.mxu0 0
    %3961 = vmatprep.subr.bf16.mxu0 0
    %3962 = vmatpush1.bf16.msra.mxu0 0
    %3963 = vmatprep.subr.bf16.mxu0 0
    %3964 = vmatpush1.bf16.msra.mxu0 0
    %3965 = vmatprep.subr.bf16.mxu0 0
    %3966 = vmatpush1.bf16.msra.mxu0 0
    %3967 = vmatprep.subr.bf16.mxu0 0
    %3968 = vmatpush1.bf16.msra.mxu0 0
    %3969 = vmatprep.subr.bf16.mxu0 0
    %3970 = vmatpush1.bf16.msra.mxu0 0
    %3971 = vmatprep.mubr.bf16.mxu0 0
    %3972 = vmatmul.mubr.bf16.gmra.mrb[0].mxu0 %v3307
    %v3973 = vpop.f32.mrb[0].mxu0
    %v3974 = vadd.f32 %v3766, %v3973
    %v3975 = vpop.f32.mrb[0].mxu0
    %v3976 = vpop.f32.mrb[0].mxu0
    %v3977 = vpop.f32.mrb[0].mxu0
    %3978 = vdwg.mxu0
    %v3979 = vld [vmem:[#allocation11] sm:$0xff]
    %v3980 = vld [vmem:[#allocation11 + $0x8] sm:$0xf]
    %v3981 = vld [vmem:[#allocation11 + $0xc] sm:$0xff]
    %v3982 = vld [vmem:[#allocation11 + $0x14] sm:$0xf]
    %v3983 = vld [vmem:[#allocation11 + $0x18] sm:$0xff]
    %v3984 = vld [vmem:[#allocation11 + $0x20] sm:$0xf]
    %v3985 = vld [vmem:[#allocation11 + $0x24] sm:$0xff]
    %v3986 = vld [vmem:[#allocation11 + $0x2c] sm:$0xf]
    %v3987 = vld [vmem:[#allocation11 + $0x30] sm:$0xff]
    %v3988 = vld [vmem:[#allocation11 + $0x38] sm:$0xf]
    %v3989 = vld [vmem:[#allocation11 + $0x3c] sm:$0xff]
    %v3990 = vld [vmem:[#allocation11 + $0x44] sm:$0xf]
    %v3991 = vld [vmem:[#allocation11 + $0x48] sm:$0xff]
    %v3992 = vld [vmem:[#allocation11 + $0x50] sm:$0xf]
    %v3993 = vld [vmem:[#allocation11 + $0x54] sm:$0xff]
    %v3994 = vld [vmem:[#allocation11 + $0x5c] sm:$0xf]
    %v3995 = vld [vmem:[#allocation11 + $0x60] sm:$0xff]
    %v3996 = vld [vmem:[#allocation11 + $0x68] sm:$0xf]
    %v3997 = vld [vmem:[#allocation11 + $0x6c] sm:$0xff]
    %v3998 = vld [vmem:[#allocation11 + $0x74] sm:$0xf]
    %v3999 = vld [vmem:[#allocation11 + $0x78] sm:$0xff]
    %v4000 = vld [vmem:[#allocation11 + $0x80] sm:$0xf]
    %v4001 = vld [vmem:[#allocation11 + $0x84] sm:$0xff]
    %v4002 = vld [vmem:[#allocation11 + $0x8c] sm:$0xf]
    %v4003 = vld [vmem:[#allocation11 + $0x90] sm:$0xff]
    %v4004 = vld [vmem:[#allocation11 + $0x98] sm:$0xf]
    %v4005 = vld [vmem:[#allocation11 + $0x9c] sm:$0xff]
    %v4006 = vld [vmem:[#allocation11 + $0xa4] sm:$0xf]
    %v4007 = vld [vmem:[#allocation11 + $0xa8] sm:$0xff]
    %v4008 = vld [vmem:[#allocation11 + $0xb0] sm:$0xf]
    %v4009 = vld [vmem:[#allocation11 + $0xb4] sm:$0xff]
    %v4010 = vld [vmem:[#allocation11 + $0xbc] sm:$0xf]
    %v4011 = vld [vmem:[%s8] sm:$0x7]
    %v4013 = vlaneseq
    %v4014 = vshrl.u32 %v4013, 7
    %v4015 = vsub.s32 0, %v4014
    %v4016 = vrot.slane %v4011, %v4015
    %v4017 = vlaneseq
    %v4018 = vshrl.u32 %v4017, 7
    %v4019 = vsub.s32 1, %v4018
    %v4020 = vrot.slane %v4011, %v4019
    %v4021 = vlaneseq
    %v4022 = vshrl.u32 %v4021, 7
    %v4023 = vsub.s32 2, %v4022
    %v4024 = vrot.slane %v4011, %v4023
    %v4060 = vunpack.c.l.b16 %v3979
    %v4061 = vunpack.c.h.b16 %v3979
    %v4062 = vunpack.c.l.b16 %v3980
    %v4063 = vunpack.c.l.b16 %v3981
    %v4064 = vunpack.c.h.b16 %v3981
    %v4065 = vunpack.c.l.b16 %v3982
    %v4066 = vunpack.c.l.b16 %v3983
    %v4067 = vunpack.c.h.b16 %v3983
    %v4068 = vunpack.c.l.b16 %v3984
    %v4069 = vunpack.c.l.b16 %v3985
    %v4070 = vunpack.c.h.b16 %v3985
    %v4071 = vunpack.c.l.b16 %v3986
    %v4072 = vunpack.c.l.b16 %v3987
    %v4073 = vunpack.c.h.b16 %v3987
    %v4074 = vunpack.c.l.b16 %v3988
    %v4075 = vunpack.c.l.b16 %v3989
    %v4076 = vunpack.c.h.b16 %v3989
    %v4077 = vunpack.c.l.b16 %v3990
    %v4078 = vunpack.c.l.b16 %v3991
    %v4079 = vunpack.c.h.b16 %v3991
    %v4080 = vunpack.c.l.b16 %v3992
    %v4081 = vunpack.c.l.b16 %v3993
    %v4082 = vunpack.c.h.b16 %v3993
    %v4083 = vunpack.c.l.b16 %v3994
    %v4084 = vunpack.c.l.b16 %v3995
    %v4085 = vunpack.c.h.b16 %v3995
    %v4086 = vunpack.c.l.b16 %v3996
    %v4087 = vunpack.c.l.b16 %v3997
    %v4088 = vunpack.c.h.b16 %v3997
    %v4089 = vunpack.c.l.b16 %v3998
    %v4090 = vunpack.c.l.b16 %v3999
    %v4091 = vunpack.c.h.b16 %v3999
    %v4092 = vunpack.c.l.b16 %v4000
    %v4093 = vunpack.c.l.b16 %v4001
    %v4094 = vunpack.c.h.b16 %v4001
    %v4095 = vunpack.c.l.b16 %v4002
    %v4096 = vunpack.c.l.b16 %v4003
    %v4097 = vunpack.c.h.b16 %v4003
    %v4098 = vunpack.c.l.b16 %v4004
    %v4099 = vunpack.c.l.b16 %v4005
    %v4100 = vunpack.c.h.b16 %v4005
    %v4101 = vunpack.c.l.b16 %v4006
    %v4102 = vunpack.c.l.b16 %v4007
    %v4103 = vunpack.c.h.b16 %v4007
    %v4104 = vunpack.c.l.b16 %v4008
    %v4105 = vunpack.c.l.b16 %v4009
    %v4106 = vunpack.c.h.b16 %v4009
    %v4107 = vunpack.c.l.b16 %v4010
    %v4108 = vpack.c.b16 %v4063, %v4060
    %v4109 = vpack.c.b16 %v4064, %v4061
    %v4110 = vpack.c.b16 %v4065, %v4062
    %v4111 = vpack.c.b16 %v4069, %v4066
    %v4112 = vpack.c.b16 %v4070, %v4067
    %v4113 = vpack.c.b16 %v4071, %v4068
    %v4114 = vpack.c.b16 %v4075, %v4072
    %v4115 = vpack.c.b16 %v4076, %v4073
    %v4116 = vpack.c.b16 %v4077, %v4074
    %v4117 = vpack.c.b16 %v4081, %v4078
    %v4118 = vpack.c.b16 %v4082, %v4079
    %v4119 = vpack.c.b16 %v4083, %v4080
    %v4120 = vpack.c.b16 %v4087, %v4084
    %v4121 = vpack.c.b16 %v4088, %v4085
    %v4122 = vpack.c.b16 %v4089, %v4086
    %v4123 = vpack.c.b16 %v4093, %v4090
    %v4124 = vpack.c.b16 %v4094, %v4091
    %v4125 = vpack.c.b16 %v4095, %v4092
    %v4126 = vpack.c.b16 %v4099, %v4096
    %v4127 = vpack.c.b16 %v4100, %v4097
    %v4128 = vpack.c.b16 %v4101, %v4098
    %v4129 = vpack.c.b16 %v4105, %v4102
    %v4130 = vpack.c.b16 %v4106, %v4103
    %v4131 = vpack.c.b16 %v4107, %v4104
    %4156 = vmatprep.subr.bf16.mxu0 %v4109
    %4157 = vmatpush1.bf16.msra.mxu0 %v4108
    %4158 = vmatprep.subr.bf16.mxu0 %v4112
    %4159 = vmatpush1.bf16.msra.mxu0 %v4111
    %4160 = vmatprep.subr.bf16.mxu0 %v4115
    %4161 = vmatpush1.bf16.msra.mxu0 %v4114
    %4162 = vmatprep.subr.bf16.mxu0 %v4118
    %4163 = vmatpush1.bf16.msra.mxu0 %v4117
    %4164 = vmatprep.subr.bf16.mxu0 %v4121
    %4165 = vmatpush1.bf16.msra.mxu0 %v4120
    %4166 = vmatprep.subr.bf16.mxu0 %v4124
    %4167 = vmatpush1.bf16.msra.mxu0 %v4123
    %4168 = vmatprep.subr.bf16.mxu0 %v4127
    %4169 = vmatpush1.bf16.msra.mxu0 %v4126
    %4170 = vmatprep.subr.bf16.mxu0 %v4130
    %4171 = vmatpush1.bf16.msra.mxu0 %v4129
    %4172 = vmatprep.subr.bf16.mxu0 0
    %4173 = vmatpush1.bf16.msra.mxu0 0
    %4174 = vmatprep.subr.bf16.mxu0 0
    %4175 = vmatpush1.bf16.msra.mxu0 0
    %4176 = vmatprep.subr.bf16.mxu0 0
    %4177 = vmatpush1.bf16.msra.mxu0 0
    %4178 = vmatprep.subr.bf16.mxu0 0
    %4179 = vmatpush1.bf16.msra.mxu0 0
    %4180 = vmatprep.subr.bf16.mxu0 0
    %4181 = vmatpush1.bf16.msra.mxu0 0
    %4182 = vmatprep.subr.bf16.mxu0 0
    %4183 = vmatpush1.bf16.msra.mxu0 0
    %4184 = vmatprep.subr.bf16.mxu0 0
    %4185 = vmatpush1.bf16.msra.mxu0 0
    %4186 = vmatprep.subr.bf16.mxu0 0
    %4187 = vmatpush1.bf16.msra.mxu0 0
    %4188 = vmatprep.mubr.bf16.mxu0 0
    %4189 = vmatmul.mubr.bf16.gmra.mrb[0].mxu0 %v3587
    %v4190 = vpop.f32.mrb[0].mxu0
    %v4191 = vadd.f32 %v4016, %v4190
    %v4192 = vpop.f32.mrb[0].mxu0
    %v4193 = vadd.f32 %v4020, %v4192
    %v4194 = vpop.f32.mrb[0].mxu0
    %v4195 = vpop.f32.mrb[0].mxu0
    %4196 = vdwg.mxu0
    %4197 = vmatprep.subr.bf16.mxu0 0
    %4198 = vmatpush1.bf16.msra.mxu0 %v4110
    %4199 = vmatprep.subr.bf16.mxu0 0
    %4200 = vmatpush1.bf16.msra.mxu0 %v4113
    %4201 = vmatprep.subr.bf16.mxu0 0
    %4202 = vmatpush1.bf16.msra.mxu0 %v4116
    %4203 = vmatprep.subr.bf16.mxu0 0
    %4204 = vmatpush1.bf16.msra.mxu0 %v4119
    %4205 = vmatprep.subr.bf16.mxu0 0
    %4206 = vmatpush1.bf16.msra.mxu0 %v4122
    %4207 = vmatprep.subr.bf16.mxu0 0
    %4208 = vmatpush1.bf16.msra.mxu0 %v4125
    %4209 = vmatprep.subr.bf16.mxu0 0
    %4210 = vmatpush1.bf16.msra.mxu0 %v4128
    %4211 = vmatprep.subr.bf16.mxu0 0
    %4212 = vmatpush1.bf16.msra.mxu0 %v4131
    %4213 = vmatprep.subr.bf16.mxu0 0
    %4214 = vmatpush1.bf16.msra.mxu0 0
    %4215 = vmatprep.subr.bf16.mxu0 0
    %4216 = vmatpush1.bf16.msra.mxu0 0
    %4217 = vmatprep.subr.bf16.mxu0 0
    %4218 = vmatpush1.bf16.msra.mxu0 0
    %4219 = vmatprep.subr.bf16.mxu0 0
    %4220 = vmatpush1.bf16.msra.mxu0 0
    %4221 = vmatprep.subr.bf16.mxu0 0
    %4222 = vmatpush1.bf16.msra.mxu0 0
    %4223 = vmatprep.subr.bf16.mxu0 0
    %4224 = vmatpush1.bf16.msra.mxu0 0
    %4225 = vmatprep.subr.bf16.mxu0 0
    %4226 = vmatpush1.bf16.msra.mxu0 0
    %4227 = vmatprep.subr.bf16.mxu0 0
    %4228 = vmatpush1.bf16.msra.mxu0 0
    %4229 = vmatprep.mubr.bf16.mxu0 0
    %4230 = vmatmul.mubr.bf16.gmra.mrb[0].mxu0 %v3587
    %v4231 = vpop.f32.mrb[0].mxu0
    %v4232 = vadd.f32 %v4024, %v4231
    %v4233 = vpop.f32.mrb[0].mxu0
    %v4234 = vpop.f32.mrb[0].mxu0
    %v4235 = vpop.f32.mrb[0].mxu0
    %4236 = vdwg.mxu0
    %v4237 = vpack.c.bf16 %v3720, %v3720
    %v4238 = vld [vmem:[#allocation5] sm:$0xff]
    %v4239 = vld [vmem:[#allocation5 + $0x8] sm:$0xf]
    %v4240 = vld [vmem:[#allocation5 + $0xc] sm:$0xff]
    %v4241 = vld [vmem:[#allocation5 + $0x14] sm:$0xf]
    %v4242 = vld [vmem:[#allocation5 + $0x18] sm:$0xff]
    %v4243 = vld [vmem:[#allocation5 + $0x20] sm:$0xf]
    %v4244 = vld [vmem:[#allocation5 + $0x24] sm:$0xff]
    %v4245 = vld [vmem:[#allocation5 + $0x2c] sm:$0xf]
    %v4246 = vld [vmem:[#allocation5 + $0x30] sm:$0xff]
    %v4247 = vld [vmem:[#allocation5 + $0x38] sm:$0xf]
    %v4248 = vld [vmem:[#allocation5 + $0x3c] sm:$0xff]
    %v4249 = vld [vmem:[#allocation5 + $0x44] sm:$0xf]
    %v4250 = vld [vmem:[#allocation5 + $0x48] sm:$0xff]
    %v4251 = vld [vmem:[#allocation5 + $0x50] sm:$0xf]
    %v4252 = vld [vmem:[#allocation5 + $0x54] sm:$0xff]
    %v4253 = vld [vmem:[#allocation5 + $0x5c] sm:$0xf]
    %v4254 = vld [vmem:[#allocation5 + $0x60] sm:$0xff]
    %v4255 = vld [vmem:[#allocation5 + $0x68] sm:$0xf]
    %v4256 = vld [vmem:[#allocation5 + $0x6c] sm:$0xff]
    %v4257 = vld [vmem:[#allocation5 + $0x74] sm:$0xf]
    %v4258 = vld [vmem:[#allocation5 + $0x78] sm:$0xff]
    %v4259 = vld [vmem:[#allocation5 + $0x80] sm:$0xf]
    %v4260 = vld [vmem:[#allocation5 + $0x84] sm:$0xff]
    %v4261 = vld [vmem:[#allocation5 + $0x8c] sm:$0xf]
    %v4262 = vld [vmem:[#allocation5 + $0x90] sm:$0xff]
    %v4263 = vld [vmem:[#allocation5 + $0x98] sm:$0xf]
    %v4264 = vld [vmem:[#allocation5 + $0x9c] sm:$0xff]
    %v4265 = vld [vmem:[#allocation5 + $0xa4] sm:$0xf]
    %v4266 = vld [vmem:[#allocation5 + $0xa8] sm:$0xff]
    %v4267 = vld [vmem:[#allocation5 + $0xb0] sm:$0xf]
    %v4268 = vld [vmem:[#allocation5 + $0xb4] sm:$0xff]
    %v4269 = vld [vmem:[#allocation5 + $0xbc] sm:$0xf]
    %v4270 = vld [vmem:[#allocation7] sm:$0xff]
    %v4271 = vld [vmem:[#allocation7 + $0x8] sm:$0xff]
    %v4272 = vld [vmem:[#allocation7 + $0x10] sm:$0xff]
    %v4305 = vunpack.c.l.b16 %v4238
    %v4306 = vunpack.c.h.b16 %v4238
    %v4307 = vunpack.c.l.b16 %v4239
    %v4308 = vunpack.c.l.b16 %v4240
    %v4309 = vunpack.c.h.b16 %v4240
    %v4310 = vunpack.c.l.b16 %v4241
    %v4311 = vunpack.c.l.b16 %v4242
    %v4312 = vunpack.c.h.b16 %v4242
    %v4313 = vunpack.c.l.b16 %v4243
    %v4314 = vunpack.c.l.b16 %v4244
    %v4315 = vunpack.c.h.b16 %v4244
    %v4316 = vunpack.c.l.b16 %v4245
    %v4317 = vunpack.c.l.b16 %v4246
    %v4318 = vunpack.c.h.b16 %v4246
    %v4319 = vunpack.c.l.b16 %v4247
    %v4320 = vunpack.c.l.b16 %v4248
    %v4321 = vunpack.c.h.b16 %v4248
    %v4322 = vunpack.c.l.b16 %v4249
    %v4323 = vunpack.c.l.b16 %v4250
    %v4324 = vunpack.c.h.b16 %v4250
    %v4325 = vunpack.c.l.b16 %v4251
    %v4326 = vunpack.c.l.b16 %v4252
    %v4327 = vunpack.c.h.b16 %v4252
    %v4328 = vunpack.c.l.b16 %v4253
    %v4329 = vunpack.c.l.b16 %v4254
    %v4330 = vunpack.c.h.b16 %v4254
    %v4331 = vunpack.c.l.b16 %v4255
    %v4332 = vunpack.c.l.b16 %v4256
    %v4333 = vunpack.c.h.b16 %v4256
    %v4334 = vunpack.c.l.b16 %v4257
    %v4335 = vunpack.c.l.b16 %v4258
    %v4336 = vunpack.c.h.b16 %v4258
    %v4337 = vunpack.c.l.b16 %v4259
    %v4338 = vunpack.c.l.b16 %v4260
    %v4339 = vunpack.c.h.b16 %v4260
    %v4340 = vunpack.c.l.b16 %v4261
    %v4341 = vunpack.c.l.b16 %v4262
    %v4342 = vunpack.c.h.b16 %v4262
    %v4343 = vunpack.c.l.b16 %v4263
    %v4344 = vunpack.c.l.b16 %v4264
    %v4345 = vunpack.c.h.b16 %v4264
    %v4346 = vunpack.c.l.b16 %v4265
    %v4347 = vunpack.c.l.b16 %v4266
    %v4348 = vunpack.c.h.b16 %v4266
    %v4349 = vunpack.c.l.b16 %v4267
    %v4350 = vunpack.c.l.b16 %v4268
    %v4351 = vunpack.c.h.b16 %v4268
    %v4352 = vunpack.c.l.b16 %v4269
    %v4353 = vpack.c.b16 %v4308, %v4305
    %v4354 = vpack.c.b16 %v4309, %v4306
    %v4355 = vpack.c.b16 %v4310, %v4307
    %v4356 = vpack.c.b16 %v4314, %v4311
    %v4357 = vpack.c.b16 %v4315, %v4312
    %v4358 = vpack.c.b16 %v4316, %v4313
    %v4359 = vpack.c.b16 %v4320, %v4317
    %v4360 = vpack.c.b16 %v4321, %v4318
    %v4361 = vpack.c.b16 %v4322, %v4319
    %v4362 = vpack.c.b16 %v4326, %v4323
    %v4363 = vpack.c.b16 %v4327, %v4324
    %v4364 = vpack.c.b16 %v4328, %v4325
    %v4365 = vpack.c.b16 %v4332, %v4329
    %v4366 = vpack.c.b16 %v4333, %v4330
    %v4367 = vpack.c.b16 %v4334, %v4331
    %v4368 = vpack.c.b16 %v4338, %v4335
    %v4369 = vpack.c.b16 %v4339, %v4336
    %v4370 = vpack.c.b16 %v4340, %v4337
    %v4371 = vpack.c.b16 %v4344, %v4341
    %v4372 = vpack.c.b16 %v4345, %v4342
    %v4373 = vpack.c.b16 %v4346, %v4343
    %v4374 = vpack.c.b16 %v4350, %v4347
    %v4375 = vpack.c.b16 %v4351, %v4348
    %v4376 = vpack.c.b16 %v4352, %v4349
    %4401 = vmatprep.subr.bf16.mxu0 %v4354
    %4402 = vmatpush1.bf16.msra.mxu0 %v4353
    %4403 = vmatprep.subr.bf16.mxu0 %v4357
    %4404 = vmatpush1.bf16.msra.mxu0 %v4356
    %4405 = vmatprep.subr.bf16.mxu0 %v4360
    %4406 = vmatpush1.bf16.msra.mxu0 %v4359
    %4407 = vmatprep.subr.bf16.mxu0 %v4363
    %4408 = vmatpush1.bf16.msra.mxu0 %v4362
    %4409 = vmatprep.subr.bf16.mxu0 %v4366
    %4410 = vmatpush1.bf16.msra.mxu0 %v4365
    %4411 = vmatprep.subr.bf16.mxu0 %v4369
    %4412 = vmatpush1.bf16.msra.mxu0 %v4368
    %4413 = vmatprep.subr.bf16.mxu0 %v4372
    %4414 = vmatpush1.bf16.msra.mxu0 %v4371
    %4415 = vmatprep.subr.bf16.mxu0 %v4375
    %4416 = vmatpush1.bf16.msra.mxu0 %v4374
    %4417 = vmatprep.subr.bf16.mxu0 0
    %4418 = vmatpush1.bf16.msra.mxu0 0
    %4419 = vmatprep.subr.bf16.mxu0 0
    %4420 = vmatpush1.bf16.msra.mxu0 0
    %4421 = vmatprep.subr.bf16.mxu0 0
    %4422 = vmatpush1.bf16.msra.mxu0 0
    %4423 = vmatprep.subr.bf16.mxu0 0
    %4424 = vmatpush1.bf16.msra.mxu0 0
    %4425 = vmatprep.subr.bf16.mxu0 0
    %4426 = vmatpush1.bf16.msra.mxu0 0
    %4427 = vmatprep.subr.bf16.mxu0 0
    %4428 = vmatpush1.bf16.msra.mxu0 0
    %4429 = vmatprep.subr.bf16.mxu0 0
    %4430 = vmatpush1.bf16.msra.mxu0 0
    %4431 = vmatprep.subr.bf16.mxu0 0
    %4432 = vmatpush1.bf16.msra.mxu0 0
    %4433 = vmatprep.mubr.bf16.mxu0 0
    %4434 = vmatmul.mubr.bf16.gmra.mrb[0].mxu0 %v4237
    %v4435 = vpop.f32.mrb[0].mxu0
    %v4436 = vadd.f32 %v4270, %v4435
    %v4437 = vpop.f32.mrb[0].mxu0
    %v4438 = vadd.f32 %v4271, %v4437
    %v4439 = vpop.f32.mrb[0].mxu0
    %v4440 = vpop.f32.mrb[0].mxu0
    %4441 = vdwg.mxu0
    %4442 = vmatprep.subr.bf16.mxu0 0
    %4443 = vmatpush1.bf16.msra.mxu0 %v4355
    %4444 = vmatprep.subr.bf16.mxu0 0
    %4445 = vmatpush1.bf16.msra.mxu0 %v4358
    %4446 = vmatprep.subr.bf16.mxu0 0
    %4447 = vmatpush1.bf16.msra.mxu0 %v4361
    %4448 = vmatprep.subr.bf16.mxu0 0
    %4449 = vmatpush1.bf16.msra.mxu0 %v4364
    %4450 = vmatprep.subr.bf16.mxu0 0
    %4451 = vmatpush1.bf16.msra.mxu0 %v4367
    %4452 = vmatprep.subr.bf16.mxu0 0
    %4453 = vmatpush1.bf16.msra.mxu0 %v4370
    %4454 = vmatprep.subr.bf16.mxu0 0
    %4455 = vmatpush1.bf16.msra.mxu0 %v4373
    %4456 = vmatprep.subr.bf16.mxu0 0
    %4457 = vmatpush1.bf16.msra.mxu0 %v4376
    %4458 = vmatprep.subr.bf16.mxu0 0
    %4459 = vmatpush1.bf16.msra.mxu0 0
    %4460 = vmatprep.subr.bf16.mxu0 0
    %4461 = vmatpush1.bf16.msra.mxu0 0
    %4462 = vmatprep.subr.bf16.mxu0 0
    %4463 = vmatpush1.bf16.msra.mxu0 0
    %4464 = vmatprep.subr.bf16.mxu0 0
    %4465 = vmatpush1.bf16.msra.mxu0 0
    %4466 = vmatprep.subr.bf16.mxu0 0
    %4467 = vmatpush1.bf16.msra.mxu0 0
    %4468 = vmatprep.subr.bf16.mxu0 0
    %4469 = vmatpush1.bf16.msra.mxu0 0
    %4470 = vmatprep.subr.bf16.mxu0 0
    %4471 = vmatpush1.bf16.msra.mxu0 0
    %4472 = vmatprep.subr.bf16.mxu0 0
    %4473 = vmatpush1.bf16.msra.mxu0 0
    %4474 = vmatprep.mubr.bf16.mxu0 0
    %4475 = vmatmul.mubr.bf16.gmra.mrb[0].mxu0 %v4237
    %v4476 = vpop.f32.mrb[0].mxu0
    %v4477 = vadd.f32 %v4272, %v4476
    %v4478 = vpop.f32.mrb[0].mxu0
    %v4479 = vpop.f32.mrb[0].mxu0
    %v4480 = vpop.f32.mrb[0].mxu0
    %4481 = vdwg.mxu0
    %v4482 = vadd.f32 %v4436, %v3933
    %v4483 = vxor.u32 %v4482, 2147483648
    %v4484 = vmul.f32 %v4483, 1.442695
    %v4485 = vpow.pop %v4484
    %v4486 = vadd.f32 %v4485, 1.0
    %v4487 = vrcp.pop %v4486
    %v4488 = vmul.f32 1.0, %v4487
    %v4489 = vadd.f32 %v4438, %v3935
    %v4490 = vxor.u32 %v4489, 2147483648
    %v4491 = vmul.f32 %v4490, 1.442695
    %v4492 = vpow.pop %v4491
    %v4493 = vadd.f32 %v4492, 1.0
    %v4494 = vrcp.pop %v4493
    %v4495 = vmul.f32 1.0, %v4494
    %v4496 = vmul.f32 %v4488, %v3974
    %v4497 = vadd.f32 %v4477, %v4496
    %v4498 = vtanh.pop %v4497
    %v4499 = vsub.f32 1.0, %v4495
    %v4500 = vmul.f32 %v4499, %v4498
    %v4501 = vmul.f32 %v4495, %v3306
    %v4502 = vadd.f32 %v4500, %v4501
    %v4503 = vpack.c.bf16 %v4502, %v4502
    %v4504 = vld [vmem:[#allocation8] sm:$0xff]
    %v4505 = vld [vmem:[#allocation8 + $0x8] sm:$0xf]
    %v4506 = vld [vmem:[#allocation8 + $0xc] sm:$0xff]
    %v4507 = vld [vmem:[#allocation8 + $0x14] sm:$0xf]
    %v4508 = vld [vmem:[#allocation8 + $0x18] sm:$0xff]
    %v4509 = vld [vmem:[#allocation8 + $0x20] sm:$0xf]
    %v4510 = vld [vmem:[#allocation8 + $0x24] sm:$0xff]
    %v4511 = vld [vmem:[#allocation8 + $0x2c] sm:$0xf]
    %v4512 = vld [vmem:[#allocation8 + $0x30] sm:$0xff]
    %v4513 = vld [vmem:[#allocation8 + $0x38] sm:$0xf]
    %v4514 = vld [vmem:[#allocation8 + $0x3c] sm:$0xff]
    %v4515 = vld [vmem:[#allocation8 + $0x44] sm:$0xf]
    %v4516 = vld [vmem:[#allocation8 + $0x48] sm:$0xff]
    %v4517 = vld [vmem:[#allocation8 + $0x50] sm:$0xf]
    %v4518 = vld [vmem:[#allocation8 + $0x54] sm:$0xff]
    %v4519 = vld [vmem:[#allocation8 + $0x5c] sm:$0xf]
    %v4520 = vld [vmem:[#allocation8 + $0x60] sm:$0xff]
    %v4521 = vld [vmem:[#allocation8 + $0x68] sm:$0xf]
    %v4522 = vld [vmem:[#allocation8 + $0x6c] sm:$0xff]
    %v4523 = vld [vmem:[#allocation8 + $0x74] sm:$0xf]
    %v4524 = vld [vmem:[#allocation8 + $0x78] sm:$0xff]
    %v4525 = vld [vmem:[#allocation8 + $0x80] sm:$0xf]
    %v4526 = vld [vmem:[#allocation8 + $0x84] sm:$0xff]
    %v4527 = vld [vmem:[#allocation8 + $0x8c] sm:$0xf]
    %v4528 = vld [vmem:[#allocation8 + $0x90] sm:$0xff]
    %v4529 = vld [vmem:[#allocation8 + $0x98] sm:$0xf]
    %v4530 = vld [vmem:[#allocation8 + $0x9c] sm:$0xff]
    %v4531 = vld [vmem:[#allocation8 + $0xa4] sm:$0xf]
    %v4532 = vld [vmem:[#allocation8 + $0xa8] sm:$0xff]
    %v4533 = vld [vmem:[#allocation8 + $0xb0] sm:$0xf]
    %v4534 = vld [vmem:[#allocation8 + $0xb4] sm:$0xff]
    %v4535 = vld [vmem:[#allocation8 + $0xbc] sm:$0xf]
    %v4536 = vld [vmem:[%s4] sm:$0x7]
    %v4538 = vlaneseq
    %v4539 = vshrl.u32 %v4538, 7
    %v4540 = vsub.s32 0, %v4539
    %v4541 = vrot.slane %v4536, %v4540
    %v4542 = vlaneseq
    %v4543 = vshrl.u32 %v4542, 7
    %v4544 = vsub.s32 1, %v4543
    %v4545 = vrot.slane %v4536, %v4544
    %v4546 = vlaneseq
    %v4547 = vshrl.u32 %v4546, 7
    %v4548 = vsub.s32 2, %v4547
    %v4549 = vrot.slane %v4536, %v4548
    %v4585 = vunpack.c.l.b16 %v4504
    %v4586 = vunpack.c.h.b16 %v4504
    %v4587 = vunpack.c.l.b16 %v4505
    %v4588 = vunpack.c.l.b16 %v4506
    %v4589 = vunpack.c.h.b16 %v4506
    %v4590 = vunpack.c.l.b16 %v4507
    %v4591 = vunpack.c.l.b16 %v4508
    %v4592 = vunpack.c.h.b16 %v4508
    %v4593 = vunpack.c.l.b16 %v4509
    %v4594 = vunpack.c.l.b16 %v4510
    %v4595 = vunpack.c.h.b16 %v4510
    %v4596 = vunpack.c.l.b16 %v4511
    %v4597 = vunpack.c.l.b16 %v4512
    %v4598 = vunpack.c.h.b16 %v4512
    %v4599 = vunpack.c.l.b16 %v4513
    %v4600 = vunpack.c.l.b16 %v4514
    %v4601 = vunpack.c.h.b16 %v4514
    %v4602 = vunpack.c.l.b16 %v4515
    %v4603 = vunpack.c.l.b16 %v4516
    %v4604 = vunpack.c.h.b16 %v4516
    %v4605 = vunpack.c.l.b16 %v4517
    %v4606 = vunpack.c.l.b16 %v4518
    %v4607 = vunpack.c.h.b16 %v4518
    %v4608 = vunpack.c.l.b16 %v4519
    %v4609 = vunpack.c.l.b16 %v4520
    %v4610 = vunpack.c.h.b16 %v4520
    %v4611 = vunpack.c.l.b16 %v4521
    %v4612 = vunpack.c.l.b16 %v4522
    %v4613 = vunpack.c.h.b16 %v4522
    %v4614 = vunpack.c.l.b16 %v4523
    %v4615 = vunpack.c.l.b16 %v4524
    %v4616 = vunpack.c.h.b16 %v4524
    %v4617 = vunpack.c.l.b16 %v4525
    %v4618 = vunpack.c.l.b16 %v4526
    %v4619 = vunpack.c.h.b16 %v4526
    %v4620 = vunpack.c.l.b16 %v4527
    %v4621 = vunpack.c.l.b16 %v4528
    %v4622 = vunpack.c.h.b16 %v4528
    %v4623 = vunpack.c.l.b16 %v4529
    %v4624 = vunpack.c.l.b16 %v4530
    %v4625 = vunpack.c.h.b16 %v4530
    %v4626 = vunpack.c.l.b16 %v4531
    %v4627 = vunpack.c.l.b16 %v4532
    %v4628 = vunpack.c.h.b16 %v4532
    %v4629 = vunpack.c.l.b16 %v4533
    %v4630 = vunpack.c.l.b16 %v4534
    %v4631 = vunpack.c.h.b16 %v4534
    %v4632 = vunpack.c.l.b16 %v4535
    %v4633 = vpack.c.b16 %v4588, %v4585
    %v4634 = vpack.c.b16 %v4589, %v4586
    %v4635 = vpack.c.b16 %v4590, %v4587
    %v4636 = vpack.c.b16 %v4594, %v4591
    %v4637 = vpack.c.b16 %v4595, %v4592
    %v4638 = vpack.c.b16 %v4596, %v4593
    %v4639 = vpack.c.b16 %v4600, %v4597
    %v4640 = vpack.c.b16 %v4601, %v4598
    %v4641 = vpack.c.b16 %v4602, %v4599
    %v4642 = vpack.c.b16 %v4606, %v4603
    %v4643 = vpack.c.b16 %v4607, %v4604
    %v4644 = vpack.c.b16 %v4608, %v4605
    %v4645 = vpack.c.b16 %v4612, %v4609
    %v4646 = vpack.c.b16 %v4613, %v4610
    %v4647 = vpack.c.b16 %v4614, %v4611
    %v4648 = vpack.c.b16 %v4618, %v4615
    %v4649 = vpack.c.b16 %v4619, %v4616
    %v4650 = vpack.c.b16 %v4620, %v4617
    %v4651 = vpack.c.b16 %v4624, %v4621
    %v4652 = vpack.c.b16 %v4625, %v4622
    %v4653 = vpack.c.b16 %v4626, %v4623
    %v4654 = vpack.c.b16 %v4630, %v4627
    %v4655 = vpack.c.b16 %v4631, %v4628
    %v4656 = vpack.c.b16 %v4632, %v4629
    %4681 = vmatprep.subr.bf16.mxu0 %v4634
    %4682 = vmatpush1.bf16.msra.mxu0 %v4633
    %4683 = vmatprep.subr.bf16.mxu0 %v4637
    %4684 = vmatpush1.bf16.msra.mxu0 %v4636
    %4685 = vmatprep.subr.bf16.mxu0 %v4640
    %4686 = vmatpush1.bf16.msra.mxu0 %v4639
    %4687 = vmatprep.subr.bf16.mxu0 %v4643
    %4688 = vmatpush1.bf16.msra.mxu0 %v4642
    %4689 = vmatprep.subr.bf16.mxu0 %v4646
    %4690 = vmatpush1.bf16.msra.mxu0 %v4645
    %4691 = vmatprep.subr.bf16.mxu0 %v4649
    %4692 = vmatpush1.bf16.msra.mxu0 %v4648
    %4693 = vmatprep.subr.bf16.mxu0 %v4652
    %4694 = vmatpush1.bf16.msra.mxu0 %v4651
    %4695 = vmatprep.subr.bf16.mxu0 %v4655
    %4696 = vmatpush1.bf16.msra.mxu0 %v4654
    %4697 = vmatprep.subr.bf16.mxu0 0
    %4698 = vmatpush1.bf16.msra.mxu0 0
    %4699 = vmatprep.subr.bf16.mxu0 0
    %4700 = vmatpush1.bf16.msra.mxu0 0
    %4701 = vmatprep.subr.bf16.mxu0 0
    %4702 = vmatpush1.bf16.msra.mxu0 0
    %4703 = vmatprep.subr.bf16.mxu0 0
    %4704 = vmatpush1.bf16.msra.mxu0 0
    %4705 = vmatprep.subr.bf16.mxu0 0
    %4706 = vmatpush1.bf16.msra.mxu0 0
    %4707 = vmatprep.subr.bf16.mxu0 0
    %4708 = vmatpush1.bf16.msra.mxu0 0
    %4709 = vmatprep.subr.bf16.mxu0 0
    %4710 = vmatpush1.bf16.msra.mxu0 0
    %4711 = vmatprep.subr.bf16.mxu0 0
    %4712 = vmatpush1.bf16.msra.mxu0 0
    %4713 = vmatprep.mubr.bf16.mxu0 0
    %4714 = vmatmul.mubr.bf16.gmra.mrb[0].mxu0 %v4503
    %v4715 = vpop.f32.mrb[0].mxu0
    %v4716 = vadd.f32 %v4541, %v4715
    %v4717 = vpop.f32.mrb[0].mxu0
    %v4718 = vadd.f32 %v4545, %v4717
    %v4719 = vpop.f32.mrb[0].mxu0
    %v4720 = vpop.f32.mrb[0].mxu0
    %4721 = vdwg.mxu0
    %4722 = vmatprep.subr.bf16.mxu0 0
    %4723 = vmatpush1.bf16.msra.mxu0 %v4635
    %4724 = vmatprep.subr.bf16.mxu0 0
    %4725 = vmatpush1.bf16.msra.mxu0 %v4638
    %4726 = vmatprep.subr.bf16.mxu0 0
    %4727 = vmatpush1.bf16.msra.mxu0 %v4641
    %4728 = vmatprep.subr.bf16.mxu0 0
    %4729 = vmatpush1.bf16.msra.mxu0 %v4644
    %4730 = vmatprep.subr.bf16.mxu0 0
    %4731 = vmatpush1.bf16.msra.mxu0 %v4647
    %4732 = vmatprep.subr.bf16.mxu0 0
    %4733 = vmatpush1.bf16.msra.mxu0 %v4650
    %4734 = vmatprep.subr.bf16.mxu0 0
    %4735 = vmatpush1.bf16.msra.mxu0 %v4653
    %4736 = vmatprep.subr.bf16.mxu0 0
    %4737 = vmatpush1.bf16.msra.mxu0 %v4656
    %4738 = vmatprep.subr.bf16.mxu0 0
    %4739 = vmatpush1.bf16.msra.mxu0 0
    %4740 = vmatprep.subr.bf16.mxu0 0
    %4741 = vmatpush1.bf16.msra.mxu0 0
    %4742 = vmatprep.subr.bf16.mxu0 0
    %4743 = vmatpush1.bf16.msra.mxu0 0
    %4744 = vmatprep.subr.bf16.mxu0 0
    %4745 = vmatpush1.bf16.msra.mxu0 0
    %4746 = vmatprep.subr.bf16.mxu0 0
    %4747 = vmatpush1.bf16.msra.mxu0 0
    %4748 = vmatprep.subr.bf16.mxu0 0
    %4749 = vmatpush1.bf16.msra.mxu0 0
    %4750 = vmatprep.subr.bf16.mxu0 0
    %4751 = vmatpush1.bf16.msra.mxu0 0
    %4752 = vmatprep.subr.bf16.mxu0 0
    %4753 = vmatpush1.bf16.msra.mxu0 0
    %4754 = vmatprep.mubr.bf16.mxu0 0
    %4755 = vmatmul.mubr.bf16.gmra.mrb[0].mxu0 %v4503
    %v4756 = vpop.f32.mrb[0].mxu0
    %v4757 = vadd.f32 %v4549, %v4756
    %v4758 = vpop.f32.mrb[0].mxu0
    %v4759 = vpop.f32.mrb[0].mxu0
    %v4760 = vpop.f32.mrb[0].mxu0
    %4761 = vdwg.mxu0
    %v4762 = vadd.f32 %v4716, %v4191
    %v4763 = vxor.u32 %v4762, 2147483648
    %v4764 = vmul.f32 %v4763, 1.442695
    %v4765 = vpow.pop %v4764
    %v4766 = vadd.f32 %v4765, 1.0
    %v4767 = vrcp.pop %v4766
    %v4768 = vmul.f32 1.0, %v4767
    %v4769 = vadd.f32 %v4718, %v4193
    %v4770 = vxor.u32 %v4769, 2147483648
    %v4771 = vmul.f32 %v4770, 1.442695
    %v4772 = vpow.pop %v4771
    %v4773 = vadd.f32 %v4772, 1.0
    %v4774 = vrcp.pop %v4773
    %v4775 = vmul.f32 1.0, %v4774
    %v4776 = vmul.f32 %v4768, %v4232
    %v4777 = vadd.f32 %v4757, %v4776
    %v4778 = vtanh.pop %v4777
    %v4779 = vsub.f32 1.0, %v4775
    %v4780 = vmul.f32 %v4779, %v4778
    %v4781 = vmul.f32 %v4775, %v3586
    %v4782 = vadd.f32 %v4780, %v4781
    %v4783 = vpack.c.bf16 %v4782, %v4782
    %v4784 = vld [vmem:[#allocation13] sm:$0xf]
    %v4785 = vld [vmem:[#allocation13 + $0x4] sm:$0xf]
    %v4786 = vld [vmem:[#allocation13 + $0x8] sm:$0xf]
    %v4787 = vld [vmem:[#allocation13 + $0xc] sm:$0xf]
    %v4788 = vld [vmem:[#allocation13 + $0x10] sm:$0xf]
    %v4789 = vld [vmem:[#allocation13 + $0x14] sm:$0xf]
    %v4790 = vld [vmem:[#allocation13 + $0x18] sm:$0xf]
    %v4791 = vld [vmem:[#allocation13 + $0x1c] sm:$0xf]
    %v4792 = vld [vmem:[#allocation13 + $0x20] sm:$0xf]
    %v4793 = vld [vmem:[#allocation13 + $0x24] sm:$0xf]
    %v4794 = vld [vmem:[#allocation13 + $0x28] sm:$0xf]
    %v4795 = vld [vmem:[#allocation13 + $0x2c] sm:$0xf]
    %v4796 = vld [vmem:[#allocation13 + $0x30] sm:$0xf]
    %v4797 = vld [vmem:[#allocation13 + $0x34] sm:$0xf]
    %v4798 = vld [vmem:[#allocation13 + $0x38] sm:$0xf]
    %v4799 = vld [vmem:[#allocation13 + $0x3c] sm:$0xf]
    %v4800 = vld [vmem:[%s10] sm:$0x1]
    %v4802 = vlaneseq
    %v4803 = vshrl.u32 %v4802, 7
    %v4804 = vsub.s32 0, %v4803
    %v4805 = vrot.slane %v4800, %v4804
    %v4823 = vunpack.c.l.b16 %v4784
    %v4824 = vunpack.c.l.b16 %v4785
    %v4825 = vunpack.c.l.b16 %v4786
    %v4826 = vunpack.c.l.b16 %v4787
    %v4827 = vunpack.c.l.b16 %v4788
    %v4828 = vunpack.c.l.b16 %v4789
    %v4829 = vunpack.c.l.b16 %v4790
    %v4830 = vunpack.c.l.b16 %v4791
    %v4831 = vunpack.c.l.b16 %v4792
    %v4832 = vunpack.c.l.b16 %v4793
    %v4833 = vunpack.c.l.b16 %v4794
    %v4834 = vunpack.c.l.b16 %v4795
    %v4835 = vunpack.c.l.b16 %v4796
    %v4836 = vunpack.c.l.b16 %v4797
    %v4837 = vunpack.c.l.b16 %v4798
    %v4838 = vunpack.c.l.b16 %v4799
    %v4839 = vpack.c.b16 %v4824, %v4823
    %v4840 = vpack.c.b16 %v4826, %v4825
    %v4841 = vpack.c.b16 %v4828, %v4827
    %v4842 = vpack.c.b16 %v4830, %v4829
    %v4843 = vpack.c.b16 %v4832, %v4831
    %v4844 = vpack.c.b16 %v4834, %v4833
    %v4845 = vpack.c.b16 %v4836, %v4835
    %v4846 = vpack.c.b16 %v4838, %v4837
    %4855 = vmatprep.subr.bf16.mxu0 0
    %4856 = vmatpush1.bf16.msra.mxu0 %v4839
    %4857 = vmatprep.subr.bf16.mxu0 0
    %4858 = vmatpush1.bf16.msra.mxu0 %v4840
    %4859 = vmatprep.subr.bf16.mxu0 0
    %4860 = vmatpush1.bf16.msra.mxu0 %v4841
    %4861 = vmatprep.subr.bf16.mxu0 0
    %4862 = vmatpush1.bf16.msra.mxu0 %v4842
    %4863 = vmatprep.subr.bf16.mxu0 0
    %4864 = vmatpush1.bf16.msra.mxu0 %v4843
    %4865 = vmatprep.subr.bf16.mxu0 0
    %4866 = vmatpush1.bf16.msra.mxu0 %v4844
    %4867 = vmatprep.subr.bf16.mxu0 0
    %4868 = vmatpush1.bf16.msra.mxu0 %v4845
    %4869 = vmatprep.subr.bf16.mxu0 0
    %4870 = vmatpush1.bf16.msra.mxu0 %v4846
    %4871 = vmatprep.subr.bf16.mxu0 0
    %4872 = vmatpush1.bf16.msra.mxu0 0
    %4873 = vmatprep.subr.bf16.mxu0 0
    %4874 = vmatpush1.bf16.msra.mxu0 0
    %4875 = vmatprep.subr.bf16.mxu0 0
    %4876 = vmatpush1.bf16.msra.mxu0 0
    %4877 = vmatprep.subr.bf16.mxu0 0
    %4878 = vmatpush1.bf16.msra.mxu0 0
    %4879 = vmatprep.subr.bf16.mxu0 0
    %4880 = vmatpush1.bf16.msra.mxu0 0
    %4881 = vmatprep.subr.bf16.mxu0 0
    %4882 = vmatpush1.bf16.msra.mxu0 0
    %4883 = vmatprep.subr.bf16.mxu0 0
    %4884 = vmatpush1.bf16.msra.mxu0 0
    %4885 = vmatprep.subr.bf16.mxu0 0
    %4886 = vmatpush1.bf16.msra.mxu0 0
    %4887 = vmatprep.mubr.bf16.mxu0 0
    %4888 = vmatmul.mubr.bf16.gmra.mrb[0].mxu0 %v4783
    %v4889 = vpop.f32.mrb[0].mxu0
    %v4890 = vadd.f32 %v4805, %v4889
    %v4891 = vpop.f32.mrb[0].mxu0
    %v4892 = vpop.f32.mrb[0].mxu0
    %v4893 = vpop.f32.mrb[0].mxu0
    %4894 = vdwg.mxu0
    %s4895 = scalar_lea.vmem [#allocation14], 24
    %4896 = vst [vmem:[%s4895] sm:$0xff] %v4890
    %4897 = vmax.xlane.f32.xlu0 %v4890
    %v4898 = vpop.xlane.xlu0 %4897
    %vm4899 = vcmp.eq.f32.partialorder %v4890, %v4898
    %v4900 = vsel %vm4899, %v132, 128
    %v4901 = vand.u32 %v4900, 65535
    %v4902 = vshra.s32 %v4900, 16
    %v4903 = vcvt.s32.f32 %v4901
    %v4904 = vcvt.s32.f32 %v4902
    %4905 = vmin.xlane.f32.xlu0 %v4904
    %v4906 = vpop.xlane.xlu0 %4905
    %vm4907 = vcmp.eq.f32.partialorder %v4904, %v4906
    %v4908 = vsel %vm4907, %v4903, inf
    %4909 = vmin.xlane.f32.xlu0 %v4908
    %v4910 = vpop.xlane.xlu0 %4909
    %v4911 = vcvt.f32.s32 %v4910
    %v4912 = vcvt.f32.s32 %v4906
    %v4913 = vshll.u32 %v4912, 16
    %v4914 = vadd.s32 %v4913, %v4911
    %vm4915 = vcmp.eq.s32.totalorder %v132, %v4914
    %v4916 = vsel %vm4915, 1.0, 0.0
    %v4917 = vld [vmem:[#allocation10] sm:$0xff]
    %v4918 = vld [vmem:[#allocation10 + $0x8] sm:$0xf]
    %v4919 = vld [vmem:[#allocation10 + $0xc] sm:$0xff]
    %v4920 = vld [vmem:[#allocation10 + $0x14] sm:$0xf]
    %v4921 = vld [vmem:[#allocation10 + $0x18] sm:$0xff]
    %v4922 = vld [vmem:[#allocation10 + $0x20] sm:$0xf]
    %v4923 = vld [vmem:[#allocation10 + $0x24] sm:$0xff]
    %v4924 = vld [vmem:[#allocation10 + $0x2c] sm:$0xf]
    %v4925 = vld [vmem:[#allocation10 + $0x30] sm:$0xff]
    %v4926 = vld [vmem:[#allocation10 + $0x38] sm:$0xf]
    %v4927 = vld [vmem:[#allocation10 + $0x3c] sm:$0xff]
    %v4928 = vld [vmem:[#allocation10 + $0x44] sm:$0xf]
    %v4929 = vld [vmem:[#allocation10 + $0x48] sm:$0xff]
    %v4930 = vld [vmem:[#allocation10 + $0x50] sm:$0xf]
    %v4931 = vld [vmem:[#allocation10 + $0x54] sm:$0xff]
    %v4932 = vld [vmem:[#allocation10 + $0x5c] sm:$0xf]
    %v4933 = vld [vmem:[#allocation10 + $0x60] sm:$0xff]
    %v4934 = vld [vmem:[#allocation10 + $0x68] sm:$0xf]
    %v4935 = vld [vmem:[#allocation10 + $0x6c] sm:$0xff]
    %v4936 = vld [vmem:[#allocation10 + $0x74] sm:$0xf]
    %v4937 = vld [vmem:[#allocation10 + $0x78] sm:$0xff]
    %v4938 = vld [vmem:[#allocation10 + $0x80] sm:$0xf]
    %v4939 = vld [vmem:[#allocation10 + $0x84] sm:$0xff]
    %v4940 = vld [vmem:[#allocation10 + $0x8c] sm:$0xf]
    %v4941 = vld [vmem:[#allocation10 + $0x90] sm:$0xff]
    %v4942 = vld [vmem:[#allocation10 + $0x98] sm:$0xf]
    %v4943 = vld [vmem:[#allocation10 + $0x9c] sm:$0xff]
    %v4944 = vld [vmem:[#allocation10 + $0xa4] sm:$0xf]
    %v4945 = vld [vmem:[#allocation10 + $0xa8] sm:$0xff]
    %v4946 = vld [vmem:[#allocation10 + $0xb0] sm:$0xf]
    %v4947 = vld [vmem:[#allocation10 + $0xb4] sm:$0xff]
    %v4948 = vld [vmem:[#allocation10 + $0xbc] sm:$0xf]
    %v4949 = vld [vmem:[%s6] sm:$0x7]
    %v4951 = vlaneseq
    %v4952 = vshrl.u32 %v4951, 7
    %v4953 = vsub.s32 0, %v4952
    %v4954 = vrot.slane %v4949, %v4953
    %v4955 = vlaneseq
    %v4956 = vshrl.u32 %v4955, 7
    %v4957 = vsub.s32 1, %v4956
    %v4958 = vrot.slane %v4949, %v4957
    %v4959 = vlaneseq
    %v4960 = vshrl.u32 %v4959, 7
    %v4961 = vsub.s32 2, %v4960
    %v4962 = vrot.slane %v4949, %v4961
    %v4998 = vunpack.c.l.b16 %v4917
    %v4999 = vunpack.c.h.b16 %v4917
    %v5000 = vunpack.c.l.b16 %v4918
    %v5001 = vunpack.c.l.b16 %v4919
    %v5002 = vunpack.c.h.b16 %v4919
    %v5003 = vunpack.c.l.b16 %v4920
    %v5004 = vunpack.c.l.b16 %v4921
    %v5005 = vunpack.c.h.b16 %v4921
    %v5006 = vunpack.c.l.b16 %v4922
    %v5007 = vunpack.c.l.b16 %v4923
    %v5008 = vunpack.c.h.b16 %v4923
    %v5009 = vunpack.c.l.b16 %v4924
    %v5010 = vunpack.c.l.b16 %v4925
    %v5011 = vunpack.c.h.b16 %v4925
    %v5012 = vunpack.c.l.b16 %v4926
    %v5013 = vunpack.c.l.b16 %v4927
    %v5014 = vunpack.c.h.b16 %v4927
    %v5015 = vunpack.c.l.b16 %v4928
    %v5016 = vunpack.c.l.b16 %v4929
    %v5017 = vunpack.c.h.b16 %v4929
    %v5018 = vunpack.c.l.b16 %v4930
    %v5019 = vunpack.c.l.b16 %v4931
    %v5020 = vunpack.c.h.b16 %v4931
    %v5021 = vunpack.c.l.b16 %v4932
    %v5022 = vunpack.c.l.b16 %v4933
    %v5023 = vunpack.c.h.b16 %v4933
    %v5024 = vunpack.c.l.b16 %v4934
    %v5025 = vunpack.c.l.b16 %v4935
    %v5026 = vunpack.c.h.b16 %v4935
    %v5027 = vunpack.c.l.b16 %v4936
    %v5028 = vunpack.c.l.b16 %v4937
    %v5029 = vunpack.c.h.b16 %v4937
    %v5030 = vunpack.c.l.b16 %v4938
    %v5031 = vunpack.c.l.b16 %v4939
    %v5032 = vunpack.c.h.b16 %v4939
    %v5033 = vunpack.c.l.b16 %v4940
    %v5034 = vunpack.c.l.b16 %v4941
    %v5035 = vunpack.c.h.b16 %v4941
    %v5036 = vunpack.c.l.b16 %v4942
    %v5037 = vunpack.c.l.b16 %v4943
    %v5038 = vunpack.c.h.b16 %v4943
    %v5039 = vunpack.c.l.b16 %v4944
    %v5040 = vunpack.c.l.b16 %v4945
    %v5041 = vunpack.c.h.b16 %v4945
    %v5042 = vunpack.c.l.b16 %v4946
    %v5043 = vunpack.c.l.b16 %v4947
    %v5044 = vunpack.c.h.b16 %v4947
    %v5045 = vunpack.c.l.b16 %v4948
    %v5046 = vpack.c.b16 %v5001, %v4998
    %v5047 = vpack.c.b16 %v5002, %v4999
    %v5048 = vpack.c.b16 %v5003, %v5000
    %v5049 = vpack.c.b16 %v5007, %v5004
    %v5050 = vpack.c.b16 %v5008, %v5005
    %v5051 = vpack.c.b16 %v5009, %v5006
    %v5052 = vpack.c.b16 %v5013, %v5010
    %v5053 = vpack.c.b16 %v5014, %v5011
    %v5054 = vpack.c.b16 %v5015, %v5012
    %v5055 = vpack.c.b16 %v5019, %v5016
    %v5056 = vpack.c.b16 %v5020, %v5017
    %v5057 = vpack.c.b16 %v5021, %v5018
    %v5058 = vpack.c.b16 %v5025, %v5022
    %v5059 = vpack.c.b16 %v5026, %v5023
    %v5060 = vpack.c.b16 %v5027, %v5024
    %v5061 = vpack.c.b16 %v5031, %v5028
    %v5062 = vpack.c.b16 %v5032, %v5029
    %v5063 = vpack.c.b16 %v5033, %v5030
    %v5064 = vpack.c.b16 %v5037, %v5034
    %v5065 = vpack.c.b16 %v5038, %v5035
    %v5066 = vpack.c.b16 %v5039, %v5036
    %v5067 = vpack.c.b16 %v5043, %v5040
    %v5068 = vpack.c.b16 %v5044, %v5041
    %v5069 = vpack.c.b16 %v5045, %v5042
    %5094 = vmatprep.subr.bf16.mxu0 %v5047
    %5095 = vmatpush1.bf16.msra.mxu0 %v5046
    %5096 = vmatprep.subr.bf16.mxu0 %v5050
    %5097 = vmatpush1.bf16.msra.mxu0 %v5049
    %5098 = vmatprep.subr.bf16.mxu0 %v5053
    %5099 = vmatpush1.bf16.msra.mxu0 %v5052
    %5100 = vmatprep.subr.bf16.mxu0 %v5056
    %5101 = vmatpush1.bf16.msra.mxu0 %v5055
    %5102 = vmatprep.subr.bf16.mxu0 %v5059
    %5103 = vmatpush1.bf16.msra.mxu0 %v5058
    %5104 = vmatprep.subr.bf16.mxu0 %v5062
    %5105 = vmatpush1.bf16.msra.mxu0 %v5061
    %5106 = vmatprep.subr.bf16.mxu0 %v5065
    %5107 = vmatpush1.bf16.msra.mxu0 %v5064
    %5108 = vmatprep.subr.bf16.mxu0 %v5068
    %5109 = vmatpush1.bf16.msra.mxu0 %v5067
    %5110 = vmatprep.subr.bf16.mxu0 0
    %5111 = vmatpush1.bf16.msra.mxu0 0
    %5112 = vmatprep.subr.bf16.mxu0 0
    %5113 = vmatpush1.bf16.msra.mxu0 0
    %5114 = vmatprep.subr.bf16.mxu0 0
    %5115 = vmatpush1.bf16.msra.mxu0 0
    %5116 = vmatprep.subr.bf16.mxu0 0
    %5117 = vmatpush1.bf16.msra.mxu0 0
    %5118 = vmatprep.subr.bf16.mxu0 0
    %5119 = vmatpush1.bf16.msra.mxu0 0
    %5120 = vmatprep.subr.bf16.mxu0 0
    %5121 = vmatpush1.bf16.msra.mxu0 0
    %5122 = vmatprep.subr.bf16.mxu0 0
    %5123 = vmatpush1.bf16.msra.mxu0 0
    %5124 = vmatprep.subr.bf16.mxu0 0
    %5125 = vmatpush1.bf16.msra.mxu0 0
    %5126 = vmatprep.mubr.bf16.mxu0 0
    %5127 = vmatmul.mubr.bf16.gmra.mrb[0].mxu0 %v4503
    %v5128 = vpop.f32.mrb[0].mxu0
    %v5129 = vadd.f32 %v4954, %v5128
    %v5130 = vpop.f32.mrb[0].mxu0
    %v5131 = vadd.f32 %v4958, %v5130
    %v5132 = vpop.f32.mrb[0].mxu0
    %v5133 = vpop.f32.mrb[0].mxu0
    %5134 = vdwg.mxu0
    %5135 = vmatprep.subr.bf16.mxu0 0
    %5136 = vmatpush1.bf16.msra.mxu0 %v5048
    %5137 = vmatprep.subr.bf16.mxu0 0
    %5138 = vmatpush1.bf16.msra.mxu0 %v5051
    %5139 = vmatprep.subr.bf16.mxu0 0
    %5140 = vmatpush1.bf16.msra.mxu0 %v5054
    %5141 = vmatprep.subr.bf16.mxu0 0
    %5142 = vmatpush1.bf16.msra.mxu0 %v5057
    %5143 = vmatprep.subr.bf16.mxu0 0
    %5144 = vmatpush1.bf16.msra.mxu0 %v5060
    %5145 = vmatprep.subr.bf16.mxu0 0
    %5146 = vmatpush1.bf16.msra.mxu0 %v5063
    %5147 = vmatprep.subr.bf16.mxu0 0
    %5148 = vmatpush1.bf16.msra.mxu0 %v5066
    %5149 = vmatprep.subr.bf16.mxu0 0
    %5150 = vmatpush1.bf16.msra.mxu0 %v5069
    %5151 = vmatprep.subr.bf16.mxu0 0
    %5152 = vmatpush1.bf16.msra.mxu0 0
    %5153 = vmatprep.subr.bf16.mxu0 0
    %5154 = vmatpush1.bf16.msra.mxu0 0
    %5155 = vmatprep.subr.bf16.mxu0 0
    %5156 = vmatpush1.bf16.msra.mxu0 0
    %5157 = vmatprep.subr.bf16.mxu0 0
    %5158 = vmatpush1.bf16.msra.mxu0 0
    %5159 = vmatprep.subr.bf16.mxu0 0
    %5160 = vmatpush1.bf16.msra.mxu0 0
    %5161 = vmatprep.subr.bf16.mxu0 0
    %5162 = vmatpush1.bf16.msra.mxu0 0
    %5163 = vmatprep.subr.bf16.mxu0 0
    %5164 = vmatpush1.bf16.msra.mxu0 0
    %5165 = vmatprep.subr.bf16.mxu0 0
    %5166 = vmatpush1.bf16.msra.mxu0 0
    %5167 = vmatprep.mubr.bf16.mxu0 0
    %5168 = vmatmul.mubr.bf16.gmra.mrb[0].mxu0 %v4503
    %v5169 = vpop.f32.mrb[0].mxu0
    %v5170 = vadd.f32 %v4962, %v5169
    %v5171 = vpop.f32.mrb[0].mxu0
    %v5172 = vpop.f32.mrb[0].mxu0
    %v5173 = vpop.f32.mrb[0].mxu0
    %5174 = vdwg.mxu0
    %v5175 = vld [vmem:[#allocation11] sm:$0xff]
    %v5176 = vld [vmem:[#allocation11 + $0x8] sm:$0xf]
    %v5177 = vld [vmem:[#allocation11 + $0xc] sm:$0xff]
    %v5178 = vld [vmem:[#allocation11 + $0x14] sm:$0xf]
    %v5179 = vld [vmem:[#allocation11 + $0x18] sm:$0xff]
    %v5180 = vld [vmem:[#allocation11 + $0x20] sm:$0xf]
    %v5181 = vld [vmem:[#allocation11 + $0x24] sm:$0xff]
    %v5182 = vld [vmem:[#allocation11 + $0x2c] sm:$0xf]
    %v5183 = vld [vmem:[#allocation11 + $0x30] sm:$0xff]
    %v5184 = vld [vmem:[#allocation11 + $0x38] sm:$0xf]
    %v5185 = vld [vmem:[#allocation11 + $0x3c] sm:$0xff]
    %v5186 = vld [vmem:[#allocation11 + $0x44] sm:$0xf]
    %v5187 = vld [vmem:[#allocation11 + $0x48] sm:$0xff]
    %v5188 = vld [vmem:[#allocation11 + $0x50] sm:$0xf]
    %v5189 = vld [vmem:[#allocation11 + $0x54] sm:$0xff]
    %v5190 = vld [vmem:[#allocation11 + $0x5c] sm:$0xf]
    %v5191 = vld [vmem:[#allocation11 + $0x60] sm:$0xff]
    %v5192 = vld [vmem:[#allocation11 + $0x68] sm:$0xf]
    %v5193 = vld [vmem:[#allocation11 + $0x6c] sm:$0xff]
    %v5194 = vld [vmem:[#allocation11 + $0x74] sm:$0xf]
    %v5195 = vld [vmem:[#allocation11 + $0x78] sm:$0xff]
    %v5196 = vld [vmem:[#allocation11 + $0x80] sm:$0xf]
    %v5197 = vld [vmem:[#allocation11 + $0x84] sm:$0xff]
    %v5198 = vld [vmem:[#allocation11 + $0x8c] sm:$0xf]
    %v5199 = vld [vmem:[#allocation11 + $0x90] sm:$0xff]
    %v5200 = vld [vmem:[#allocation11 + $0x98] sm:$0xf]
    %v5201 = vld [vmem:[#allocation11 + $0x9c] sm:$0xff]
    %v5202 = vld [vmem:[#allocation11 + $0xa4] sm:$0xf]
    %v5203 = vld [vmem:[#allocation11 + $0xa8] sm:$0xff]
    %v5204 = vld [vmem:[#allocation11 + $0xb0] sm:$0xf]
    %v5205 = vld [vmem:[#allocation11 + $0xb4] sm:$0xff]
    %v5206 = vld [vmem:[#allocation11 + $0xbc] sm:$0xf]
    %v5207 = vld [vmem:[%s8] sm:$0x7]
    %v5209 = vlaneseq
    %v5210 = vshrl.u32 %v5209, 7
    %v5211 = vsub.s32 0, %v5210
    %v5212 = vrot.slane %v5207, %v5211
    %v5213 = vlaneseq
    %v5214 = vshrl.u32 %v5213, 7
    %v5215 = vsub.s32 1, %v5214
    %v5216 = vrot.slane %v5207, %v5215
    %v5217 = vlaneseq
    %v5218 = vshrl.u32 %v5217, 7
    %v5219 = vsub.s32 2, %v5218
    %v5220 = vrot.slane %v5207, %v5219
    %v5256 = vunpack.c.l.b16 %v5175
    %v5257 = vunpack.c.h.b16 %v5175
    %v5258 = vunpack.c.l.b16 %v5176
    %v5259 = vunpack.c.l.b16 %v5177
    %v5260 = vunpack.c.h.b16 %v5177
    %v5261 = vunpack.c.l.b16 %v5178
    %v5262 = vunpack.c.l.b16 %v5179
    %v5263 = vunpack.c.h.b16 %v5179
    %v5264 = vunpack.c.l.b16 %v5180
    %v5265 = vunpack.c.l.b16 %v5181
    %v5266 = vunpack.c.h.b16 %v5181
    %v5267 = vunpack.c.l.b16 %v5182
    %v5268 = vunpack.c.l.b16 %v5183
    %v5269 = vunpack.c.h.b16 %v5183
    %v5270 = vunpack.c.l.b16 %v5184
    %v5271 = vunpack.c.l.b16 %v5185
    %v5272 = vunpack.c.h.b16 %v5185
    %v5273 = vunpack.c.l.b16 %v5186
    %v5274 = vunpack.c.l.b16 %v5187
    %v5275 = vunpack.c.h.b16 %v5187
    %v5276 = vunpack.c.l.b16 %v5188
    %v5277 = vunpack.c.l.b16 %v5189
    %v5278 = vunpack.c.h.b16 %v5189
    %v5279 = vunpack.c.l.b16 %v5190
    %v5280 = vunpack.c.l.b16 %v5191
    %v5281 = vunpack.c.h.b16 %v5191
    %v5282 = vunpack.c.l.b16 %v5192
    %v5283 = vunpack.c.l.b16 %v5193
    %v5284 = vunpack.c.h.b16 %v5193
    %v5285 = vunpack.c.l.b16 %v5194
    %v5286 = vunpack.c.l.b16 %v5195
    %v5287 = vunpack.c.h.b16 %v5195
    %v5288 = vunpack.c.l.b16 %v5196
    %v5289 = vunpack.c.l.b16 %v5197
    %v5290 = vunpack.c.h.b16 %v5197
    %v5291 = vunpack.c.l.b16 %v5198
    %v5292 = vunpack.c.l.b16 %v5199
    %v5293 = vunpack.c.h.b16 %v5199
    %v5294 = vunpack.c.l.b16 %v5200
    %v5295 = vunpack.c.l.b16 %v5201
    %v5296 = vunpack.c.h.b16 %v5201
    %v5297 = vunpack.c.l.b16 %v5202
    %v5298 = vunpack.c.l.b16 %v5203
    %v5299 = vunpack.c.h.b16 %v5203
    %v5300 = vunpack.c.l.b16 %v5204
    %v5301 = vunpack.c.l.b16 %v5205
    %v5302 = vunpack.c.h.b16 %v5205
    %v5303 = vunpack.c.l.b16 %v5206
    %v5304 = vpack.c.b16 %v5259, %v5256
    %v5305 = vpack.c.b16 %v5260, %v5257
    %v5306 = vpack.c.b16 %v5261, %v5258
    %v5307 = vpack.c.b16 %v5265, %v5262
    %v5308 = vpack.c.b16 %v5266, %v5263
    %v5309 = vpack.c.b16 %v5267, %v5264
    %v5310 = vpack.c.b16 %v5271, %v5268
    %v5311 = vpack.c.b16 %v5272, %v5269
    %v5312 = vpack.c.b16 %v5273, %v5270
    %v5313 = vpack.c.b16 %v5277, %v5274
    %v5314 = vpack.c.b16 %v5278, %v5275
    %v5315 = vpack.c.b16 %v5279, %v5276
    %v5316 = vpack.c.b16 %v5283, %v5280
    %v5317 = vpack.c.b16 %v5284, %v5281
    %v5318 = vpack.c.b16 %v5285, %v5282
    %v5319 = vpack.c.b16 %v5289, %v5286
    %v5320 = vpack.c.b16 %v5290, %v5287
    %v5321 = vpack.c.b16 %v5291, %v5288
    %v5322 = vpack.c.b16 %v5295, %v5292
    %v5323 = vpack.c.b16 %v5296, %v5293
    %v5324 = vpack.c.b16 %v5297, %v5294
    %v5325 = vpack.c.b16 %v5301, %v5298
    %v5326 = vpack.c.b16 %v5302, %v5299
    %v5327 = vpack.c.b16 %v5303, %v5300
    %5352 = vmatprep.subr.bf16.mxu0 %v5305
    %5353 = vmatpush1.bf16.msra.mxu0 %v5304
    %5354 = vmatprep.subr.bf16.mxu0 %v5308
    %5355 = vmatpush1.bf16.msra.mxu0 %v5307
    %5356 = vmatprep.subr.bf16.mxu0 %v5311
    %5357 = vmatpush1.bf16.msra.mxu0 %v5310
    %5358 = vmatprep.subr.bf16.mxu0 %v5314
    %5359 = vmatpush1.bf16.msra.mxu0 %v5313
    %5360 = vmatprep.subr.bf16.mxu0 %v5317
    %5361 = vmatpush1.bf16.msra.mxu0 %v5316
    %5362 = vmatprep.subr.bf16.mxu0 %v5320
    %5363 = vmatpush1.bf16.msra.mxu0 %v5319
    %5364 = vmatprep.subr.bf16.mxu0 %v5323
    %5365 = vmatpush1.bf16.msra.mxu0 %v5322
    %5366 = vmatprep.subr.bf16.mxu0 %v5326
    %5367 = vmatpush1.bf16.msra.mxu0 %v5325
    %5368 = vmatprep.subr.bf16.mxu0 0
    %5369 = vmatpush1.bf16.msra.mxu0 0
    %5370 = vmatprep.subr.bf16.mxu0 0
    %5371 = vmatpush1.bf16.msra.mxu0 0
    %5372 = vmatprep.subr.bf16.mxu0 0
    %5373 = vmatpush1.bf16.msra.mxu0 0
    %5374 = vmatprep.subr.bf16.mxu0 0
    %5375 = vmatpush1.bf16.msra.mxu0 0
    %5376 = vmatprep.subr.bf16.mxu0 0
    %5377 = vmatpush1.bf16.msra.mxu0 0
    %5378 = vmatprep.subr.bf16.mxu0 0
    %5379 = vmatpush1.bf16.msra.mxu0 0
    %5380 = vmatprep.subr.bf16.mxu0 0
    %5381 = vmatpush1.bf16.msra.mxu0 0
    %5382 = vmatprep.subr.bf16.mxu0 0
    %5383 = vmatpush1.bf16.msra.mxu0 0
    %5384 = vmatprep.mubr.bf16.mxu0 0
    %5385 = vmatmul.mubr.bf16.gmra.mrb[0].mxu0 %v4783
    %v5386 = vpop.f32.mrb[0].mxu0
    %v5387 = vadd.f32 %v5212, %v5386
    %v5388 = vpop.f32.mrb[0].mxu0
    %v5389 = vadd.f32 %v5216, %v5388
    %v5390 = vpop.f32.mrb[0].mxu0
    %v5391 = vpop.f32.mrb[0].mxu0
    %5392 = vdwg.mxu0
    %5393 = vmatprep.subr.bf16.mxu0 0
    %5394 = vmatpush1.bf16.msra.mxu0 %v5306
    %5395 = vmatprep.subr.bf16.mxu0 0
    %5396 = vmatpush1.bf16.msra.mxu0 %v5309
    %5397 = vmatprep.subr.bf16.mxu0 0
    %5398 = vmatpush1.bf16.msra.mxu0 %v5312
    %5399 = vmatprep.subr.bf16.mxu0 0
    %5400 = vmatpush1.bf16.msra.mxu0 %v5315
    %5401 = vmatprep.subr.bf16.mxu0 0
    %5402 = vmatpush1.bf16.msra.mxu0 %v5318
    %5403 = vmatprep.subr.bf16.mxu0 0
    %5404 = vmatpush1.bf16.msra.mxu0 %v5321
    %5405 = vmatprep.subr.bf16.mxu0 0
    %5406 = vmatpush1.bf16.msra.mxu0 %v5324
    %5407 = vmatprep.subr.bf16.mxu0 0
    %5408 = vmatpush1.bf16.msra.mxu0 %v5327
    %5409 = vmatprep.subr.bf16.mxu0 0
    %5410 = vmatpush1.bf16.msra.mxu0 0
    %5411 = vmatprep.subr.bf16.mxu0 0
    %5412 = vmatpush1.bf16.msra.mxu0 0
    %5413 = vmatprep.subr.bf16.mxu0 0
    %5414 = vmatpush1.bf16.msra.mxu0 0
    %5415 = vmatprep.subr.bf16.mxu0 0
    %5416 = vmatpush1.bf16.msra.mxu0 0
    %5417 = vmatprep.subr.bf16.mxu0 0
    %5418 = vmatpush1.bf16.msra.mxu0 0
    %5419 = vmatprep.subr.bf16.mxu0 0
    %5420 = vmatpush1.bf16.msra.mxu0 0
    %5421 = vmatprep.subr.bf16.mxu0 0
    %5422 = vmatpush1.bf16.msra.mxu0 0
    %5423 = vmatprep.subr.bf16.mxu0 0
    %5424 = vmatpush1.bf16.msra.mxu0 0
    %5425 = vmatprep.mubr.bf16.mxu0 0
    %5426 = vmatmul.mubr.bf16.gmra.mrb[0].mxu0 %v4783
    %v5427 = vpop.f32.mrb[0].mxu0
    %v5428 = vadd.f32 %v5220, %v5427
    %v5429 = vpop.f32.mrb[0].mxu0
    %v5430 = vpop.f32.mrb[0].mxu0
    %v5431 = vpop.f32.mrb[0].mxu0
    %5432 = vdwg.mxu0
    %v5433 = vpack.c.bf16 %v4916, %v4916
    %v5434 = vld [vmem:[#allocation5] sm:$0xff]
    %v5435 = vld [vmem:[#allocation5 + $0x8] sm:$0xf]
    %v5436 = vld [vmem:[#allocation5 + $0xc] sm:$0xff]
    %v5437 = vld [vmem:[#allocation5 + $0x14] sm:$0xf]
    %v5438 = vld [vmem:[#allocation5 + $0x18] sm:$0xff]
    %v5439 = vld [vmem:[#allocation5 + $0x20] sm:$0xf]
    %v5440 = vld [vmem:[#allocation5 + $0x24] sm:$0xff]
    %v5441 = vld [vmem:[#allocation5 + $0x2c] sm:$0xf]
    %v5442 = vld [vmem:[#allocation5 + $0x30] sm:$0xff]
    %v5443 = vld [vmem:[#allocation5 + $0x38] sm:$0xf]
    %v5444 = vld [vmem:[#allocation5 + $0x3c] sm:$0xff]
    %v5445 = vld [vmem:[#allocation5 + $0x44] sm:$0xf]
    %v5446 = vld [vmem:[#allocation5 + $0x48] sm:$0xff]
    %v5447 = vld [vmem:[#allocation5 + $0x50] sm:$0xf]
    %v5448 = vld [vmem:[#allocation5 + $0x54] sm:$0xff]
    %v5449 = vld [vmem:[#allocation5 + $0x5c] sm:$0xf]
    %v5450 = vld [vmem:[#allocation5 + $0x60] sm:$0xff]
    %v5451 = vld [vmem:[#allocation5 + $0x68] sm:$0xf]
    %v5452 = vld [vmem:[#allocation5 + $0x6c] sm:$0xff]
    %v5453 = vld [vmem:[#allocation5 + $0x74] sm:$0xf]
    %v5454 = vld [vmem:[#allocation5 + $0x78] sm:$0xff]
    %v5455 = vld [vmem:[#allocation5 + $0x80] sm:$0xf]
    %v5456 = vld [vmem:[#allocation5 + $0x84] sm:$0xff]
    %v5457 = vld [vmem:[#allocation5 + $0x8c] sm:$0xf]
    %v5458 = vld [vmem:[#allocation5 + $0x90] sm:$0xff]
    %v5459 = vld [vmem:[#allocation5 + $0x98] sm:$0xf]
    %v5460 = vld [vmem:[#allocation5 + $0x9c] sm:$0xff]
    %v5461 = vld [vmem:[#allocation5 + $0xa4] sm:$0xf]
    %v5462 = vld [vmem:[#allocation5 + $0xa8] sm:$0xff]
    %v5463 = vld [vmem:[#allocation5 + $0xb0] sm:$0xf]
    %v5464 = vld [vmem:[#allocation5 + $0xb4] sm:$0xff]
    %v5465 = vld [vmem:[#allocation5 + $0xbc] sm:$0xf]
    %v5466 = vld [vmem:[#allocation7] sm:$0xff]
    %v5467 = vld [vmem:[#allocation7 + $0x8] sm:$0xff]
    %v5468 = vld [vmem:[#allocation7 + $0x10] sm:$0xff]
    %v5501 = vunpack.c.l.b16 %v5434
    %v5502 = vunpack.c.h.b16 %v5434
    %v5503 = vunpack.c.l.b16 %v5435
    %v5504 = vunpack.c.l.b16 %v5436
    %v5505 = vunpack.c.h.b16 %v5436
    %v5506 = vunpack.c.l.b16 %v5437
    %v5507 = vunpack.c.l.b16 %v5438
    %v5508 = vunpack.c.h.b16 %v5438
    %v5509 = vunpack.c.l.b16 %v5439
    %v5510 = vunpack.c.l.b16 %v5440
    %v5511 = vunpack.c.h.b16 %v5440
    %v5512 = vunpack.c.l.b16 %v5441
    %v5513 = vunpack.c.l.b16 %v5442
    %v5514 = vunpack.c.h.b16 %v5442
    %v5515 = vunpack.c.l.b16 %v5443
    %v5516 = vunpack.c.l.b16 %v5444
    %v5517 = vunpack.c.h.b16 %v5444
    %v5518 = vunpack.c.l.b16 %v5445
    %v5519 = vunpack.c.l.b16 %v5446
    %v5520 = vunpack.c.h.b16 %v5446
    %v5521 = vunpack.c.l.b16 %v5447
    %v5522 = vunpack.c.l.b16 %v5448
    %v5523 = vunpack.c.h.b16 %v5448
    %v5524 = vunpack.c.l.b16 %v5449
    %v5525 = vunpack.c.l.b16 %v5450
    %v5526 = vunpack.c.h.b16 %v5450
    %v5527 = vunpack.c.l.b16 %v5451
    %v5528 = vunpack.c.l.b16 %v5452
    %v5529 = vunpack.c.h.b16 %v5452
    %v5530 = vunpack.c.l.b16 %v5453
    %v5531 = vunpack.c.l.b16 %v5454
    %v5532 = vunpack.c.h.b16 %v5454
    %v5533 = vunpack.c.l.b16 %v5455
    %v5534 = vunpack.c.l.b16 %v5456
    %v5535 = vunpack.c.h.b16 %v5456
    %v5536 = vunpack.c.l.b16 %v5457
    %v5537 = vunpack.c.l.b16 %v5458
    %v5538 = vunpack.c.h.b16 %v5458
    %v5539 = vunpack.c.l.b16 %v5459
    %v5540 = vunpack.c.l.b16 %v5460
    %v5541 = vunpack.c.h.b16 %v5460
    %v5542 = vunpack.c.l.b16 %v5461
    %v5543 = vunpack.c.l.b16 %v5462
    %v5544 = vunpack.c.h.b16 %v5462
    %v5545 = vunpack.c.l.b16 %v5463
    %v5546 = vunpack.c.l.b16 %v5464
    %v5547 = vunpack.c.h.b16 %v5464
    %v5548 = vunpack.c.l.b16 %v5465
    %v5549 = vpack.c.b16 %v5504, %v5501
    %v5550 = vpack.c.b16 %v5505, %v5502
    %v5551 = vpack.c.b16 %v5506, %v5503
    %v5552 = vpack.c.b16 %v5510, %v5507
    %v5553 = vpack.c.b16 %v5511, %v5508
    %v5554 = vpack.c.b16 %v5512, %v5509
    %v5555 = vpack.c.b16 %v5516, %v5513
    %v5556 = vpack.c.b16 %v5517, %v5514
    %v5557 = vpack.c.b16 %v5518, %v5515
    %v5558 = vpack.c.b16 %v5522, %v5519
    %v5559 = vpack.c.b16 %v5523, %v5520
    %v5560 = vpack.c.b16 %v5524, %v5521
    %v5561 = vpack.c.b16 %v5528, %v5525
    %v5562 = vpack.c.b16 %v5529, %v5526
    %v5563 = vpack.c.b16 %v5530, %v5527
    %v5564 = vpack.c.b16 %v5534, %v5531
    %v5565 = vpack.c.b16 %v5535, %v5532
    %v5566 = vpack.c.b16 %v5536, %v5533
    %v5567 = vpack.c.b16 %v5540, %v5537
    %v5568 = vpack.c.b16 %v5541, %v5538
    %v5569 = vpack.c.b16 %v5542, %v5539
    %v5570 = vpack.c.b16 %v5546, %v5543
    %v5571 = vpack.c.b16 %v5547, %v5544
    %v5572 = vpack.c.b16 %v5548, %v5545
    %5597 = vmatprep.subr.bf16.mxu0 %v5550
    %5598 = vmatpush1.bf16.msra.mxu0 %v5549
    %5599 = vmatprep.subr.bf16.mxu0 %v5553
    %5600 = vmatpush1.bf16.msra.mxu0 %v5552
    %5601 = vmatprep.subr.bf16.mxu0 %v5556
    %5602 = vmatpush1.bf16.msra.mxu0 %v5555
    %5603 = vmatprep.subr.bf16.mxu0 %v5559
    %5604 = vmatpush1.bf16.msra.mxu0 %v5558
    %5605 = vmatprep.subr.bf16.mxu0 %v5562
    %5606 = vmatpush1.bf16.msra.mxu0 %v5561
    %5607 = vmatprep.subr.bf16.mxu0 %v5565
    %5608 = vmatpush1.bf16.msra.mxu0 %v5564
    %5609 = vmatprep.subr.bf16.mxu0 %v5568
    %5610 = vmatpush1.bf16.msra.mxu0 %v5567
    %5611 = vmatprep.subr.bf16.mxu0 %v5571
    %5612 = vmatpush1.bf16.msra.mxu0 %v5570
    %5613 = vmatprep.subr.bf16.mxu0 0
    %5614 = vmatpush1.bf16.msra.mxu0 0
    %5615 = vmatprep.subr.bf16.mxu0 0
    %5616 = vmatpush1.bf16.msra.mxu0 0
    %5617 = vmatprep.subr.bf16.mxu0 0
    %5618 = vmatpush1.bf16.msra.mxu0 0
    %5619 = vmatprep.subr.bf16.mxu0 0
    %5620 = vmatpush1.bf16.msra.mxu0 0
    %5621 = vmatprep.subr.bf16.mxu0 0
    %5622 = vmatpush1.bf16.msra.mxu0 0
    %5623 = vmatprep.subr.bf16.mxu0 0
    %5624 = vmatpush1.bf16.msra.mxu0 0
    %5625 = vmatprep.subr.bf16.mxu0 0
    %5626 = vmatpush1.bf16.msra.mxu0 0
    %5627 = vmatprep.subr.bf16.mxu0 0
    %5628 = vmatpush1.bf16.msra.mxu0 0
    %5629 = vmatprep.mubr.bf16.mxu0 0
    %5630 = vmatmul.mubr.bf16.gmra.mrb[0].mxu0 %v5433
    %v5631 = vpop.f32.mrb[0].mxu0
    %v5632 = vadd.f32 %v5466, %v5631
    %v5633 = vpop.f32.mrb[0].mxu0
    %v5634 = vadd.f32 %v5467, %v5633
    %v5635 = vpop.f32.mrb[0].mxu0
    %v5636 = vpop.f32.mrb[0].mxu0
    %5637 = vdwg.mxu0
    %5638 = vmatprep.subr.bf16.mxu0 0
    %5639 = vmatpush1.bf16.msra.mxu0 %v5551
    %5640 = vmatprep.subr.bf16.mxu0 0
    %5641 = vmatpush1.bf16.msra.mxu0 %v5554
    %5642 = vmatprep.subr.bf16.mxu0 0
    %5643 = vmatpush1.bf16.msra.mxu0 %v5557
    %5644 = vmatprep.subr.bf16.mxu0 0
    %5645 = vmatpush1.bf16.msra.mxu0 %v5560
    %5646 = vmatprep.subr.bf16.mxu0 0
    %5647 = vmatpush1.bf16.msra.mxu0 %v5563
    %5648 = vmatprep.subr.bf16.mxu0 0
    %5649 = vmatpush1.bf16.msra.mxu0 %v5566
    %5650 = vmatprep.subr.bf16.mxu0 0
    %5651 = vmatpush1.bf16.msra.mxu0 %v5569
    %5652 = vmatprep.subr.bf16.mxu0 0
    %5653 = vmatpush1.bf16.msra.mxu0 %v5572
    %5654 = vmatprep.subr.bf16.mxu0 0
    %5655 = vmatpush1.bf16.msra.mxu0 0
    %5656 = vmatprep.subr.bf16.mxu0 0
    %5657 = vmatpush1.bf16.msra.mxu0 0
    %5658 = vmatprep.subr.bf16.mxu0 0
    %5659 = vmatpush1.bf16.msra.mxu0 0
    %5660 = vmatprep.subr.bf16.mxu0 0
    %5661 = vmatpush1.bf16.msra.mxu0 0
    %5662 = vmatprep.subr.bf16.mxu0 0
    %5663 = vmatpush1.bf16.msra.mxu0 0
    %5664 = vmatprep.subr.bf16.mxu0 0
    %5665 = vmatpush1.bf16.msra.mxu0 0
    %5666 = vmatprep.subr.bf16.mxu0 0
    %5667 = vmatpush1.bf16.msra.mxu0 0
    %5668 = vmatprep.subr.bf16.mxu0 0
    %5669 = vmatpush1.bf16.msra.mxu0 0
    %5670 = vmatprep.mubr.bf16.mxu0 0
    %5671 = vmatmul.mubr.bf16.gmra.mrb[0].mxu0 %v5433
    %v5672 = vpop.f32.mrb[0].mxu0
    %v5673 = vadd.f32 %v5468, %v5672
    %v5674 = vpop.f32.mrb[0].mxu0
    %v5675 = vpop.f32.mrb[0].mxu0
    %v5676 = vpop.f32.mrb[0].mxu0
    %5677 = vdwg.mxu0
    %v5678 = vadd.f32 %v5632, %v5129
    %v5679 = vxor.u32 %v5678, 2147483648
    %v5680 = vmul.f32 %v5679, 1.442695
    %v5681 = vpow.pop %v5680
    %v5682 = vadd.f32 %v5681, 1.0
    %v5683 = vrcp.pop %v5682
    %v5684 = vmul.f32 1.0, %v5683
    %v5685 = vadd.f32 %v5634, %v5131
    %v5686 = vxor.u32 %v5685, 2147483648
    %v5687 = vmul.f32 %v5686, 1.442695
    %v5688 = vpow.pop %v5687
    %v5689 = vadd.f32 %v5688, 1.0
    %v5690 = vrcp.pop %v5689
    %v5691 = vmul.f32 1.0, %v5690
    %v5692 = vmul.f32 %v5684, %v5170
    %v5693 = vadd.f32 %v5673, %v5692
    %v5694 = vtanh.pop %v5693
    %v5695 = vsub.f32 1.0, %v5691
    %v5696 = vmul.f32 %v5695, %v5694
    %v5697 = vmul.f32 %v5691, %v4502
    %v5698 = vadd.f32 %v5696, %v5697
    %v5699 = vpack.c.bf16 %v5698, %v5698
    %v5700 = vld [vmem:[#allocation8] sm:$0xff]
    %v5701 = vld [vmem:[#allocation8 + $0x8] sm:$0xf]
    %v5702 = vld [vmem:[#allocation8 + $0xc] sm:$0xff]
    %v5703 = vld [vmem:[#allocation8 + $0x14] sm:$0xf]
    %v5704 = vld [vmem:[#allocation8 + $0x18] sm:$0xff]
    %v5705 = vld [vmem:[#allocation8 + $0x20] sm:$0xf]
    %v5706 = vld [vmem:[#allocation8 + $0x24] sm:$0xff]
    %v5707 = vld [vmem:[#allocation8 + $0x2c] sm:$0xf]
    %v5708 = vld [vmem:[#allocation8 + $0x30] sm:$0xff]
    %v5709 = vld [vmem:[#allocation8 + $0x38] sm:$0xf]
    %v5710 = vld [vmem:[#allocation8 + $0x3c] sm:$0xff]
    %v5711 = vld [vmem:[#allocation8 + $0x44] sm:$0xf]
    %v5712 = vld [vmem:[#allocation8 + $0x48] sm:$0xff]
    %v5713 = vld [vmem:[#allocation8 + $0x50] sm:$0xf]
    %v5714 = vld [vmem:[#allocation8 + $0x54] sm:$0xff]
    %v5715 = vld [vmem:[#allocation8 + $0x5c] sm:$0xf]
    %v5716 = vld [vmem:[#allocation8 + $0x60] sm:$0xff]
    %v5717 = vld [vmem:[#allocation8 + $0x68] sm:$0xf]
    %v5718 = vld [vmem:[#allocation8 + $0x6c] sm:$0xff]
    %v5719 = vld [vmem:[#allocation8 + $0x74] sm:$0xf]
    %v5720 = vld [vmem:[#allocation8 + $0x78] sm:$0xff]
    %v5721 = vld [vmem:[#allocation8 + $0x80] sm:$0xf]
    %v5722 = vld [vmem:[#allocation8 + $0x84] sm:$0xff]
    %v5723 = vld [vmem:[#allocation8 + $0x8c] sm:$0xf]
    %v5724 = vld [vmem:[#allocation8 + $0x90] sm:$0xff]
    %v5725 = vld [vmem:[#allocation8 + $0x98] sm:$0xf]
    %v5726 = vld [vmem:[#allocation8 + $0x9c] sm:$0xff]
    %v5727 = vld [vmem:[#allocation8 + $0xa4] sm:$0xf]
    %v5728 = vld [vmem:[#allocation8 + $0xa8] sm:$0xff]
    %v5729 = vld [vmem:[#allocation8 + $0xb0] sm:$0xf]
    %v5730 = vld [vmem:[#allocation8 + $0xb4] sm:$0xff]
    %v5731 = vld [vmem:[#allocation8 + $0xbc] sm:$0xf]
    %v5732 = vld [vmem:[%s4] sm:$0x7]
    %v5734 = vlaneseq
    %v5735 = vshrl.u32 %v5734, 7
    %v5736 = vsub.s32 0, %v5735
    %v5737 = vrot.slane %v5732, %v5736
    %v5738 = vlaneseq
    %v5739 = vshrl.u32 %v5738, 7
    %v5740 = vsub.s32 1, %v5739
    %v5741 = vrot.slane %v5732, %v5740
    %v5742 = vlaneseq
    %v5743 = vshrl.u32 %v5742, 7
    %v5744 = vsub.s32 2, %v5743
    %v5745 = vrot.slane %v5732, %v5744
    %v5781 = vunpack.c.l.b16 %v5700
    %v5782 = vunpack.c.h.b16 %v5700
    %v5783 = vunpack.c.l.b16 %v5701
    %v5784 = vunpack.c.l.b16 %v5702
    %v5785 = vunpack.c.h.b16 %v5702
    %v5786 = vunpack.c.l.b16 %v5703
    %v5787 = vunpack.c.l.b16 %v5704
    %v5788 = vunpack.c.h.b16 %v5704
    %v5789 = vunpack.c.l.b16 %v5705
    %v5790 = vunpack.c.l.b16 %v5706
    %v5791 = vunpack.c.h.b16 %v5706
    %v5792 = vunpack.c.l.b16 %v5707
    %v5793 = vunpack.c.l.b16 %v5708
    %v5794 = vunpack.c.h.b16 %v5708
    %v5795 = vunpack.c.l.b16 %v5709
    %v5796 = vunpack.c.l.b16 %v5710
    %v5797 = vunpack.c.h.b16 %v5710
    %v5798 = vunpack.c.l.b16 %v5711
    %v5799 = vunpack.c.l.b16 %v5712
    %v5800 = vunpack.c.h.b16 %v5712
    %v5801 = vunpack.c.l.b16 %v5713
    %v5802 = vunpack.c.l.b16 %v5714
    %v5803 = vunpack.c.h.b16 %v5714
    %v5804 = vunpack.c.l.b16 %v5715
    %v5805 = vunpack.c.l.b16 %v5716
    %v5806 = vunpack.c.h.b16 %v5716
    %v5807 = vunpack.c.l.b16 %v5717
    %v5808 = vunpack.c.l.b16 %v5718
    %v5809 = vunpack.c.h.b16 %v5718
    %v5810 = vunpack.c.l.b16 %v5719
    %v5811 = vunpack.c.l.b16 %v5720
    %v5812 = vunpack.c.h.b16 %v5720
    %v5813 = vunpack.c.l.b16 %v5721
    %v5814 = vunpack.c.l.b16 %v5722
    %v5815 = vunpack.c.h.b16 %v5722
    %v5816 = vunpack.c.l.b16 %v5723
    %v5817 = vunpack.c.l.b16 %v5724
    %v5818 = vunpack.c.h.b16 %v5724
    %v5819 = vunpack.c.l.b16 %v5725
    %v5820 = vunpack.c.l.b16 %v5726
    %v5821 = vunpack.c.h.b16 %v5726
    %v5822 = vunpack.c.l.b16 %v5727
    %v5823 = vunpack.c.l.b16 %v5728
    %v5824 = vunpack.c.h.b16 %v5728
    %v5825 = vunpack.c.l.b16 %v5729
    %v5826 = vunpack.c.l.b16 %v5730
    %v5827 = vunpack.c.h.b16 %v5730
    %v5828 = vunpack.c.l.b16 %v5731
    %v5829 = vpack.c.b16 %v5784, %v5781
    %v5830 = vpack.c.b16 %v5785, %v5782
    %v5831 = vpack.c.b16 %v5786, %v5783
    %v5832 = vpack.c.b16 %v5790, %v5787
    %v5833 = vpack.c.b16 %v5791, %v5788
    %v5834 = vpack.c.b16 %v5792, %v5789
    %v5835 = vpack.c.b16 %v5796, %v5793
    %v5836 = vpack.c.b16 %v5797, %v5794
    %v5837 = vpack.c.b16 %v5798, %v5795
    %v5838 = vpack.c.b16 %v5802, %v5799
    %v5839 = vpack.c.b16 %v5803, %v5800
    %v5840 = vpack.c.b16 %v5804, %v5801
    %v5841 = vpack.c.b16 %v5808, %v5805
    %v5842 = vpack.c.b16 %v5809, %v5806
    %v5843 = vpack.c.b16 %v5810, %v5807
    %v5844 = vpack.c.b16 %v5814, %v5811
    %v5845 = vpack.c.b16 %v5815, %v5812
    %v5846 = vpack.c.b16 %v5816, %v5813
    %v5847 = vpack.c.b16 %v5820, %v5817
    %v5848 = vpack.c.b16 %v5821, %v5818
    %v5849 = vpack.c.b16 %v5822, %v5819
    %v5850 = vpack.c.b16 %v5826, %v5823
    %v5851 = vpack.c.b16 %v5827, %v5824
    %v5852 = vpack.c.b16 %v5828, %v5825
    %5877 = vmatprep.subr.bf16.mxu0 %v5830
    %5878 = vmatpush1.bf16.msra.mxu0 %v5829
    %5879 = vmatprep.subr.bf16.mxu0 %v5833
    %5880 = vmatpush1.bf16.msra.mxu0 %v5832
    %5881 = vmatprep.subr.bf16.mxu0 %v5836
    %5882 = vmatpush1.bf16.msra.mxu0 %v5835
    %5883 = vmatprep.subr.bf16.mxu0 %v5839
    %5884 = vmatpush1.bf16.msra.mxu0 %v5838
    %5885 = vmatprep.subr.bf16.mxu0 %v5842
    %5886 = vmatpush1.bf16.msra.mxu0 %v5841
    %5887 = vmatprep.subr.bf16.mxu0 %v5845
    %5888 = vmatpush1.bf16.msra.mxu0 %v5844
    %5889 = vmatprep.subr.bf16.mxu0 %v5848
    %5890 = vmatpush1.bf16.msra.mxu0 %v5847
    %5891 = vmatprep.subr.bf16.mxu0 %v5851
    %5892 = vmatpush1.bf16.msra.mxu0 %v5850
    %5893 = vmatprep.subr.bf16.mxu0 0
    %5894 = vmatpush1.bf16.msra.mxu0 0
    %5895 = vmatprep.subr.bf16.mxu0 0
    %5896 = vmatpush1.bf16.msra.mxu0 0
    %5897 = vmatprep.subr.bf16.mxu0 0
    %5898 = vmatpush1.bf16.msra.mxu0 0
    %5899 = vmatprep.subr.bf16.mxu0 0
    %5900 = vmatpush1.bf16.msra.mxu0 0
    %5901 = vmatprep.subr.bf16.mxu0 0
    %5902 = vmatpush1.bf16.msra.mxu0 0
    %5903 = vmatprep.subr.bf16.mxu0 0
    %5904 = vmatpush1.bf16.msra.mxu0 0
    %5905 = vmatprep.subr.bf16.mxu0 0
    %5906 = vmatpush1.bf16.msra.mxu0 0
    %5907 = vmatprep.subr.bf16.mxu0 0
    %5908 = vmatpush1.bf16.msra.mxu0 0
    %5909 = vmatprep.mubr.bf16.mxu0 0
    %5910 = vmatmul.mubr.bf16.gmra.mrb[0].mxu0 %v5699
    %v5911 = vpop.f32.mrb[0].mxu0
    %v5912 = vadd.f32 %v5737, %v5911
    %v5913 = vpop.f32.mrb[0].mxu0
    %v5914 = vadd.f32 %v5741, %v5913
    %v5915 = vpop.f32.mrb[0].mxu0
    %v5916 = vpop.f32.mrb[0].mxu0
    %5917 = vdwg.mxu0
    %5918 = vmatprep.subr.bf16.mxu0 0
    %5919 = vmatpush1.bf16.msra.mxu0 %v5831
    %5920 = vmatprep.subr.bf16.mxu0 0
    %5921 = vmatpush1.bf16.msra.mxu0 %v5834
    %5922 = vmatprep.subr.bf16.mxu0 0
    %5923 = vmatpush1.bf16.msra.mxu0 %v5837
    %5924 = vmatprep.subr.bf16.mxu0 0
    %5925 = vmatpush1.bf16.msra.mxu0 %v5840
    %5926 = vmatprep.subr.bf16.mxu0 0
    %5927 = vmatpush1.bf16.msra.mxu0 %v5843
    %5928 = vmatprep.subr.bf16.mxu0 0
    %5929 = vmatpush1.bf16.msra.mxu0 %v5846
    %5930 = vmatprep.subr.bf16.mxu0 0
    %5931 = vmatpush1.bf16.msra.mxu0 %v5849
    %5932 = vmatprep.subr.bf16.mxu0 0
    %5933 = vmatpush1.bf16.msra.mxu0 %v5852
    %5934 = vmatprep.subr.bf16.mxu0 0
    %5935 = vmatpush1.bf16.msra.mxu0 0
    %5936 = vmatprep.subr.bf16.mxu0 0
    %5937 = vmatpush1.bf16.msra.mxu0 0
    %5938 = vmatprep.subr.bf16.mxu0 0
    %5939 = vmatpush1.bf16.msra.mxu0 0
    %5940 = vmatprep.subr.bf16.mxu0 0
    %5941 = vmatpush1.bf16.msra.mxu0 0
    %5942 = vmatprep.subr.bf16.mxu0 0
    %5943 = vmatpush1.bf16.msra.mxu0 0
    %5944 = vmatprep.subr.bf16.mxu0 0
    %5945 = vmatpush1.bf16.msra.mxu0 0
    %5946 = vmatprep.subr.bf16.mxu0 0
    %5947 = vmatpush1.bf16.msra.mxu0 0
    %5948 = vmatprep.subr.bf16.mxu0 0
    %5949 = vmatpush1.bf16.msra.mxu0 0
    %5950 = vmatprep.mubr.bf16.mxu0 0
    %5951 = vmatmul.mubr.bf16.gmra.mrb[0].mxu0 %v5699
    %v5952 = vpop.f32.mrb[0].mxu0
    %v5953 = vadd.f32 %v5745, %v5952
    %v5954 = vpop.f32.mrb[0].mxu0
    %v5955 = vpop.f32.mrb[0].mxu0
    %v5956 = vpop.f32.mrb[0].mxu0
    %5957 = vdwg.mxu0
    %v5958 = vadd.f32 %v5912, %v5387
    %v5959 = vxor.u32 %v5958, 2147483648
    %v5960 = vmul.f32 %v5959, 1.442695
    %v5961 = vpow.pop %v5960
    %v5962 = vadd.f32 %v5961, 1.0
    %v5963 = vrcp.pop %v5962
    %v5964 = vmul.f32 1.0, %v5963
    %v5965 = vadd.f32 %v5914, %v5389
    %v5966 = vxor.u32 %v5965, 2147483648
    %v5967 = vmul.f32 %v5966, 1.442695
    %v5968 = vpow.pop %v5967
    %v5969 = vadd.f32 %v5968, 1.0
    %v5970 = vrcp.pop %v5969
    %v5971 = vmul.f32 1.0, %v5970
    %v5972 = vmul.f32 %v5964, %v5428
    %v5973 = vadd.f32 %v5953, %v5972
    %v5974 = vtanh.pop %v5973
    %v5975 = vsub.f32 1.0, %v5971
    %v5976 = vmul.f32 %v5975, %v5974
    %v5977 = vmul.f32 %v5971, %v4782
    %v5978 = vadd.f32 %v5976, %v5977
    %v5979 = vpack.c.bf16 %v5978, %v5978
    %v5980 = vld [vmem:[#allocation13] sm:$0xf]
    %v5981 = vld [vmem:[#allocation13 + $0x4] sm:$0xf]
    %v5982 = vld [vmem:[#allocation13 + $0x8] sm:$0xf]
    %v5983 = vld [vmem:[#allocation13 + $0xc] sm:$0xf]
    %v5984 = vld [vmem:[#allocation13 + $0x10] sm:$0xf]
    %v5985 = vld [vmem:[#allocation13 + $0x14] sm:$0xf]
    %v5986 = vld [vmem:[#allocation13 + $0x18] sm:$0xf]
    %v5987 = vld [vmem:[#allocation13 + $0x1c] sm:$0xf]
    %v5988 = vld [vmem:[#allocation13 + $0x20] sm:$0xf]
    %v5989 = vld [vmem:[#allocation13 + $0x24] sm:$0xf]
    %v5990 = vld [vmem:[#allocation13 + $0x28] sm:$0xf]
    %v5991 = vld [vmem:[#allocation13 + $0x2c] sm:$0xf]
    %v5992 = vld [vmem:[#allocation13 + $0x30] sm:$0xf]
    %v5993 = vld [vmem:[#allocation13 + $0x34] sm:$0xf]
    %v5994 = vld [vmem:[#allocation13 + $0x38] sm:$0xf]
    %v5995 = vld [vmem:[#allocation13 + $0x3c] sm:$0xf]
    %v5996 = vld [vmem:[%s10] sm:$0x1]
    %v5998 = vlaneseq
    %v5999 = vshrl.u32 %v5998, 7
    %v6000 = vsub.s32 0, %v5999
    %v6001 = vrot.slane %v5996, %v6000
    %v6019 = vunpack.c.l.b16 %v5980
    %v6020 = vunpack.c.l.b16 %v5981
    %v6021 = vunpack.c.l.b16 %v5982
    %v6022 = vunpack.c.l.b16 %v5983
    %v6023 = vunpack.c.l.b16 %v5984
    %v6024 = vunpack.c.l.b16 %v5985
    %v6025 = vunpack.c.l.b16 %v5986
    %v6026 = vunpack.c.l.b16 %v5987
    %v6027 = vunpack.c.l.b16 %v5988
    %v6028 = vunpack.c.l.b16 %v5989
    %v6029 = vunpack.c.l.b16 %v5990
    %v6030 = vunpack.c.l.b16 %v5991
    %v6031 = vunpack.c.l.b16 %v5992
    %v6032 = vunpack.c.l.b16 %v5993
    %v6033 = vunpack.c.l.b16 %v5994
    %v6034 = vunpack.c.l.b16 %v5995
    %v6035 = vpack.c.b16 %v6020, %v6019
    %v6036 = vpack.c.b16 %v6022, %v6021
    %v6037 = vpack.c.b16 %v6024, %v6023
    %v6038 = vpack.c.b16 %v6026, %v6025
    %v6039 = vpack.c.b16 %v6028, %v6027
    %v6040 = vpack.c.b16 %v6030, %v6029
    %v6041 = vpack.c.b16 %v6032, %v6031
    %v6042 = vpack.c.b16 %v6034, %v6033
    %6051 = vmatprep.subr.bf16.mxu0 0
    %6052 = vmatpush1.bf16.msra.mxu0 %v6035
    %6053 = vmatprep.subr.bf16.mxu0 0
    %6054 = vmatpush1.bf16.msra.mxu0 %v6036
    %6055 = vmatprep.subr.bf16.mxu0 0
    %6056 = vmatpush1.bf16.msra.mxu0 %v6037
    %6057 = vmatprep.subr.bf16.mxu0 0
    %6058 = vmatpush1.bf16.msra.mxu0 %v6038
    %6059 = vmatprep.subr.bf16.mxu0 0
    %6060 = vmatpush1.bf16.msra.mxu0 %v6039
    %6061 = vmatprep.subr.bf16.mxu0 0
    %6062 = vmatpush1.bf16.msra.mxu0 %v6040
    %6063 = vmatprep.subr.bf16.mxu0 0
    %6064 = vmatpush1.bf16.msra.mxu0 %v6041
    %6065 = vmatprep.subr.bf16.mxu0 0
    %6066 = vmatpush1.bf16.msra.mxu0 %v6042
    %6067 = vmatprep.subr.bf16.mxu0 0
    %6068 = vmatpush1.bf16.msra.mxu0 0
    %6069 = vmatprep.subr.bf16.mxu0 0
    %6070 = vmatpush1.bf16.msra.mxu0 0
    %6071 = vmatprep.subr.bf16.mxu0 0
    %6072 = vmatpush1.bf16.msra.mxu0 0
    %6073 = vmatprep.subr.bf16.mxu0 0
    %6074 = vmatpush1.bf16.msra.mxu0 0
    %6075 = vmatprep.subr.bf16.mxu0 0
    %6076 = vmatpush1.bf16.msra.mxu0 0
    %6077 = vmatprep.subr.bf16.mxu0 0
    %6078 = vmatpush1.bf16.msra.mxu0 0
    %6079 = vmatprep.subr.bf16.mxu0 0
    %6080 = vmatpush1.bf16.msra.mxu0 0
    %6081 = vmatprep.subr.bf16.mxu0 0
    %6082 = vmatpush1.bf16.msra.mxu0 0
    %6083 = vmatprep.mubr.bf16.mxu0 0
    %6084 = vmatmul.mubr.bf16.gmra.mrb[0].mxu0 %v5979
    %v6085 = vpop.f32.mrb[0].mxu0
    %v6086 = vadd.f32 %v6001, %v6085
    %v6087 = vpop.f32.mrb[0].mxu0
    %v6088 = vpop.f32.mrb[0].mxu0
    %v6089 = vpop.f32.mrb[0].mxu0
    %6090 = vdwg.mxu0
    %s6091 = scalar_lea.vmem [#allocation14], 32
    %6092 = vst [vmem:[%s6091] sm:$0xff] %v6086
    %6093 = vmax.xlane.f32.xlu0 %v6086
    %v6094 = vpop.xlane.xlu0 %6093
    %vm6095 = vcmp.eq.f32.partialorder %v6086, %v6094
    %v6096 = vsel %vm6095, %v132, 128
    %v6097 = vand.u32 %v6096, 65535
    %v6098 = vshra.s32 %v6096, 16
    %v6099 = vcvt.s32.f32 %v6097
    %v6100 = vcvt.s32.f32 %v6098
    %6101 = vmin.xlane.f32.xlu0 %v6100
    %v6102 = vpop.xlane.xlu0 %6101
    %vm6103 = vcmp.eq.f32.partialorder %v6100, %v6102
    %v6104 = vsel %vm6103, %v6099, inf
    %6105 = vmin.xlane.f32.xlu0 %v6104
    %v6106 = vpop.xlane.xlu0 %6105
    %v6107 = vcvt.f32.s32 %v6106
    %v6108 = vcvt.f32.s32 %v6102
    %v6109 = vshll.u32 %v6108, 16
    %v6110 = vadd.s32 %v6109, %v6107
    %vm6111 = vcmp.eq.s32.totalorder %v132, %v6110
    %v6112 = vsel %vm6111, 1.0, 0.0
    %v6113 = vld [vmem:[#allocation10] sm:$0xff]
    %v6114 = vld [vmem:[#allocation10 + $0x8] sm:$0xf]
    %v6115 = vld [vmem:[#allocation10 + $0xc] sm:$0xff]
    %v6116 = vld [vmem:[#allocation10 + $0x14] sm:$0xf]
    %v6117 = vld [vmem:[#allocation10 + $0x18] sm:$0xff]
    %v6118 = vld [vmem:[#allocation10 + $0x20] sm:$0xf]
    %v6119 = vld [vmem:[#allocation10 + $0x24] sm:$0xff]
    %v6120 = vld [vmem:[#allocation10 + $0x2c] sm:$0xf]
    %v6121 = vld [vmem:[#allocation10 + $0x30] sm:$0xff]
    %v6122 = vld [vmem:[#allocation10 + $0x38] sm:$0xf]
    %v6123 = vld [vmem:[#allocation10 + $0x3c] sm:$0xff]
    %v6124 = vld [vmem:[#allocation10 + $0x44] sm:$0xf]
    %v6125 = vld [vmem:[#allocation10 + $0x48] sm:$0xff]
    %v6126 = vld [vmem:[#allocation10 + $0x50] sm:$0xf]
    %v6127 = vld [vmem:[#allocation10 + $0x54] sm:$0xff]
    %v6128 = vld [vmem:[#allocation10 + $0x5c] sm:$0xf]
    %v6129 = vld [vmem:[#allocation10 + $0x60] sm:$0xff]
    %v6130 = vld [vmem:[#allocation10 + $0x68] sm:$0xf]
    %v6131 = vld [vmem:[#allocation10 + $0x6c] sm:$0xff]
    %v6132 = vld [vmem:[#allocation10 + $0x74] sm:$0xf]
    %v6133 = vld [vmem:[#allocation10 + $0x78] sm:$0xff]
    %v6134 = vld [vmem:[#allocation10 + $0x80] sm:$0xf]
    %v6135 = vld [vmem:[#allocation10 + $0x84] sm:$0xff]
    %v6136 = vld [vmem:[#allocation10 + $0x8c] sm:$0xf]
    %v6137 = vld [vmem:[#allocation10 + $0x90] sm:$0xff]
    %v6138 = vld [vmem:[#allocation10 + $0x98] sm:$0xf]
    %v6139 = vld [vmem:[#allocation10 + $0x9c] sm:$0xff]
    %v6140 = vld [vmem:[#allocation10 + $0xa4] sm:$0xf]
    %v6141 = vld [vmem:[#allocation10 + $0xa8] sm:$0xff]
    %v6142 = vld [vmem:[#allocation10 + $0xb0] sm:$0xf]
    %v6143 = vld [vmem:[#allocation10 + $0xb4] sm:$0xff]
    %v6144 = vld [vmem:[#allocation10 + $0xbc] sm:$0xf]
    %v6145 = vld [vmem:[%s6] sm:$0x7]
    %v6147 = vlaneseq
    %v6148 = vshrl.u32 %v6147, 7
    %v6149 = vsub.s32 0, %v6148
    %v6150 = vrot.slane %v6145, %v6149
    %v6151 = vlaneseq
    %v6152 = vshrl.u32 %v6151, 7
    %v6153 = vsub.s32 1, %v6152
    %v6154 = vrot.slane %v6145, %v6153
    %v6155 = vlaneseq
    %v6156 = vshrl.u32 %v6155, 7
    %v6157 = vsub.s32 2, %v6156
    %v6158 = vrot.slane %v6145, %v6157
    %v6194 = vunpack.c.l.b16 %v6113
    %v6195 = vunpack.c.h.b16 %v6113
    %v6196 = vunpack.c.l.b16 %v6114
    %v6197 = vunpack.c.l.b16 %v6115
    %v6198 = vunpack.c.h.b16 %v6115
    %v6199 = vunpack.c.l.b16 %v6116
    %v6200 = vunpack.c.l.b16 %v6117
    %v6201 = vunpack.c.h.b16 %v6117
    %v6202 = vunpack.c.l.b16 %v6118
    %v6203 = vunpack.c.l.b16 %v6119
    %v6204 = vunpack.c.h.b16 %v6119
    %v6205 = vunpack.c.l.b16 %v6120
    %v6206 = vunpack.c.l.b16 %v6121
    %v6207 = vunpack.c.h.b16 %v6121
    %v6208 = vunpack.c.l.b16 %v6122
    %v6209 = vunpack.c.l.b16 %v6123
    %v6210 = vunpack.c.h.b16 %v6123
    %v6211 = vunpack.c.l.b16 %v6124
    %v6212 = vunpack.c.l.b16 %v6125
    %v6213 = vunpack.c.h.b16 %v6125
    %v6214 = vunpack.c.l.b16 %v6126
    %v6215 = vunpack.c.l.b16 %v6127
    %v6216 = vunpack.c.h.b16 %v6127
    %v6217 = vunpack.c.l.b16 %v6128
    %v6218 = vunpack.c.l.b16 %v6129
    %v6219 = vunpack.c.h.b16 %v6129
    %v6220 = vunpack.c.l.b16 %v6130
    %v6221 = vunpack.c.l.b16 %v6131
    %v6222 = vunpack.c.h.b16 %v6131
    %v6223 = vunpack.c.l.b16 %v6132
    %v6224 = vunpack.c.l.b16 %v6133
    %v6225 = vunpack.c.h.b16 %v6133
    %v6226 = vunpack.c.l.b16 %v6134
    %v6227 = vunpack.c.l.b16 %v6135
    %v6228 = vunpack.c.h.b16 %v6135
    %v6229 = vunpack.c.l.b16 %v6136
    %v6230 = vunpack.c.l.b16 %v6137
    %v6231 = vunpack.c.h.b16 %v6137
    %v6232 = vunpack.c.l.b16 %v6138
    %v6233 = vunpack.c.l.b16 %v6139
    %v6234 = vunpack.c.h.b16 %v6139
    %v6235 = vunpack.c.l.b16 %v6140
    %v6236 = vunpack.c.l.b16 %v6141
    %v6237 = vunpack.c.h.b16 %v6141
    %v6238 = vunpack.c.l.b16 %v6142
    %v6239 = vunpack.c.l.b16 %v6143
    %v6240 = vunpack.c.h.b16 %v6143
    %v6241 = vunpack.c.l.b16 %v6144
    %v6242 = vpack.c.b16 %v6197, %v6194
    %v6243 = vpack.c.b16 %v6198, %v6195
    %v6244 = vpack.c.b16 %v6199, %v6196
    %v6245 = vpack.c.b16 %v6203, %v6200
    %v6246 = vpack.c.b16 %v6204, %v6201
    %v6247 = vpack.c.b16 %v6205, %v6202
    %v6248 = vpack.c.b16 %v6209, %v6206
    %v6249 = vpack.c.b16 %v6210, %v6207
    %v6250 = vpack.c.b16 %v6211, %v6208
    %v6251 = vpack.c.b16 %v6215, %v6212
    %v6252 = vpack.c.b16 %v6216, %v6213
    %v6253 = vpack.c.b16 %v6217, %v6214
    %v6254 = vpack.c.b16 %v6221, %v6218
    %v6255 = vpack.c.b16 %v6222, %v6219
    %v6256 = vpack.c.b16 %v6223, %v6220
    %v6257 = vpack.c.b16 %v6227, %v6224
    %v6258 = vpack.c.b16 %v6228, %v6225
    %v6259 = vpack.c.b16 %v6229, %v6226
    %v6260 = vpack.c.b16 %v6233, %v6230
    %v6261 = vpack.c.b16 %v6234, %v6231
    %v6262 = vpack.c.b16 %v6235, %v6232
    %v6263 = vpack.c.b16 %v6239, %v6236
    %v6264 = vpack.c.b16 %v6240, %v6237
    %v6265 = vpack.c.b16 %v6241, %v6238
    %6290 = vmatprep.subr.bf16.mxu0 %v6243
    %6291 = vmatpush1.bf16.msra.mxu0 %v6242
    %6292 = vmatprep.subr.bf16.mxu0 %v6246
    %6293 = vmatpush1.bf16.msra.mxu0 %v6245
    %6294 = vmatprep.subr.bf16.mxu0 %v6249
    %6295 = vmatpush1.bf16.msra.mxu0 %v6248
    %6296 = vmatprep.subr.bf16.mxu0 %v6252
    %6297 = vmatpush1.bf16.msra.mxu0 %v6251
    %6298 = vmatprep.subr.bf16.mxu0 %v6255
    %6299 = vmatpush1.bf16.msra.mxu0 %v6254
    %6300 = vmatprep.subr.bf16.mxu0 %v6258
    %6301 = vmatpush1.bf16.msra.mxu0 %v6257
    %6302 = vmatprep.subr.bf16.mxu0 %v6261
    %6303 = vmatpush1.bf16.msra.mxu0 %v6260
    %6304 = vmatprep.subr.bf16.mxu0 %v6264
    %6305 = vmatpush1.bf16.msra.mxu0 %v6263
    %6306 = vmatprep.subr.bf16.mxu0 0
    %6307 = vmatpush1.bf16.msra.mxu0 0
    %6308 = vmatprep.subr.bf16.mxu0 0
    %6309 = vmatpush1.bf16.msra.mxu0 0
    %6310 = vmatprep.subr.bf16.mxu0 0
    %6311 = vmatpush1.bf16.msra.mxu0 0
    %6312 = vmatprep.subr.bf16.mxu0 0
    %6313 = vmatpush1.bf16.msra.mxu0 0
    %6314 = vmatprep.subr.bf16.mxu0 0
    %6315 = vmatpush1.bf16.msra.mxu0 0
    %6316 = vmatprep.subr.bf16.mxu0 0
    %6317 = vmatpush1.bf16.msra.mxu0 0
    %6318 = vmatprep.subr.bf16.mxu0 0
    %6319 = vmatpush1.bf16.msra.mxu0 0
    %6320 = vmatprep.subr.bf16.mxu0 0
    %6321 = vmatpush1.bf16.msra.mxu0 0
    %6322 = vmatprep.mubr.bf16.mxu0 0
    %6323 = vmatmul.mubr.bf16.gmra.mrb[0].mxu0 %v5699
    %v6324 = vpop.f32.mrb[0].mxu0
    %v6325 = vadd.f32 %v6150, %v6324
    %v6326 = vpop.f32.mrb[0].mxu0
    %v6327 = vadd.f32 %v6154, %v6326
    %v6328 = vpop.f32.mrb[0].mxu0
    %v6329 = vpop.f32.mrb[0].mxu0
    %6330 = vdwg.mxu0
    %6331 = vmatprep.subr.bf16.mxu0 0
    %6332 = vmatpush1.bf16.msra.mxu0 %v6244
    %6333 = vmatprep.subr.bf16.mxu0 0
    %6334 = vmatpush1.bf16.msra.mxu0 %v6247
    %6335 = vmatprep.subr.bf16.mxu0 0
    %6336 = vmatpush1.bf16.msra.mxu0 %v6250
    %6337 = vmatprep.subr.bf16.mxu0 0
    %6338 = vmatpush1.bf16.msra.mxu0 %v6253
    %6339 = vmatprep.subr.bf16.mxu0 0
    %6340 = vmatpush1.bf16.msra.mxu0 %v6256
    %6341 = vmatprep.subr.bf16.mxu0 0
    %6342 = vmatpush1.bf16.msra.mxu0 %v6259
    %6343 = vmatprep.subr.bf16.mxu0 0
    %6344 = vmatpush1.bf16.msra.mxu0 %v6262
    %6345 = vmatprep.subr.bf16.mxu0 0
    %6346 = vmatpush1.bf16.msra.mxu0 %v6265
    %6347 = vmatprep.subr.bf16.mxu0 0
    %6348 = vmatpush1.bf16.msra.mxu0 0
    %6349 = vmatprep.subr.bf16.mxu0 0
    %6350 = vmatpush1.bf16.msra.mxu0 0
    %6351 = vmatprep.subr.bf16.mxu0 0
    %6352 = vmatpush1.bf16.msra.mxu0 0
    %6353 = vmatprep.subr.bf16.mxu0 0
    %6354 = vmatpush1.bf16.msra.mxu0 0
    %6355 = vmatprep.subr.bf16.mxu0 0
    %6356 = vmatpush1.bf16.msra.mxu0 0
    %6357 = vmatprep.subr.bf16.mxu0 0
    %6358 = vmatpush1.bf16.msra.mxu0 0
    %6359 = vmatprep.subr.bf16.mxu0 0
    %6360 = vmatpush1.bf16.msra.mxu0 0
    %6361 = vmatprep.subr.bf16.mxu0 0
    %6362 = vmatpush1.bf16.msra.mxu0 0
    %6363 = vmatprep.mubr.bf16.mxu0 0
    %6364 = vmatmul.mubr.bf16.gmra.mrb[0].mxu0 %v5699
    %v6365 = vpop.f32.mrb[0].mxu0
    %v6366 = vadd.f32 %v6158, %v6365
    %v6367 = vpop.f32.mrb[0].mxu0
    %v6368 = vpop.f32.mrb[0].mxu0
    %v6369 = vpop.f32.mrb[0].mxu0
    %6370 = vdwg.mxu0
    %v6371 = vld [vmem:[#allocation11] sm:$0xff]
    %v6372 = vld [vmem:[#allocation11 + $0x8] sm:$0xf]
    %v6373 = vld [vmem:[#allocation11 + $0xc] sm:$0xff]
    %v6374 = vld [vmem:[#allocation11 + $0x14] sm:$0xf]
    %v6375 = vld [vmem:[#allocation11 + $0x18] sm:$0xff]
    %v6376 = vld [vmem:[#allocation11 + $0x20] sm:$0xf]
    %v6377 = vld [vmem:[#allocation11 + $0x24] sm:$0xff]
    %v6378 = vld [vmem:[#allocation11 + $0x2c] sm:$0xf]
    %v6379 = vld [vmem:[#allocation11 + $0x30] sm:$0xff]
    %v6380 = vld [vmem:[#allocation11 + $0x38] sm:$0xf]
    %v6381 = vld [vmem:[#allocation11 + $0x3c] sm:$0xff]
    %v6382 = vld [vmem:[#allocation11 + $0x44] sm:$0xf]
    %v6383 = vld [vmem:[#allocation11 + $0x48] sm:$0xff]
    %v6384 = vld [vmem:[#allocation11 + $0x50] sm:$0xf]
    %v6385 = vld [vmem:[#allocation11 + $0x54] sm:$0xff]
    %v6386 = vld [vmem:[#allocation11 + $0x5c] sm:$0xf]
    %v6387 = vld [vmem:[#allocation11 + $0x60] sm:$0xff]
    %v6388 = vld [vmem:[#allocation11 + $0x68] sm:$0xf]
    %v6389 = vld [vmem:[#allocation11 + $0x6c] sm:$0xff]
    %v6390 = vld [vmem:[#allocation11 + $0x74] sm:$0xf]
    %v6391 = vld [vmem:[#allocation11 + $0x78] sm:$0xff]
    %v6392 = vld [vmem:[#allocation11 + $0x80] sm:$0xf]
    %v6393 = vld [vmem:[#allocation11 + $0x84] sm:$0xff]
    %v6394 = vld [vmem:[#allocation11 + $0x8c] sm:$0xf]
    %v6395 = vld [vmem:[#allocation11 + $0x90] sm:$0xff]
    %v6396 = vld [vmem:[#allocation11 + $0x98] sm:$0xf]
    %v6397 = vld [vmem:[#allocation11 + $0x9c] sm:$0xff]
    %v6398 = vld [vmem:[#allocation11 + $0xa4] sm:$0xf]
    %v6399 = vld [vmem:[#allocation11 + $0xa8] sm:$0xff]
    %v6400 = vld [vmem:[#allocation11 + $0xb0] sm:$0xf]
    %v6401 = vld [vmem:[#allocation11 + $0xb4] sm:$0xff]
    %v6402 = vld [vmem:[#allocation11 + $0xbc] sm:$0xf]
    %v6403 = vld [vmem:[%s8] sm:$0x7]
    %v6405 = vlaneseq
    %v6406 = vshrl.u32 %v6405, 7
    %v6407 = vsub.s32 0, %v6406
    %v6408 = vrot.slane %v6403, %v6407
    %v6409 = vlaneseq
    %v6410 = vshrl.u32 %v6409, 7
    %v6411 = vsub.s32 1, %v6410
    %v6412 = vrot.slane %v6403, %v6411
    %v6413 = vlaneseq
    %v6414 = vshrl.u32 %v6413, 7
    %v6415 = vsub.s32 2, %v6414
    %v6416 = vrot.slane %v6403, %v6415
    %v6452 = vunpack.c.l.b16 %v6371
    %v6453 = vunpack.c.h.b16 %v6371
    %v6454 = vunpack.c.l.b16 %v6372
    %v6455 = vunpack.c.l.b16 %v6373
    %v6456 = vunpack.c.h.b16 %v6373
    %v6457 = vunpack.c.l.b16 %v6374
    %v6458 = vunpack.c.l.b16 %v6375
    %v6459 = vunpack.c.h.b16 %v6375
    %v6460 = vunpack.c.l.b16 %v6376
    %v6461 = vunpack.c.l.b16 %v6377
    %v6462 = vunpack.c.h.b16 %v6377
    %v6463 = vunpack.c.l.b16 %v6378
    %v6464 = vunpack.c.l.b16 %v6379
    %v6465 = vunpack.c.h.b16 %v6379
    %v6466 = vunpack.c.l.b16 %v6380
    %v6467 = vunpack.c.l.b16 %v6381
    %v6468 = vunpack.c.h.b16 %v6381
    %v6469 = vunpack.c.l.b16 %v6382
    %v6470 = vunpack.c.l.b16 %v6383
    %v6471 = vunpack.c.h.b16 %v6383
    %v6472 = vunpack.c.l.b16 %v6384
    %v6473 = vunpack.c.l.b16 %v6385
    %v6474 = vunpack.c.h.b16 %v6385
    %v6475 = vunpack.c.l.b16 %v6386
    %v6476 = vunpack.c.l.b16 %v6387
    %v6477 = vunpack.c.h.b16 %v6387
    %v6478 = vunpack.c.l.b16 %v6388
    %v6479 = vunpack.c.l.b16 %v6389
    %v6480 = vunpack.c.h.b16 %v6389
    %v6481 = vunpack.c.l.b16 %v6390
    %v6482 = vunpack.c.l.b16 %v6391
    %v6483 = vunpack.c.h.b16 %v6391
    %v6484 = vunpack.c.l.b16 %v6392
    %v6485 = vunpack.c.l.b16 %v6393
    %v6486 = vunpack.c.h.b16 %v6393
    %v6487 = vunpack.c.l.b16 %v6394
    %v6488 = vunpack.c.l.b16 %v6395
    %v6489 = vunpack.c.h.b16 %v6395
    %v6490 = vunpack.c.l.b16 %v6396
    %v6491 = vunpack.c.l.b16 %v6397
    %v6492 = vunpack.c.h.b16 %v6397
    %v6493 = vunpack.c.l.b16 %v6398
    %v6494 = vunpack.c.l.b16 %v6399
    %v6495 = vunpack.c.h.b16 %v6399
    %v6496 = vunpack.c.l.b16 %v6400
    %v6497 = vunpack.c.l.b16 %v6401
    %v6498 = vunpack.c.h.b16 %v6401
    %v6499 = vunpack.c.l.b16 %v6402
    %v6500 = vpack.c.b16 %v6455, %v6452
    %v6501 = vpack.c.b16 %v6456, %v6453
    %v6502 = vpack.c.b16 %v6457, %v6454
    %v6503 = vpack.c.b16 %v6461, %v6458
    %v6504 = vpack.c.b16 %v6462, %v6459
    %v6505 = vpack.c.b16 %v6463, %v6460
    %v6506 = vpack.c.b16 %v6467, %v6464
    %v6507 = vpack.c.b16 %v6468, %v6465
    %v6508 = vpack.c.b16 %v6469, %v6466
    %v6509 = vpack.c.b16 %v6473, %v6470
    %v6510 = vpack.c.b16 %v6474, %v6471
    %v6511 = vpack.c.b16 %v6475, %v6472
    %v6512 = vpack.c.b16 %v6479, %v6476
    %v6513 = vpack.c.b16 %v6480, %v6477
    %v6514 = vpack.c.b16 %v6481, %v6478
    %v6515 = vpack.c.b16 %v6485, %v6482
    %v6516 = vpack.c.b16 %v6486, %v6483
    %v6517 = vpack.c.b16 %v6487, %v6484
    %v6518 = vpack.c.b16 %v6491, %v6488
    %v6519 = vpack.c.b16 %v6492, %v6489
    %v6520 = vpack.c.b16 %v6493, %v6490
    %v6521 = vpack.c.b16 %v6497, %v6494
    %v6522 = vpack.c.b16 %v6498, %v6495
    %v6523 = vpack.c.b16 %v6499, %v6496
    %6548 = vmatprep.subr.bf16.mxu0 %v6501
    %6549 = vmatpush1.bf16.msra.mxu0 %v6500
    %6550 = vmatprep.subr.bf16.mxu0 %v6504
    %6551 = vmatpush1.bf16.msra.mxu0 %v6503
    %6552 = vmatprep.subr.bf16.mxu0 %v6507
    %6553 = vmatpush1.bf16.msra.mxu0 %v6506
    %6554 = vmatprep.subr.bf16.mxu0 %v6510
    %6555 = vmatpush1.bf16.msra.mxu0 %v6509
    %6556 = vmatprep.subr.bf16.mxu0 %v6513
    %6557 = vmatpush1.bf16.msra.mxu0 %v6512
    %6558 = vmatprep.subr.bf16.mxu0 %v6516
    %6559 = vmatpush1.bf16.msra.mxu0 %v6515
    %6560 = vmatprep.subr.bf16.mxu0 %v6519
    %6561 = vmatpush1.bf16.msra.mxu0 %v6518
    %6562 = vmatprep.subr.bf16.mxu0 %v6522
    %6563 = vmatpush1.bf16.msra.mxu0 %v6521
    %6564 = vmatprep.subr.bf16.mxu0 0
    %6565 = vmatpush1.bf16.msra.mxu0 0
    %6566 = vmatprep.subr.bf16.mxu0 0
    %6567 = vmatpush1.bf16.msra.mxu0 0
    %6568 = vmatprep.subr.bf16.mxu0 0
    %6569 = vmatpush1.bf16.msra.mxu0 0
    %6570 = vmatprep.subr.bf16.mxu0 0
    %6571 = vmatpush1.bf16.msra.mxu0 0
    %6572 = vmatprep.subr.bf16.mxu0 0
    %6573 = vmatpush1.bf16.msra.mxu0 0
    %6574 = vmatprep.subr.bf16.mxu0 0
    %6575 = vmatpush1.bf16.msra.mxu0 0
    %6576 = vmatprep.subr.bf16.mxu0 0
    %6577 = vmatpush1.bf16.msra.mxu0 0
    %6578 = vmatprep.subr.bf16.mxu0 0
    %6579 = vmatpush1.bf16.msra.mxu0 0
    %6580 = vmatprep.mubr.bf16.mxu0 0
    %6581 = vmatmul.mubr.bf16.gmra.mrb[0].mxu0 %v5979
    %v6582 = vpop.f32.mrb[0].mxu0
    %v6583 = vadd.f32 %v6408, %v6582
    %v6584 = vpop.f32.mrb[0].mxu0
    %v6585 = vadd.f32 %v6412, %v6584
    %v6586 = vpop.f32.mrb[0].mxu0
    %v6587 = vpop.f32.mrb[0].mxu0
    %6588 = vdwg.mxu0
    %6589 = vmatprep.subr.bf16.mxu0 0
    %6590 = vmatpush1.bf16.msra.mxu0 %v6502
    %6591 = vmatprep.subr.bf16.mxu0 0
    %6592 = vmatpush1.bf16.msra.mxu0 %v6505
    %6593 = vmatprep.subr.bf16.mxu0 0
    %6594 = vmatpush1.bf16.msra.mxu0 %v6508
    %6595 = vmatprep.subr.bf16.mxu0 0
    %6596 = vmatpush1.bf16.msra.mxu0 %v6511
    %6597 = vmatprep.subr.bf16.mxu0 0
    %6598 = vmatpush1.bf16.msra.mxu0 %v6514
    %6599 = vmatprep.subr.bf16.mxu0 0
    %6600 = vmatpush1.bf16.msra.mxu0 %v6517
    %6601 = vmatprep.subr.bf16.mxu0 0
    %6602 = vmatpush1.bf16.msra.mxu0 %v6520
    %6603 = vmatprep.subr.bf16.mxu0 0
    %6604 = vmatpush1.bf16.msra.mxu0 %v6523
    %6605 = vmatprep.subr.bf16.mxu0 0
    %6606 = vmatpush1.bf16.msra.mxu0 0
    %6607 = vmatprep.subr.bf16.mxu0 0
    %6608 = vmatpush1.bf16.msra.mxu0 0
    %6609 = vmatprep.subr.bf16.mxu0 0
    %6610 = vmatpush1.bf16.msra.mxu0 0
    %6611 = vmatprep.subr.bf16.mxu0 0
    %6612 = vmatpush1.bf16.msra.mxu0 0
    %6613 = vmatprep.subr.bf16.mxu0 0
    %6614 = vmatpush1.bf16.msra.mxu0 0
    %6615 = vmatprep.subr.bf16.mxu0 0
    %6616 = vmatpush1.bf16.msra.mxu0 0
    %6617 = vmatprep.subr.bf16.mxu0 0
    %6618 = vmatpush1.bf16.msra.mxu0 0
    %6619 = vmatprep.subr.bf16.mxu0 0
    %6620 = vmatpush1.bf16.msra.mxu0 0
    %6621 = vmatprep.mubr.bf16.mxu0 0
    %6622 = vmatmul.mubr.bf16.gmra.mrb[0].mxu0 %v5979
    %v6623 = vpop.f32.mrb[0].mxu0
    %v6624 = vadd.f32 %v6416, %v6623
    %v6625 = vpop.f32.mrb[0].mxu0
    %v6626 = vpop.f32.mrb[0].mxu0
    %v6627 = vpop.f32.mrb[0].mxu0
    %6628 = vdwg.mxu0
    %v6629 = vpack.c.bf16 %v6112, %v6112
    %v6630 = vld [vmem:[#allocation5] sm:$0xff]
    %v6631 = vld [vmem:[#allocation5 + $0x8] sm:$0xf]
    %v6632 = vld [vmem:[#allocation5 + $0xc] sm:$0xff]
    %v6633 = vld [vmem:[#allocation5 + $0x14] sm:$0xf]
    %v6634 = vld [vmem:[#allocation5 + $0x18] sm:$0xff]
    %v6635 = vld [vmem:[#allocation5 + $0x20] sm:$0xf]
    %v6636 = vld [vmem:[#allocation5 + $0x24] sm:$0xff]
    %v6637 = vld [vmem:[#allocation5 + $0x2c] sm:$0xf]
    %v6638 = vld [vmem:[#allocation5 + $0x30] sm:$0xff]
    %v6639 = vld [vmem:[#allocation5 + $0x38] sm:$0xf]
    %v6640 = vld [vmem:[#allocation5 + $0x3c] sm:$0xff]
    %v6641 = vld [vmem:[#allocation5 + $0x44] sm:$0xf]
    %v6642 = vld [vmem:[#allocation5 + $0x48] sm:$0xff]
    %v6643 = vld [vmem:[#allocation5 + $0x50] sm:$0xf]
    %v6644 = vld [vmem:[#allocation5 + $0x54] sm:$0xff]
    %v6645 = vld [vmem:[#allocation5 + $0x5c] sm:$0xf]
    %v6646 = vld [vmem:[#allocation5 + $0x60] sm:$0xff]
    %v6647 = vld [vmem:[#allocation5 + $0x68] sm:$0xf]
    %v6648 = vld [vmem:[#allocation5 + $0x6c] sm:$0xff]
    %v6649 = vld [vmem:[#allocation5 + $0x74] sm:$0xf]
    %v6650 = vld [vmem:[#allocation5 + $0x78] sm:$0xff]
    %v6651 = vld [vmem:[#allocation5 + $0x80] sm:$0xf]
    %v6652 = vld [vmem:[#allocation5 + $0x84] sm:$0xff]
    %v6653 = vld [vmem:[#allocation5 + $0x8c] sm:$0xf]
    %v6654 = vld [vmem:[#allocation5 + $0x90] sm:$0xff]
    %v6655 = vld [vmem:[#allocation5 + $0x98] sm:$0xf]
    %v6656 = vld [vmem:[#allocation5 + $0x9c] sm:$0xff]
    %v6657 = vld [vmem:[#allocation5 + $0xa4] sm:$0xf]
    %v6658 = vld [vmem:[#allocation5 + $0xa8] sm:$0xff]
    %v6659 = vld [vmem:[#allocation5 + $0xb0] sm:$0xf]
    %v6660 = vld [vmem:[#allocation5 + $0xb4] sm:$0xff]
    %v6661 = vld [vmem:[#allocation5 + $0xbc] sm:$0xf]
    %v6662 = vld [vmem:[#allocation7] sm:$0xff]
    %v6663 = vld [vmem:[#allocation7 + $0x8] sm:$0xff]
    %v6664 = vld [vmem:[#allocation7 + $0x10] sm:$0xff]
    %v6697 = vunpack.c.l.b16 %v6630
    %v6698 = vunpack.c.h.b16 %v6630
    %v6699 = vunpack.c.l.b16 %v6631
    %v6700 = vunpack.c.l.b16 %v6632
    %v6701 = vunpack.c.h.b16 %v6632
    %v6702 = vunpack.c.l.b16 %v6633
    %v6703 = vunpack.c.l.b16 %v6634
    %v6704 = vunpack.c.h.b16 %v6634
    %v6705 = vunpack.c.l.b16 %v6635
    %v6706 = vunpack.c.l.b16 %v6636
    %v6707 = vunpack.c.h.b16 %v6636
    %v6708 = vunpack.c.l.b16 %v6637
    %v6709 = vunpack.c.l.b16 %v6638
    %v6710 = vunpack.c.h.b16 %v6638
    %v6711 = vunpack.c.l.b16 %v6639
    %v6712 = vunpack.c.l.b16 %v6640
    %v6713 = vunpack.c.h.b16 %v6640
    %v6714 = vunpack.c.l.b16 %v6641
    %v6715 = vunpack.c.l.b16 %v6642
    %v6716 = vunpack.c.h.b16 %v6642
    %v6717 = vunpack.c.l.b16 %v6643
    %v6718 = vunpack.c.l.b16 %v6644
    %v6719 = vunpack.c.h.b16 %v6644
    %v6720 = vunpack.c.l.b16 %v6645
    %v6721 = vunpack.c.l.b16 %v6646
    %v6722 = vunpack.c.h.b16 %v6646
    %v6723 = vunpack.c.l.b16 %v6647
    %v6724 = vunpack.c.l.b16 %v6648
    %v6725 = vunpack.c.h.b16 %v6648
    %v6726 = vunpack.c.l.b16 %v6649
    %v6727 = vunpack.c.l.b16 %v6650
    %v6728 = vunpack.c.h.b16 %v6650
    %v6729 = vunpack.c.l.b16 %v6651
    %v6730 = vunpack.c.l.b16 %v6652
    %v6731 = vunpack.c.h.b16 %v6652
    %v6732 = vunpack.c.l.b16 %v6653
    %v6733 = vunpack.c.l.b16 %v6654
    %v6734 = vunpack.c.h.b16 %v6654
    %v6735 = vunpack.c.l.b16 %v6655
    %v6736 = vunpack.c.l.b16 %v6656
    %v6737 = vunpack.c.h.b16 %v6656
    %v6738 = vunpack.c.l.b16 %v6657
    %v6739 = vunpack.c.l.b16 %v6658
    %v6740 = vunpack.c.h.b16 %v6658
    %v6741 = vunpack.c.l.b16 %v6659
    %v6742 = vunpack.c.l.b16 %v6660
    %v6743 = vunpack.c.h.b16 %v6660
    %v6744 = vunpack.c.l.b16 %v6661
    %v6745 = vpack.c.b16 %v6700, %v6697
    %v6746 = vpack.c.b16 %v6701, %v6698
    %v6747 = vpack.c.b16 %v6702, %v6699
    %v6748 = vpack.c.b16 %v6706, %v6703
    %v6749 = vpack.c.b16 %v6707, %v6704
    %v6750 = vpack.c.b16 %v6708, %v6705
    %v6751 = vpack.c.b16 %v6712, %v6709
    %v6752 = vpack.c.b16 %v6713, %v6710
    %v6753 = vpack.c.b16 %v6714, %v6711
    %v6754 = vpack.c.b16 %v6718, %v6715
    %v6755 = vpack.c.b16 %v6719, %v6716
    %v6756 = vpack.c.b16 %v6720, %v6717
    %v6757 = vpack.c.b16 %v6724, %v6721
    %v6758 = vpack.c.b16 %v6725, %v6722
    %v6759 = vpack.c.b16 %v6726, %v6723
    %v6760 = vpack.c.b16 %v6730, %v6727
    %v6761 = vpack.c.b16 %v6731, %v6728
    %v6762 = vpack.c.b16 %v6732, %v6729
    %v6763 = vpack.c.b16 %v6736, %v6733
    %v6764 = vpack.c.b16 %v6737, %v6734
    %v6765 = vpack.c.b16 %v6738, %v6735
    %v6766 = vpack.c.b16 %v6742, %v6739
    %v6767 = vpack.c.b16 %v6743, %v6740
    %v6768 = vpack.c.b16 %v6744, %v6741
    %6793 = vmatprep.subr.bf16.mxu0 %v6746
    %6794 = vmatpush1.bf16.msra.mxu0 %v6745
    %6795 = vmatprep.subr.bf16.mxu0 %v6749
    %6796 = vmatpush1.bf16.msra.mxu0 %v6748
    %6797 = vmatprep.subr.bf16.mxu0 %v6752
    %6798 = vmatpush1.bf16.msra.mxu0 %v6751
    %6799 = vmatprep.subr.bf16.mxu0 %v6755
    %6800 = vmatpush1.bf16.msra.mxu0 %v6754
    %6801 = vmatprep.subr.bf16.mxu0 %v6758
    %6802 = vmatpush1.bf16.msra.mxu0 %v6757
    %6803 = vmatprep.subr.bf16.mxu0 %v6761
    %6804 = vmatpush1.bf16.msra.mxu0 %v6760
    %6805 = vmatprep.subr.bf16.mxu0 %v6764
    %6806 = vmatpush1.bf16.msra.mxu0 %v6763
    %6807 = vmatprep.subr.bf16.mxu0 %v6767
    %6808 = vmatpush1.bf16.msra.mxu0 %v6766
    %6809 = vmatprep.subr.bf16.mxu0 0
    %6810 = vmatpush1.bf16.msra.mxu0 0
    %6811 = vmatprep.subr.bf16.mxu0 0
    %6812 = vmatpush1.bf16.msra.mxu0 0
    %6813 = vmatprep.subr.bf16.mxu0 0
    %6814 = vmatpush1.bf16.msra.mxu0 0
    %6815 = vmatprep.subr.bf16.mxu0 0
    %6816 = vmatpush1.bf16.msra.mxu0 0
    %6817 = vmatprep.subr.bf16.mxu0 0
    %6818 = vmatpush1.bf16.msra.mxu0 0
    %6819 = vmatprep.subr.bf16.mxu0 0
    %6820 = vmatpush1.bf16.msra.mxu0 0
    %6821 = vmatprep.subr.bf16.mxu0 0
    %6822 = vmatpush1.bf16.msra.mxu0 0
    %6823 = vmatprep.subr.bf16.mxu0 0
    %6824 = vmatpush1.bf16.msra.mxu0 0
    %6825 = vmatprep.mubr.bf16.mxu0 0
    %6826 = vmatmul.mubr.bf16.gmra.mrb[0].mxu0 %v6629
    %v6827 = vpop.f32.mrb[0].mxu0
    %v6828 = vadd.f32 %v6662, %v6827
    %v6829 = vpop.f32.mrb[0].mxu0
    %v6830 = vadd.f32 %v6663, %v6829
    %v6831 = vpop.f32.mrb[0].mxu0
    %v6832 = vpop.f32.mrb[0].mxu0
    %6833 = vdwg.mxu0
    %6834 = vmatprep.subr.bf16.mxu0 0
    %6835 = vmatpush1.bf16.msra.mxu0 %v6747
    %6836 = vmatprep.subr.bf16.mxu0 0
    %6837 = vmatpush1.bf16.msra.mxu0 %v6750
    %6838 = vmatprep.subr.bf16.mxu0 0
    %6839 = vmatpush1.bf16.msra.mxu0 %v6753
    %6840 = vmatprep.subr.bf16.mxu0 0
    %6841 = vmatpush1.bf16.msra.mxu0 %v6756
    %6842 = vmatprep.subr.bf16.mxu0 0
    %6843 = vmatpush1.bf16.msra.mxu0 %v6759
    %6844 = vmatprep.subr.bf16.mxu0 0
    %6845 = vmatpush1.bf16.msra.mxu0 %v6762
    %6846 = vmatprep.subr.bf16.mxu0 0
    %6847 = vmatpush1.bf16.msra.mxu0 %v6765
    %6848 = vmatprep.subr.bf16.mxu0 0
    %6849 = vmatpush1.bf16.msra.mxu0 %v6768
    %6850 = vmatprep.subr.bf16.mxu0 0
    %6851 = vmatpush1.bf16.msra.mxu0 0
    %6852 = vmatprep.subr.bf16.mxu0 0
    %6853 = vmatpush1.bf16.msra.mxu0 0
    %6854 = vmatprep.subr.bf16.mxu0 0
    %6855 = vmatpush1.bf16.msra.mxu0 0
    %6856 = vmatprep.subr.bf16.mxu0 0
    %6857 = vmatpush1.bf16.msra.mxu0 0
    %6858 = vmatprep.subr.bf16.mxu0 0
    %6859 = vmatpush1.bf16.msra.mxu0 0
    %6860 = vmatprep.subr.bf16.mxu0 0
    %6861 = vmatpush1.bf16.msra.mxu0 0
    %6862 = vmatprep.subr.bf16.mxu0 0
    %6863 = vmatpush1.bf16.msra.mxu0 0
    %6864 = vmatprep.subr.bf16.mxu0 0
    %6865 = vmatpush1.bf16.msra.mxu0 0
    %6866 = vmatprep.mubr.bf16.mxu0 0
    %6867 = vmatmul.mubr.bf16.gmra.mrb[0].mxu0 %v6629
    %v6868 = vpop.f32.mrb[0].mxu0
    %v6869 = vadd.f32 %v6664, %v6868
    %v6870 = vpop.f32.mrb[0].mxu0
    %v6871 = vpop.f32.mrb[0].mxu0
    %v6872 = vpop.f32.mrb[0].mxu0
    %6873 = vdwg.mxu0
    %v6874 = vadd.f32 %v6828, %v6325
    %v6875 = vxor.u32 %v6874, 2147483648
    %v6876 = vmul.f32 %v6875, 1.442695
    %v6877 = vpow.pop %v6876
    %v6878 = vadd.f32 %v6877, 1.0
    %v6879 = vrcp.pop %v6878
    %v6880 = vmul.f32 1.0, %v6879
    %v6881 = vadd.f32 %v6830, %v6327
    %v6882 = vxor.u32 %v6881, 2147483648
    %v6883 = vmul.f32 %v6882, 1.442695
    %v6884 = vpow.pop %v6883
    %v6885 = vadd.f32 %v6884, 1.0
    %v6886 = vrcp.pop %v6885
    %v6887 = vmul.f32 1.0, %v6886
    %v6888 = vmul.f32 %v6880, %v6366
    %v6889 = vadd.f32 %v6869, %v6888
    %v6890 = vtanh.pop %v6889
    %v6891 = vsub.f32 1.0, %v6887
    %v6892 = vmul.f32 %v6891, %v6890
    %v6893 = vmul.f32 %v6887, %v5698
    %v6894 = vadd.f32 %v6892, %v6893
    %v6895 = vpack.c.bf16 %v6894, %v6894
    %v6896 = vld [vmem:[#allocation8] sm:$0xff]
    %v6897 = vld [vmem:[#allocation8 + $0x8] sm:$0xf]
    %v6898 = vld [vmem:[#allocation8 + $0xc] sm:$0xff]
    %v6899 = vld [vmem:[#allocation8 + $0x14] sm:$0xf]
    %v6900 = vld [vmem:[#allocation8 + $0x18] sm:$0xff]
    %v6901 = vld [vmem:[#allocation8 + $0x20] sm:$0xf]
    %v6902 = vld [vmem:[#allocation8 + $0x24] sm:$0xff]
    %v6903 = vld [vmem:[#allocation8 + $0x2c] sm:$0xf]
    %v6904 = vld [vmem:[#allocation8 + $0x30] sm:$0xff]
    %v6905 = vld [vmem:[#allocation8 + $0x38] sm:$0xf]
    %v6906 = vld [vmem:[#allocation8 + $0x3c] sm:$0xff]
    %v6907 = vld [vmem:[#allocation8 + $0x44] sm:$0xf]
    %v6908 = vld [vmem:[#allocation8 + $0x48] sm:$0xff]
    %v6909 = vld [vmem:[#allocation8 + $0x50] sm:$0xf]
    %v6910 = vld [vmem:[#allocation8 + $0x54] sm:$0xff]
    %v6911 = vld [vmem:[#allocation8 + $0x5c] sm:$0xf]
    %v6912 = vld [vmem:[#allocation8 + $0x60] sm:$0xff]
    %v6913 = vld [vmem:[#allocation8 + $0x68] sm:$0xf]
    %v6914 = vld [vmem:[#allocation8 + $0x6c] sm:$0xff]
    %v6915 = vld [vmem:[#allocation8 + $0x74] sm:$0xf]
    %v6916 = vld [vmem:[#allocation8 + $0x78] sm:$0xff]
    %v6917 = vld [vmem:[#allocation8 + $0x80] sm:$0xf]
    %v6918 = vld [vmem:[#allocation8 + $0x84] sm:$0xff]
    %v6919 = vld [vmem:[#allocation8 + $0x8c] sm:$0xf]
    %v6920 = vld [vmem:[#allocation8 + $0x90] sm:$0xff]
    %v6921 = vld [vmem:[#allocation8 + $0x98] sm:$0xf]
    %v6922 = vld [vmem:[#allocation8 + $0x9c] sm:$0xff]
    %v6923 = vld [vmem:[#allocation8 + $0xa4] sm:$0xf]
    %v6924 = vld [vmem:[#allocation8 + $0xa8] sm:$0xff]
    %v6925 = vld [vmem:[#allocation8 + $0xb0] sm:$0xf]
    %v6926 = vld [vmem:[#allocation8 + $0xb4] sm:$0xff]
    %v6927 = vld [vmem:[#allocation8 + $0xbc] sm:$0xf]
    %v6928 = vld [vmem:[%s4] sm:$0x7]
    %v6930 = vlaneseq
    %v6931 = vshrl.u32 %v6930, 7
    %v6932 = vsub.s32 0, %v6931
    %v6933 = vrot.slane %v6928, %v6932
    %v6934 = vlaneseq
    %v6935 = vshrl.u32 %v6934, 7
    %v6936 = vsub.s32 1, %v6935
    %v6937 = vrot.slane %v6928, %v6936
    %v6938 = vlaneseq
    %v6939 = vshrl.u32 %v6938, 7
    %v6940 = vsub.s32 2, %v6939
    %v6941 = vrot.slane %v6928, %v6940
    %v6977 = vunpack.c.l.b16 %v6896
    %v6978 = vunpack.c.h.b16 %v6896
    %v6979 = vunpack.c.l.b16 %v6897
    %v6980 = vunpack.c.l.b16 %v6898
    %v6981 = vunpack.c.h.b16 %v6898
    %v6982 = vunpack.c.l.b16 %v6899
    %v6983 = vunpack.c.l.b16 %v6900
    %v6984 = vunpack.c.h.b16 %v6900
    %v6985 = vunpack.c.l.b16 %v6901
    %v6986 = vunpack.c.l.b16 %v6902
    %v6987 = vunpack.c.h.b16 %v6902
    %v6988 = vunpack.c.l.b16 %v6903
    %v6989 = vunpack.c.l.b16 %v6904
    %v6990 = vunpack.c.h.b16 %v6904
    %v6991 = vunpack.c.l.b16 %v6905
    %v6992 = vunpack.c.l.b16 %v6906
    %v6993 = vunpack.c.h.b16 %v6906
    %v6994 = vunpack.c.l.b16 %v6907
    %v6995 = vunpack.c.l.b16 %v6908
    %v6996 = vunpack.c.h.b16 %v6908
    %v6997 = vunpack.c.l.b16 %v6909
    %v6998 = vunpack.c.l.b16 %v6910
    %v6999 = vunpack.c.h.b16 %v6910
    %v7000 = vunpack.c.l.b16 %v6911
    %v7001 = vunpack.c.l.b16 %v6912
    %v7002 = vunpack.c.h.b16 %v6912
    %v7003 = vunpack.c.l.b16 %v6913
    %v7004 = vunpack.c.l.b16 %v6914
    %v7005 = vunpack.c.h.b16 %v6914
    %v7006 = vunpack.c.l.b16 %v6915
    %v7007 = vunpack.c.l.b16 %v6916
    %v7008 = vunpack.c.h.b16 %v6916
    %v7009 = vunpack.c.l.b16 %v6917
    %v7010 = vunpack.c.l.b16 %v6918
    %v7011 = vunpack.c.h.b16 %v6918
    %v7012 = vunpack.c.l.b16 %v6919
    %v7013 = vunpack.c.l.b16 %v6920
    %v7014 = vunpack.c.h.b16 %v6920
    %v7015 = vunpack.c.l.b16 %v6921
    %v7016 = vunpack.c.l.b16 %v6922
    %v7017 = vunpack.c.h.b16 %v6922
    %v7018 = vunpack.c.l.b16 %v6923
    %v7019 = vunpack.c.l.b16 %v6924
    %v7020 = vunpack.c.h.b16 %v6924
    %v7021 = vunpack.c.l.b16 %v6925
    %v7022 = vunpack.c.l.b16 %v6926
    %v7023 = vunpack.c.h.b16 %v6926
    %v7024 = vunpack.c.l.b16 %v6927
    %v7025 = vpack.c.b16 %v6980, %v6977
    %v7026 = vpack.c.b16 %v6981, %v6978
    %v7027 = vpack.c.b16 %v6982, %v6979
    %v7028 = vpack.c.b16 %v6986, %v6983
    %v7029 = vpack.c.b16 %v6987, %v6984
    %v7030 = vpack.c.b16 %v6988, %v6985
    %v7031 = vpack.c.b16 %v6992, %v6989
    %v7032 = vpack.c.b16 %v6993, %v6990
    %v7033 = vpack.c.b16 %v6994, %v6991
    %v7034 = vpack.c.b16 %v6998, %v6995
    %v7035 = vpack.c.b16 %v6999, %v6996
    %v7036 = vpack.c.b16 %v7000, %v6997
    %v7037 = vpack.c.b16 %v7004, %v7001
    %v7038 = vpack.c.b16 %v7005, %v7002
    %v7039 = vpack.c.b16 %v7006, %v7003
    %v7040 = vpack.c.b16 %v7010, %v7007
    %v7041 = vpack.c.b16 %v7011, %v7008
    %v7042 = vpack.c.b16 %v7012, %v7009
    %v7043 = vpack.c.b16 %v7016, %v7013
    %v7044 = vpack.c.b16 %v7017, %v7014
    %v7045 = vpack.c.b16 %v7018, %v7015
    %v7046 = vpack.c.b16 %v7022, %v7019
    %v7047 = vpack.c.b16 %v7023, %v7020
    %v7048 = vpack.c.b16 %v7024, %v7021
    %7073 = vmatprep.subr.bf16.mxu0 %v7026
    %7074 = vmatpush1.bf16.msra.mxu0 %v7025
    %7075 = vmatprep.subr.bf16.mxu0 %v7029
    %7076 = vmatpush1.bf16.msra.mxu0 %v7028
    %7077 = vmatprep.subr.bf16.mxu0 %v7032
    %7078 = vmatpush1.bf16.msra.mxu0 %v7031
    %7079 = vmatprep.subr.bf16.mxu0 %v7035
    %7080 = vmatpush1.bf16.msra.mxu0 %v7034
    %7081 = vmatprep.subr.bf16.mxu0 %v7038
    %7082 = vmatpush1.bf16.msra.mxu0 %v7037
    %7083 = vmatprep.subr.bf16.mxu0 %v7041
    %7084 = vmatpush1.bf16.msra.mxu0 %v7040
    %7085 = vmatprep.subr.bf16.mxu0 %v7044
    %7086 = vmatpush1.bf16.msra.mxu0 %v7043
    %7087 = vmatprep.subr.bf16.mxu0 %v7047
    %7088 = vmatpush1.bf16.msra.mxu0 %v7046
    %7089 = vmatprep.subr.bf16.mxu0 0
    %7090 = vmatpush1.bf16.msra.mxu0 0
    %7091 = vmatprep.subr.bf16.mxu0 0
    %7092 = vmatpush1.bf16.msra.mxu0 0
    %7093 = vmatprep.subr.bf16.mxu0 0
    %7094 = vmatpush1.bf16.msra.mxu0 0
    %7095 = vmatprep.subr.bf16.mxu0 0
    %7096 = vmatpush1.bf16.msra.mxu0 0
    %7097 = vmatprep.subr.bf16.mxu0 0
    %7098 = vmatpush1.bf16.msra.mxu0 0
    %7099 = vmatprep.subr.bf16.mxu0 0
    %7100 = vmatpush1.bf16.msra.mxu0 0
    %7101 = vmatprep.subr.bf16.mxu0 0
    %7102 = vmatpush1.bf16.msra.mxu0 0
    %7103 = vmatprep.subr.bf16.mxu0 0
    %7104 = vmatpush1.bf16.msra.mxu0 0
    %7105 = vmatprep.mubr.bf16.mxu0 0
    %7106 = vmatmul.mubr.bf16.gmra.mrb[0].mxu0 %v6895
    %v7107 = vpop.f32.mrb[0].mxu0
    %v7108 = vadd.f32 %v6933, %v7107
    %v7109 = vpop.f32.mrb[0].mxu0
    %v7110 = vadd.f32 %v6937, %v7109
    %v7111 = vpop.f32.mrb[0].mxu0
    %v7112 = vpop.f32.mrb[0].mxu0
    %7113 = vdwg.mxu0
    %7114 = vmatprep.subr.bf16.mxu0 0
    %7115 = vmatpush1.bf16.msra.mxu0 %v7027
    %7116 = vmatprep.subr.bf16.mxu0 0
    %7117 = vmatpush1.bf16.msra.mxu0 %v7030
    %7118 = vmatprep.subr.bf16.mxu0 0
    %7119 = vmatpush1.bf16.msra.mxu0 %v7033
    %7120 = vmatprep.subr.bf16.mxu0 0
    %7121 = vmatpush1.bf16.msra.mxu0 %v7036
    %7122 = vmatprep.subr.bf16.mxu0 0
    %7123 = vmatpush1.bf16.msra.mxu0 %v7039
    %7124 = vmatprep.subr.bf16.mxu0 0
    %7125 = vmatpush1.bf16.msra.mxu0 %v7042
    %7126 = vmatprep.subr.bf16.mxu0 0
    %7127 = vmatpush1.bf16.msra.mxu0 %v7045
    %7128 = vmatprep.subr.bf16.mxu0 0
    %7129 = vmatpush1.bf16.msra.mxu0 %v7048
    %7130 = vmatprep.subr.bf16.mxu0 0
    %7131 = vmatpush1.bf16.msra.mxu0 0
    %7132 = vmatprep.subr.bf16.mxu0 0
    %7133 = vmatpush1.bf16.msra.mxu0 0
    %7134 = vmatprep.subr.bf16.mxu0 0
    %7135 = vmatpush1.bf16.msra.mxu0 0
    %7136 = vmatprep.subr.bf16.mxu0 0
    %7137 = vmatpush1.bf16.msra.mxu0 0
    %7138 = vmatprep.subr.bf16.mxu0 0
    %7139 = vmatpush1.bf16.msra.mxu0 0
    %7140 = vmatprep.subr.bf16.mxu0 0
    %7141 = vmatpush1.bf16.msra.mxu0 0
    %7142 = vmatprep.subr.bf16.mxu0 0
    %7143 = vmatpush1.bf16.msra.mxu0 0
    %7144 = vmatprep.subr.bf16.mxu0 0
    %7145 = vmatpush1.bf16.msra.mxu0 0
    %7146 = vmatprep.mubr.bf16.mxu0 0
    %7147 = vmatmul.mubr.bf16.gmra.mrb[0].mxu0 %v6895
    %v7148 = vpop.f32.mrb[0].mxu0
    %v7149 = vadd.f32 %v6941, %v7148
    %v7150 = vpop.f32.mrb[0].mxu0
    %v7151 = vpop.f32.mrb[0].mxu0
    %v7152 = vpop.f32.mrb[0].mxu0
    %7153 = vdwg.mxu0
    %v7154 = vadd.f32 %v7108, %v6583
    %v7155 = vxor.u32 %v7154, 2147483648
    %v7156 = vmul.f32 %v7155, 1.442695
    %v7157 = vpow.pop %v7156
    %v7158 = vadd.f32 %v7157, 1.0
    %v7159 = vrcp.pop %v7158
    %v7160 = vmul.f32 1.0, %v7159
    %v7161 = vadd.f32 %v7110, %v6585
    %v7162 = vxor.u32 %v7161, 2147483648
    %v7163 = vmul.f32 %v7162, 1.442695
    %v7164 = vpow.pop %v7163
    %v7165 = vadd.f32 %v7164, 1.0
    %v7166 = vrcp.pop %v7165
    %v7167 = vmul.f32 1.0, %v7166
    %v7168 = vmul.f32 %v7160, %v6624
    %v7169 = vadd.f32 %v7149, %v7168
    %v7170 = vtanh.pop %v7169
    %v7171 = vsub.f32 1.0, %v7167
    %v7172 = vmul.f32 %v7171, %v7170
    %v7173 = vmul.f32 %v7167, %v5978
    %v7174 = vadd.f32 %v7172, %v7173
    %v7175 = vpack.c.bf16 %v7174, %v7174
    %v7176 = vld [vmem:[#allocation13] sm:$0xf]
    %v7177 = vld [vmem:[#allocation13 + $0x4] sm:$0xf]
    %v7178 = vld [vmem:[#allocation13 + $0x8] sm:$0xf]
    %v7179 = vld [vmem:[#allocation13 + $0xc] sm:$0xf]
    %v7180 = vld [vmem:[#allocation13 + $0x10] sm:$0xf]
    %v7181 = vld [vmem:[#allocation13 + $0x14] sm:$0xf]
    %v7182 = vld [vmem:[#allocation13 + $0x18] sm:$0xf]
    %v7183 = vld [vmem:[#allocation13 + $0x1c] sm:$0xf]
    %v7184 = vld [vmem:[#allocation13 + $0x20] sm:$0xf]
    %v7185 = vld [vmem:[#allocation13 + $0x24] sm:$0xf]
    %v7186 = vld [vmem:[#allocation13 + $0x28] sm:$0xf]
    %v7187 = vld [vmem:[#allocation13 + $0x2c] sm:$0xf]
    %v7188 = vld [vmem:[#allocation13 + $0x30] sm:$0xf]
    %v7189 = vld [vmem:[#allocation13 + $0x34] sm:$0xf]
    %v7190 = vld [vmem:[#allocation13 + $0x38] sm:$0xf]
    %v7191 = vld [vmem:[#allocation13 + $0x3c] sm:$0xf]
    %v7192 = vld [vmem:[%s10] sm:$0x1]
    %v7194 = vlaneseq
    %v7195 = vshrl.u32 %v7194, 7
    %v7196 = vsub.s32 0, %v7195
    %v7197 = vrot.slane %v7192, %v7196
    %v7215 = vunpack.c.l.b16 %v7176
    %v7216 = vunpack.c.l.b16 %v7177
    %v7217 = vunpack.c.l.b16 %v7178
    %v7218 = vunpack.c.l.b16 %v7179
    %v7219 = vunpack.c.l.b16 %v7180
    %v7220 = vunpack.c.l.b16 %v7181
    %v7221 = vunpack.c.l.b16 %v7182
    %v7222 = vunpack.c.l.b16 %v7183
    %v7223 = vunpack.c.l.b16 %v7184
    %v7224 = vunpack.c.l.b16 %v7185
    %v7225 = vunpack.c.l.b16 %v7186
    %v7226 = vunpack.c.l.b16 %v7187
    %v7227 = vunpack.c.l.b16 %v7188
    %v7228 = vunpack.c.l.b16 %v7189
    %v7229 = vunpack.c.l.b16 %v7190
    %v7230 = vunpack.c.l.b16 %v7191
    %v7231 = vpack.c.b16 %v7216, %v7215
    %v7232 = vpack.c.b16 %v7218, %v7217
    %v7233 = vpack.c.b16 %v7220, %v7219
    %v7234 = vpack.c.b16 %v7222, %v7221
    %v7235 = vpack.c.b16 %v7224, %v7223
    %v7236 = vpack.c.b16 %v7226, %v7225
    %v7237 = vpack.c.b16 %v7228, %v7227
    %v7238 = vpack.c.b16 %v7230, %v7229
    %7247 = vmatprep.subr.bf16.mxu0 0
    %7248 = vmatpush1.bf16.msra.mxu0 %v7231
    %7249 = vmatprep.subr.bf16.mxu0 0
    %7250 = vmatpush1.bf16.msra.mxu0 %v7232
    %7251 = vmatprep.subr.bf16.mxu0 0
    %7252 = vmatpush1.bf16.msra.mxu0 %v7233
    %7253 = vmatprep.subr.bf16.mxu0 0
    %7254 = vmatpush1.bf16.msra.mxu0 %v7234
    %7255 = vmatprep.subr.bf16.mxu0 0
    %7256 = vmatpush1.bf16.msra.mxu0 %v7235
    %7257 = vmatprep.subr.bf16.mxu0 0
    %7258 = vmatpush1.bf16.msra.mxu0 %v7236
    %7259 = vmatprep.subr.bf16.mxu0 0
    %7260 = vmatpush1.bf16.msra.mxu0 %v7237
    %7261 = vmatprep.subr.bf16.mxu0 0
    %7262 = vmatpush1.bf16.msra.mxu0 %v7238
    %7263 = vmatprep.subr.bf16.mxu0 0
    %7264 = vmatpush1.bf16.msra.mxu0 0
    %7265 = vmatprep.subr.bf16.mxu0 0
    %7266 = vmatpush1.bf16.msra.mxu0 0
    %7267 = vmatprep.subr.bf16.mxu0 0
    %7268 = vmatpush1.bf16.msra.mxu0 0
    %7269 = vmatprep.subr.bf16.mxu0 0
    %7270 = vmatpush1.bf16.msra.mxu0 0
    %7271 = vmatprep.subr.bf16.mxu0 0
    %7272 = vmatpush1.bf16.msra.mxu0 0
    %7273 = vmatprep.subr.bf16.mxu0 0
    %7274 = vmatpush1.bf16.msra.mxu0 0
    %7275 = vmatprep.subr.bf16.mxu0 0
    %7276 = vmatpush1.bf16.msra.mxu0 0
    %7277 = vmatprep.subr.bf16.mxu0 0
    %7278 = vmatpush1.bf16.msra.mxu0 0
    %7279 = vmatprep.mubr.bf16.mxu0 0
    %7280 = vmatmul.mubr.bf16.gmra.mrb[0].mxu0 %v7175
    %v7281 = vpop.f32.mrb[0].mxu0
    %v7282 = vadd.f32 %v7197, %v7281
    %v7283 = vpop.f32.mrb[0].mxu0
    %v7284 = vpop.f32.mrb[0].mxu0
    %v7285 = vpop.f32.mrb[0].mxu0
    %7286 = vdwg.mxu0
    %s7287 = scalar_lea.vmem [#allocation14], 40
    %7288 = vst [vmem:[%s7287] sm:$0xff] %v7282
    %7289 = vmax.xlane.f32.xlu0 %v7282
    %v7290 = vpop.xlane.xlu0 %7289
    %vm7291 = vcmp.eq.f32.partialorder %v7282, %v7290
    %v7292 = vsel %vm7291, %v132, 128
    %v7293 = vand.u32 %v7292, 65535
    %v7294 = vshra.s32 %v7292, 16
    %v7295 = vcvt.s32.f32 %v7293
    %v7296 = vcvt.s32.f32 %v7294
    %7297 = vmin.xlane.f32.xlu0 %v7296
    %v7298 = vpop.xlane.xlu0 %7297
    %vm7299 = vcmp.eq.f32.partialorder %v7296, %v7298
    %v7300 = vsel %vm7299, %v7295, inf
    %7301 = vmin.xlane.f32.xlu0 %v7300
    %v7302 = vpop.xlane.xlu0 %7301
    %v7303 = vcvt.f32.s32 %v7302
    %v7304 = vcvt.f32.s32 %v7298
    %v7305 = vshll.u32 %v7304, 16
    %v7306 = vadd.s32 %v7305, %v7303
    %vm7307 = vcmp.eq.s32.totalorder %v132, %v7306
    %v7308 = vsel %vm7307, 1.0, 0.0
    %v7309 = vld [vmem:[#allocation10] sm:$0xff]
    %v7310 = vld [vmem:[#allocation10 + $0x8] sm:$0xf]
    %v7311 = vld [vmem:[#allocation10 + $0xc] sm:$0xff]
    %v7312 = vld [vmem:[#allocation10 + $0x14] sm:$0xf]
    %v7313 = vld [vmem:[#allocation10 + $0x18] sm:$0xff]
    %v7314 = vld [vmem:[#allocation10 + $0x20] sm:$0xf]
    %v7315 = vld [vmem:[#allocation10 + $0x24] sm:$0xff]
    %v7316 = vld [vmem:[#allocation10 + $0x2c] sm:$0xf]
    %v7317 = vld [vmem:[#allocation10 + $0x30] sm:$0xff]
    %v7318 = vld [vmem:[#allocation10 + $0x38] sm:$0xf]
    %v7319 = vld [vmem:[#allocation10 + $0x3c] sm:$0xff]
    %v7320 = vld [vmem:[#allocation10 + $0x44] sm:$0xf]
    %v7321 = vld [vmem:[#allocation10 + $0x48] sm:$0xff]
    %v7322 = vld [vmem:[#allocation10 + $0x50] sm:$0xf]
    %v7323 = vld [vmem:[#allocation10 + $0x54] sm:$0xff]
    %v7324 = vld [vmem:[#allocation10 + $0x5c] sm:$0xf]
    %v7325 = vld [vmem:[#allocation10 + $0x60] sm:$0xff]
    %v7326 = vld [vmem:[#allocation10 + $0x68] sm:$0xf]
    %v7327 = vld [vmem:[#allocation10 + $0x6c] sm:$0xff]
    %v7328 = vld [vmem:[#allocation10 + $0x74] sm:$0xf]
    %v7329 = vld [vmem:[#allocation10 + $0x78] sm:$0xff]
    %v7330 = vld [vmem:[#allocation10 + $0x80] sm:$0xf]
    %v7331 = vld [vmem:[#allocation10 + $0x84] sm:$0xff]
    %v7332 = vld [vmem:[#allocation10 + $0x8c] sm:$0xf]
    %v7333 = vld [vmem:[#allocation10 + $0x90] sm:$0xff]
    %v7334 = vld [vmem:[#allocation10 + $0x98] sm:$0xf]
    %v7335 = vld [vmem:[#allocation10 + $0x9c] sm:$0xff]
    %v7336 = vld [vmem:[#allocation10 + $0xa4] sm:$0xf]
    %v7337 = vld [vmem:[#allocation10 + $0xa8] sm:$0xff]
    %v7338 = vld [vmem:[#allocation10 + $0xb0] sm:$0xf]
    %v7339 = vld [vmem:[#allocation10 + $0xb4] sm:$0xff]
    %v7340 = vld [vmem:[#allocation10 + $0xbc] sm:$0xf]
    %v7341 = vld [vmem:[%s6] sm:$0x7]
    %v7343 = vlaneseq
    %v7344 = vshrl.u32 %v7343, 7
    %v7345 = vsub.s32 0, %v7344
    %v7346 = vrot.slane %v7341, %v7345
    %v7347 = vlaneseq
    %v7348 = vshrl.u32 %v7347, 7
    %v7349 = vsub.s32 1, %v7348
    %v7350 = vrot.slane %v7341, %v7349
    %v7351 = vlaneseq
    %v7352 = vshrl.u32 %v7351, 7
    %v7353 = vsub.s32 2, %v7352
    %v7354 = vrot.slane %v7341, %v7353
    %v7390 = vunpack.c.l.b16 %v7309
    %v7391 = vunpack.c.h.b16 %v7309
    %v7392 = vunpack.c.l.b16 %v7310
    %v7393 = vunpack.c.l.b16 %v7311
    %v7394 = vunpack.c.h.b16 %v7311
    %v7395 = vunpack.c.l.b16 %v7312
    %v7396 = vunpack.c.l.b16 %v7313
    %v7397 = vunpack.c.h.b16 %v7313
    %v7398 = vunpack.c.l.b16 %v7314
    %v7399 = vunpack.c.l.b16 %v7315
    %v7400 = vunpack.c.h.b16 %v7315
    %v7401 = vunpack.c.l.b16 %v7316
    %v7402 = vunpack.c.l.b16 %v7317
    %v7403 = vunpack.c.h.b16 %v7317
    %v7404 = vunpack.c.l.b16 %v7318
    %v7405 = vunpack.c.l.b16 %v7319
    %v7406 = vunpack.c.h.b16 %v7319
    %v7407 = vunpack.c.l.b16 %v7320
    %v7408 = vunpack.c.l.b16 %v7321
    %v7409 = vunpack.c.h.b16 %v7321
    %v7410 = vunpack.c.l.b16 %v7322
    %v7411 = vunpack.c.l.b16 %v7323
    %v7412 = vunpack.c.h.b16 %v7323
    %v7413 = vunpack.c.l.b16 %v7324
    %v7414 = vunpack.c.l.b16 %v7325
    %v7415 = vunpack.c.h.b16 %v7325
    %v7416 = vunpack.c.l.b16 %v7326
    %v7417 = vunpack.c.l.b16 %v7327
    %v7418 = vunpack.c.h.b16 %v7327
    %v7419 = vunpack.c.l.b16 %v7328
    %v7420 = vunpack.c.l.b16 %v7329
    %v7421 = vunpack.c.h.b16 %v7329
    %v7422 = vunpack.c.l.b16 %v7330
    %v7423 = vunpack.c.l.b16 %v7331
    %v7424 = vunpack.c.h.b16 %v7331
    %v7425 = vunpack.c.l.b16 %v7332
    %v7426 = vunpack.c.l.b16 %v7333
    %v7427 = vunpack.c.h.b16 %v7333
    %v7428 = vunpack.c.l.b16 %v7334
    %v7429 = vunpack.c.l.b16 %v7335
    %v7430 = vunpack.c.h.b16 %v7335
    %v7431 = vunpack.c.l.b16 %v7336
    %v7432 = vunpack.c.l.b16 %v7337
    %v7433 = vunpack.c.h.b16 %v7337
    %v7434 = vunpack.c.l.b16 %v7338
    %v7435 = vunpack.c.l.b16 %v7339
    %v7436 = vunpack.c.h.b16 %v7339
    %v7437 = vunpack.c.l.b16 %v7340
    %v7438 = vpack.c.b16 %v7393, %v7390
    %v7439 = vpack.c.b16 %v7394, %v7391
    %v7440 = vpack.c.b16 %v7395, %v7392
    %v7441 = vpack.c.b16 %v7399, %v7396
    %v7442 = vpack.c.b16 %v7400, %v7397
    %v7443 = vpack.c.b16 %v7401, %v7398
    %v7444 = vpack.c.b16 %v7405, %v7402
    %v7445 = vpack.c.b16 %v7406, %v7403
    %v7446 = vpack.c.b16 %v7407, %v7404
    %v7447 = vpack.c.b16 %v7411, %v7408
    %v7448 = vpack.c.b16 %v7412, %v7409
    %v7449 = vpack.c.b16 %v7413, %v7410
    %v7450 = vpack.c.b16 %v7417, %v7414
    %v7451 = vpack.c.b16 %v7418, %v7415
    %v7452 = vpack.c.b16 %v7419, %v7416
    %v7453 = vpack.c.b16 %v7423, %v7420
    %v7454 = vpack.c.b16 %v7424, %v7421
    %v7455 = vpack.c.b16 %v7425, %v7422
    %v7456 = vpack.c.b16 %v7429, %v7426
    %v7457 = vpack.c.b16 %v7430, %v7427
    %v7458 = vpack.c.b16 %v7431, %v7428
    %v7459 = vpack.c.b16 %v7435, %v7432
    %v7460 = vpack.c.b16 %v7436, %v7433
    %v7461 = vpack.c.b16 %v7437, %v7434
    %7486 = vmatprep.subr.bf16.mxu0 %v7439
    %7487 = vmatpush1.bf16.msra.mxu0 %v7438
    %7488 = vmatprep.subr.bf16.mxu0 %v7442
    %7489 = vmatpush1.bf16.msra.mxu0 %v7441
    %7490 = vmatprep.subr.bf16.mxu0 %v7445
    %7491 = vmatpush1.bf16.msra.mxu0 %v7444
    %7492 = vmatprep.subr.bf16.mxu0 %v7448
    %7493 = vmatpush1.bf16.msra.mxu0 %v7447
    %7494 = vmatprep.subr.bf16.mxu0 %v7451
    %7495 = vmatpush1.bf16.msra.mxu0 %v7450
    %7496 = vmatprep.subr.bf16.mxu0 %v7454
    %7497 = vmatpush1.bf16.msra.mxu0 %v7453
    %7498 = vmatprep.subr.bf16.mxu0 %v7457
    %7499 = vmatpush1.bf16.msra.mxu0 %v7456
    %7500 = vmatprep.subr.bf16.mxu0 %v7460
    %7501 = vmatpush1.bf16.msra.mxu0 %v7459
    %7502 = vmatprep.subr.bf16.mxu0 0
    %7503 = vmatpush1.bf16.msra.mxu0 0
    %7504 = vmatprep.subr.bf16.mxu0 0
    %7505 = vmatpush1.bf16.msra.mxu0 0
    %7506 = vmatprep.subr.bf16.mxu0 0
    %7507 = vmatpush1.bf16.msra.mxu0 0
    %7508 = vmatprep.subr.bf16.mxu0 0
    %7509 = vmatpush1.bf16.msra.mxu0 0
    %7510 = vmatprep.subr.bf16.mxu0 0
    %7511 = vmatpush1.bf16.msra.mxu0 0
    %7512 = vmatprep.subr.bf16.mxu0 0
    %7513 = vmatpush1.bf16.msra.mxu0 0
    %7514 = vmatprep.subr.bf16.mxu0 0
    %7515 = vmatpush1.bf16.msra.mxu0 0
    %7516 = vmatprep.subr.bf16.mxu0 0
    %7517 = vmatpush1.bf16.msra.mxu0 0
    %7518 = vmatprep.mubr.bf16.mxu0 0
    %7519 = vmatmul.mubr.bf16.gmra.mrb[0].mxu0 %v6895
    %v7520 = vpop.f32.mrb[0].mxu0
    %v7521 = vadd.f32 %v7346, %v7520
    %v7522 = vpop.f32.mrb[0].mxu0
    %v7523 = vadd.f32 %v7350, %v7522
    %v7524 = vpop.f32.mrb[0].mxu0
    %v7525 = vpop.f32.mrb[0].mxu0
    %7526 = vdwg.mxu0
    %7527 = vmatprep.subr.bf16.mxu0 0
    %7528 = vmatpush1.bf16.msra.mxu0 %v7440
    %7529 = vmatprep.subr.bf16.mxu0 0
    %7530 = vmatpush1.bf16.msra.mxu0 %v7443
    %7531 = vmatprep.subr.bf16.mxu0 0
    %7532 = vmatpush1.bf16.msra.mxu0 %v7446
    %7533 = vmatprep.subr.bf16.mxu0 0
    %7534 = vmatpush1.bf16.msra.mxu0 %v7449
    %7535 = vmatprep.subr.bf16.mxu0 0
    %7536 = vmatpush1.bf16.msra.mxu0 %v7452
    %7537 = vmatprep.subr.bf16.mxu0 0
    %7538 = vmatpush1.bf16.msra.mxu0 %v7455
    %7539 = vmatprep.subr.bf16.mxu0 0
    %7540 = vmatpush1.bf16.msra.mxu0 %v7458
    %7541 = vmatprep.subr.bf16.mxu0 0
    %7542 = vmatpush1.bf16.msra.mxu0 %v7461
    %7543 = vmatprep.subr.bf16.mxu0 0
    %7544 = vmatpush1.bf16.msra.mxu0 0
    %7545 = vmatprep.subr.bf16.mxu0 0
    %7546 = vmatpush1.bf16.msra.mxu0 0
    %7547 = vmatprep.subr.bf16.mxu0 0
    %7548 = vmatpush1.bf16.msra.mxu0 0
    %7549 = vmatprep.subr.bf16.mxu0 0
    %7550 = vmatpush1.bf16.msra.mxu0 0
    %7551 = vmatprep.subr.bf16.mxu0 0
    %7552 = vmatpush1.bf16.msra.mxu0 0
    %7553 = vmatprep.subr.bf16.mxu0 0
    %7554 = vmatpush1.bf16.msra.mxu0 0
    %7555 = vmatprep.subr.bf16.mxu0 0
    %7556 = vmatpush1.bf16.msra.mxu0 0
    %7557 = vmatprep.subr.bf16.mxu0 0
    %7558 = vmatpush1.bf16.msra.mxu0 0
    %7559 = vmatprep.mubr.bf16.mxu0 0
    %7560 = vmatmul.mubr.bf16.gmra.mrb[0].mxu0 %v6895
    %v7561 = vpop.f32.mrb[0].mxu0
    %v7562 = vadd.f32 %v7354, %v7561
    %v7563 = vpop.f32.mrb[0].mxu0
    %v7564 = vpop.f32.mrb[0].mxu0
    %v7565 = vpop.f32.mrb[0].mxu0
    %7566 = vdwg.mxu0
    %v7567 = vld [vmem:[#allocation11] sm:$0xff]
    %v7568 = vld [vmem:[#allocation11 + $0x8] sm:$0xf]
    %v7569 = vld [vmem:[#allocation11 + $0xc] sm:$0xff]
    %v7570 = vld [vmem:[#allocation11 + $0x14] sm:$0xf]
    %v7571 = vld [vmem:[#allocation11 + $0x18] sm:$0xff]
    %v7572 = vld [vmem:[#allocation11 + $0x20] sm:$0xf]
    %v7573 = vld [vmem:[#allocation11 + $0x24] sm:$0xff]
    %v7574 = vld [vmem:[#allocation11 + $0x2c] sm:$0xf]
    %v7575 = vld [vmem:[#allocation11 + $0x30] sm:$0xff]
    %v7576 = vld [vmem:[#allocation11 + $0x38] sm:$0xf]
    %v7577 = vld [vmem:[#allocation11 + $0x3c] sm:$0xff]
    %v7578 = vld [vmem:[#allocation11 + $0x44] sm:$0xf]
    %v7579 = vld [vmem:[#allocation11 + $0x48] sm:$0xff]
    %v7580 = vld [vmem:[#allocation11 + $0x50] sm:$0xf]
    %v7581 = vld [vmem:[#allocation11 + $0x54] sm:$0xff]
    %v7582 = vld [vmem:[#allocation11 + $0x5c] sm:$0xf]
    %v7583 = vld [vmem:[#allocation11 + $0x60] sm:$0xff]
    %v7584 = vld [vmem:[#allocation11 + $0x68] sm:$0xf]
    %v7585 = vld [vmem:[#allocation11 + $0x6c] sm:$0xff]
    %v7586 = vld [vmem:[#allocation11 + $0x74] sm:$0xf]
    %v7587 = vld [vmem:[#allocation11 + $0x78] sm:$0xff]
    %v7588 = vld [vmem:[#allocation11 + $0x80] sm:$0xf]
    %v7589 = vld [vmem:[#allocation11 + $0x84] sm:$0xff]
    %v7590 = vld [vmem:[#allocation11 + $0x8c] sm:$0xf]
    %v7591 = vld [vmem:[#allocation11 + $0x90] sm:$0xff]
    %v7592 = vld [vmem:[#allocation11 + $0x98] sm:$0xf]
    %v7593 = vld [vmem:[#allocation11 + $0x9c] sm:$0xff]
    %v7594 = vld [vmem:[#allocation11 + $0xa4] sm:$0xf]
    %v7595 = vld [vmem:[#allocation11 + $0xa8] sm:$0xff]
    %v7596 = vld [vmem:[#allocation11 + $0xb0] sm:$0xf]
    %v7597 = vld [vmem:[#allocation11 + $0xb4] sm:$0xff]
    %v7598 = vld [vmem:[#allocation11 + $0xbc] sm:$0xf]
    %v7599 = vld [vmem:[%s8] sm:$0x7]
    %v7601 = vlaneseq
    %v7602 = vshrl.u32 %v7601, 7
    %v7603 = vsub.s32 0, %v7602
    %v7604 = vrot.slane %v7599, %v7603
    %v7605 = vlaneseq
    %v7606 = vshrl.u32 %v7605, 7
    %v7607 = vsub.s32 1, %v7606
    %v7608 = vrot.slane %v7599, %v7607
    %v7609 = vlaneseq
    %v7610 = vshrl.u32 %v7609, 7
    %v7611 = vsub.s32 2, %v7610
    %v7612 = vrot.slane %v7599, %v7611
    %v7648 = vunpack.c.l.b16 %v7567
    %v7649 = vunpack.c.h.b16 %v7567
    %v7650 = vunpack.c.l.b16 %v7568
    %v7651 = vunpack.c.l.b16 %v7569
    %v7652 = vunpack.c.h.b16 %v7569
    %v7653 = vunpack.c.l.b16 %v7570
    %v7654 = vunpack.c.l.b16 %v7571
    %v7655 = vunpack.c.h.b16 %v7571
    %v7656 = vunpack.c.l.b16 %v7572
    %v7657 = vunpack.c.l.b16 %v7573
    %v7658 = vunpack.c.h.b16 %v7573
    %v7659 = vunpack.c.l.b16 %v7574
    %v7660 = vunpack.c.l.b16 %v7575
    %v7661 = vunpack.c.h.b16 %v7575
    %v7662 = vunpack.c.l.b16 %v7576
    %v7663 = vunpack.c.l.b16 %v7577
    %v7664 = vunpack.c.h.b16 %v7577
    %v7665 = vunpack.c.l.b16 %v7578
    %v7666 = vunpack.c.l.b16 %v7579
    %v7667 = vunpack.c.h.b16 %v7579
    %v7668 = vunpack.c.l.b16 %v7580
    %v7669 = vunpack.c.l.b16 %v7581
    %v7670 = vunpack.c.h.b16 %v7581
    %v7671 = vunpack.c.l.b16 %v7582
    %v7672 = vunpack.c.l.b16 %v7583
    %v7673 = vunpack.c.h.b16 %v7583
    %v7674 = vunpack.c.l.b16 %v7584
    %v7675 = vunpack.c.l.b16 %v7585
    %v7676 = vunpack.c.h.b16 %v7585
    %v7677 = vunpack.c.l.b16 %v7586
    %v7678 = vunpack.c.l.b16 %v7587
    %v7679 = vunpack.c.h.b16 %v7587
    %v7680 = vunpack.c.l.b16 %v7588
    %v7681 = vunpack.c.l.b16 %v7589
    %v7682 = vunpack.c.h.b16 %v7589
    %v7683 = vunpack.c.l.b16 %v7590
    %v7684 = vunpack.c.l.b16 %v7591
    %v7685 = vunpack.c.h.b16 %v7591
    %v7686 = vunpack.c.l.b16 %v7592
    %v7687 = vunpack.c.l.b16 %v7593
    %v7688 = vunpack.c.h.b16 %v7593
    %v7689 = vunpack.c.l.b16 %v7594
    %v7690 = vunpack.c.l.b16 %v7595
    %v7691 = vunpack.c.h.b16 %v7595
    %v7692 = vunpack.c.l.b16 %v7596
    %v7693 = vunpack.c.l.b16 %v7597
    %v7694 = vunpack.c.h.b16 %v7597
    %v7695 = vunpack.c.l.b16 %v7598
    %v7696 = vpack.c.b16 %v7651, %v7648
    %v7697 = vpack.c.b16 %v7652, %v7649
    %v7698 = vpack.c.b16 %v7653, %v7650
    %v7699 = vpack.c.b16 %v7657, %v7654
    %v7700 = vpack.c.b16 %v7658, %v7655
    %v7701 = vpack.c.b16 %v7659, %v7656
    %v7702 = vpack.c.b16 %v7663, %v7660
    %v7703 = vpack.c.b16 %v7664, %v7661
    %v7704 = vpack.c.b16 %v7665, %v7662
    %v7705 = vpack.c.b16 %v7669, %v7666
    %v7706 = vpack.c.b16 %v7670, %v7667
    %v7707 = vpack.c.b16 %v7671, %v7668
    %v7708 = vpack.c.b16 %v7675, %v7672
    %v7709 = vpack.c.b16 %v7676, %v7673
    %v7710 = vpack.c.b16 %v7677, %v7674
    %v7711 = vpack.c.b16 %v7681, %v7678
    %v7712 = vpack.c.b16 %v7682, %v7679
    %v7713 = vpack.c.b16 %v7683, %v7680
    %v7714 = vpack.c.b16 %v7687, %v7684
    %v7715 = vpack.c.b16 %v7688, %v7685
    %v7716 = vpack.c.b16 %v7689, %v7686
    %v7717 = vpack.c.b16 %v7693, %v7690
    %v7718 = vpack.c.b16 %v7694, %v7691
    %v7719 = vpack.c.b16 %v7695, %v7692
    %7744 = vmatprep.subr.bf16.mxu0 %v7697
    %7745 = vmatpush1.bf16.msra.mxu0 %v7696
    %7746 = vmatprep.subr.bf16.mxu0 %v7700
    %7747 = vmatpush1.bf16.msra.mxu0 %v7699
    %7748 = vmatprep.subr.bf16.mxu0 %v7703
    %7749 = vmatpush1.bf16.msra.mxu0 %v7702
    %7750 = vmatprep.subr.bf16.mxu0 %v7706
    %7751 = vmatpush1.bf16.msra.mxu0 %v7705
    %7752 = vmatprep.subr.bf16.mxu0 %v7709
    %7753 = vmatpush1.bf16.msra.mxu0 %v7708
    %7754 = vmatprep.subr.bf16.mxu0 %v7712
    %7755 = vmatpush1.bf16.msra.mxu0 %v7711
    %7756 = vmatprep.subr.bf16.mxu0 %v7715
    %7757 = vmatpush1.bf16.msra.mxu0 %v7714
    %7758 = vmatprep.subr.bf16.mxu0 %v7718
    %7759 = vmatpush1.bf16.msra.mxu0 %v7717
    %7760 = vmatprep.subr.bf16.mxu0 0
    %7761 = vmatpush1.bf16.msra.mxu0 0
    %7762 = vmatprep.subr.bf16.mxu0 0
    %7763 = vmatpush1.bf16.msra.mxu0 0
    %7764 = vmatprep.subr.bf16.mxu0 0
    %7765 = vmatpush1.bf16.msra.mxu0 0
    %7766 = vmatprep.subr.bf16.mxu0 0
    %7767 = vmatpush1.bf16.msra.mxu0 0
    %7768 = vmatprep.subr.bf16.mxu0 0
    %7769 = vmatpush1.bf16.msra.mxu0 0
    %7770 = vmatprep.subr.bf16.mxu0 0
    %7771 = vmatpush1.bf16.msra.mxu0 0
    %7772 = vmatprep.subr.bf16.mxu0 0
    %7773 = vmatpush1.bf16.msra.mxu0 0
    %7774 = vmatprep.subr.bf16.mxu0 0
    %7775 = vmatpush1.bf16.msra.mxu0 0
    %7776 = vmatprep.mubr.bf16.mxu0 0
    %7777 = vmatmul.mubr.bf16.gmra.mrb[0].mxu0 %v7175
    %v7778 = vpop.f32.mrb[0].mxu0
    %v7779 = vadd.f32 %v7604, %v7778
    %v7780 = vpop.f32.mrb[0].mxu0
    %v7781 = vadd.f32 %v7608, %v7780
    %v7782 = vpop.f32.mrb[0].mxu0
    %v7783 = vpop.f32.mrb[0].mxu0
    %7784 = vdwg.mxu0
    %7785 = vmatprep.subr.bf16.mxu0 0
    %7786 = vmatpush1.bf16.msra.mxu0 %v7698
    %7787 = vmatprep.subr.bf16.mxu0 0
    %7788 = vmatpush1.bf16.msra.mxu0 %v7701
    %7789 = vmatprep.subr.bf16.mxu0 0
    %7790 = vmatpush1.bf16.msra.mxu0 %v7704
    %7791 = vmatprep.subr.bf16.mxu0 0
    %7792 = vmatpush1.bf16.msra.mxu0 %v7707
    %7793 = vmatprep.subr.bf16.mxu0 0
    %7794 = vmatpush1.bf16.msra.mxu0 %v7710
    %7795 = vmatprep.subr.bf16.mxu0 0
    %7796 = vmatpush1.bf16.msra.mxu0 %v7713
    %7797 = vmatprep.subr.bf16.mxu0 0
    %7798 = vmatpush1.bf16.msra.mxu0 %v7716
    %7799 = vmatprep.subr.bf16.mxu0 0
    %7800 = vmatpush1.bf16.msra.mxu0 %v7719
    %7801 = vmatprep.subr.bf16.mxu0 0
    %7802 = vmatpush1.bf16.msra.mxu0 0
    %7803 = vmatprep.subr.bf16.mxu0 0
    %7804 = vmatpush1.bf16.msra.mxu0 0
    %7805 = vmatprep.subr.bf16.mxu0 0
    %7806 = vmatpush1.bf16.msra.mxu0 0
    %7807 = vmatprep.subr.bf16.mxu0 0
    %7808 = vmatpush1.bf16.msra.mxu0 0
    %7809 = vmatprep.subr.bf16.mxu0 0
    %7810 = vmatpush1.bf16.msra.mxu0 0
    %7811 = vmatprep.subr.bf16.mxu0 0
    %7812 = vmatpush1.bf16.msra.mxu0 0
    %7813 = vmatprep.subr.bf16.mxu0 0
    %7814 = vmatpush1.bf16.msra.mxu0 0
    %7815 = vmatprep.subr.bf16.mxu0 0
    %7816 = vmatpush1.bf16.msra.mxu0 0
    %7817 = vmatprep.mubr.bf16.mxu0 0
    %7818 = vmatmul.mubr.bf16.gmra.mrb[0].mxu0 %v7175
    %v7819 = vpop.f32.mrb[0].mxu0
    %v7820 = vadd.f32 %v7612, %v7819
    %v7821 = vpop.f32.mrb[0].mxu0
    %v7822 = vpop.f32.mrb[0].mxu0
    %v7823 = vpop.f32.mrb[0].mxu0
    %7824 = vdwg.mxu0
    %v7825 = vpack.c.bf16 %v7308, %v7308
    %v7826 = vld [vmem:[#allocation5] sm:$0xff]
    %v7827 = vld [vmem:[#allocation5 + $0x8] sm:$0xf]
    %v7828 = vld [vmem:[#allocation5 + $0xc] sm:$0xff]
    %v7829 = vld [vmem:[#allocation5 + $0x14] sm:$0xf]
    %v7830 = vld [vmem:[#allocation5 + $0x18] sm:$0xff]
    %v7831 = vld [vmem:[#allocation5 + $0x20] sm:$0xf]
    %v7832 = vld [vmem:[#allocation5 + $0x24] sm:$0xff]
    %v7833 = vld [vmem:[#allocation5 + $0x2c] sm:$0xf]
    %v7834 = vld [vmem:[#allocation5 + $0x30] sm:$0xff]
    %v7835 = vld [vmem:[#allocation5 + $0x38] sm:$0xf]
    %v7836 = vld [vmem:[#allocation5 + $0x3c] sm:$0xff]
    %v7837 = vld [vmem:[#allocation5 + $0x44] sm:$0xf]
    %v7838 = vld [vmem:[#allocation5 + $0x48] sm:$0xff]
    %v7839 = vld [vmem:[#allocation5 + $0x50] sm:$0xf]
    %v7840 = vld [vmem:[#allocation5 + $0x54] sm:$0xff]
    %v7841 = vld [vmem:[#allocation5 + $0x5c] sm:$0xf]
    %v7842 = vld [vmem:[#allocation5 + $0x60] sm:$0xff]
    %v7843 = vld [vmem:[#allocation5 + $0x68] sm:$0xf]
    %v7844 = vld [vmem:[#allocation5 + $0x6c] sm:$0xff]
    %v7845 = vld [vmem:[#allocation5 + $0x74] sm:$0xf]
    %v7846 = vld [vmem:[#allocation5 + $0x78] sm:$0xff]
    %v7847 = vld [vmem:[#allocation5 + $0x80] sm:$0xf]
    %v7848 = vld [vmem:[#allocation5 + $0x84] sm:$0xff]
    %v7849 = vld [vmem:[#allocation5 + $0x8c] sm:$0xf]
    %v7850 = vld [vmem:[#allocation5 + $0x90] sm:$0xff]
    %v7851 = vld [vmem:[#allocation5 + $0x98] sm:$0xf]
    %v7852 = vld [vmem:[#allocation5 + $0x9c] sm:$0xff]
    %v7853 = vld [vmem:[#allocation5 + $0xa4] sm:$0xf]
    %v7854 = vld [vmem:[#allocation5 + $0xa8] sm:$0xff]
    %v7855 = vld [vmem:[#allocation5 + $0xb0] sm:$0xf]
    %v7856 = vld [vmem:[#allocation5 + $0xb4] sm:$0xff]
    %v7857 = vld [vmem:[#allocation5 + $0xbc] sm:$0xf]
    %v7858 = vld [vmem:[#allocation7] sm:$0xff]
    %v7859 = vld [vmem:[#allocation7 + $0x8] sm:$0xff]
    %v7860 = vld [vmem:[#allocation7 + $0x10] sm:$0xff]
    %v7893 = vunpack.c.l.b16 %v7826
    %v7894 = vunpack.c.h.b16 %v7826
    %v7895 = vunpack.c.l.b16 %v7827
    %v7896 = vunpack.c.l.b16 %v7828
    %v7897 = vunpack.c.h.b16 %v7828
    %v7898 = vunpack.c.l.b16 %v7829
    %v7899 = vunpack.c.l.b16 %v7830
    %v7900 = vunpack.c.h.b16 %v7830
    %v7901 = vunpack.c.l.b16 %v7831
    %v7902 = vunpack.c.l.b16 %v7832
    %v7903 = vunpack.c.h.b16 %v7832
    %v7904 = vunpack.c.l.b16 %v7833
    %v7905 = vunpack.c.l.b16 %v7834
    %v7906 = vunpack.c.h.b16 %v7834
    %v7907 = vunpack.c.l.b16 %v7835
    %v7908 = vunpack.c.l.b16 %v7836
    %v7909 = vunpack.c.h.b16 %v7836
    %v7910 = vunpack.c.l.b16 %v7837
    %v7911 = vunpack.c.l.b16 %v7838
    %v7912 = vunpack.c.h.b16 %v7838
    %v7913 = vunpack.c.l.b16 %v7839
    %v7914 = vunpack.c.l.b16 %v7840
    %v7915 = vunpack.c.h.b16 %v7840
    %v7916 = vunpack.c.l.b16 %v7841
    %v7917 = vunpack.c.l.b16 %v7842
    %v7918 = vunpack.c.h.b16 %v7842
    %v7919 = vunpack.c.l.b16 %v7843
    %v7920 = vunpack.c.l.b16 %v7844
    %v7921 = vunpack.c.h.b16 %v7844
    %v7922 = vunpack.c.l.b16 %v7845
    %v7923 = vunpack.c.l.b16 %v7846
    %v7924 = vunpack.c.h.b16 %v7846
    %v7925 = vunpack.c.l.b16 %v7847
    %v7926 = vunpack.c.l.b16 %v7848
    %v7927 = vunpack.c.h.b16 %v7848
    %v7928 = vunpack.c.l.b16 %v7849
    %v7929 = vunpack.c.l.b16 %v7850
    %v7930 = vunpack.c.h.b16 %v7850
    %v7931 = vunpack.c.l.b16 %v7851
    %v7932 = vunpack.c.l.b16 %v7852
    %v7933 = vunpack.c.h.b16 %v7852
    %v7934 = vunpack.c.l.b16 %v7853
    %v7935 = vunpack.c.l.b16 %v7854
    %v7936 = vunpack.c.h.b16 %v7854
    %v7937 = vunpack.c.l.b16 %v7855
    %v7938 = vunpack.c.l.b16 %v7856
    %v7939 = vunpack.c.h.b16 %v7856
    %v7940 = vunpack.c.l.b16 %v7857
    %v7941 = vpack.c.b16 %v7896, %v7893
    %v7942 = vpack.c.b16 %v7897, %v7894
    %v7943 = vpack.c.b16 %v7898, %v7895
    %v7944 = vpack.c.b16 %v7902, %v7899
    %v7945 = vpack.c.b16 %v7903, %v7900
    %v7946 = vpack.c.b16 %v7904, %v7901
    %v7947 = vpack.c.b16 %v7908, %v7905
    %v7948 = vpack.c.b16 %v7909, %v7906
    %v7949 = vpack.c.b16 %v7910, %v7907
    %v7950 = vpack.c.b16 %v7914, %v7911
    %v7951 = vpack.c.b16 %v7915, %v7912
    %v7952 = vpack.c.b16 %v7916, %v7913
    %v7953 = vpack.c.b16 %v7920, %v7917
    %v7954 = vpack.c.b16 %v7921, %v7918
    %v7955 = vpack.c.b16 %v7922, %v7919
    %v7956 = vpack.c.b16 %v7926, %v7923
    %v7957 = vpack.c.b16 %v7927, %v7924
    %v7958 = vpack.c.b16 %v7928, %v7925
    %v7959 = vpack.c.b16 %v7932, %v7929
    %v7960 = vpack.c.b16 %v7933, %v7930
    %v7961 = vpack.c.b16 %v7934, %v7931
    %v7962 = vpack.c.b16 %v7938, %v7935
    %v7963 = vpack.c.b16 %v7939, %v7936
    %v7964 = vpack.c.b16 %v7940, %v7937
    %7989 = vmatprep.subr.bf16.mxu0 %v7942
    %7990 = vmatpush1.bf16.msra.mxu0 %v7941
    %7991 = vmatprep.subr.bf16.mxu0 %v7945
    %7992 = vmatpush1.bf16.msra.mxu0 %v7944
    %7993 = vmatprep.subr.bf16.mxu0 %v7948
    %7994 = vmatpush1.bf16.msra.mxu0 %v7947
    %7995 = vmatprep.subr.bf16.mxu0 %v7951
    %7996 = vmatpush1.bf16.msra.mxu0 %v7950
    %7997 = vmatprep.subr.bf16.mxu0 %v7954
    %7998 = vmatpush1.bf16.msra.mxu0 %v7953
    %7999 = vmatprep.subr.bf16.mxu0 %v7957
    %8000 = vmatpush1.bf16.msra.mxu0 %v7956
    %8001 = vmatprep.subr.bf16.mxu0 %v7960
    %8002 = vmatpush1.bf16.msra.mxu0 %v7959
    %8003 = vmatprep.subr.bf16.mxu0 %v7963
    %8004 = vmatpush1.bf16.msra.mxu0 %v7962
    %8005 = vmatprep.subr.bf16.mxu0 0
    %8006 = vmatpush1.bf16.msra.mxu0 0
    %8007 = vmatprep.subr.bf16.mxu0 0
    %8008 = vmatpush1.bf16.msra.mxu0 0
    %8009 = vmatprep.subr.bf16.mxu0 0
    %8010 = vmatpush1.bf16.msra.mxu0 0
    %8011 = vmatprep.subr.bf16.mxu0 0
    %8012 = vmatpush1.bf16.msra.mxu0 0
    %8013 = vmatprep.subr.bf16.mxu0 0
    %8014 = vmatpush1.bf16.msra.mxu0 0
    %8015 = vmatprep.subr.bf16.mxu0 0
    %8016 = vmatpush1.bf16.msra.mxu0 0
    %8017 = vmatprep.subr.bf16.mxu0 0
    %8018 = vmatpush1.bf16.msra.mxu0 0
    %8019 = vmatprep.subr.bf16.mxu0 0
    %8020 = vmatpush1.bf16.msra.mxu0 0
    %8021 = vmatprep.mubr.bf16.mxu0 0
    %8022 = vmatmul.mubr.bf16.gmra.mrb[0].mxu0 %v7825
    %v8023 = vpop.f32.mrb[0].mxu0
    %v8024 = vadd.f32 %v7858, %v8023
    %v8025 = vpop.f32.mrb[0].mxu0
    %v8026 = vadd.f32 %v7859, %v8025
    %v8027 = vpop.f32.mrb[0].mxu0
    %v8028 = vpop.f32.mrb[0].mxu0
    %8029 = vdwg.mxu0
    %8030 = vmatprep.subr.bf16.mxu0 0
    %8031 = vmatpush1.bf16.msra.mxu0 %v7943
    %8032 = vmatprep.subr.bf16.mxu0 0
    %8033 = vmatpush1.bf16.msra.mxu0 %v7946
    %8034 = vmatprep.subr.bf16.mxu0 0
    %8035 = vmatpush1.bf16.msra.mxu0 %v7949
    %8036 = vmatprep.subr.bf16.mxu0 0
    %8037 = vmatpush1.bf16.msra.mxu0 %v7952
    %8038 = vmatprep.subr.bf16.mxu0 0
    %8039 = vmatpush1.bf16.msra.mxu0 %v7955
    %8040 = vmatprep.subr.bf16.mxu0 0
    %8041 = vmatpush1.bf16.msra.mxu0 %v7958
    %8042 = vmatprep.subr.bf16.mxu0 0
    %8043 = vmatpush1.bf16.msra.mxu0 %v7961
    %8044 = vmatprep.subr.bf16.mxu0 0
    %8045 = vmatpush1.bf16.msra.mxu0 %v7964
    %8046 = vmatprep.subr.bf16.mxu0 0
    %8047 = vmatpush1.bf16.msra.mxu0 0
    %8048 = vmatprep.subr.bf16.mxu0 0
    %8049 = vmatpush1.bf16.msra.mxu0 0
    %8050 = vmatprep.subr.bf16.mxu0 0
    %8051 = vmatpush1.bf16.msra.mxu0 0
    %8052 = vmatprep.subr.bf16.mxu0 0
    %8053 = vmatpush1.bf16.msra.mxu0 0
    %8054 = vmatprep.subr.bf16.mxu0 0
    %8055 = vmatpush1.bf16.msra.mxu0 0
    %8056 = vmatprep.subr.bf16.mxu0 0
    %8057 = vmatpush1.bf16.msra.mxu0 0
    %8058 = vmatprep.subr.bf16.mxu0 0
    %8059 = vmatpush1.bf16.msra.mxu0 0
    %8060 = vmatprep.subr.bf16.mxu0 0
    %8061 = vmatpush1.bf16.msra.mxu0 0
    %8062 = vmatprep.mubr.bf16.mxu0 0
    %8063 = vmatmul.mubr.bf16.gmra.mrb[0].mxu0 %v7825
    %v8064 = vpop.f32.mrb[0].mxu0
    %v8065 = vadd.f32 %v7860, %v8064
    %v8066 = vpop.f32.mrb[0].mxu0
    %v8067 = vpop.f32.mrb[0].mxu0
    %v8068 = vpop.f32.mrb[0].mxu0
    %8069 = vdwg.mxu0
    %v8070 = vadd.f32 %v8024, %v7521
    %v8071 = vxor.u32 %v8070, 2147483648
    %v8072 = vmul.f32 %v8071, 1.442695
    %v8073 = vpow.pop %v8072
    %v8074 = vadd.f32 %v8073, 1.0
    %v8075 = vrcp.pop %v8074
    %v8076 = vmul.f32 1.0, %v8075
    %v8077 = vadd.f32 %v8026, %v7523
    %v8078 = vxor.u32 %v8077, 2147483648
    %v8079 = vmul.f32 %v8078, 1.442695
    %v8080 = vpow.pop %v8079
    %v8081 = vadd.f32 %v8080, 1.0
    %v8082 = vrcp.pop %v8081
    %v8083 = vmul.f32 1.0, %v8082
    %v8084 = vmul.f32 %v8076, %v7562
    %v8085 = vadd.f32 %v8065, %v8084
    %v8086 = vtanh.pop %v8085
    %v8087 = vsub.f32 1.0, %v8083
    %v8088 = vmul.f32 %v8087, %v8086
    %v8089 = vmul.f32 %v8083, %v6894
    %v8090 = vadd.f32 %v8088, %v8089
    %v8091 = vpack.c.bf16 %v8090, %v8090
    %v8092 = vld [vmem:[#allocation8] sm:$0xff]
    %v8093 = vld [vmem:[#allocation8 + $0x8] sm:$0xf]
    %v8094 = vld [vmem:[#allocation8 + $0xc] sm:$0xff]
    %v8095 = vld [vmem:[#allocation8 + $0x14] sm:$0xf]
    %v8096 = vld [vmem:[#allocation8 + $0x18] sm:$0xff]
    %v8097 = vld [vmem:[#allocation8 + $0x20] sm:$0xf]
    %v8098 = vld [vmem:[#allocation8 + $0x24] sm:$0xff]
    %v8099 = vld [vmem:[#allocation8 + $0x2c] sm:$0xf]
    %v8100 = vld [vmem:[#allocation8 + $0x30] sm:$0xff]
    %v8101 = vld [vmem:[#allocation8 + $0x38] sm:$0xf]
    %v8102 = vld [vmem:[#allocation8 + $0x3c] sm:$0xff]
    %v8103 = vld [vmem:[#allocation8 + $0x44] sm:$0xf]
    %v8104 = vld [vmem:[#allocation8 + $0x48] sm:$0xff]
    %v8105 = vld [vmem:[#allocation8 + $0x50] sm:$0xf]
    %v8106 = vld [vmem:[#allocation8 + $0x54] sm:$0xff]
    %v8107 = vld [vmem:[#allocation8 + $0x5c] sm:$0xf]
    %v8108 = vld [vmem:[#allocation8 + $0x60] sm:$0xff]
    %v8109 = vld [vmem:[#allocation8 + $0x68] sm:$0xf]
    %v8110 = vld [vmem:[#allocation8 + $0x6c] sm:$0xff]
    %v8111 = vld [vmem:[#allocation8 + $0x74] sm:$0xf]
    %v8112 = vld [vmem:[#allocation8 + $0x78] sm:$0xff]
    %v8113 = vld [vmem:[#allocation8 + $0x80] sm:$0xf]
    %v8114 = vld [vmem:[#allocation8 + $0x84] sm:$0xff]
    %v8115 = vld [vmem:[#allocation8 + $0x8c] sm:$0xf]
    %v8116 = vld [vmem:[#allocation8 + $0x90] sm:$0xff]
    %v8117 = vld [vmem:[#allocation8 + $0x98] sm:$0xf]
    %v8118 = vld [vmem:[#allocation8 + $0x9c] sm:$0xff]
    %v8119 = vld [vmem:[#allocation8 + $0xa4] sm:$0xf]
    %v8120 = vld [vmem:[#allocation8 + $0xa8] sm:$0xff]
    %v8121 = vld [vmem:[#allocation8 + $0xb0] sm:$0xf]
    %v8122 = vld [vmem:[#allocation8 + $0xb4] sm:$0xff]
    %v8123 = vld [vmem:[#allocation8 + $0xbc] sm:$0xf]
    %v8124 = vld [vmem:[%s4] sm:$0x7]
    %v8126 = vlaneseq
    %v8127 = vshrl.u32 %v8126, 7
    %v8128 = vsub.s32 0, %v8127
    %v8129 = vrot.slane %v8124, %v8128
    %v8130 = vlaneseq
    %v8131 = vshrl.u32 %v8130, 7
    %v8132 = vsub.s32 1, %v8131
    %v8133 = vrot.slane %v8124, %v8132
    %v8134 = vlaneseq
    %v8135 = vshrl.u32 %v8134, 7
    %v8136 = vsub.s32 2, %v8135
    %v8137 = vrot.slane %v8124, %v8136
    %v8173 = vunpack.c.l.b16 %v8092
    %v8174 = vunpack.c.h.b16 %v8092
    %v8175 = vunpack.c.l.b16 %v8093
    %v8176 = vunpack.c.l.b16 %v8094
    %v8177 = vunpack.c.h.b16 %v8094
    %v8178 = vunpack.c.l.b16 %v8095
    %v8179 = vunpack.c.l.b16 %v8096
    %v8180 = vunpack.c.h.b16 %v8096
    %v8181 = vunpack.c.l.b16 %v8097
    %v8182 = vunpack.c.l.b16 %v8098
    %v8183 = vunpack.c.h.b16 %v8098
    %v8184 = vunpack.c.l.b16 %v8099
    %v8185 = vunpack.c.l.b16 %v8100
    %v8186 = vunpack.c.h.b16 %v8100
    %v8187 = vunpack.c.l.b16 %v8101
    %v8188 = vunpack.c.l.b16 %v8102
    %v8189 = vunpack.c.h.b16 %v8102
    %v8190 = vunpack.c.l.b16 %v8103
    %v8191 = vunpack.c.l.b16 %v8104
    %v8192 = vunpack.c.h.b16 %v8104
    %v8193 = vunpack.c.l.b16 %v8105
    %v8194 = vunpack.c.l.b16 %v8106
    %v8195 = vunpack.c.h.b16 %v8106
    %v8196 = vunpack.c.l.b16 %v8107
    %v8197 = vunpack.c.l.b16 %v8108
    %v8198 = vunpack.c.h.b16 %v8108
    %v8199 = vunpack.c.l.b16 %v8109
    %v8200 = vunpack.c.l.b16 %v8110
    %v8201 = vunpack.c.h.b16 %v8110
    %v8202 = vunpack.c.l.b16 %v8111
    %v8203 = vunpack.c.l.b16 %v8112
    %v8204 = vunpack.c.h.b16 %v8112
    %v8205 = vunpack.c.l.b16 %v8113
    %v8206 = vunpack.c.l.b16 %v8114
    %v8207 = vunpack.c.h.b16 %v8114
    %v8208 = vunpack.c.l.b16 %v8115
    %v8209 = vunpack.c.l.b16 %v8116
    %v8210 = vunpack.c.h.b16 %v8116
    %v8211 = vunpack.c.l.b16 %v8117
    %v8212 = vunpack.c.l.b16 %v8118
    %v8213 = vunpack.c.h.b16 %v8118
    %v8214 = vunpack.c.l.b16 %v8119
    %v8215 = vunpack.c.l.b16 %v8120
    %v8216 = vunpack.c.h.b16 %v8120
    %v8217 = vunpack.c.l.b16 %v8121
    %v8218 = vunpack.c.l.b16 %v8122
    %v8219 = vunpack.c.h.b16 %v8122
    %v8220 = vunpack.c.l.b16 %v8123
    %v8221 = vpack.c.b16 %v8176, %v8173
    %v8222 = vpack.c.b16 %v8177, %v8174
    %v8223 = vpack.c.b16 %v8178, %v8175
    %v8224 = vpack.c.b16 %v8182, %v8179
    %v8225 = vpack.c.b16 %v8183, %v8180
    %v8226 = vpack.c.b16 %v8184, %v8181
    %v8227 = vpack.c.b16 %v8188, %v8185
    %v8228 = vpack.c.b16 %v8189, %v8186
    %v8229 = vpack.c.b16 %v8190, %v8187
    %v8230 = vpack.c.b16 %v8194, %v8191
    %v8231 = vpack.c.b16 %v8195, %v8192
    %v8232 = vpack.c.b16 %v8196, %v8193
    %v8233 = vpack.c.b16 %v8200, %v8197
    %v8234 = vpack.c.b16 %v8201, %v8198
    %v8235 = vpack.c.b16 %v8202, %v8199
    %v8236 = vpack.c.b16 %v8206, %v8203
    %v8237 = vpack.c.b16 %v8207, %v8204
    %v8238 = vpack.c.b16 %v8208, %v8205
    %v8239 = vpack.c.b16 %v8212, %v8209
    %v8240 = vpack.c.b16 %v8213, %v8210
    %v8241 = vpack.c.b16 %v8214, %v8211
    %v8242 = vpack.c.b16 %v8218, %v8215
    %v8243 = vpack.c.b16 %v8219, %v8216
    %v8244 = vpack.c.b16 %v8220, %v8217
    %8269 = vmatprep.subr.bf16.mxu0 %v8222
    %8270 = vmatpush1.bf16.msra.mxu0 %v8221
    %8271 = vmatprep.subr.bf16.mxu0 %v8225
    %8272 = vmatpush1.bf16.msra.mxu0 %v8224
    %8273 = vmatprep.subr.bf16.mxu0 %v8228
    %8274 = vmatpush1.bf16.msra.mxu0 %v8227
    %8275 = vmatprep.subr.bf16.mxu0 %v8231
    %8276 = vmatpush1.bf16.msra.mxu0 %v8230
    %8277 = vmatprep.subr.bf16.mxu0 %v8234
    %8278 = vmatpush1.bf16.msra.mxu0 %v8233
    %8279 = vmatprep.subr.bf16.mxu0 %v8237
    %8280 = vmatpush1.bf16.msra.mxu0 %v8236
    %8281 = vmatprep.subr.bf16.mxu0 %v8240
    %8282 = vmatpush1.bf16.msra.mxu0 %v8239
    %8283 = vmatprep.subr.bf16.mxu0 %v8243
    %8284 = vmatpush1.bf16.msra.mxu0 %v8242
    %8285 = vmatprep.subr.bf16.mxu0 0
    %8286 = vmatpush1.bf16.msra.mxu0 0
    %8287 = vmatprep.subr.bf16.mxu0 0
    %8288 = vmatpush1.bf16.msra.mxu0 0
    %8289 = vmatprep.subr.bf16.mxu0 0
    %8290 = vmatpush1.bf16.msra.mxu0 0
    %8291 = vmatprep.subr.bf16.mxu0 0
    %8292 = vmatpush1.bf16.msra.mxu0 0
    %8293 = vmatprep.subr.bf16.mxu0 0
    %8294 = vmatpush1.bf16.msra.mxu0 0
    %8295 = vmatprep.subr.bf16.mxu0 0
    %8296 = vmatpush1.bf16.msra.mxu0 0
    %8297 = vmatprep.subr.bf16.mxu0 0
    %8298 = vmatpush1.bf16.msra.mxu0 0
    %8299 = vmatprep.subr.bf16.mxu0 0
    %8300 = vmatpush1.bf16.msra.mxu0 0
    %8301 = vmatprep.mubr.bf16.mxu0 0
    %8302 = vmatmul.mubr.bf16.gmra.mrb[0].mxu0 %v8091
    %v8303 = vpop.f32.mrb[0].mxu0
    %v8304 = vadd.f32 %v8129, %v8303
    %v8305 = vpop.f32.mrb[0].mxu0
    %v8306 = vadd.f32 %v8133, %v8305
    %v8307 = vpop.f32.mrb[0].mxu0
    %v8308 = vpop.f32.mrb[0].mxu0
    %8309 = vdwg.mxu0
    %8310 = vmatprep.subr.bf16.mxu0 0
    %8311 = vmatpush1.bf16.msra.mxu0 %v8223
    %8312 = vmatprep.subr.bf16.mxu0 0
    %8313 = vmatpush1.bf16.msra.mxu0 %v8226
    %8314 = vmatprep.subr.bf16.mxu0 0
    %8315 = vmatpush1.bf16.msra.mxu0 %v8229
    %8316 = vmatprep.subr.bf16.mxu0 0
    %8317 = vmatpush1.bf16.msra.mxu0 %v8232
    %8318 = vmatprep.subr.bf16.mxu0 0
    %8319 = vmatpush1.bf16.msra.mxu0 %v8235
    %8320 = vmatprep.subr.bf16.mxu0 0
    %8321 = vmatpush1.bf16.msra.mxu0 %v8238
    %8322 = vmatprep.subr.bf16.mxu0 0
    %8323 = vmatpush1.bf16.msra.mxu0 %v8241
    %8324 = vmatprep.subr.bf16.mxu0 0
    %8325 = vmatpush1.bf16.msra.mxu0 %v8244
    %8326 = vmatprep.subr.bf16.mxu0 0
    %8327 = vmatpush1.bf16.msra.mxu0 0
    %8328 = vmatprep.subr.bf16.mxu0 0
    %8329 = vmatpush1.bf16.msra.mxu0 0
    %8330 = vmatprep.subr.bf16.mxu0 0
    %8331 = vmatpush1.bf16.msra.mxu0 0
    %8332 = vmatprep.subr.bf16.mxu0 0
    %8333 = vmatpush1.bf16.msra.mxu0 0
    %8334 = vmatprep.subr.bf16.mxu0 0
    %8335 = vmatpush1.bf16.msra.mxu0 0
    %8336 = vmatprep.subr.bf16.mxu0 0
    %8337 = vmatpush1.bf16.msra.mxu0 0
    %8338 = vmatprep.subr.bf16.mxu0 0
    %8339 = vmatpush1.bf16.msra.mxu0 0
    %8340 = vmatprep.subr.bf16.mxu0 0
    %8341 = vmatpush1.bf16.msra.mxu0 0
    %8342 = vmatprep.mubr.bf16.mxu0 0
    %8343 = vmatmul.mubr.bf16.gmra.mrb[0].mxu0 %v8091
    %v8344 = vpop.f32.mrb[0].mxu0
    %v8345 = vadd.f32 %v8137, %v8344
    %v8346 = vpop.f32.mrb[0].mxu0
    %v8347 = vpop.f32.mrb[0].mxu0
    %v8348 = vpop.f32.mrb[0].mxu0
    %8349 = vdwg.mxu0
    %v8350 = vadd.f32 %v8304, %v7779
    %v8351 = vxor.u32 %v8350, 2147483648
    %v8352 = vmul.f32 %v8351, 1.442695
    %v8353 = vpow.pop %v8352
    %v8354 = vadd.f32 %v8353, 1.0
    %v8355 = vrcp.pop %v8354
    %v8356 = vmul.f32 1.0, %v8355
    %v8357 = vadd.f32 %v8306, %v7781
    %v8358 = vxor.u32 %v8357, 2147483648
    %v8359 = vmul.f32 %v8358, 1.442695
    %v8360 = vpow.pop %v8359
    %v8361 = vadd.f32 %v8360, 1.0
    %v8362 = vrcp.pop %v8361
    %v8363 = vmul.f32 1.0, %v8362
    %v8364 = vmul.f32 %v8356, %v7820
    %v8365 = vadd.f32 %v8345, %v8364
    %v8366 = vtanh.pop %v8365
    %v8367 = vsub.f32 1.0, %v8363
    %v8368 = vmul.f32 %v8367, %v8366
    %v8369 = vmul.f32 %v8363, %v7174
    %v8370 = vadd.f32 %v8368, %v8369
    %v8371 = vpack.c.bf16 %v8370, %v8370
    %v8372 = vld [vmem:[#allocation13] sm:$0xf]
    %v8373 = vld [vmem:[#allocation13 + $0x4] sm:$0xf]
    %v8374 = vld [vmem:[#allocation13 + $0x8] sm:$0xf]
    %v8375 = vld [vmem:[#allocation13 + $0xc] sm:$0xf]
    %v8376 = vld [vmem:[#allocation13 + $0x10] sm:$0xf]
    %v8377 = vld [vmem:[#allocation13 + $0x14] sm:$0xf]
    %v8378 = vld [vmem:[#allocation13 + $0x18] sm:$0xf]
    %v8379 = vld [vmem:[#allocation13 + $0x1c] sm:$0xf]
    %v8380 = vld [vmem:[#allocation13 + $0x20] sm:$0xf]
    %v8381 = vld [vmem:[#allocation13 + $0x24] sm:$0xf]
    %v8382 = vld [vmem:[#allocation13 + $0x28] sm:$0xf]
    %v8383 = vld [vmem:[#allocation13 + $0x2c] sm:$0xf]
    %v8384 = vld [vmem:[#allocation13 + $0x30] sm:$0xf]
    %v8385 = vld [vmem:[#allocation13 + $0x34] sm:$0xf]
    %v8386 = vld [vmem:[#allocation13 + $0x38] sm:$0xf]
    %v8387 = vld [vmem:[#allocation13 + $0x3c] sm:$0xf]
    %v8388 = vld [vmem:[%s10] sm:$0x1]
    %v8390 = vlaneseq
    %v8391 = vshrl.u32 %v8390, 7
    %v8392 = vsub.s32 0, %v8391
    %v8393 = vrot.slane %v8388, %v8392
    %v8411 = vunpack.c.l.b16 %v8372
    %v8412 = vunpack.c.l.b16 %v8373
    %v8413 = vunpack.c.l.b16 %v8374
    %v8414 = vunpack.c.l.b16 %v8375
    %v8415 = vunpack.c.l.b16 %v8376
    %v8416 = vunpack.c.l.b16 %v8377
    %v8417 = vunpack.c.l.b16 %v8378
    %v8418 = vunpack.c.l.b16 %v8379
    %v8419 = vunpack.c.l.b16 %v8380
    %v8420 = vunpack.c.l.b16 %v8381
    %v8421 = vunpack.c.l.b16 %v8382
    %v8422 = vunpack.c.l.b16 %v8383
    %v8423 = vunpack.c.l.b16 %v8384
    %v8424 = vunpack.c.l.b16 %v8385
    %v8425 = vunpack.c.l.b16 %v8386
    %v8426 = vunpack.c.l.b16 %v8387
    %v8427 = vpack.c.b16 %v8412, %v8411
    %v8428 = vpack.c.b16 %v8414, %v8413
    %v8429 = vpack.c.b16 %v8416, %v8415
    %v8430 = vpack.c.b16 %v8418, %v8417
    %v8431 = vpack.c.b16 %v8420, %v8419
    %v8432 = vpack.c.b16 %v8422, %v8421
    %v8433 = vpack.c.b16 %v8424, %v8423
    %v8434 = vpack.c.b16 %v8426, %v8425
    %8443 = vmatprep.subr.bf16.mxu0 0
    %8444 = vmatpush1.bf16.msra.mxu0 %v8427
    %8445 = vmatprep.subr.bf16.mxu0 0
    %8446 = vmatpush1.bf16.msra.mxu0 %v8428
    %8447 = vmatprep.subr.bf16.mxu0 0
    %8448 = vmatpush1.bf16.msra.mxu0 %v8429
    %8449 = vmatprep.subr.bf16.mxu0 0
    %8450 = vmatpush1.bf16.msra.mxu0 %v8430
    %8451 = vmatprep.subr.bf16.mxu0 0
    %8452 = vmatpush1.bf16.msra.mxu0 %v8431
    %8453 = vmatprep.subr.bf16.mxu0 0
    %8454 = vmatpush1.bf16.msra.mxu0 %v8432
    %8455 = vmatprep.subr.bf16.mxu0 0
    %8456 = vmatpush1.bf16.msra.mxu0 %v8433
    %8457 = vmatprep.subr.bf16.mxu0 0
    %8458 = vmatpush1.bf16.msra.mxu0 %v8434
    %8459 = vmatprep.subr.bf16.mxu0 0
    %8460 = vmatpush1.bf16.msra.mxu0 0
    %8461 = vmatprep.subr.bf16.mxu0 0
    %8462 = vmatpush1.bf16.msra.mxu0 0
    %8463 = vmatprep.subr.bf16.mxu0 0
    %8464 = vmatpush1.bf16.msra.mxu0 0
    %8465 = vmatprep.subr.bf16.mxu0 0
    %8466 = vmatpush1.bf16.msra.mxu0 0
    %8467 = vmatprep.subr.bf16.mxu0 0
    %8468 = vmatpush1.bf16.msra.mxu0 0
    %8469 = vmatprep.subr.bf16.mxu0 0
    %8470 = vmatpush1.bf16.msra.mxu0 0
    %8471 = vmatprep.subr.bf16.mxu0 0
    %8472 = vmatpush1.bf16.msra.mxu0 0
    %8473 = vmatprep.subr.bf16.mxu0 0
    %8474 = vmatpush1.bf16.msra.mxu0 0
    %8475 = vmatprep.mubr.bf16.mxu0 0
    %8476 = vmatmul.mubr.bf16.gmra.mrb[0].mxu0 %v8371
    %v8477 = vpop.f32.mrb[0].mxu0
    %v8478 = vadd.f32 %v8393, %v8477
    %v8479 = vpop.f32.mrb[0].mxu0
    %v8480 = vpop.f32.mrb[0].mxu0
    %v8481 = vpop.f32.mrb[0].mxu0
    %8482 = vdwg.mxu0
    %s8483 = scalar_lea.vmem [#allocation14], 48
    %8484 = vst [vmem:[%s8483] sm:$0xff] %v8478
    // Predicated region
    $region74: #{tpu_custom_call.1} parent=1 // pred_check
      _
    $region75: #{tpu_custom_call.1} parent=1 // pred_check_branch
      %8486 = sbr.rel (0) target = $region77
    $region76: #{tpu_custom_call.1} parent=1 // pred_region
      %s8488 = ssub.s32 896, 896
      %8489 = vsyncadd [#allocation4], %s8488
      %s8490 = sshll.u32 [#allocation14], 4
      %s8491 = int_to_ptr.vmem [resolvable:$true] %s8490
      %8496 = dma.vmem_to_hbm [thread:$0]  %s8491, 896, %s11, [#allocation4], 128, 128, 8
    $region77: #{tpu_custom_call.1} parent=1 // pred_fallthru
      _
    // Predicated region
    $region78: #{tpu_custom_call.1} parent=1 // pred_check
      _
    $region79: #{tpu_custom_call.1} parent=1 // pred_check_branch
      %8498 = sbr.rel (0) target = $region81
    $region80: #{tpu_custom_call.1} parent=1 // pred_region
      %8499 = dma.done [#allocation4], 896
    $region81: #{tpu_custom_call.1} parent=1 // pred_fallthru
      _
    %8500 = vsyncpa [#allocation3], 1
    %8501 = vsyncpa [#allocation6], 1
    %8502 = vsyncpa [#allocation9], 1
    %8503 = vsyncpa [#allocation12], 1
    %8504 = vsyncpa [#allocation4], 1

</llo_original>
